<compile_context>
chip_gen: v7x
topology: tpu7x:2x2x1
jax: 0.10.0
libtpu: 0.0.40
codegen_flags: <defaults>
</compile_context>

<pallas_src>
import functools

import jax
import jax.numpy as jnp
from jax.experimental import pallas as pl
from jax.experimental.pallas import tpu as pltpu

BN_EPS = 1e-5
LANES = 128
CONV_OPERAND_DTYPE = jnp.bfloat16      # matmul operand dtype (f32 accumulation)


# ---------------------------------------------------------------------------
# Kernel helpers
# ---------------------------------------------------------------------------
def _zero_halo(pad_ref):
    """Zero only the 1-pixel halo ring; done once, reused by both convs."""
    n, hp2, wp2, c = pad_ref.shape
    h, w = hp2 - 2, wp2 - 2
    dt = pad_ref.dtype
    pad_ref[:, 0:1, :, :] = jnp.zeros((n, 1, wp2, c), dt)
    pad_ref[:, h + 1:h + 2, :, :] = jnp.zeros((n, 1, wp2, c), dt)
    pad_ref[:, 1:h + 1, 0:1, :] = jnp.zeros((n, h, 1, c), dt)
    pad_ref[:, 1:h + 1, w + 1:w + 2, :] = jnp.zeros((n, h, 1, c), dt)


def _bn_relu_conv3x3(x4d, scale, shift, w, bias, pad_ref):
    """Folded-BN affine -> ReLU -> 3x3 same conv as ONE im2col matmul.

    x4d:   (N, H, W', Cpk) f32 activations in the W-packed layout
    scale/shift/bias: (1, Cpk) f32
    w:     (9*Cpk, Cpk) packed weight (bf16 or f32), rows ordered (ky, kx, cin)
    pad_ref: (N, H+2, W'+2, Cpk) f32 VMEM scratch, halo ring already zero
    returns (N*H*W', Cpk) f32
    """
    n, hp2, wp2, c = pad_ref.shape
    h, wd = hp2 - 2, wp2 - 2

    a = jnp.maximum(x4d * scale + shift, 0.0)
    pad_ref[:, 1:h + 1, 1:wd + 1, :] = a          # interior written once

    # im2col: 9 lane-dense taps concatenated along channels -> one matmul
    # with K = 9*Cpk.  Operands cast to bf16 right before the dot.
    taps = [pad_ref[:, ky:ky + h, kx:kx + wd, :]
            for ky in range(3) for kx in range(3)]
    patches = jnp.concatenate(taps, axis=-1).reshape(n * h * wd, 9 * c)
    patches = patches.astype(w.dtype)
    return jnp.dot(patches, w, preferred_element_type=jnp.float32) + bias


def _fused_kernel(x_ref, gsum_ref,
                  g1_ref, be1_ref, w1_ref, b1_ref,
                  g2_ref, be2_ref, w2_ref, b2_ref,
                  o_ref, pad_ref, *, inv_count, eps):
    """Whole block: bn1 stats -> conv1 -> bn2 stats -> conv2 -> +x."""
    n, h, wd, c = x_ref.shape
    m = n * h * wd

    _zero_halo(pad_ref)

    x = x_ref[...]
    x2 = x.reshape(m, c)

    def batch_stats(v2d):
        # Row-reduce to (1, Cpk) sums / sums-of-squares, then one tiny matmul
        # against the 0/1 group-sum matrix: it sums the P packed pixel groups
        # of each real channel and re-broadcasts the per-channel total to
        # every packed lane of that channel (padded lanes stay 0).
        rows = jnp.concatenate(
            [jnp.sum(v2d, axis=0, keepdims=True),
             jnp.sum(v2d * v2d, axis=0, keepdims=True)], axis=0)  # (2, Cpk)
        tot = jnp.dot(rows, gsum_ref[...], preferred_element_type=jnp.float32)
        mean = tot[0:1, :] * inv_count
        var = jnp.maximum(tot[1:2, :] * inv_count - mean * mean, 0.0)
        return mean, var

    def fold(gamma, beta, mean, var):
        scale = gamma * jax.lax.rsqrt(var + eps)
        return scale, beta - mean * scale

    # ---- stage 1: y1 = conv_1(relu(bn_1(x)))
    mean1, var1 = batch_stats(x2)
    sc1, sh1 = fold(g1_ref[...], be1_ref[...], mean1, var1)
    y1 = _bn_relu_conv3x3(x, sc1, sh1, w1_ref[...], b1_ref[...], pad_ref)

    # ---- stage 2: out = conv_2(relu(bn_2(y1))) + x   (stats from f32 y1)
    mean2, var2 = batch_stats(y1)
    sc2, sh2 = fold(g2_ref[...], be2_ref[...], mean2, var2)
    y2 = _bn_relu_conv3x3(y1.reshape(n, h, wd, c), sc2, sh2,
                          w2_ref[...], b2_ref[...], pad_ref)

    o_ref[...] = y2.reshape(n, h, wd, c) + x


# ---------------------------------------------------------------------------
# Wrapper-side packing helpers
# ---------------------------------------------------------------------------
def _round_up(v, m):
    return ((v + m - 1) // m) * m


def _choose_pack(C, W):
    """Largest P with P*C <= 128 (at least 1) that divides W."""
    P = max(1, min(LANES // max(C, 1), W))
    while W % P:
        P -= 1
    return P


def _pack_conv_weight(w_oihw, C, P, Cpk, dtype):
    """(Cout, Cin, 3, 3) -> (9*Cpk, Cpk) weight for the W-packed layout.

    Packed channel index = pixel_in_group * C + channel.  For output pixel po
    and original kx offset dx-1, the source pixel q = po + dx - 1 lives in the
    same packed group (kx_p=1), the left neighbour group's last pixel
    (kx_p=0), or the right neighbour group's first pixel (kx_p=2).
    """
    w = jnp.transpose(w_oihw.astype(jnp.float32), (2, 3, 1, 0))  # (ky,kx,ci,co)
    wp = jnp.zeros((3, 3, Cpk, Cpk), jnp.float32)
    for po in range(P):
        for dx in range(3):
            q = po + dx - 1
            if q < 0:
                kxp, pi = 0, P - 1
            elif q >= P:
                kxp, pi = 2, 0
            else:
                kxp, pi = 1, q
            wp = wp.at[:, kxp, pi * C:(pi + 1) * C,
                       po * C:(po + 1) * C].set(w[:, dx])
    return wp.reshape(9 * Cpk, Cpk).astype(dtype)


def _tile_vec(v, P, Cpk):
    t = jnp.tile(v.astype(jnp.float32), P)
    return jnp.pad(t, (0, Cpk - t.shape[0])).reshape(1, Cpk)


def _group_sum_matrix(C, P, Cpk):
    i = jnp.arange(Cpk)
    real = i < P * C
    same = (i[:, None] % C) == (i[None, :] % C)
    return (same & real[:, None] & real[None, :]).astype(jnp.float32)


# ---------------------------------------------------------------------------
# Forward pass
# ---------------------------------------------------------------------------
def pre_activation_residual_block(x_nchw, params, eps=BN_EPS):
    """Forward pass of PreActivationResidualBlock. x_nchw: (N, C, H, W)."""
    N, C, H, W = x_nchw.shape
    P = _choose_pack(C, W)
    Wq = W // P
    Cpk = _round_up(P * C, LANES)
    count = N * H * W                       # BN sample count per channel
    m = N * H * Wq                          # matmul rows per conv
    opbytes = jnp.dtype(CONV_OPERAND_DTYPE).itemsize

    # NHWC, then space-to-depth on W: (N,H,W,C) -> (N,H,W/P,P*C) -> pad lanes.
    x = jnp.transpose(x_nchw, (0, 2, 3, 1)).astype(jnp.float32)
    x = x.reshape(N, H, Wq, P * C)
    x = jnp.pad(x, ((0, 0), (0, 0), (0, 0), (0, Cpk - P * C)))

    gsum = _group_sum_matrix(C, P, Cpk)
    g1, be1 = _tile_vec(params["g1"], P, Cpk), _tile_vec(params["be1"], P, Cpk)
    g2, be2 = _tile_vec(params["g2"], P, Cpk), _tile_vec(params["be2"], P, Cpk)
    b1, b2 = _tile_vec(params["b1"], P, Cpk), _tile_vec(params["b2"], P, Cpk)
    w1 = _pack_conv_weight(params["w1"], C, P, Cpk, CONV_OPERAND_DTYPE)
    w2 = _pack_conv_weight(params["w2"], C, P, Cpk, CONV_OPERAND_DTYPE)

    # Fused single-call path requires the whole batch resident in VMEM.
    vmem_needed = (2 * m * Cpk * 4                         # x + out blocks
                   + N * (H + 2) * (Wq + 2) * Cpk * 4      # padded scratch
                   + 2 * 9 * Cpk * Cpk * opbytes           # packed weights
                   + Cpk * Cpk * 4                         # group-sum matrix
                   + m * 9 * Cpk * (4 + opbytes)           # im2col temporaries
                   + m * Cpk * 4)                          # y1 value
    assert vmem_needed < 40 * 1024 * 1024, (
        "activation too large for the fused single-call path")
    # TODO(synk): H-banded two-stage fallback for larger activations.

    act_spec = pl.BlockSpec((N, H, Wq, Cpk), lambda i: (0, 0, 0, 0))
    vec_spec = pl.BlockSpec((1, Cpk), lambda i: (0, 0))
    w_spec = pl.BlockSpec((9 * Cpk, Cpk), lambda i: (0, 0))
    sq_spec = pl.BlockSpec((Cpk, Cpk), lambda i: (0, 0))

    conv_flops = 2 * (2 * m * 9 * Cpk * Cpk) + 2 * (2 * 2 * Cpk * Cpk)
    bytes_accessed = (2 * m * Cpk * 4 + 2 * 9 * Cpk * Cpk * opbytes
                      + Cpk * Cpk * 4)

    kernel = functools.partial(_fused_kernel,
                               inv_count=1.0 / float(count), eps=eps)

    out = pl.pallas_call(
        kernel,
        out_shape=jax.ShapeDtypeStruct((N, H, Wq, Cpk), jnp.float32),
        grid=(1,),
        in_specs=[act_spec, sq_spec,
                  vec_spec, vec_spec, w_spec, vec_spec,
                  vec_spec, vec_spec, w_spec, vec_spec],
        out_specs=act_spec,
        scratch_shapes=[pltpu.VMEM((N, H + 2, Wq + 2, Cpk), jnp.float32)],
        input_output_aliases={0: 0},            # reuse packed-x HBM buffer
        compiler_params=pltpu.CompilerParams(
            dimension_semantics=("arbitrary",),
            vmem_limit_bytes=32 * 1024 * 1024),
        cost_estimate=pl.CostEstimate(flops=conv_flops,
                                      transcendentals=2 * Cpk,
                                      bytes_accessed=bytes_accessed),
    )(x, gsum, g1, be1, w1, b1, g2, be2, w2, b2)

    # Undo lane packing / padding, back to NCHW.
    out = out[..., :P * C].reshape(N, H, W, C)
    return jnp.transpose(out, (0, 3, 1, 2))


# ---------------------------------------------------------------------------
# Pure-JAX reference (training-mode BN, matches the PyTorch forward)
# ---------------------------------------------------------------------------
def _reference_forward(x, params, eps=BN_EPS):
    def bn(t, g, b):
        mean = jnp.mean(t, axis=(0, 2, 3), keepdims=True)
        var = jnp.mean(jnp.square(t - mean), axis=(0, 2, 3), keepdims=True)
        return ((t - mean) * jax.lax.rsqrt(var + eps)
                * g.reshape(1, -1, 1, 1) + b.reshape(1, -1, 1, 1))

    def conv(t, w, b):
        y = jax.lax.conv_general_dilated(
            t, w, window_strides=(1, 1), padding=((1, 1), (1, 1)),
            dimension_numbers=("NCHW", "OIHW", "NCHW"),
            precision=jax.lax.Precision.HIGHEST)
        return y + b.reshape(1, -1, 1, 1)

    out = conv(jnp.maximum(bn(x, params["g1"], params["be1"]), 0.0),
               params["w1"], params["b1"])
    out = conv(jnp.maximum(bn(out, params["g2"], params["be2"]), 0.0),
               params["w2"], params["b2"])
    return out + x


def make_params(key, C):
    ks = jax.random.split(key, 8)
    n = lambda k, shape, s=0.1: s * jax.random.normal(k, shape, jnp.float32)
    return {
        "g1": 1.0 + n(ks[0], (C,)), "be1": n(ks[1], (C,), 0.05),
        "w1": n(ks[2], (C, C, 3, 3)), "b1": n(ks[3], (C,), 0.05),
        "g2": 1.0 + n(ks[4], (C,)), "be2": n(ks[5], (C,), 0.05),
        "w2": n(ks[6], (C, C, 3, 3)), "b2": n(ks[7], (C,), 0.05),
    }


if __name__ == "__main__":
    key = jax.random.PRNGKey(0)
    N, C, H, W = 2, 16, 16, 16

    pkey, xkey = jax.random.split(key)
    params = make_params(pkey, C)
    x = jax.random.normal(xkey, (N, C, H, W), jnp.float32)

    fwd = jax.jit(pre_activation_residual_block)
    out = jax.block_until_ready(fwd(x, params))
    assert out.shape == (N, C, H, W)
    assert bool(jnp.all(jnp.isfinite(out)))

    ref = _reference_forward(x, params)
    # bf16 matmul operands (f32 accumulation) deviate ~1e-2 max from the f32
    # reference at these scales; CONV_OPERAND_DTYPE=float32 recovers 5e-3.
    tol = 2e-2 if CONV_OPERAND_DTYPE == jnp.bfloat16 else 5e-3
    max_err = float(jnp.max(jnp.abs(out - ref)))
    assert bool(jnp.allclose(out, ref, rtol=tol, atol=tol)), max_err

    print("KERNEL_OK")
</pallas_src>

<mosaic_0001>
module attributes {stable_mosaic.version = 11 : i64} {
  func.func @_fused_kernel(%arg0: i32, %arg1: memref<2x16x2x128xf32, #tpu.memory_space<vmem>>, %arg2: memref<128x128xf32, #tpu.memory_space<vmem>>, %arg3: memref<1x128xf32, #tpu.memory_space<vmem>>, %arg4: memref<1x128xf32, #tpu.memory_space<vmem>>, %arg5: memref<1152x128xbf16, #tpu.memory_space<vmem>>, %arg6: memref<1x128xf32, #tpu.memory_space<vmem>>, %arg7: memref<1x128xf32, #tpu.memory_space<vmem>>, %arg8: memref<1x128xf32, #tpu.memory_space<vmem>>, %arg9: memref<1152x128xbf16, #tpu.memory_space<vmem>>, %arg10: memref<1x128xf32, #tpu.memory_space<vmem>>, %arg11: memref<2x16x2x128xf32, #tpu.memory_space<vmem>>, %arg12: memref<2x18x4x128xf32, #tpu.memory_space<vmem>>) attributes {dimension_semantics = [#tpu.dimension_semantics<arbitrary>], iteration_bounds = array<i64: 1>, scalar_prefetch = 0 : i64, scratch_operands = 1 : i64, tpu.core_type = #tpu.core_type<tc>, window_params = [{pipeline_mode = #tpu.pipeline_mode<synchronous>, transform_indices = @transform_0, window_bounds = array<i64: 2, 16, 2, 128>}, {pipeline_mode = #tpu.pipeline_mode<synchronous>, transform_indices = @transform_1, window_bounds = array<i64: 128, 128>}, {pipeline_mode = #tpu.pipeline_mode<synchronous>, transform_indices = @transform_2, window_bounds = array<i64: 1, 128>}, {pipeline_mode = #tpu.pipeline_mode<synchronous>, transform_indices = @transform_3, window_bounds = array<i64: 1, 128>}, {pipeline_mode = #tpu.pipeline_mode<synchronous>, transform_indices = @transform_4, window_bounds = array<i64: 1152, 128>}, {pipeline_mode = #tpu.pipeline_mode<synchronous>, transform_indices = @transform_5, window_bounds = array<i64: 1, 128>}, {pipeline_mode = #tpu.pipeline_mode<synchronous>, transform_indices = @transform_6, window_bounds = array<i64: 1, 128>}, {pipeline_mode = #tpu.pipeline_mode<synchronous>, transform_indices = @transform_7, window_bounds = array<i64: 1, 128>}, {pipeline_mode = #tpu.pipeline_mode<synchronous>, transform_indices = @transform_8, window_bounds = array<i64: 1152, 128>}, {pipeline_mode = #tpu.pipeline_mode<synchronous>, transform_indices = @transform_9, window_bounds = array<i64: 1, 128>}, {pipeline_mode = #tpu.pipeline_mode<synchronous>, transform_indices = @transform_10, window_bounds = array<i64: 2, 16, 2, 128>}]} {
    %cst = arith.constant 0.000000e+00 : f32
    %0 = vector.broadcast %cst : f32 to vector<2x1x4x128xf32>
    %c0 = arith.constant 0 : index
    %c0_0 = arith.constant 0 : index
    %c0_1 = arith.constant 0 : index
    %c0_2 = arith.constant 0 : index
    %1 = vector.load %arg12[%c0, %c0_0, %c0_1, %c0_2] : memref<2x18x4x128xf32, #tpu.memory_space<vmem>>, vector<2x1x4x128xf32>
    tpu.vector_store %arg12[%c0, %c0_0, %c0_1, %c0_2], %0 {strides = array<i32>} : memref<2x18x4x128xf32, #tpu.memory_space<vmem>>, vector<2x1x4x128xf32>,
    %cst_3 = arith.constant 0.000000e+00 : f32
    %2 = vector.broadcast %cst_3 : f32 to vector<2x1x4x128xf32>
    %c0_4 = arith.constant 0 : index
    %c17 = arith.constant 17 : index
    %c0_5 = arith.constant 0 : index
    %c0_6 = arith.constant 0 : index
    %3 = vector.load %arg12[%c0_4, %c17, %c0_5, %c0_6] : memref<2x18x4x128xf32, #tpu.memory_space<vmem>>, vector<2x1x4x128xf32>
    tpu.vector_store %arg12[%c0_4, %c17, %c0_5, %c0_6], %2 {strides = array<i32>} : memref<2x18x4x128xf32, #tpu.memory_space<vmem>>, vector<2x1x4x128xf32>,
    %cst_7 = arith.constant 0.000000e+00 : f32
    %4 = vector.broadcast %cst_7 : f32 to vector<2x16x1x128xf32>
    %c0_8 = arith.constant 0 : index
    %c1 = arith.constant 1 : index
    %c0_9 = arith.constant 0 : index
    %c0_10 = arith.constant 0 : index
    %5 = vector.load %arg12[%c0_8, %c1, %c0_9, %c0_10] : memref<2x18x4x128xf32, #tpu.memory_space<vmem>>, vector<2x16x1x128xf32>
    tpu.vector_store %arg12[%c0_8, %c1, %c0_9, %c0_10], %4 {strides = array<i32>} : memref<2x18x4x128xf32, #tpu.memory_space<vmem>>, vector<2x16x1x128xf32>,
    %cst_11 = arith.constant 0.000000e+00 : f32
    %6 = vector.broadcast %cst_11 : f32 to vector<2x16x1x128xf32>
    %c0_12 = arith.constant 0 : index
    %c1_13 = arith.constant 1 : index
    %c3 = arith.constant 3 : index
    %c0_14 = arith.constant 0 : index
    %7 = vector.load %arg12[%c0_12, %c1_13, %c3, %c0_14] : memref<2x18x4x128xf32, #tpu.memory_space<vmem>>, vector<2x16x1x128xf32>
    tpu.vector_store %arg12[%c0_12, %c1_13, %c3, %c0_14], %6 {strides = array<i32>} : memref<2x18x4x128xf32, #tpu.memory_space<vmem>>, vector<2x16x1x128xf32>,
    %c0_15 = arith.constant 0 : index
    %c0_16 = arith.constant 0 : index
    %c0_17 = arith.constant 0 : index
    %c0_18 = arith.constant 0 : index
    %8 = vector.load %arg1[%c0_15, %c0_16, %c0_17, %c0_18] : memref<2x16x2x128xf32, #tpu.memory_space<vmem>>, vector<2x16x2x128xf32>
    %9 = vector.shape_cast %8 : vector<2x16x2x128xf32> to vector<64x128xf32>
    %cst_19 = arith.constant dense<0.000000e+00> : vector<128xf32>
    %10 = vector.multi_reduction <add>, %9, %cst_19 [0] : vector<64x128xf32> to vector<128xf32>
    %11 = vector.shape_cast %10 : vector<128xf32> to vector<1x128xf32>
    %12 = arith.mulf %9, %9 : vector<64x128xf32>
    %cst_20 = arith.constant dense<0.000000e+00> : vector<128xf32>
    %13 = vector.multi_reduction <add>, %12, %cst_20 [0] : vector<64x128xf32> to vector<128xf32>
    %14 = vector.shape_cast %13 : vector<128xf32> to vector<1x128xf32>
    %15 = tpu.concatenate %11, %14 in 0 : vector<1x128xf32>, vector<1x128xf32> -> vector<2x128xf32>
    %c0_21 = arith.constant 0 : index
    %c0_22 = arith.constant 0 : index
    %16 = vector.load %arg2[%c0_21, %c0_22] : memref<128x128xf32, #tpu.memory_space<vmem>>, vector<128x128xf32>
    %cst_23 = arith.constant dense<0.000000e+00> : vector<2x128xf32>
    %17 = tpu.matmul %15, %16, %cst_23 {dimension_numbers = #tpu.dot_dimension_numbers<[1], [0], [0], [1], [0, 0, 1, 1], [], []>} : vector<2x128xf32>, vector<128x128xf32>, vector<2x128xf32> -> vector<2x128xf32>
    %18 = vector.extract_strided_slice %17 {offsets = [0, 0], sizes = [1, 128], strides = [1, 1]} : vector<2x128xf32> to vector<1x128xf32>
    %cst_24 = arith.constant 0.001953125 : f32
    %19 = vector.broadcast %cst_24 : f32 to vector<1x128xf32>
    %20 = arith.mulf %18, %19 : vector<1x128xf32>
    %21 = vector.extract_strided_slice %17 {offsets = [1, 0], sizes = [1, 128], strides = [1, 1]} : vector<2x128xf32> to vector<1x128xf32>
    %cst_25 = arith.constant 0.001953125 : f32
    %22 = vector.broadcast %cst_25 : f32 to vector<1x128xf32>
    %23 = arith.mulf %21, %22 : vector<1x128xf32>
    %24 = arith.mulf %20, %20 : vector<1x128xf32>
    %25 = arith.subf %23, %24 : vector<1x128xf32>
    %cst_26 = arith.constant 0.000000e+00 : f32
    %26 = vector.broadcast %cst_26 : f32 to vector<1x128xf32>
    %27 = arith.maximumf %25, %26 : vector<1x128xf32>
    %c0_27 = arith.constant 0 : index
    %c0_28 = arith.constant 0 : index
    %28 = vector.load %arg3[%c0_27, %c0_28] : memref<1x128xf32, #tpu.memory_space<vmem>>, vector<1x128xf32>
    %c0_29 = arith.constant 0 : index
    %c0_30 = arith.constant 0 : index
    %29 = vector.load %arg4[%c0_29, %c0_30] : memref<1x128xf32, #tpu.memory_space<vmem>>, vector<1x128xf32>
    %cst_31 = arith.constant 9.99999974E-6 : f32
    %30 = vector.broadcast %cst_31 : f32 to vector<1x128xf32>
    %31 = arith.addf %27, %30 : vector<1x128xf32>
    %32 = math.rsqrt %31 : vector<1x128xf32>
    %33 = arith.mulf %28, %32 : vector<1x128xf32>
    %34 = arith.mulf %20, %33 : vector<1x128xf32>
    %35 = arith.subf %29, %34 : vector<1x128xf32>
    %c0_32 = arith.constant 0 : index
    %c0_33 = arith.constant 0 : index
    %36 = vector.load %arg5[%c0_32, %c0_33] : memref<1152x128xbf16, #tpu.memory_space<vmem>>, vector<1152x128xbf16>
    %c0_34 = arith.constant 0 : index
    %c0_35 = arith.constant 0 : index
    %37 = vector.load %arg6[%c0_34, %c0_35] : memref<1x128xf32, #tpu.memory_space<vmem>>, vector<1x128xf32>
    %38 = vector.shape_cast %33 : vector<1x128xf32> to vector<1x1x1x128xf32>
    %39 = vector.broadcast %38 : vector<1x1x1x128xf32> to vector<2x16x2x128xf32>
    %40 = arith.mulf %8, %39 : vector<2x16x2x128xf32>
    %41 = vector.shape_cast %35 : vector<1x128xf32> to vector<1x1x1x128xf32>
    %42 = vector.broadcast %41 : vector<1x1x1x128xf32> to vector<2x16x2x128xf32>
    %43 = arith.addf %40, %42 : vector<2x16x2x128xf32>
    %cst_36 = arith.constant 0.000000e+00 : f32
    %44 = vector.broadcast %cst_36 : f32 to vector<2x16x2x128xf32>
    %45 = arith.maximumf %43, %44 : vector<2x16x2x128xf32>
    %c0_37 = arith.constant 0 : index
    %c1_38 = arith.constant 1 : index
    %c1_39 = arith.constant 1 : index
    %c0_40 = arith.constant 0 : index
    %46 = vector.load %arg12[%c0_37, %c1_38, %c1_39, %c0_40] : memref<2x18x4x128xf32, #tpu.memory_space<vmem>>, vector<2x16x2x128xf32>
    tpu.vector_store %arg12[%c0_37, %c1_38, %c1_39, %c0_40], %45 {strides = array<i32>} : memref<2x18x4x128xf32, #tpu.memory_space<vmem>>, vector<2x16x2x128xf32>,
    %c0_41 = arith.constant 0 : index
    %c0_42 = arith.constant 0 : index
    %c0_43 = arith.constant 0 : index
    %c0_44 = arith.constant 0 : index
    %47 = vector.load %arg12[%c0_41, %c0_42, %c0_43, %c0_44] : memref<2x18x4x128xf32, #tpu.memory_space<vmem>>, vector<2x16x2x128xf32>
    %c0_45 = arith.constant 0 : index
    %c0_46 = arith.constant 0 : index
    %c1_47 = arith.constant 1 : index
    %c0_48 = arith.constant 0 : index
    %48 = vector.load %arg12[%c0_45, %c0_46, %c1_47, %c0_48] : memref<2x18x4x128xf32, #tpu.memory_space<vmem>>, vector<2x16x2x128xf32>
    %c0_49 = arith.constant 0 : index
    %c0_50 = arith.constant 0 : index
    %c2 = arith.constant 2 : index
    %c0_51 = arith.constant 0 : index
    %49 = vector.load %arg12[%c0_49, %c0_50, %c2, %c0_51] : memref<2x18x4x128xf32, #tpu.memory_space<vmem>>, vector<2x16x2x128xf32>
    %c0_52 = arith.constant 0 : index
    %c1_53 = arith.constant 1 : index
    %c0_54 = arith.constant 0 : index
    %c0_55 = arith.constant 0 : index
    %50 = vector.load %arg12[%c0_52, %c1_53, %c0_54, %c0_55] : memref<2x18x4x128xf32, #tpu.memory_space<vmem>>, vector<2x16x2x128xf32>
    %c0_56 = arith.constant 0 : index
    %c1_57 = arith.constant 1 : index
    %c1_58 = arith.constant 1 : index
    %c0_59 = arith.constant 0 : index
    %51 = vector.load %arg12[%c0_56, %c1_57, %c1_58, %c0_59] : memref<2x18x4x128xf32, #tpu.memory_space<vmem>>, vector<2x16x2x128xf32>
    %c0_60 = arith.constant 0 : index
    %c1_61 = arith.constant 1 : index
    %c2_62 = arith.constant 2 : index
    %c0_63 = arith.constant 0 : index
    %52 = vector.load %arg12[%c0_60, %c1_61, %c2_62, %c0_63] : memref<2x18x4x128xf32, #tpu.memory_space<vmem>>, vector<2x16x2x128xf32>
    %c0_64 = arith.constant 0 : index
    %c2_65 = arith.constant 2 : index
    %c0_66 = arith.constant 0 : index
    %c0_67 = arith.constant 0 : index
    %53 = vector.load %arg12[%c0_64, %c2_65, %c0_66, %c0_67] : memref<2x18x4x128xf32, #tpu.memory_space<vmem>>, vector<2x16x2x128xf32>
    %c0_68 = arith.constant 0 : index
    %c2_69 = arith.constant 2 : index
    %c1_70 = arith.constant 1 : index
    %c0_71 = arith.constant 0 : index
    %54 = vector.load %arg12[%c0_68, %c2_69, %c1_70, %c0_71] : memref<2x18x4x128xf32, #tpu.memory_space<vmem>>, vector<2x16x2x128xf32>
    %c0_72 = arith.constant 0 : index
    %c2_73 = arith.constant 2 : index
    %c2_74 = arith.constant 2 : index
    %c0_75 = arith.constant 0 : index
    %55 = vector.load %arg12[%c0_72, %c2_73, %c2_74, %c0_75] : memref<2x18x4x128xf32, #tpu.memory_space<vmem>>, vector<2x16x2x128xf32>
    %56 = tpu.concatenate %47, %48, %49, %50, %51, %52, %53, %54, %55 in 3 : vector<2x16x2x128xf32>, vector<2x16x2x128xf32>, vector<2x16x2x128xf32>, vector<2x16x2x128xf32>, vector<2x16x2x128xf32>, vector<2x16x2x128xf32>, vector<2x16x2x128xf32>, vector<2x16x2x128xf32>, vector<2x16x2x128xf32> -> vector<2x16x2x1152xf32>
    %57 = vector.shape_cast %56 : vector<2x16x2x1152xf32> to vector<64x1152xf32>
    %58 = arith.truncf %57 : vector<64x1152xf32> to vector<64x1152xbf16>
    %cst_76 = arith.constant dense<0.000000e+00> : vector<64x128xf32>
    %59 = tpu.matmul %58, %36, %cst_76 {dimension_numbers = #tpu.dot_dimension_numbers<[1], [0], [0], [1], [0, 0, 1, 1], [], []>} : vector<64x1152xbf16>, vector<1152x128xbf16>, vector<64x128xf32> -> vector<64x128xf32>
    %60 = vector.broadcast %37 : vector<1x128xf32> to vector<64x128xf32>
    %61 = arith.addf %59, %60 : vector<64x128xf32>
    %cst_77 = arith.constant dense<0.000000e+00> : vector<128xf32>
    %62 = vector.multi_reduction <add>, %61, %cst_77 [0] : vector<64x128xf32> to vector<128xf32>
    %63 = vector.shape_cast %62 : vector<128xf32> to vector<1x128xf32>
    %64 = arith.mulf %61, %61 : vector<64x128xf32>
    %cst_78 = arith.constant dense<0.000000e+00> : vector<128xf32>
    %65 = vector.multi_reduction <add>, %64, %cst_78 [0] : vector<64x128xf32> to vector<128xf32>
    %66 = vector.shape_cast %65 : vector<128xf32> to vector<1x128xf32>
    %67 = tpu.concatenate %63, %66 in 0 : vector<1x128xf32>, vector<1x128xf32> -> vector<2x128xf32>
    %c0_79 = arith.constant 0 : index
    %c0_80 = arith.constant 0 : index
    %68 = vector.load %arg2[%c0_79, %c0_80] : memref<128x128xf32, #tpu.memory_space<vmem>>, vector<128x128xf32>
    %cst_81 = arith.constant dense<0.000000e+00> : vector<2x128xf32>
    %69 = tpu.matmul %67, %68, %cst_81 {dimension_numbers = #tpu.dot_dimension_numbers<[1], [0], [0], [1], [0, 0, 1, 1], [], []>} : vector<2x128xf32>, vector<128x128xf32>, vector<2x128xf32> -> vector<2x128xf32>
    %70 = vector.extract_strided_slice %69 {offsets = [0, 0], sizes = [1, 128], strides = [1, 1]} : vector<2x128xf32> to vector<1x128xf32>
    %cst_82 = arith.constant 0.001953125 : f32
    %71 = vector.broadcast %cst_82 : f32 to vector<1x128xf32>
    %72 = arith.mulf %70, %71 : vector<1x128xf32>
    %73 = vector.extract_strided_slice %69 {offsets = [1, 0], sizes = [1, 128], strides = [1, 1]} : vector<2x128xf32> to vector<1x128xf32>
    %cst_83 = arith.constant 0.001953125 : f32
    %74 = vector.broadcast %cst_83 : f32 to vector<1x128xf32>
    %75 = arith.mulf %73, %74 : vector<1x128xf32>
    %76 = arith.mulf %72, %72 : vector<1x128xf32>
    %77 = arith.subf %75, %76 : vector<1x128xf32>
    %cst_84 = arith.constant 0.000000e+00 : f32
    %78 = vector.broadcast %cst_84 : f32 to vector<1x128xf32>
    %79 = arith.maximumf %77, %78 : vector<1x128xf32>
    %c0_85 = arith.constant 0 : index
    %c0_86 = arith.constant 0 : index
    %80 = vector.load %arg7[%c0_85, %c0_86] : memref<1x128xf32, #tpu.memory_space<vmem>>, vector<1x128xf32>
    %c0_87 = arith.constant 0 : index
    %c0_88 = arith.constant 0 : index
    %81 = vector.load %arg8[%c0_87, %c0_88] : memref<1x128xf32, #tpu.memory_space<vmem>>, vector<1x128xf32>
    %cst_89 = arith.constant 9.99999974E-6 : f32
    %82 = vector.broadcast %cst_89 : f32 to vector<1x128xf32>
    %83 = arith.addf %79, %82 : vector<1x128xf32>
    %84 = math.rsqrt %83 : vector<1x128xf32>
    %85 = arith.mulf %80, %84 : vector<1x128xf32>
    %86 = arith.mulf %72, %85 : vector<1x128xf32>
    %87 = arith.subf %81, %86 : vector<1x128xf32>
    %88 = vector.shape_cast %61 : vector<64x128xf32> to vector<2x16x2x128xf32>
    %c0_90 = arith.constant 0 : index
    %c0_91 = arith.constant 0 : index
    %89 = vector.load %arg9[%c0_90, %c0_91] : memref<1152x128xbf16, #tpu.memory_space<vmem>>, vector<1152x128xbf16>
    %c0_92 = arith.constant 0 : index
    %c0_93 = arith.constant 0 : index
    %90 = vector.load %arg10[%c0_92, %c0_93] : memref<1x128xf32, #tpu.memory_space<vmem>>, vector<1x128xf32>
    %91 = vector.shape_cast %85 : vector<1x128xf32> to vector<1x1x1x128xf32>
    %92 = vector.broadcast %91 : vector<1x1x1x128xf32> to vector<2x16x2x128xf32>
    %93 = arith.mulf %88, %92 : vector<2x16x2x128xf32>
    %94 = vector.shape_cast %87 : vector<1x128xf32> to vector<1x1x1x128xf32>
    %95 = vector.broadcast %94 : vector<1x1x1x128xf32> to vector<2x16x2x128xf32>
    %96 = arith.addf %93, %95 : vector<2x16x2x128xf32>
    %cst_94 = arith.constant 0.000000e+00 : f32
    %97 = vector.broadcast %cst_94 : f32 to vector<2x16x2x128xf32>
    %98 = arith.maximumf %96, %97 : vector<2x16x2x128xf32>
    %c0_95 = arith.constant 0 : index
    %c1_96 = arith.constant 1 : index
    %c1_97 = arith.constant 1 : index
    %c0_98 = arith.constant 0 : index
    %99 = vector.load %arg12[%c0_95, %c1_96, %c1_97, %c0_98] : memref<2x18x4x128xf32, #tpu.memory_space<vmem>>, vector<2x16x2x128xf32>
    tpu.vector_store %arg12[%c0_95, %c1_96, %c1_97, %c0_98], %98 {strides = array<i32>} : memref<2x18x4x128xf32, #tpu.memory_space<vmem>>, vector<2x16x2x128xf32>,
    %c0_99 = arith.constant 0 : index
    %c0_100 = arith.constant 0 : index
    %c0_101 = arith.constant 0 : index
    %c0_102 = arith.constant 0 : index
    %100 = vector.load %arg12[%c0_99, %c0_100, %c0_101, %c0_102] : memref<2x18x4x128xf32, #tpu.memory_space<vmem>>, vector<2x16x2x128xf32>
    %c0_103 = arith.constant 0 : index
    %c0_104 = arith.constant 0 : index
    %c1_105 = arith.constant 1 : index
    %c0_106 = arith.constant 0 : index
    %101 = vector.load %arg12[%c0_103, %c0_104, %c1_105, %c0_106] : memref<2x18x4x128xf32, #tpu.memory_space<vmem>>, vector<2x16x2x128xf32>
    %c0_107 = arith.constant 0 : index
    %c0_108 = arith.constant 0 : index
    %c2_109 = arith.constant 2 : index
    %c0_110 = arith.constant 0 : index
    %102 = vector.load %arg12[%c0_107, %c0_108, %c2_109, %c0_110] : memref<2x18x4x128xf32, #tpu.memory_space<vmem>>, vector<2x16x2x128xf32>
    %c0_111 = arith.constant 0 : index
    %c1_112 = arith.constant 1 : index
    %c0_113 = arith.constant 0 : index
    %c0_114 = arith.constant 0 : index
    %103 = vector.load %arg12[%c0_111, %c1_112, %c0_113, %c0_114] : memref<2x18x4x128xf32, #tpu.memory_space<vmem>>, vector<2x16x2x128xf32>
    %c0_115 = arith.constant 0 : index
    %c1_116 = arith.constant 1 : index
    %c1_117 = arith.constant 1 : index
    %c0_118 = arith.constant 0 : index
    %104 = vector.load %arg12[%c0_115, %c1_116, %c1_117, %c0_118] : memref<2x18x4x128xf32, #tpu.memory_space<vmem>>, vector<2x16x2x128xf32>
    %c0_119 = arith.constant 0 : index
    %c1_120 = arith.constant 1 : index
    %c2_121 = arith.constant 2 : index
    %c0_122 = arith.constant 0 : index
    %105 = vector.load %arg12[%c0_119, %c1_120, %c2_121, %c0_122] : memref<2x18x4x128xf32, #tpu.memory_space<vmem>>, vector<2x16x2x128xf32>
    %c0_123 = arith.constant 0 : index
    %c2_124 = arith.constant 2 : index
    %c0_125 = arith.constant 0 : index
    %c0_126 = arith.constant 0 : index
    %106 = vector.load %arg12[%c0_123, %c2_124, %c0_125, %c0_126] : memref<2x18x4x128xf32, #tpu.memory_space<vmem>>, vector<2x16x2x128xf32>
    %c0_127 = arith.constant 0 : index
    %c2_128 = arith.constant 2 : index
    %c1_129 = arith.constant 1 : index
    %c0_130 = arith.constant 0 : index
    %107 = vector.load %arg12[%c0_127, %c2_128, %c1_129, %c0_130] : memref<2x18x4x128xf32, #tpu.memory_space<vmem>>, vector<2x16x2x128xf32>
    %c0_131 = arith.constant 0 : index
    %c2_132 = arith.constant 2 : index
    %c2_133 = arith.constant 2 : index
    %c0_134 = arith.constant 0 : index
    %108 = vector.load %arg12[%c0_131, %c2_132, %c2_133, %c0_134] : memref<2x18x4x128xf32, #tpu.memory_space<vmem>>, vector<2x16x2x128xf32>
    %109 = tpu.concatenate %100, %101, %102, %103, %104, %105, %106, %107, %108 in 3 : vector<2x16x2x128xf32>, vector<2x16x2x128xf32>, vector<2x16x2x128xf32>, vector<2x16x2x128xf32>, vector<2x16x2x128xf32>, vector<2x16x2x128xf32>, vector<2x16x2x128xf32>, vector<2x16x2x128xf32>, vector<2x16x2x128xf32> -> vector<2x16x2x1152xf32>
    %110 = vector.shape_cast %109 : vector<2x16x2x1152xf32> to vector<64x1152xf32>
    %111 = arith.truncf %110 : vector<64x1152xf32> to vector<64x1152xbf16>
    %cst_135 = arith.constant dense<0.000000e+00> : vector<64x128xf32>
    %112 = tpu.matmul %111, %89, %cst_135 {dimension_numbers = #tpu.dot_dimension_numbers<[1], [0], [0], [1], [0, 0, 1, 1], [], []>} : vector<64x1152xbf16>, vector<1152x128xbf16>, vector<64x128xf32> -> vector<64x128xf32>
    %113 = vector.broadcast %90 : vector<1x128xf32> to vector<64x128xf32>
    %114 = arith.addf %112, %113 : vector<64x128xf32>
    %115 = vector.shape_cast %114 : vector<64x128xf32> to vector<2x16x2x128xf32>
    %116 = arith.addf %115, %8 : vector<2x16x2x128xf32>
    %c0_136 = arith.constant 0 : index
    %c0_137 = arith.constant 0 : index
    %c0_138 = arith.constant 0 : index
    %c0_139 = arith.constant 0 : index
    %117 = vector.load %arg11[%c0_136, %c0_137, %c0_138, %c0_139] : memref<2x16x2x128xf32, #tpu.memory_space<vmem>>, vector<2x16x2x128xf32>
    tpu.vector_store %arg11[%c0_136, %c0_137, %c0_138, %c0_139], %116 {strides = array<i32>} : memref<2x16x2x128xf32, #tpu.memory_space<vmem>>, vector<2x16x2x128xf32>,
    return
  }
  func.func @transform_0(%arg0: i32) -> (i32, i32, i32, i32) {
    %c0_i32 = arith.constant 0 : i32
    %c0_i32_0 = arith.constant 0 : i32
    %c0_i32_1 = arith.constant 0 : i32
    %c0_i32_2 = arith.constant 0 : i32
    %c0_i32_3 = arith.constant 0 : i32
    return %c0_i32, %c0_i32_0, %c0_i32_1, %c0_i32_2 : i32, i32, i32, i32
  }
  func.func @transform_1(%arg0: i32) -> (i32, i32) {
    %c0_i32 = arith.constant 0 : i32
    %c0_i32_0 = arith.constant 0 : i32
    %c0_i32_1 = arith.constant 0 : i32
    return %c0_i32, %c0_i32_0 : i32, i32
  }
  func.func @transform_2(%arg0: i32) -> (i32, i32) {
    %c0_i32 = arith.constant 0 : i32
    %c0_i32_0 = arith.constant 0 : i32
    %c0_i32_1 = arith.constant 0 : i32
    return %c0_i32, %c0_i32_0 : i32, i32
  }
  func.func @transform_3(%arg0: i32) -> (i32, i32) {
    %c0_i32 = arith.constant 0 : i32
    %c0_i32_0 = arith.constant 0 : i32
    %c0_i32_1 = arith.constant 0 : i32
    return %c0_i32, %c0_i32_0 : i32, i32
  }
  func.func @transform_4(%arg0: i32) -> (i32, i32) {
    %c0_i32 = arith.constant 0 : i32
    %c0_i32_0 = arith.constant 0 : i32
    %c0_i32_1 = arith.constant 0 : i32
    return %c0_i32, %c0_i32_0 : i32, i32
  }
  func.func @transform_5(%arg0: i32) -> (i32, i32) {
    %c0_i32 = arith.constant 0 : i32
    %c0_i32_0 = arith.constant 0 : i32
    %c0_i32_1 = arith.constant 0 : i32
    return %c0_i32, %c0_i32_0 : i32, i32
  }
  func.func @transform_6(%arg0: i32) -> (i32, i32) {
    %c0_i32 = arith.constant 0 : i32
    %c0_i32_0 = arith.constant 0 : i32
    %c0_i32_1 = arith.constant 0 : i32
    return %c0_i32, %c0_i32_0 : i32, i32
  }
  func.func @transform_7(%arg0: i32) -> (i32, i32) {
    %c0_i32 = arith.constant 0 : i32
    %c0_i32_0 = arith.constant 0 : i32
    %c0_i32_1 = arith.constant 0 : i32
    return %c0_i32, %c0_i32_0 : i32, i32
  }
  func.func @transform_8(%arg0: i32) -> (i32, i32) {
    %c0_i32 = arith.constant 0 : i32
    %c0_i32_0 = arith.constant 0 : i32
    %c0_i32_1 = arith.constant 0 : i32
    return %c0_i32, %c0_i32_0 : i32, i32
  }
  func.func @transform_9(%arg0: i32) -> (i32, i32) {
    %c0_i32 = arith.constant 0 : i32
    %c0_i32_0 = arith.constant 0 : i32
    %c0_i32_1 = arith.constant 0 : i32
    return %c0_i32, %c0_i32_0 : i32, i32
  }
  func.func @transform_10(%arg0: i32) -> (i32, i32, i32, i32) {
    %c0_i32 = arith.constant 0 : i32
    %c0_i32_0 = arith.constant 0 : i32
    %c0_i32_1 = arith.constant 0 : i32
    %c0_i32_2 = arith.constant 0 : i32
    %c0_i32_3 = arith.constant 0 : i32
    return %c0_i32, %c0_i32_0, %c0_i32_1, %c0_i32_2 : i32, i32, i32, i32
  }
}

</mosaic_0001>

<llo_original>
// kernel: tile.33
$region0: #{tile.33}
  #allocation0 [shape = 's32[1]{0}', space=sflag, size = 0x4, scoped, tag = 'scoped memory for tile.33']
  %s0 = inlined_call_operand.vmem [shape: f32[16], index: 0, kind: input, shape index: {}]
  %s1 = inlined_call_operand.vmem [shape: f32[8,16], index: 1, kind: output, shape index: {}]
  // Predicated region
  $region2: #{tile.33} parent=0 // pred_check
    _
  $region3: #{tile.33} parent=0 // pred_check_branch
    %3 = sbr.rel (0) target = $region5
  $region4: #{tile.33} parent=0 // pred_region
    _
  $region5: #{tile.33} parent=0 // pred_fallthru
    _
  %v4 = vld [vmem:[%s0] ss:$0 sm:$0xff]
  %5 = vst [vmem:[%s1] sm:$0xff] %v4

// kernel: pre_activation_residual_block.1
$region0: #{pre_activation_residual_block.1}
  #allocation0 [shape = 'u32[]', space=smem, size = 0x4, offset = 0x4, fixed_abs, tag = 'smem constant byte address 0x4 - core index']
  #allocation1 [shape = 'u32[144,128]{1,0:T(1,128)}', space=vmem, size = 0x12000, scoped, tag = 'internal scratch']
  #allocation2 [shape = 'f32[2,18,4,128]{3,2,1,0:T(4,128)}', space=vmem, size = 0x12000, scoped, tag = 'scratch operand']
  %s0 = inlined_call_operand.vmem [shape: f32[2,16,2,128], index: 0, kind: input, shape index: {}, may-alias: {0,10}]
  %s1 = inlined_call_operand.vmem [shape: f32[128,128], index: 1, kind: input, shape index: {}]
  %s2 = inlined_call_operand.vmem [shape: f32[1,128], index: 2, kind: input, shape index: {}]
  %s3 = inlined_call_operand.vmem [shape: f32[1,128], index: 3, kind: input, shape index: {}]
  %s4 = inlined_call_operand.vmem [shape: bf16[1152,128], index: 4, kind: input, shape index: {}]
  %s5 = inlined_call_operand.vmem [shape: f32[1,128], index: 5, kind: input, shape index: {}]
  %s6 = inlined_call_operand.vmem [shape: f32[1,128], index: 6, kind: input, shape index: {}]
  %s7 = inlined_call_operand.vmem [shape: f32[1,128], index: 7, kind: input, shape index: {}]
  %s8 = inlined_call_operand.vmem [shape: bf16[1152,128], index: 8, kind: input, shape index: {}]
  %s9 = inlined_call_operand.vmem [shape: f32[1,128], index: 9, kind: input, shape index: {}]
  %s10 = inlined_call_operand.vmem [shape: f32[2,16,2,128], index: 10, kind: output, shape index: {}, may-alias: {0,10}]
  %s11 = sld [smem:[#allocation0]]
  $region50: #{pre_activation_residual_block.1} parent=0
    _
  %s13 = ssub.s32 1, %s11
  %s14 = scalar_select 0, %s13, %s11
  // Predicated region
  $region2: #{pre_activation_residual_block.1} parent=0 // pred_check
    _
  $region3: #{pre_activation_residual_block.1} parent=0 // pred_check_branch
    %16 = sbr.rel (0) target = $region5
  $region4: #{pre_activation_residual_block.1} parent=0 // pred_region
    _
  $region5: #{pre_activation_residual_block.1} parent=0 // pred_fallthru
    _
  // Predicated region
  $region6: #{pre_activation_residual_block.1} parent=0 // pred_check
    _
  $region7: #{pre_activation_residual_block.1} parent=0 // pred_check_branch
    %18 = sbr.rel (0) target = $region9
  $region8: #{pre_activation_residual_block.1} parent=0 // pred_region
    _
  $region9: #{pre_activation_residual_block.1} parent=0 // pred_fallthru
    _
  // Predicated region
  $region10: #{pre_activation_residual_block.1} parent=0 // pred_check
    _
  $region11: #{pre_activation_residual_block.1} parent=0 // pred_check_branch
    %20 = sbr.rel (0) target = $region13
  $region12: #{pre_activation_residual_block.1} parent=0 // pred_region
    _
  $region13: #{pre_activation_residual_block.1} parent=0 // pred_fallthru
    _
  // Predicated region
  $region14: #{pre_activation_residual_block.1} parent=0 // pred_check
    _
  $region15: #{pre_activation_residual_block.1} parent=0 // pred_check_branch
    %22 = sbr.rel (0) target = $region17
  $region16: #{pre_activation_residual_block.1} parent=0 // pred_region
    _
  $region17: #{pre_activation_residual_block.1} parent=0 // pred_fallthru
    _
  // Predicated region
  $region18: #{pre_activation_residual_block.1} parent=0 // pred_check
    _
  $region19: #{pre_activation_residual_block.1} parent=0 // pred_check_branch
    %24 = sbr.rel (0) target = $region21
  $region20: #{pre_activation_residual_block.1} parent=0 // pred_region
    _
  $region21: #{pre_activation_residual_block.1} parent=0 // pred_fallthru
    _
  // Predicated region
  $region22: #{pre_activation_residual_block.1} parent=0 // pred_check
    _
  $region23: #{pre_activation_residual_block.1} parent=0 // pred_check_branch
    %26 = sbr.rel (0) target = $region25
  $region24: #{pre_activation_residual_block.1} parent=0 // pred_region
    _
  $region25: #{pre_activation_residual_block.1} parent=0 // pred_fallthru
    _
  // Predicated region
  $region26: #{pre_activation_residual_block.1} parent=0 // pred_check
    _
  $region27: #{pre_activation_residual_block.1} parent=0 // pred_check_branch
    %28 = sbr.rel (0) target = $region29
  $region28: #{pre_activation_residual_block.1} parent=0 // pred_region
    _
  $region29: #{pre_activation_residual_block.1} parent=0 // pred_fallthru
    _
  // Predicated region
  $region30: #{pre_activation_residual_block.1} parent=0 // pred_check
    _
  $region31: #{pre_activation_residual_block.1} parent=0 // pred_check_branch
    %30 = sbr.rel (0) target = $region33
  $region32: #{pre_activation_residual_block.1} parent=0 // pred_region
    _
  $region33: #{pre_activation_residual_block.1} parent=0 // pred_fallthru
    _
  // Predicated region
  $region34: #{pre_activation_residual_block.1} parent=0 // pred_check
    _
  $region35: #{pre_activation_residual_block.1} parent=0 // pred_check_branch
    %32 = sbr.rel (0) target = $region37
  $region36: #{pre_activation_residual_block.1} parent=0 // pred_region
    _
  $region37: #{pre_activation_residual_block.1} parent=0 // pred_fallthru
    _
  // Predicated region
  $region38: #{pre_activation_residual_block.1} parent=0 // pred_check
    _
  $region39: #{pre_activation_residual_block.1} parent=0 // pred_check_branch
    %34 = sbr.rel (0) target = $region41
  $region40: #{pre_activation_residual_block.1} parent=0 // pred_region
    _
  $region41: #{pre_activation_residual_block.1} parent=0 // pred_fallthru
    _
  %36 = vst [vmem:[#allocation2] sm:$0xf] 0.0
  %37 = vst [vmem:[#allocation2 + $0x48] sm:$0xf] 0.0
  %s38 = scalar_lea.vmem [#allocation2], 68
  %39 = vst [vmem:[%s38] sm:$0xf] 0.0
  %40 = vst [vmem:[%s38 + $0x48] sm:$0xf] 0.0
  %s41 = scalar_lea.vmem [#allocation2], 4
  %42 = vst [vmem:[%s41] sm:$0x1] 0.0
  %43 = vst [vmem:[%s41 + $0x4] sm:$0x1] 0.0
  %44 = vst [vmem:[%s41 + $0x8] sm:$0x1] 0.0
  %45 = vst [vmem:[%s41 + $0xc] sm:$0x1] 0.0
  %46 = vst [vmem:[%s41 + $0x10] sm:$0x1] 0.0
  %47 = vst [vmem:[%s41 + $0x14] sm:$0x1] 0.0
  %48 = vst [vmem:[%s41 + $0x18] sm:$0x1] 0.0
  %49 = vst [vmem:[%s41 + $0x1c] sm:$0x1] 0.0
  %50 = vst [vmem:[%s41 + $0x20] sm:$0x1] 0.0
  %51 = vst [vmem:[%s41 + $0x24] sm:$0x1] 0.0
  %52 = vst [vmem:[%s41 + $0x28] sm:$0x1] 0.0
  %53 = vst [vmem:[%s41 + $0x2c] sm:$0x1] 0.0
  %54 = vst [vmem:[%s41 + $0x30] sm:$0x1] 0.0
  %55 = vst [vmem:[%s41 + $0x34] sm:$0x1] 0.0
  %56 = vst [vmem:[%s41 + $0x38] sm:$0x1] 0.0
  %57 = vst [vmem:[%s41 + $0x3c] sm:$0x1] 0.0
  %58 = vst [vmem:[%s41 + $0x48] sm:$0x1] 0.0
  %59 = vst [vmem:[%s41 + $0x4c] sm:$0x1] 0.0
  %60 = vst [vmem:[%s41 + $0x50] sm:$0x1] 0.0
  %61 = vst [vmem:[%s41 + $0x54] sm:$0x1] 0.0
  %62 = vst [vmem:[%s41 + $0x58] sm:$0x1] 0.0
  %63 = vst [vmem:[%s41 + $0x5c] sm:$0x1] 0.0
  %64 = vst [vmem:[%s41 + $0x60] sm:$0x1] 0.0
  %65 = vst [vmem:[%s41 + $0x64] sm:$0x1] 0.0
  %66 = vst [vmem:[%s41 + $0x68] sm:$0x1] 0.0
  %67 = vst [vmem:[%s41 + $0x6c] sm:$0x1] 0.0
  %68 = vst [vmem:[%s41 + $0x70] sm:$0x1] 0.0
  %69 = vst [vmem:[%s41 + $0x74] sm:$0x1] 0.0
  %70 = vst [vmem:[%s41 + $0x78] sm:$0x1] 0.0
  %71 = vst [vmem:[%s41 + $0x7c] sm:$0x1] 0.0
  %72 = vst [vmem:[%s41 + $0x80] sm:$0x1] 0.0
  %73 = vst [vmem:[%s41 + $0x84] sm:$0x1] 0.0
  %74 = vst [vmem:[%s41 + $0x3] sm:$0x1] 0.0
  %75 = vst [vmem:[%s41 + $0x7] sm:$0x1] 0.0
  %76 = vst [vmem:[%s41 + $0xb] sm:$0x1] 0.0
  %77 = vst [vmem:[%s41 + $0xf] sm:$0x1] 0.0
  %78 = vst [vmem:[%s41 + $0x13] sm:$0x1] 0.0
  %79 = vst [vmem:[%s41 + $0x17] sm:$0x1] 0.0
  %80 = vst [vmem:[%s41 + $0x1b] sm:$0x1] 0.0
  %81 = vst [vmem:[%s41 + $0x1f] sm:$0x1] 0.0
  %82 = vst [vmem:[%s41 + $0x23] sm:$0x1] 0.0
  %83 = vst [vmem:[%s41 + $0x27] sm:$0x1] 0.0
  %84 = vst [vmem:[%s41 + $0x2b] sm:$0x1] 0.0
  %85 = vst [vmem:[%s41 + $0x2f] sm:$0x1] 0.0
  %86 = vst [vmem:[%s41 + $0x33] sm:$0x1] 0.0
  %87 = vst [vmem:[%s41 + $0x37] sm:$0x1] 0.0
  %88 = vst [vmem:[%s41 + $0x3b] sm:$0x1] 0.0
  %89 = vst [vmem:[%s41 + $0x3f] sm:$0x1] 0.0
  %90 = vst [vmem:[%s41 + $0x4b] sm:$0x1] 0.0
  %91 = vst [vmem:[%s41 + $0x4f] sm:$0x1] 0.0
  %92 = vst [vmem:[%s41 + $0x53] sm:$0x1] 0.0
  %93 = vst [vmem:[%s41 + $0x57] sm:$0x1] 0.0
  %94 = vst [vmem:[%s41 + $0x5b] sm:$0x1] 0.0
  %95 = vst [vmem:[%s41 + $0x5f] sm:$0x1] 0.0
  %96 = vst [vmem:[%s41 + $0x63] sm:$0x1] 0.0
  %97 = vst [vmem:[%s41 + $0x67] sm:$0x1] 0.0
  %98 = vst [vmem:[%s41 + $0x6b] sm:$0x1] 0.0
  %99 = vst [vmem:[%s41 + $0x6f] sm:$0x1] 0.0
  %100 = vst [vmem:[%s41 + $0x73] sm:$0x1] 0.0
  %101 = vst [vmem:[%s41 + $0x77] sm:$0x1] 0.0
  %102 = vst [vmem:[%s41 + $0x7b] sm:$0x1] 0.0
  %103 = vst [vmem:[%s41 + $0x7f] sm:$0x1] 0.0
  %104 = vst [vmem:[%s41 + $0x83] sm:$0x1] 0.0
  %105 = vst [vmem:[%s41 + $0x87] sm:$0x1] 0.0
  %v106 = vld [vmem:[%s0] sm:$0x3]
  %v107 = vld [vmem:[%s0 + $0x2] sm:$0x3]
  %v108 = vld [vmem:[%s0 + $0x4] sm:$0x3]
  %v109 = vld [vmem:[%s0 + $0x6] sm:$0x3]
  %v110 = vld [vmem:[%s0 + $0x8] sm:$0x3]
  %v111 = vld [vmem:[%s0 + $0xa] sm:$0x3]
  %v112 = vld [vmem:[%s0 + $0xc] sm:$0x3]
  %v113 = vld [vmem:[%s0 + $0xe] sm:$0x3]
  %v114 = vld [vmem:[%s0 + $0x10] sm:$0x3]
  %v115 = vld [vmem:[%s0 + $0x12] sm:$0x3]
  %v116 = vld [vmem:[%s0 + $0x14] sm:$0x3]
  %v117 = vld [vmem:[%s0 + $0x16] sm:$0x3]
  %v118 = vld [vmem:[%s0 + $0x18] sm:$0x3]
  %v119 = vld [vmem:[%s0 + $0x1a] sm:$0x3]
  %v120 = vld [vmem:[%s0 + $0x1c] sm:$0x3]
  %v121 = vld [vmem:[%s0 + $0x1e] sm:$0x3]
  %v122 = vld [vmem:[%s0 + $0x20] sm:$0x3]
  %v123 = vld [vmem:[%s0 + $0x22] sm:$0x3]
  %v124 = vld [vmem:[%s0 + $0x24] sm:$0x3]
  %v125 = vld [vmem:[%s0 + $0x26] sm:$0x3]
  %v126 = vld [vmem:[%s0 + $0x28] sm:$0x3]
  %v127 = vld [vmem:[%s0 + $0x2a] sm:$0x3]
  %v128 = vld [vmem:[%s0 + $0x2c] sm:$0x3]
  %v129 = vld [vmem:[%s0 + $0x2e] sm:$0x3]
  %v130 = vld [vmem:[%s0 + $0x30] sm:$0x3]
  %v131 = vld [vmem:[%s0 + $0x32] sm:$0x3]
  %v132 = vld [vmem:[%s0 + $0x34] sm:$0x3]
  %v133 = vld [vmem:[%s0 + $0x36] sm:$0x3]
  %v134 = vld [vmem:[%s0 + $0x38] sm:$0x3]
  %v135 = vld [vmem:[%s0 + $0x3a] sm:$0x3]
  %v136 = vld [vmem:[%s0 + $0x3c] sm:$0x3]
  %v137 = vld [vmem:[%s0 + $0x3e] sm:$0x3]
  %v170 = vcombine.low %v106, %v107
  %v171 = vcombine.low %v108, %v109
  %v173 = vunpack.c.l.s4 1983009808
  %v174 = vunpack.c.0.s8 %v173
  %v175 = vlaneseq
  %v176 = vshrl.u32 %v175, 7
  %v177 = vsub.s32 %v174, %v176
  %v178 = vrot.slane %v170, %v177
  %v180 = vunpack.c.l.s4 1983009808
  %v181 = vunpack.c.0.s8 %v180
  %v182 = vlaneseq
  %v183 = vshrl.u32 %v182, 7
  %v184 = vsub.s32 %v181, %v183
  %v185 = vrot.slane %v171, %v184
  %v186 = vcombine.low %v178, %v185
  %v187 = vcombine.low %v110, %v111
  %v188 = vcombine.low %v112, %v113
  %v190 = vunpack.c.l.s4 1983009808
  %v191 = vunpack.c.0.s8 %v190
  %v192 = vlaneseq
  %v193 = vshrl.u32 %v192, 7
  %v194 = vsub.s32 %v191, %v193
  %v195 = vrot.slane %v187, %v194
  %v197 = vunpack.c.l.s4 1983009808
  %v198 = vunpack.c.0.s8 %v197
  %v199 = vlaneseq
  %v200 = vshrl.u32 %v199, 7
  %v201 = vsub.s32 %v198, %v200
  %v202 = vrot.slane %v188, %v201
  %v203 = vcombine.low %v195, %v202
  %v204 = vcombine.low %v114, %v115
  %v205 = vcombine.low %v116, %v117
  %v207 = vunpack.c.l.s4 1983009808
  %v208 = vunpack.c.0.s8 %v207
  %v209 = vlaneseq
  %v210 = vshrl.u32 %v209, 7
  %v211 = vsub.s32 %v208, %v210
  %v212 = vrot.slane %v204, %v211
  %v214 = vunpack.c.l.s4 1983009808
  %v215 = vunpack.c.0.s8 %v214
  %v216 = vlaneseq
  %v217 = vshrl.u32 %v216, 7
  %v218 = vsub.s32 %v215, %v217
  %v219 = vrot.slane %v205, %v218
  %v220 = vcombine.low %v212, %v219
  %v221 = vcombine.low %v118, %v119
  %v222 = vcombine.low %v120, %v121
  %v224 = vunpack.c.l.s4 1983009808
  %v225 = vunpack.c.0.s8 %v224
  %v226 = vlaneseq
  %v227 = vshrl.u32 %v226, 7
  %v228 = vsub.s32 %v225, %v227
  %v229 = vrot.slane %v221, %v228
  %v231 = vunpack.c.l.s4 1983009808
  %v232 = vunpack.c.0.s8 %v231
  %v233 = vlaneseq
  %v234 = vshrl.u32 %v233, 7
  %v235 = vsub.s32 %v232, %v234
  %v236 = vrot.slane %v222, %v235
  %v237 = vcombine.low %v229, %v236
  %v238 = vcombine.low %v122, %v123
  %v239 = vcombine.low %v124, %v125
  %v241 = vunpack.c.l.s4 1983009808
  %v242 = vunpack.c.0.s8 %v241
  %v243 = vlaneseq
  %v244 = vshrl.u32 %v243, 7
  %v245 = vsub.s32 %v242, %v244
  %v246 = vrot.slane %v238, %v245
  %v248 = vunpack.c.l.s4 1983009808
  %v249 = vunpack.c.0.s8 %v248
  %v250 = vlaneseq
  %v251 = vshrl.u32 %v250, 7
  %v252 = vsub.s32 %v249, %v251
  %v253 = vrot.slane %v239, %v252
  %v254 = vcombine.low %v246, %v253
  %v255 = vcombine.low %v126, %v127
  %v256 = vcombine.low %v128, %v129
  %v258 = vunpack.c.l.s4 1983009808
  %v259 = vunpack.c.0.s8 %v258
  %v260 = vlaneseq
  %v261 = vshrl.u32 %v260, 7
  %v262 = vsub.s32 %v259, %v261
  %v263 = vrot.slane %v255, %v262
  %v265 = vunpack.c.l.s4 1983009808
  %v266 = vunpack.c.0.s8 %v265
  %v267 = vlaneseq
  %v268 = vshrl.u32 %v267, 7
  %v269 = vsub.s32 %v266, %v268
  %v270 = vrot.slane %v256, %v269
  %v271 = vcombine.low %v263, %v270
  %v272 = vcombine.low %v130, %v131
  %v273 = vcombine.low %v132, %v133
  %v275 = vunpack.c.l.s4 1983009808
  %v276 = vunpack.c.0.s8 %v275
  %v277 = vlaneseq
  %v278 = vshrl.u32 %v277, 7
  %v279 = vsub.s32 %v276, %v278
  %v280 = vrot.slane %v272, %v279
  %v282 = vunpack.c.l.s4 1983009808
  %v283 = vunpack.c.0.s8 %v282
  %v284 = vlaneseq
  %v285 = vshrl.u32 %v284, 7
  %v286 = vsub.s32 %v283, %v285
  %v287 = vrot.slane %v273, %v286
  %v288 = vcombine.low %v280, %v287
  %v289 = vcombine.low %v134, %v135
  %v290 = vcombine.low %v136, %v137
  %v292 = vunpack.c.l.s4 1983009808
  %v293 = vunpack.c.0.s8 %v292
  %v294 = vlaneseq
  %v295 = vshrl.u32 %v294, 7
  %v296 = vsub.s32 %v293, %v295
  %v297 = vrot.slane %v289, %v296
  %v299 = vunpack.c.l.s4 1983009808
  %v300 = vunpack.c.0.s8 %v299
  %v301 = vlaneseq
  %v302 = vshrl.u32 %v301, 7
  %v303 = vsub.s32 %v300, %v302
  %v304 = vrot.slane %v290, %v303
  %v305 = vcombine.low %v297, %v304
  %v314 = vadd.f32 %v186, %v203
  %v315 = vadd.f32 %v314, %v220
  %v316 = vadd.f32 %v315, %v237
  %v317 = vadd.f32 %v316, %v254
  %v318 = vadd.f32 %v317, %v271
  %v319 = vadd.f32 %v318, %v288
  %v320 = vadd.f32 %v319, %v305
  %v321 = vrot.slane %v320, 4
  %v322 = vadd.f32 %v320, %v321
  %v323 = vrot.slane %v322, 2
  %v324 = vadd.f32 %v322, %v323
  %v325 = vrot.slane %v324, 1
  %v326 = vadd.f32 %v324, %v325
  %v327 = vmul.f32 %v106, %v106
  %v328 = vmul.f32 %v107, %v107
  %v329 = vmul.f32 %v108, %v108
  %v330 = vmul.f32 %v109, %v109
  %v331 = vmul.f32 %v110, %v110
  %v332 = vmul.f32 %v111, %v111
  %v333 = vmul.f32 %v112, %v112
  %v334 = vmul.f32 %v113, %v113
  %v335 = vmul.f32 %v114, %v114
  %v336 = vmul.f32 %v115, %v115
  %v337 = vmul.f32 %v116, %v116
  %v338 = vmul.f32 %v117, %v117
  %v339 = vmul.f32 %v118, %v118
  %v340 = vmul.f32 %v119, %v119
  %v341 = vmul.f32 %v120, %v120
  %v342 = vmul.f32 %v121, %v121
  %v343 = vmul.f32 %v122, %v122
  %v344 = vmul.f32 %v123, %v123
  %v345 = vmul.f32 %v124, %v124
  %v346 = vmul.f32 %v125, %v125
  %v347 = vmul.f32 %v126, %v126
  %v348 = vmul.f32 %v127, %v127
  %v349 = vmul.f32 %v128, %v128
  %v350 = vmul.f32 %v129, %v129
  %v351 = vmul.f32 %v130, %v130
  %v352 = vmul.f32 %v131, %v131
  %v353 = vmul.f32 %v132, %v132
  %v354 = vmul.f32 %v133, %v133
  %v355 = vmul.f32 %v134, %v134
  %v356 = vmul.f32 %v135, %v135
  %v357 = vmul.f32 %v136, %v136
  %v358 = vmul.f32 %v137, %v137
  %v391 = vcombine.low %v327, %v328
  %v392 = vcombine.low %v329, %v330
  %v394 = vunpack.c.l.s4 1983009808
  %v395 = vunpack.c.0.s8 %v394
  %v396 = vlaneseq
  %v397 = vshrl.u32 %v396, 7
  %v398 = vsub.s32 %v395, %v397
  %v399 = vrot.slane %v391, %v398
  %v401 = vunpack.c.l.s4 1983009808
  %v402 = vunpack.c.0.s8 %v401
  %v403 = vlaneseq
  %v404 = vshrl.u32 %v403, 7
  %v405 = vsub.s32 %v402, %v404
  %v406 = vrot.slane %v392, %v405
  %v407 = vcombine.low %v399, %v406
  %v408 = vcombine.low %v331, %v332
  %v409 = vcombine.low %v333, %v334
  %v411 = vunpack.c.l.s4 1983009808
  %v412 = vunpack.c.0.s8 %v411
  %v413 = vlaneseq
  %v414 = vshrl.u32 %v413, 7
  %v415 = vsub.s32 %v412, %v414
  %v416 = vrot.slane %v408, %v415
  %v418 = vunpack.c.l.s4 1983009808
  %v419 = vunpack.c.0.s8 %v418
  %v420 = vlaneseq
  %v421 = vshrl.u32 %v420, 7
  %v422 = vsub.s32 %v419, %v421
  %v423 = vrot.slane %v409, %v422
  %v424 = vcombine.low %v416, %v423
  %v425 = vcombine.low %v335, %v336
  %v426 = vcombine.low %v337, %v338
  %v428 = vunpack.c.l.s4 1983009808
  %v429 = vunpack.c.0.s8 %v428
  %v430 = vlaneseq
  %v431 = vshrl.u32 %v430, 7
  %v432 = vsub.s32 %v429, %v431
  %v433 = vrot.slane %v425, %v432
  %v435 = vunpack.c.l.s4 1983009808
  %v436 = vunpack.c.0.s8 %v435
  %v437 = vlaneseq
  %v438 = vshrl.u32 %v437, 7
  %v439 = vsub.s32 %v436, %v438
  %v440 = vrot.slane %v426, %v439
  %v441 = vcombine.low %v433, %v440
  %v442 = vcombine.low %v339, %v340
  %v443 = vcombine.low %v341, %v342
  %v445 = vunpack.c.l.s4 1983009808
  %v446 = vunpack.c.0.s8 %v445
  %v447 = vlaneseq
  %v448 = vshrl.u32 %v447, 7
  %v449 = vsub.s32 %v446, %v448
  %v450 = vrot.slane %v442, %v449
  %v452 = vunpack.c.l.s4 1983009808
  %v453 = vunpack.c.0.s8 %v452
  %v454 = vlaneseq
  %v455 = vshrl.u32 %v454, 7
  %v456 = vsub.s32 %v453, %v455
  %v457 = vrot.slane %v443, %v456
  %v458 = vcombine.low %v450, %v457
  %v459 = vcombine.low %v343, %v344
  %v460 = vcombine.low %v345, %v346
  %v462 = vunpack.c.l.s4 1983009808
  %v463 = vunpack.c.0.s8 %v462
  %v464 = vlaneseq
  %v465 = vshrl.u32 %v464, 7
  %v466 = vsub.s32 %v463, %v465
  %v467 = vrot.slane %v459, %v466
  %v469 = vunpack.c.l.s4 1983009808
  %v470 = vunpack.c.0.s8 %v469
  %v471 = vlaneseq
  %v472 = vshrl.u32 %v471, 7
  %v473 = vsub.s32 %v470, %v472
  %v474 = vrot.slane %v460, %v473
  %v475 = vcombine.low %v467, %v474
  %v476 = vcombine.low %v347, %v348
  %v477 = vcombine.low %v349, %v350
  %v479 = vunpack.c.l.s4 1983009808
  %v480 = vunpack.c.0.s8 %v479
  %v481 = vlaneseq
  %v482 = vshrl.u32 %v481, 7
  %v483 = vsub.s32 %v480, %v482
  %v484 = vrot.slane %v476, %v483
  %v486 = vunpack.c.l.s4 1983009808
  %v487 = vunpack.c.0.s8 %v486
  %v488 = vlaneseq
  %v489 = vshrl.u32 %v488, 7
  %v490 = vsub.s32 %v487, %v489
  %v491 = vrot.slane %v477, %v490
  %v492 = vcombine.low %v484, %v491
  %v493 = vcombine.low %v351, %v352
  %v494 = vcombine.low %v353, %v354
  %v496 = vunpack.c.l.s4 1983009808
  %v497 = vunpack.c.0.s8 %v496
  %v498 = vlaneseq
  %v499 = vshrl.u32 %v498, 7
  %v500 = vsub.s32 %v497, %v499
  %v501 = vrot.slane %v493, %v500
  %v503 = vunpack.c.l.s4 1983009808
  %v504 = vunpack.c.0.s8 %v503
  %v505 = vlaneseq
  %v506 = vshrl.u32 %v505, 7
  %v507 = vsub.s32 %v504, %v506
  %v508 = vrot.slane %v494, %v507
  %v509 = vcombine.low %v501, %v508
  %v510 = vcombine.low %v355, %v356
  %v511 = vcombine.low %v357, %v358
  %v513 = vunpack.c.l.s4 1983009808
  %v514 = vunpack.c.0.s8 %v513
  %v515 = vlaneseq
  %v516 = vshrl.u32 %v515, 7
  %v517 = vsub.s32 %v514, %v516
  %v518 = vrot.slane %v510, %v517
  %v520 = vunpack.c.l.s4 1983009808
  %v521 = vunpack.c.0.s8 %v520
  %v522 = vlaneseq
  %v523 = vshrl.u32 %v522, 7
  %v524 = vsub.s32 %v521, %v523
  %v525 = vrot.slane %v511, %v524
  %v526 = vcombine.low %v518, %v525
  %v535 = vadd.f32 %v407, %v424
  %v536 = vadd.f32 %v535, %v441
  %v537 = vadd.f32 %v536, %v458
  %v538 = vadd.f32 %v537, %v475
  %v539 = vadd.f32 %v538, %v492
  %v540 = vadd.f32 %v539, %v509
  %v541 = vadd.f32 %v540, %v526
  %v542 = vrot.slane %v541, 4
  %v543 = vadd.f32 %v541, %v542
  %v544 = vrot.slane %v543, 2
  %v545 = vadd.f32 %v543, %v544
  %v546 = vrot.slane %v545, 1
  %v547 = vadd.f32 %v545, %v546
  %vm548 = vcmask 1040384
  %v549 = vsel %vm548, %v326, %v547
  %v550 = vld [vmem:[%s1] sm:$0xff]
  %v551 = vld [vmem:[%s1 + $0x8] sm:$0xff]
  %v552 = vld [vmem:[%s1 + $0x10] sm:$0xff]
  %v553 = vld [vmem:[%s1 + $0x18] sm:$0xff]
  %v554 = vld [vmem:[%s1 + $0x20] sm:$0xff]
  %v555 = vld [vmem:[%s1 + $0x28] sm:$0xff]
  %v556 = vld [vmem:[%s1 + $0x30] sm:$0xff]
  %v557 = vld [vmem:[%s1 + $0x38] sm:$0xff]
  %v558 = vld [vmem:[%s1 + $0x40] sm:$0xff]
  %v559 = vld [vmem:[%s1 + $0x48] sm:$0xff]
  %v560 = vld [vmem:[%s1 + $0x50] sm:$0xff]
  %v561 = vld [vmem:[%s1 + $0x58] sm:$0xff]
  %v562 = vld [vmem:[%s1 + $0x60] sm:$0xff]
  %v563 = vld [vmem:[%s1 + $0x68] sm:$0xff]
  %v564 = vld [vmem:[%s1 + $0x70] sm:$0xff]
  %v565 = vld [vmem:[%s1 + $0x78] sm:$0xff]
  %566 = vmatprep.subr.mxu0 0.0
  %567 = vmatpush1.msra.mxu0 %v550
  %568 = vmatprep.subr.mxu0 0.0
  %569 = vmatpush1.msra.mxu0 %v551
  %570 = vmatprep.subr.mxu0 0.0
  %571 = vmatpush1.msra.mxu0 %v552
  %572 = vmatprep.subr.mxu0 0.0
  %573 = vmatpush1.msra.mxu0 %v553
  %574 = vmatprep.subr.mxu0 0.0
  %575 = vmatpush1.msra.mxu0 %v554
  %576 = vmatprep.subr.mxu0 0.0
  %577 = vmatpush1.msra.mxu0 %v555
  %578 = vmatprep.subr.mxu0 0.0
  %579 = vmatpush1.msra.mxu0 %v556
  %580 = vmatprep.subr.mxu0 0.0
  %581 = vmatpush1.msra.mxu0 %v557
  %582 = vmatprep.subr.mxu0 0.0
  %583 = vmatpush1.msra.mxu0 %v558
  %584 = vmatprep.subr.mxu0 0.0
  %585 = vmatpush1.msra.mxu0 %v559
  %586 = vmatprep.subr.mxu0 0.0
  %587 = vmatpush1.msra.mxu0 %v560
  %588 = vmatprep.subr.mxu0 0.0
  %589 = vmatpush1.msra.mxu0 %v561
  %590 = vmatprep.subr.mxu0 0.0
  %591 = vmatpush1.msra.mxu0 %v562
  %592 = vmatprep.subr.mxu0 0.0
  %593 = vmatpush1.msra.mxu0 %v563
  %594 = vmatprep.subr.mxu0 0.0
  %595 = vmatpush1.msra.mxu0 %v564
  %596 = vmatprep.subr.mxu0 0.0
  %597 = vmatpush1.msra.mxu0 %v565
  %598 = vmatprep.subr.mxu0 0.0
  %599 = vmatpush1.msra.mxu0 0.0
  %600 = vmatprep.subr.mxu0 0.0
  %601 = vmatpush1.msra.mxu0 0.0
  %602 = vmatprep.subr.mxu0 0.0
  %603 = vmatpush1.msra.mxu0 0.0
  %604 = vmatprep.subr.mxu0 0.0
  %605 = vmatpush1.msra.mxu0 0.0
  %606 = vmatprep.subr.mxu0 0.0
  %607 = vmatpush1.msra.mxu0 0.0
  %608 = vmatprep.subr.mxu0 0.0
  %609 = vmatpush1.msra.mxu0 0.0
  %610 = vmatprep.subr.mxu0 0.0
  %611 = vmatpush1.msra.mxu0 0.0
  %612 = vmatprep.subr.mxu0 0.0
  %613 = vmatpush1.msra.mxu0 0.0
  %614 = vmatprep.subr.mxu0 0.0
  %615 = vmatpush1.msra.mxu0 0.0
  %616 = vmatprep.subr.mxu0 0.0
  %617 = vmatpush1.msra.mxu0 0.0
  %618 = vmatprep.subr.mxu0 0.0
  %619 = vmatpush1.msra.mxu0 0.0
  %620 = vmatprep.subr.mxu0 0.0
  %621 = vmatpush1.msra.mxu0 0.0
  %622 = vmatprep.subr.mxu0 0.0
  %623 = vmatpush1.msra.mxu0 0.0
  %624 = vmatprep.subr.mxu0 0.0
  %625 = vmatpush1.msra.mxu0 0.0
  %626 = vmatprep.subr.mxu0 0.0
  %627 = vmatpush1.msra.mxu0 0.0
  %628 = vmatprep.subr.mxu0 0.0
  %629 = vmatpush1.msra.mxu0 0.0
  %630 = vmatprep.mubr.f32.mxu0 0.0
  %631 = vmatmul.mubr.f32.gmra.mrb[0].mxu0 %v549
  %v632 = vpop.f32.mrb[0].mxu0
  %v633 = vadd.f32 0.0, %v632
  %v634 = vpop.f32.mrb[0].mxu0
  %635 = vdwg.mxu0
  %v636 = vmul.f32 %v633, 0.001953125
  %v637 = vmul.f32 %v636, %v636
  %v639 = vrot.slane %v637, 7
  %v641 = vsub.f32 %v636, %v639
  %v642 = vmax.f32 %v641, 0.0
  %v643 = vld [vmem:[%s2] sm:$0x1]
  %v644 = vld [vmem:[%s3] sm:$0x1]
  %v645 = vadd.f32 %v642, 1e-05
  %v646 = vrsqrt.pop %v645
  %v649 = vunpack.c.l.s4 1966171168
  %v650 = vunpack.c.0.s8 %v649
  %v651 = vlaneseq
  %v652 = vshrl.u32 %v651, 7
  %v653 = vsub.s32 %v650, %v652
  %v654 = vrot.slane %v646, %v653
  %v655 = vcombine.high %v654, %v654
  %v657 = vunpack.c.l.s4 1966171168
  %v658 = vunpack.c.0.s8 %v657
  %v659 = vlaneseq
  %v660 = vshrl.u32 %v659, 7
  %v661 = vsub.s32 %v658, %v660
  %v662 = vrot.slane %v655, %v661
  %v664 = vmul.f32 %v643, %v662
  %v665 = vmul.f32 %v636, %v664
  %v666 = vsub.f32 %v644, %v665
  %v667 = vld [vmem:[%s4] sm:$0xf]
  %v668 = vld [vmem:[%s4 + $0x4] sm:$0xf]
  %v669 = vld [vmem:[%s4 + $0x8] sm:$0xf]
  %v670 = vld [vmem:[%s4 + $0xc] sm:$0xf]
  %v671 = vld [vmem:[%s4 + $0x10] sm:$0xf]
  %v672 = vld [vmem:[%s4 + $0x14] sm:$0xf]
  %v673 = vld [vmem:[%s4 + $0x18] sm:$0xf]
  %v674 = vld [vmem:[%s4 + $0x1c] sm:$0xf]
  %v675 = vld [vmem:[%s4 + $0x20] sm:$0xf]
  %v676 = vld [vmem:[%s4 + $0x24] sm:$0xf]
  %v677 = vld [vmem:[%s4 + $0x28] sm:$0xf]
  %v678 = vld [vmem:[%s4 + $0x2c] sm:$0xf]
  %v679 = vld [vmem:[%s4 + $0x30] sm:$0xf]
  %v680 = vld [vmem:[%s4 + $0x34] sm:$0xf]
  %v681 = vld [vmem:[%s4 + $0x38] sm:$0xf]
  %v682 = vld [vmem:[%s4 + $0x3c] sm:$0xf]
  %v683 = vld [vmem:[%s4 + $0x40] sm:$0xf]
  %v684 = vld [vmem:[%s4 + $0x44] sm:$0xf]
  %v685 = vld [vmem:[%s4 + $0x48] sm:$0xf]
  %v686 = vld [vmem:[%s4 + $0x4c] sm:$0xf]
  %v687 = vld [vmem:[%s4 + $0x50] sm:$0xf]
  %v688 = vld [vmem:[%s4 + $0x54] sm:$0xf]
  %v689 = vld [vmem:[%s4 + $0x58] sm:$0xf]
  %v690 = vld [vmem:[%s4 + $0x5c] sm:$0xf]
  %v691 = vld [vmem:[%s4 + $0x60] sm:$0xf]
  %v692 = vld [vmem:[%s4 + $0x64] sm:$0xf]
  %v693 = vld [vmem:[%s4 + $0x68] sm:$0xf]
  %v694 = vld [vmem:[%s4 + $0x6c] sm:$0xf]
  %v695 = vld [vmem:[%s4 + $0x70] sm:$0xf]
  %v696 = vld [vmem:[%s4 + $0x74] sm:$0xf]
  %v697 = vld [vmem:[%s4 + $0x78] sm:$0xf]
  %v698 = vld [vmem:[%s4 + $0x7c] sm:$0xf]
  %v699 = vld [vmem:[%s4 + $0x80] sm:$0xf]
  %v700 = vld [vmem:[%s4 + $0x84] sm:$0xf]
  %v701 = vld [vmem:[%s4 + $0x88] sm:$0xf]
  %v702 = vld [vmem:[%s4 + $0x8c] sm:$0xf]
  %v703 = vld [vmem:[%s4 + $0x90] sm:$0xf]
  %v704 = vld [vmem:[%s4 + $0x94] sm:$0xf]
  %v705 = vld [vmem:[%s4 + $0x98] sm:$0xf]
  %v706 = vld [vmem:[%s4 + $0x9c] sm:$0xf]
  %v707 = vld [vmem:[%s4 + $0xa0] sm:$0xf]
  %v708 = vld [vmem:[%s4 + $0xa4] sm:$0xf]
  %v709 = vld [vmem:[%s4 + $0xa8] sm:$0xf]
  %v710 = vld [vmem:[%s4 + $0xac] sm:$0xf]
  %v711 = vld [vmem:[%s4 + $0xb0] sm:$0xf]
  %v712 = vld [vmem:[%s4 + $0xb4] sm:$0xf]
  %v713 = vld [vmem:[%s4 + $0xb8] sm:$0xf]
  %v714 = vld [vmem:[%s4 + $0xbc] sm:$0xf]
  %v715 = vld [vmem:[%s4 + $0xc0] sm:$0xf]
  %v716 = vld [vmem:[%s4 + $0xc4] sm:$0xf]
  %v717 = vld [vmem:[%s4 + $0xc8] sm:$0xf]
  %v718 = vld [vmem:[%s4 + $0xcc] sm:$0xf]
  %v719 = vld [vmem:[%s4 + $0xd0] sm:$0xf]
  %v720 = vld [vmem:[%s4 + $0xd4] sm:$0xf]
  %v721 = vld [vmem:[%s4 + $0xd8] sm:$0xf]
  %v722 = vld [vmem:[%s4 + $0xdc] sm:$0xf]
  %v723 = vld [vmem:[%s4 + $0xe0] sm:$0xf]
  %v724 = vld [vmem:[%s4 + $0xe4] sm:$0xf]
  %v725 = vld [vmem:[%s4 + $0xe8] sm:$0xf]
  %v726 = vld [vmem:[%s4 + $0xec] sm:$0xf]
  %v727 = vld [vmem:[%s4 + $0xf0] sm:$0xf]
  %v728 = vld [vmem:[%s4 + $0xf4] sm:$0xf]
  %v729 = vld [vmem:[%s4 + $0xf8] sm:$0xf]
  %v730 = vld [vmem:[%s4 + $0xfc] sm:$0xf]
  %v731 = vld [vmem:[%s4 + $0x100] sm:$0xf]
  %v732 = vld [vmem:[%s4 + $0x104] sm:$0xf]
  %v733 = vld [vmem:[%s4 + $0x108] sm:$0xf]
  %v734 = vld [vmem:[%s4 + $0x10c] sm:$0xf]
  %v735 = vld [vmem:[%s4 + $0x110] sm:$0xf]
  %v736 = vld [vmem:[%s4 + $0x114] sm:$0xf]
  %v737 = vld [vmem:[%s4 + $0x118] sm:$0xf]
  %v738 = vld [vmem:[%s4 + $0x11c] sm:$0xf]
  %v739 = vld [vmem:[%s4 + $0x120] sm:$0xf]
  %v740 = vld [vmem:[%s4 + $0x124] sm:$0xf]
  %v741 = vld [vmem:[%s4 + $0x128] sm:$0xf]
  %v742 = vld [vmem:[%s4 + $0x12c] sm:$0xf]
  %v743 = vld [vmem:[%s4 + $0x130] sm:$0xf]
  %v744 = vld [vmem:[%s4 + $0x134] sm:$0xf]
  %v745 = vld [vmem:[%s4 + $0x138] sm:$0xf]
  %v746 = vld [vmem:[%s4 + $0x13c] sm:$0xf]
  %v747 = vld [vmem:[%s4 + $0x140] sm:$0xf]
  %v748 = vld [vmem:[%s4 + $0x144] sm:$0xf]
  %v749 = vld [vmem:[%s4 + $0x148] sm:$0xf]
  %v750 = vld [vmem:[%s4 + $0x14c] sm:$0xf]
  %v751 = vld [vmem:[%s4 + $0x150] sm:$0xf]
  %v752 = vld [vmem:[%s4 + $0x154] sm:$0xf]
  %v753 = vld [vmem:[%s4 + $0x158] sm:$0xf]
  %v754 = vld [vmem:[%s4 + $0x15c] sm:$0xf]
  %v755 = vld [vmem:[%s4 + $0x160] sm:$0xf]
  %v756 = vld [vmem:[%s4 + $0x164] sm:$0xf]
  %v757 = vld [vmem:[%s4 + $0x168] sm:$0xf]
  %v758 = vld [vmem:[%s4 + $0x16c] sm:$0xf]
  %v759 = vld [vmem:[%s4 + $0x170] sm:$0xf]
  %v760 = vld [vmem:[%s4 + $0x174] sm:$0xf]
  %v761 = vld [vmem:[%s4 + $0x178] sm:$0xf]
  %v762 = vld [vmem:[%s4 + $0x17c] sm:$0xf]
  %v763 = vld [vmem:[%s4 + $0x180] sm:$0xf]
  %v764 = vld [vmem:[%s4 + $0x184] sm:$0xf]
  %v765 = vld [vmem:[%s4 + $0x188] sm:$0xf]
  %v766 = vld [vmem:[%s4 + $0x18c] sm:$0xf]
  %v767 = vld [vmem:[%s4 + $0x190] sm:$0xf]
  %v768 = vld [vmem:[%s4 + $0x194] sm:$0xf]
  %v769 = vld [vmem:[%s4 + $0x198] sm:$0xf]
  %v770 = vld [vmem:[%s4 + $0x19c] sm:$0xf]
  %v771 = vld [vmem:[%s4 + $0x1a0] sm:$0xf]
  %v772 = vld [vmem:[%s4 + $0x1a4] sm:$0xf]
  %v773 = vld [vmem:[%s4 + $0x1a8] sm:$0xf]
  %v774 = vld [vmem:[%s4 + $0x1ac] sm:$0xf]
  %v775 = vld [vmem:[%s4 + $0x1b0] sm:$0xf]
  %v776 = vld [vmem:[%s4 + $0x1b4] sm:$0xf]
  %v777 = vld [vmem:[%s4 + $0x1b8] sm:$0xf]
  %v778 = vld [vmem:[%s4 + $0x1bc] sm:$0xf]
  %v779 = vld [vmem:[%s4 + $0x1c0] sm:$0xf]
  %v780 = vld [vmem:[%s4 + $0x1c4] sm:$0xf]
  %v781 = vld [vmem:[%s4 + $0x1c8] sm:$0xf]
  %v782 = vld [vmem:[%s4 + $0x1cc] sm:$0xf]
  %v783 = vld [vmem:[%s4 + $0x1d0] sm:$0xf]
  %v784 = vld [vmem:[%s4 + $0x1d4] sm:$0xf]
  %v785 = vld [vmem:[%s4 + $0x1d8] sm:$0xf]
  %v786 = vld [vmem:[%s4 + $0x1dc] sm:$0xf]
  %v787 = vld [vmem:[%s4 + $0x1e0] sm:$0xf]
  %v788 = vld [vmem:[%s4 + $0x1e4] sm:$0xf]
  %v789 = vld [vmem:[%s4 + $0x1e8] sm:$0xf]
  %v790 = vld [vmem:[%s4 + $0x1ec] sm:$0xf]
  %v791 = vld [vmem:[%s4 + $0x1f0] sm:$0xf]
  %v792 = vld [vmem:[%s4 + $0x1f4] sm:$0xf]
  %v793 = vld [vmem:[%s4 + $0x1f8] sm:$0xf]
  %v794 = vld [vmem:[%s4 + $0x1fc] sm:$0xf]
  %v795 = vld [vmem:[%s4 + $0x200] sm:$0xf]
  %v796 = vld [vmem:[%s4 + $0x204] sm:$0xf]
  %v797 = vld [vmem:[%s4 + $0x208] sm:$0xf]
  %v798 = vld [vmem:[%s4 + $0x20c] sm:$0xf]
  %v799 = vld [vmem:[%s4 + $0x210] sm:$0xf]
  %v800 = vld [vmem:[%s4 + $0x214] sm:$0xf]
  %v801 = vld [vmem:[%s4 + $0x218] sm:$0xf]
  %v802 = vld [vmem:[%s4 + $0x21c] sm:$0xf]
  %v803 = vld [vmem:[%s4 + $0x220] sm:$0xf]
  %v804 = vld [vmem:[%s4 + $0x224] sm:$0xf]
  %v805 = vld [vmem:[%s4 + $0x228] sm:$0xf]
  %v806 = vld [vmem:[%s4 + $0x22c] sm:$0xf]
  %v807 = vld [vmem:[%s4 + $0x230] sm:$0xf]
  %v808 = vld [vmem:[%s4 + $0x234] sm:$0xf]
  %v809 = vld [vmem:[%s4 + $0x238] sm:$0xf]
  %v810 = vld [vmem:[%s4 + $0x23c] sm:$0xf]
  %v811 = vld [vmem:[%s5] sm:$0x1]
  %v813 = vlaneseq
  %v814 = vshrl.u32 %v813, 7
  %v815 = vsub.s32 0, %v814
  %v816 = vrot.slane %v664, %v815
  %v818 = vmul.f32 %v106, %v816
  %v819 = vmul.f32 %v107, %v816
  %v820 = vmul.f32 %v108, %v816
  %v821 = vmul.f32 %v109, %v816
  %v822 = vmul.f32 %v110, %v816
  %v823 = vmul.f32 %v111, %v816
  %v824 = vmul.f32 %v112, %v816
  %v825 = vmul.f32 %v113, %v816
  %v826 = vmul.f32 %v114, %v816
  %v827 = vmul.f32 %v115, %v816
  %v828 = vmul.f32 %v116, %v816
  %v829 = vmul.f32 %v117, %v816
  %v830 = vmul.f32 %v118, %v816
  %v831 = vmul.f32 %v119, %v816
  %v832 = vmul.f32 %v120, %v816
  %v833 = vmul.f32 %v121, %v816
  %v834 = vmul.f32 %v122, %v816
  %v835 = vmul.f32 %v123, %v816
  %v836 = vmul.f32 %v124, %v816
  %v837 = vmul.f32 %v125, %v816
  %v838 = vmul.f32 %v126, %v816
  %v839 = vmul.f32 %v127, %v816
  %v840 = vmul.f32 %v128, %v816
  %v841 = vmul.f32 %v129, %v816
  %v842 = vmul.f32 %v130, %v816
  %v843 = vmul.f32 %v131, %v816
  %v844 = vmul.f32 %v132, %v816
  %v845 = vmul.f32 %v133, %v816
  %v846 = vmul.f32 %v134, %v816
  %v847 = vmul.f32 %v135, %v816
  %v848 = vmul.f32 %v136, %v816
  %v849 = vmul.f32 %v137, %v816
  %v851 = vlaneseq
  %v852 = vshrl.u32 %v851, 7
  %v853 = vsub.s32 0, %v852
  %v854 = vrot.slane %v666, %v853
  %v856 = vadd.f32 %v818, %v854
  %v857 = vadd.f32 %v819, %v854
  %v858 = vadd.f32 %v820, %v854
  %v859 = vadd.f32 %v821, %v854
  %v860 = vadd.f32 %v822, %v854
  %v861 = vadd.f32 %v823, %v854
  %v862 = vadd.f32 %v824, %v854
  %v863 = vadd.f32 %v825, %v854
  %v864 = vadd.f32 %v826, %v854
  %v865 = vadd.f32 %v827, %v854
  %v866 = vadd.f32 %v828, %v854
  %v867 = vadd.f32 %v829, %v854
  %v868 = vadd.f32 %v830, %v854
  %v869 = vadd.f32 %v831, %v854
  %v870 = vadd.f32 %v832, %v854
  %v871 = vadd.f32 %v833, %v854
  %v872 = vadd.f32 %v834, %v854
  %v873 = vadd.f32 %v835, %v854
  %v874 = vadd.f32 %v836, %v854
  %v875 = vadd.f32 %v837, %v854
  %v876 = vadd.f32 %v838, %v854
  %v877 = vadd.f32 %v839, %v854
  %v878 = vadd.f32 %v840, %v854
  %v879 = vadd.f32 %v841, %v854
  %v880 = vadd.f32 %v842, %v854
  %v881 = vadd.f32 %v843, %v854
  %v882 = vadd.f32 %v844, %v854
  %v883 = vadd.f32 %v845, %v854
  %v884 = vadd.f32 %v846, %v854
  %v885 = vadd.f32 %v847, %v854
  %v886 = vadd.f32 %v848, %v854
  %v887 = vadd.f32 %v849, %v854
  %v888 = vmax.f32 %v856, 0.0
  %v889 = vmax.f32 %v857, 0.0
  %v890 = vmax.f32 %v858, 0.0
  %v891 = vmax.f32 %v859, 0.0
  %v892 = vmax.f32 %v860, 0.0
  %v893 = vmax.f32 %v861, 0.0
  %v894 = vmax.f32 %v862, 0.0
  %v895 = vmax.f32 %v863, 0.0
  %v896 = vmax.f32 %v864, 0.0
  %v897 = vmax.f32 %v865, 0.0
  %v898 = vmax.f32 %v866, 0.0
  %v899 = vmax.f32 %v867, 0.0
  %v900 = vmax.f32 %v868, 0.0
  %v901 = vmax.f32 %v869, 0.0
  %v902 = vmax.f32 %v870, 0.0
  %v903 = vmax.f32 %v871, 0.0
  %v904 = vmax.f32 %v872, 0.0
  %v905 = vmax.f32 %v873, 0.0
  %v906 = vmax.f32 %v874, 0.0
  %v907 = vmax.f32 %v875, 0.0
  %v908 = vmax.f32 %v876, 0.0
  %v909 = vmax.f32 %v877, 0.0
  %v910 = vmax.f32 %v878, 0.0
  %v911 = vmax.f32 %v879, 0.0
  %v912 = vmax.f32 %v880, 0.0
  %v913 = vmax.f32 %v881, 0.0
  %v914 = vmax.f32 %v882, 0.0
  %v915 = vmax.f32 %v883, 0.0
  %v916 = vmax.f32 %v884, 0.0
  %v917 = vmax.f32 %v885, 0.0
  %v918 = vmax.f32 %v886, 0.0
  %v919 = vmax.f32 %v887, 0.0
  %920 = vst [vmem:[%s41 + $0x1] sm:$0x3] %v888
  %921 = vst [vmem:[%s41 + $0x5] sm:$0x3] %v889
  %922 = vst [vmem:[%s41 + $0x9] sm:$0x3] %v890
  %923 = vst [vmem:[%s41 + $0xd] sm:$0x3] %v891
  %924 = vst [vmem:[%s41 + $0x11] sm:$0x3] %v892
  %925 = vst [vmem:[%s41 + $0x15] sm:$0x3] %v893
  %926 = vst [vmem:[%s41 + $0x19] sm:$0x3] %v894
  %927 = vst [vmem:[%s41 + $0x1d] sm:$0x3] %v895
  %928 = vst [vmem:[%s41 + $0x21] sm:$0x3] %v896
  %929 = vst [vmem:[%s41 + $0x25] sm:$0x3] %v897
  %930 = vst [vmem:[%s41 + $0x29] sm:$0x3] %v898
  %931 = vst [vmem:[%s41 + $0x2d] sm:$0x3] %v899
  %932 = vst [vmem:[%s41 + $0x31] sm:$0x3] %v900
  %933 = vst [vmem:[%s41 + $0x35] sm:$0x3] %v901
  %934 = vst [vmem:[%s41 + $0x39] sm:$0x3] %v902
  %935 = vst [vmem:[%s41 + $0x3d] sm:$0x3] %v903
  %936 = vst [vmem:[%s41 + $0x49] sm:$0x3] %v904
  %937 = vst [vmem:[%s41 + $0x4d] sm:$0x3] %v905
  %938 = vst [vmem:[%s41 + $0x51] sm:$0x3] %v906
  %939 = vst [vmem:[%s41 + $0x55] sm:$0x3] %v907
  %940 = vst [vmem:[%s41 + $0x59] sm:$0x3] %v908
  %941 = vst [vmem:[%s41 + $0x5d] sm:$0x3] %v909
  %942 = vst [vmem:[%s41 + $0x61] sm:$0x3] %v910
  %943 = vst [vmem:[%s41 + $0x65] sm:$0x3] %v911
  %944 = vst [vmem:[%s41 + $0x69] sm:$0x3] %v912
  %945 = vst [vmem:[%s41 + $0x6d] sm:$0x3] %v913
  %946 = vst [vmem:[%s41 + $0x71] sm:$0x3] %v914
  %947 = vst [vmem:[%s41 + $0x75] sm:$0x3] %v915
  %948 = vst [vmem:[%s41 + $0x79] sm:$0x3] %v916
  %949 = vst [vmem:[%s41 + $0x7d] sm:$0x3] %v917
  %950 = vst [vmem:[%s41 + $0x81] sm:$0x3] %v918
  %951 = vst [vmem:[%s41 + $0x85] sm:$0x3] %v919
  %v952 = vld [vmem:[#allocation2] sm:$0x3]
  %v953 = vld [vmem:[#allocation2 + $0x4] sm:$0x3]
  %v954 = vld [vmem:[#allocation2 + $0x8] sm:$0x3]
  %v955 = vld [vmem:[#allocation2 + $0xc] sm:$0x3]
  %v956 = vld [vmem:[#allocation2 + $0x10] sm:$0x3]
  %v957 = vld [vmem:[#allocation2 + $0x14] sm:$0x3]
  %v958 = vld [vmem:[#allocation2 + $0x18] sm:$0x3]
  %v959 = vld [vmem:[#allocation2 + $0x1c] sm:$0x3]
  %v960 = vld [vmem:[#allocation2 + $0x20] sm:$0x3]
  %v961 = vld [vmem:[#allocation2 + $0x24] sm:$0x3]
  %v962 = vld [vmem:[#allocation2 + $0x28] sm:$0x3]
  %v963 = vld [vmem:[#allocation2 + $0x2c] sm:$0x3]
  %v964 = vld [vmem:[#allocation2 + $0x30] sm:$0x3]
  %v965 = vld [vmem:[#allocation2 + $0x34] sm:$0x3]
  %v966 = vld [vmem:[#allocation2 + $0x38] sm:$0x3]
  %v967 = vld [vmem:[#allocation2 + $0x3c] sm:$0x3]
  %v968 = vld [vmem:[#allocation2 + $0x48] sm:$0x3]
  %v969 = vld [vmem:[#allocation2 + $0x4c] sm:$0x3]
  %v970 = vld [vmem:[#allocation2 + $0x50] sm:$0x3]
  %v971 = vld [vmem:[#allocation2 + $0x54] sm:$0x3]
  %v972 = vld [vmem:[#allocation2 + $0x58] sm:$0x3]
  %v973 = vld [vmem:[#allocation2 + $0x5c] sm:$0x3]
  %v974 = vld [vmem:[#allocation2 + $0x60] sm:$0x3]
  %v975 = vld [vmem:[#allocation2 + $0x64] sm:$0x3]
  %v976 = vld [vmem:[#allocation2 + $0x68] sm:$0x3]
  %v977 = vld [vmem:[#allocation2 + $0x6c] sm:$0x3]
  %v978 = vld [vmem:[#allocation2 + $0x70] sm:$0x3]
  %v979 = vld [vmem:[#allocation2 + $0x74] sm:$0x3]
  %v980 = vld [vmem:[#allocation2 + $0x78] sm:$0x3]
  %v981 = vld [vmem:[#allocation2 + $0x7c] sm:$0x3]
  %v982 = vld [vmem:[#allocation2 + $0x80] sm:$0x3]
  %v983 = vld [vmem:[#allocation2 + $0x84] sm:$0x3]
  %v984 = vld [vmem:[#allocation2 + $0x1] sm:$0x3]
  %v985 = vld [vmem:[#allocation2 + $0x5] sm:$0x3]
  %v986 = vld [vmem:[#allocation2 + $0x9] sm:$0x3]
  %v987 = vld [vmem:[#allocation2 + $0xd] sm:$0x3]
  %v988 = vld [vmem:[#allocation2 + $0x11] sm:$0x3]
  %v989 = vld [vmem:[#allocation2 + $0x15] sm:$0x3]
  %v990 = vld [vmem:[#allocation2 + $0x19] sm:$0x3]
  %v991 = vld [vmem:[#allocation2 + $0x1d] sm:$0x3]
  %v992 = vld [vmem:[#allocation2 + $0x21] sm:$0x3]
  %v993 = vld [vmem:[#allocation2 + $0x25] sm:$0x3]
  %v994 = vld [vmem:[#allocation2 + $0x29] sm:$0x3]
  %v995 = vld [vmem:[#allocation2 + $0x2d] sm:$0x3]
  %v996 = vld [vmem:[#allocation2 + $0x31] sm:$0x3]
  %v997 = vld [vmem:[#allocation2 + $0x35] sm:$0x3]
  %v998 = vld [vmem:[#allocation2 + $0x39] sm:$0x3]
  %v999 = vld [vmem:[#allocation2 + $0x3d] sm:$0x3]
  %v1000 = vld [vmem:[#allocation2 + $0x49] sm:$0x3]
  %v1001 = vld [vmem:[#allocation2 + $0x4d] sm:$0x3]
  %v1002 = vld [vmem:[#allocation2 + $0x51] sm:$0x3]
  %v1003 = vld [vmem:[#allocation2 + $0x55] sm:$0x3]
  %v1004 = vld [vmem:[#allocation2 + $0x59] sm:$0x3]
  %v1005 = vld [vmem:[#allocation2 + $0x5d] sm:$0x3]
  %v1006 = vld [vmem:[#allocation2 + $0x61] sm:$0x3]
  %v1007 = vld [vmem:[#allocation2 + $0x65] sm:$0x3]
  %v1008 = vld [vmem:[#allocation2 + $0x69] sm:$0x3]
  %v1009 = vld [vmem:[#allocation2 + $0x6d] sm:$0x3]
  %v1010 = vld [vmem:[#allocation2 + $0x71] sm:$0x3]
  %v1011 = vld [vmem:[#allocation2 + $0x75] sm:$0x3]
  %v1012 = vld [vmem:[#allocation2 + $0x79] sm:$0x3]
  %v1013 = vld [vmem:[#allocation2 + $0x7d] sm:$0x3]
  %v1014 = vld [vmem:[#allocation2 + $0x81] sm:$0x3]
  %v1015 = vld [vmem:[#allocation2 + $0x85] sm:$0x3]
  %v1016 = vld [vmem:[#allocation2 + $0x2] sm:$0x3]
  %v1017 = vld [vmem:[#allocation2 + $0x6] sm:$0x3]
  %v1018 = vld [vmem:[#allocation2 + $0xa] sm:$0x3]
  %v1019 = vld [vmem:[#allocation2 + $0xe] sm:$0x3]
  %v1020 = vld [vmem:[#allocation2 + $0x12] sm:$0x3]
  %v1021 = vld [vmem:[#allocation2 + $0x16] sm:$0x3]
  %v1022 = vld [vmem:[#allocation2 + $0x1a] sm:$0x3]
  %v1023 = vld [vmem:[#allocation2 + $0x1e] sm:$0x3]
  %v1024 = vld [vmem:[#allocation2 + $0x22] sm:$0x3]
  %v1025 = vld [vmem:[#allocation2 + $0x26] sm:$0x3]
  %v1026 = vld [vmem:[#allocation2 + $0x2a] sm:$0x3]
  %v1027 = vld [vmem:[#allocation2 + $0x2e] sm:$0x3]
  %v1028 = vld [vmem:[#allocation2 + $0x32] sm:$0x3]
  %v1029 = vld [vmem:[#allocation2 + $0x36] sm:$0x3]
  %v1030 = vld [vmem:[#allocation2 + $0x3a] sm:$0x3]
  %v1031 = vld [vmem:[#allocation2 + $0x3e] sm:$0x3]
  %v1032 = vld [vmem:[#allocation2 + $0x4a] sm:$0x3]
  %v1033 = vld [vmem:[#allocation2 + $0x4e] sm:$0x3]
  %v1034 = vld [vmem:[#allocation2 + $0x52] sm:$0x3]
  %v1035 = vld [vmem:[#allocation2 + $0x56] sm:$0x3]
  %v1036 = vld [vmem:[#allocation2 + $0x5a] sm:$0x3]
  %v1037 = vld [vmem:[#allocation2 + $0x5e] sm:$0x3]
  %v1038 = vld [vmem:[#allocation2 + $0x62] sm:$0x3]
  %v1039 = vld [vmem:[#allocation2 + $0x66] sm:$0x3]
  %v1040 = vld [vmem:[#allocation2 + $0x6a] sm:$0x3]
  %v1041 = vld [vmem:[#allocation2 + $0x6e] sm:$0x3]
  %v1042 = vld [vmem:[#allocation2 + $0x72] sm:$0x3]
  %v1043 = vld [vmem:[#allocation2 + $0x76] sm:$0x3]
  %v1044 = vld [vmem:[#allocation2 + $0x7a] sm:$0x3]
  %v1045 = vld [vmem:[#allocation2 + $0x7e] sm:$0x3]
  %v1046 = vld [vmem:[#allocation2 + $0x82] sm:$0x3]
  %v1047 = vld [vmem:[#allocation2 + $0x86] sm:$0x3]
  %v1048 = vld [vmem:[%s41] sm:$0x3]
  %v1049 = vld [vmem:[%s41 + $0x4] sm:$0x3]
  %v1050 = vld [vmem:[%s41 + $0x8] sm:$0x3]
  %v1051 = vld [vmem:[%s41 + $0xc] sm:$0x3]
  %v1052 = vld [vmem:[%s41 + $0x10] sm:$0x3]
  %v1053 = vld [vmem:[%s41 + $0x14] sm:$0x3]
  %v1054 = vld [vmem:[%s41 + $0x18] sm:$0x3]
  %v1055 = vld [vmem:[%s41 + $0x1c] sm:$0x3]
  %v1056 = vld [vmem:[%s41 + $0x20] sm:$0x3]
  %v1057 = vld [vmem:[%s41 + $0x24] sm:$0x3]
  %v1058 = vld [vmem:[%s41 + $0x28] sm:$0x3]
  %v1059 = vld [vmem:[%s41 + $0x2c] sm:$0x3]
  %v1060 = vld [vmem:[%s41 + $0x30] sm:$0x3]
  %v1061 = vld [vmem:[%s41 + $0x34] sm:$0x3]
  %v1062 = vld [vmem:[%s41 + $0x38] sm:$0x3]
  %v1063 = vld [vmem:[%s41 + $0x3c] sm:$0x3]
  %v1064 = vld [vmem:[%s41 + $0x48] sm:$0x3]
  %v1065 = vld [vmem:[%s41 + $0x4c] sm:$0x3]
  %v1066 = vld [vmem:[%s41 + $0x50] sm:$0x3]
  %v1067 = vld [vmem:[%s41 + $0x54] sm:$0x3]
  %v1068 = vld [vmem:[%s41 + $0x58] sm:$0x3]
  %v1069 = vld [vmem:[%s41 + $0x5c] sm:$0x3]
  %v1070 = vld [vmem:[%s41 + $0x60] sm:$0x3]
  %v1071 = vld [vmem:[%s41 + $0x64] sm:$0x3]
  %v1072 = vld [vmem:[%s41 + $0x68] sm:$0x3]
  %v1073 = vld [vmem:[%s41 + $0x6c] sm:$0x3]
  %v1074 = vld [vmem:[%s41 + $0x70] sm:$0x3]
  %v1075 = vld [vmem:[%s41 + $0x74] sm:$0x3]
  %v1076 = vld [vmem:[%s41 + $0x78] sm:$0x3]
  %v1077 = vld [vmem:[%s41 + $0x7c] sm:$0x3]
  %v1078 = vld [vmem:[%s41 + $0x80] sm:$0x3]
  %v1079 = vld [vmem:[%s41 + $0x84] sm:$0x3]
  %v1080 = vld [vmem:[%s41 + $0x1] sm:$0x3]
  %v1081 = vld [vmem:[%s41 + $0x5] sm:$0x3]
  %v1082 = vld [vmem:[%s41 + $0x9] sm:$0x3]
  %v1083 = vld [vmem:[%s41 + $0xd] sm:$0x3]
  %v1084 = vld [vmem:[%s41 + $0x11] sm:$0x3]
  %v1085 = vld [vmem:[%s41 + $0x15] sm:$0x3]
  %v1086 = vld [vmem:[%s41 + $0x19] sm:$0x3]
  %v1087 = vld [vmem:[%s41 + $0x1d] sm:$0x3]
  %v1088 = vld [vmem:[%s41 + $0x21] sm:$0x3]
  %v1089 = vld [vmem:[%s41 + $0x25] sm:$0x3]
  %v1090 = vld [vmem:[%s41 + $0x29] sm:$0x3]
  %v1091 = vld [vmem:[%s41 + $0x2d] sm:$0x3]
  %v1092 = vld [vmem:[%s41 + $0x31] sm:$0x3]
  %v1093 = vld [vmem:[%s41 + $0x35] sm:$0x3]
  %v1094 = vld [vmem:[%s41 + $0x39] sm:$0x3]
  %v1095 = vld [vmem:[%s41 + $0x3d] sm:$0x3]
  %v1096 = vld [vmem:[%s41 + $0x49] sm:$0x3]
  %v1097 = vld [vmem:[%s41 + $0x4d] sm:$0x3]
  %v1098 = vld [vmem:[%s41 + $0x51] sm:$0x3]
  %v1099 = vld [vmem:[%s41 + $0x55] sm:$0x3]
  %v1100 = vld [vmem:[%s41 + $0x59] sm:$0x3]
  %v1101 = vld [vmem:[%s41 + $0x5d] sm:$0x3]
  %v1102 = vld [vmem:[%s41 + $0x61] sm:$0x3]
  %v1103 = vld [vmem:[%s41 + $0x65] sm:$0x3]
  %v1104 = vld [vmem:[%s41 + $0x69] sm:$0x3]
  %v1105 = vld [vmem:[%s41 + $0x6d] sm:$0x3]
  %v1106 = vld [vmem:[%s41 + $0x71] sm:$0x3]
  %v1107 = vld [vmem:[%s41 + $0x75] sm:$0x3]
  %v1108 = vld [vmem:[%s41 + $0x79] sm:$0x3]
  %v1109 = vld [vmem:[%s41 + $0x7d] sm:$0x3]
  %v1110 = vld [vmem:[%s41 + $0x81] sm:$0x3]
  %v1111 = vld [vmem:[%s41 + $0x85] sm:$0x3]
  %v1112 = vld [vmem:[%s41 + $0x2] sm:$0x3]
  %v1113 = vld [vmem:[%s41 + $0x6] sm:$0x3]
  %v1114 = vld [vmem:[%s41 + $0xa] sm:$0x3]
  %v1115 = vld [vmem:[%s41 + $0xe] sm:$0x3]
  %v1116 = vld [vmem:[%s41 + $0x12] sm:$0x3]
  %v1117 = vld [vmem:[%s41 + $0x16] sm:$0x3]
  %v1118 = vld [vmem:[%s41 + $0x1a] sm:$0x3]
  %v1119 = vld [vmem:[%s41 + $0x1e] sm:$0x3]
  %v1120 = vld [vmem:[%s41 + $0x22] sm:$0x3]
  %v1121 = vld [vmem:[%s41 + $0x26] sm:$0x3]
  %v1122 = vld [vmem:[%s41 + $0x2a] sm:$0x3]
  %v1123 = vld [vmem:[%s41 + $0x2e] sm:$0x3]
  %v1124 = vld [vmem:[%s41 + $0x32] sm:$0x3]
  %v1125 = vld [vmem:[%s41 + $0x36] sm:$0x3]
  %v1126 = vld [vmem:[%s41 + $0x3a] sm:$0x3]
  %v1127 = vld [vmem:[%s41 + $0x3e] sm:$0x3]
  %v1128 = vld [vmem:[%s41 + $0x4a] sm:$0x3]
  %v1129 = vld [vmem:[%s41 + $0x4e] sm:$0x3]
  %v1130 = vld [vmem:[%s41 + $0x52] sm:$0x3]
  %v1131 = vld [vmem:[%s41 + $0x56] sm:$0x3]
  %v1132 = vld [vmem:[%s41 + $0x5a] sm:$0x3]
  %v1133 = vld [vmem:[%s41 + $0x5e] sm:$0x3]
  %v1134 = vld [vmem:[%s41 + $0x62] sm:$0x3]
  %v1135 = vld [vmem:[%s41 + $0x66] sm:$0x3]
  %v1136 = vld [vmem:[%s41 + $0x6a] sm:$0x3]
  %v1137 = vld [vmem:[%s41 + $0x6e] sm:$0x3]
  %v1138 = vld [vmem:[%s41 + $0x72] sm:$0x3]
  %v1139 = vld [vmem:[%s41 + $0x76] sm:$0x3]
  %v1140 = vld [vmem:[%s41 + $0x7a] sm:$0x3]
  %v1141 = vld [vmem:[%s41 + $0x7e] sm:$0x3]
  %v1142 = vld [vmem:[%s41 + $0x82] sm:$0x3]
  %v1143 = vld [vmem:[%s41 + $0x86] sm:$0x3]
  %s1144 = scalar_lea.vmem [#allocation2], 8
  %v1145 = vld [vmem:[%s1144] sm:$0x3]
  %v1146 = vld [vmem:[%s1144 + $0x4] sm:$0x3]
  %v1147 = vld [vmem:[%s1144 + $0x8] sm:$0x3]
  %v1148 = vld [vmem:[%s1144 + $0xc] sm:$0x3]
  %v1149 = vld [vmem:[%s1144 + $0x10] sm:$0x3]
  %v1150 = vld [vmem:[%s1144 + $0x14] sm:$0x3]
  %v1151 = vld [vmem:[%s1144 + $0x18] sm:$0x3]
  %v1152 = vld [vmem:[%s1144 + $0x1c] sm:$0x3]
  %v1153 = vld [vmem:[%s1144 + $0x20] sm:$0x3]
  %v1154 = vld [vmem:[%s1144 + $0x24] sm:$0x3]
  %v1155 = vld [vmem:[%s1144 + $0x28] sm:$0x3]
  %v1156 = vld [vmem:[%s1144 + $0x2c] sm:$0x3]
  %v1157 = vld [vmem:[%s1144 + $0x30] sm:$0x3]
  %v1158 = vld [vmem:[%s1144 + $0x34] sm:$0x3]
  %v1159 = vld [vmem:[%s1144 + $0x38] sm:$0x3]
  %v1160 = vld [vmem:[%s1144 + $0x3c] sm:$0x3]
  %v1161 = vld [vmem:[%s1144 + $0x48] sm:$0x3]
  %v1162 = vld [vmem:[%s1144 + $0x4c] sm:$0x3]
  %v1163 = vld [vmem:[%s1144 + $0x50] sm:$0x3]
  %v1164 = vld [vmem:[%s1144 + $0x54] sm:$0x3]
  %v1165 = vld [vmem:[%s1144 + $0x58] sm:$0x3]
  %v1166 = vld [vmem:[%s1144 + $0x5c] sm:$0x3]
  %v1167 = vld [vmem:[%s1144 + $0x60] sm:$0x3]
  %v1168 = vld [vmem:[%s1144 + $0x64] sm:$0x3]
  %v1169 = vld [vmem:[%s1144 + $0x68] sm:$0x3]
  %v1170 = vld [vmem:[%s1144 + $0x6c] sm:$0x3]
  %v1171 = vld [vmem:[%s1144 + $0x70] sm:$0x3]
  %v1172 = vld [vmem:[%s1144 + $0x74] sm:$0x3]
  %v1173 = vld [vmem:[%s1144 + $0x78] sm:$0x3]
  %v1174 = vld [vmem:[%s1144 + $0x7c] sm:$0x3]
  %v1175 = vld [vmem:[%s1144 + $0x80] sm:$0x3]
  %v1176 = vld [vmem:[%s1144 + $0x84] sm:$0x3]
  %v1177 = vld [vmem:[%s1144 + $0x1] sm:$0x3]
  %v1178 = vld [vmem:[%s1144 + $0x5] sm:$0x3]
  %v1179 = vld [vmem:[%s1144 + $0x9] sm:$0x3]
  %v1180 = vld [vmem:[%s1144 + $0xd] sm:$0x3]
  %v1181 = vld [vmem:[%s1144 + $0x11] sm:$0x3]
  %v1182 = vld [vmem:[%s1144 + $0x15] sm:$0x3]
  %v1183 = vld [vmem:[%s1144 + $0x19] sm:$0x3]
  %v1184 = vld [vmem:[%s1144 + $0x1d] sm:$0x3]
  %v1185 = vld [vmem:[%s1144 + $0x21] sm:$0x3]
  %v1186 = vld [vmem:[%s1144 + $0x25] sm:$0x3]
  %v1187 = vld [vmem:[%s1144 + $0x29] sm:$0x3]
  %v1188 = vld [vmem:[%s1144 + $0x2d] sm:$0x3]
  %v1189 = vld [vmem:[%s1144 + $0x31] sm:$0x3]
  %v1190 = vld [vmem:[%s1144 + $0x35] sm:$0x3]
  %v1191 = vld [vmem:[%s1144 + $0x39] sm:$0x3]
  %v1192 = vld [vmem:[%s1144 + $0x3d] sm:$0x3]
  %v1193 = vld [vmem:[%s1144 + $0x49] sm:$0x3]
  %v1194 = vld [vmem:[%s1144 + $0x4d] sm:$0x3]
  %v1195 = vld [vmem:[%s1144 + $0x51] sm:$0x3]
  %v1196 = vld [vmem:[%s1144 + $0x55] sm:$0x3]
  %v1197 = vld [vmem:[%s1144 + $0x59] sm:$0x3]
  %v1198 = vld [vmem:[%s1144 + $0x5d] sm:$0x3]
  %v1199 = vld [vmem:[%s1144 + $0x61] sm:$0x3]
  %v1200 = vld [vmem:[%s1144 + $0x65] sm:$0x3]
  %v1201 = vld [vmem:[%s1144 + $0x69] sm:$0x3]
  %v1202 = vld [vmem:[%s1144 + $0x6d] sm:$0x3]
  %v1203 = vld [vmem:[%s1144 + $0x71] sm:$0x3]
  %v1204 = vld [vmem:[%s1144 + $0x75] sm:$0x3]
  %v1205 = vld [vmem:[%s1144 + $0x79] sm:$0x3]
  %v1206 = vld [vmem:[%s1144 + $0x7d] sm:$0x3]
  %v1207 = vld [vmem:[%s1144 + $0x81] sm:$0x3]
  %v1208 = vld [vmem:[%s1144 + $0x85] sm:$0x3]
  %v1209 = vld [vmem:[%s1144 + $0x2] sm:$0x3]
  %v1210 = vld [vmem:[%s1144 + $0x6] sm:$0x3]
  %v1211 = vld [vmem:[%s1144 + $0xa] sm:$0x3]
  %v1212 = vld [vmem:[%s1144 + $0xe] sm:$0x3]
  %v1213 = vld [vmem:[%s1144 + $0x12] sm:$0x3]
  %v1214 = vld [vmem:[%s1144 + $0x16] sm:$0x3]
  %v1215 = vld [vmem:[%s1144 + $0x1a] sm:$0x3]
  %v1216 = vld [vmem:[%s1144 + $0x1e] sm:$0x3]
  %v1217 = vld [vmem:[%s1144 + $0x22] sm:$0x3]
  %v1218 = vld [vmem:[%s1144 + $0x26] sm:$0x3]
  %v1219 = vld [vmem:[%s1144 + $0x2a] sm:$0x3]
  %v1220 = vld [vmem:[%s1144 + $0x2e] sm:$0x3]
  %v1221 = vld [vmem:[%s1144 + $0x32] sm:$0x3]
  %v1222 = vld [vmem:[%s1144 + $0x36] sm:$0x3]
  %v1223 = vld [vmem:[%s1144 + $0x3a] sm:$0x3]
  %v1224 = vld [vmem:[%s1144 + $0x3e] sm:$0x3]
  %v1225 = vld [vmem:[%s1144 + $0x4a] sm:$0x3]
  %v1226 = vld [vmem:[%s1144 + $0x4e] sm:$0x3]
  %v1227 = vld [vmem:[%s1144 + $0x52] sm:$0x3]
  %v1228 = vld [vmem:[%s1144 + $0x56] sm:$0x3]
  %v1229 = vld [vmem:[%s1144 + $0x5a] sm:$0x3]
  %v1230 = vld [vmem:[%s1144 + $0x5e] sm:$0x3]
  %v1231 = vld [vmem:[%s1144 + $0x62] sm:$0x3]
  %v1232 = vld [vmem:[%s1144 + $0x66] sm:$0x3]
  %v1233 = vld [vmem:[%s1144 + $0x6a] sm:$0x3]
  %v1234 = vld [vmem:[%s1144 + $0x6e] sm:$0x3]
  %v1235 = vld [vmem:[%s1144 + $0x72] sm:$0x3]
  %v1236 = vld [vmem:[%s1144 + $0x76] sm:$0x3]
  %v1237 = vld [vmem:[%s1144 + $0x7a] sm:$0x3]
  %v1238 = vld [vmem:[%s1144 + $0x7e] sm:$0x3]
  %v1239 = vld [vmem:[%s1144 + $0x82] sm:$0x3]
  %v1240 = vld [vmem:[%s1144 + $0x86] sm:$0x3]
  %v1529 = vcombine.low %v952, %v984
  %v1530 = vcombine.low %v1016, %v1048
  %v1532 = vunpack.c.l.s4 1983009808
  %v1533 = vunpack.c.0.s8 %v1532
  %v1534 = vlaneseq
  %v1535 = vshrl.u32 %v1534, 7
  %v1536 = vsub.s32 %v1533, %v1535
  %v1537 = vrot.slane %v1529, %v1536
  %v1539 = vunpack.c.l.s4 1983009808
  %v1540 = vunpack.c.0.s8 %v1539
  %v1541 = vlaneseq
  %v1542 = vshrl.u32 %v1541, 7
  %v1543 = vsub.s32 %v1540, %v1542
  %v1544 = vrot.slane %v1530, %v1543
  %v1545 = vcombine.low %v1537, %v1544
  %v1546 = vcombine.low %v1080, %v1112
  %v1547 = vcombine.low %v1145, %v1177
  %v1549 = vunpack.c.l.s4 1983009808
  %v1550 = vunpack.c.0.s8 %v1549
  %v1551 = vlaneseq
  %v1552 = vshrl.u32 %v1551, 7
  %v1553 = vsub.s32 %v1550, %v1552
  %v1554 = vrot.slane %v1546, %v1553
  %v1556 = vunpack.c.l.s4 1983009808
  %v1557 = vunpack.c.0.s8 %v1556
  %v1558 = vlaneseq
  %v1559 = vshrl.u32 %v1558, 7
  %v1560 = vsub.s32 %v1557, %v1559
  %v1561 = vrot.slane %v1547, %v1560
  %v1562 = vcombine.low %v1554, %v1561
  %v1564 = vunpack.c.l.s4 1983009808
  %v1565 = vunpack.c.0.s8 %v1564
  %v1566 = vlaneseq
  %v1567 = vshrl.u32 %v1566, 7
  %v1568 = vsub.s32 %v1565, %v1567
  %v1569 = vrot.slane %v1209, %v1568
  %v1570 = vcombine.low %v953, %v985
  %v1571 = vcombine.low %v1017, %v1049
  %v1573 = vunpack.c.l.s4 1983009808
  %v1574 = vunpack.c.0.s8 %v1573
  %v1575 = vlaneseq
  %v1576 = vshrl.u32 %v1575, 7
  %v1577 = vsub.s32 %v1574, %v1576
  %v1578 = vrot.slane %v1570, %v1577
  %v1580 = vunpack.c.l.s4 1983009808
  %v1581 = vunpack.c.0.s8 %v1580
  %v1582 = vlaneseq
  %v1583 = vshrl.u32 %v1582, 7
  %v1584 = vsub.s32 %v1581, %v1583
  %v1585 = vrot.slane %v1571, %v1584
  %v1586 = vcombine.low %v1578, %v1585
  %v1587 = vcombine.low %v1081, %v1113
  %v1588 = vcombine.low %v1146, %v1178
  %v1590 = vunpack.c.l.s4 1983009808
  %v1591 = vunpack.c.0.s8 %v1590
  %v1592 = vlaneseq
  %v1593 = vshrl.u32 %v1592, 7
  %v1594 = vsub.s32 %v1591, %v1593
  %v1595 = vrot.slane %v1587, %v1594
  %v1597 = vunpack.c.l.s4 1983009808
  %v1598 = vunpack.c.0.s8 %v1597
  %v1599 = vlaneseq
  %v1600 = vshrl.u32 %v1599, 7
  %v1601 = vsub.s32 %v1598, %v1600
  %v1602 = vrot.slane %v1588, %v1601
  %v1603 = vcombine.low %v1595, %v1602
  %v1605 = vunpack.c.l.s4 1983009808
  %v1606 = vunpack.c.0.s8 %v1605
  %v1607 = vlaneseq
  %v1608 = vshrl.u32 %v1607, 7
  %v1609 = vsub.s32 %v1606, %v1608
  %v1610 = vrot.slane %v1210, %v1609
  %v1611 = vcombine.low %v954, %v986
  %v1612 = vcombine.low %v1018, %v1050
  %v1614 = vunpack.c.l.s4 1983009808
  %v1615 = vunpack.c.0.s8 %v1614
  %v1616 = vlaneseq
  %v1617 = vshrl.u32 %v1616, 7
  %v1618 = vsub.s32 %v1615, %v1617
  %v1619 = vrot.slane %v1611, %v1618
  %v1621 = vunpack.c.l.s4 1983009808
  %v1622 = vunpack.c.0.s8 %v1621
  %v1623 = vlaneseq
  %v1624 = vshrl.u32 %v1623, 7
  %v1625 = vsub.s32 %v1622, %v1624
  %v1626 = vrot.slane %v1612, %v1625
  %v1627 = vcombine.low %v1619, %v1626
  %v1628 = vcombine.low %v1082, %v1114
  %v1629 = vcombine.low %v1147, %v1179
  %v1631 = vunpack.c.l.s4 1983009808
  %v1632 = vunpack.c.0.s8 %v1631
  %v1633 = vlaneseq
  %v1634 = vshrl.u32 %v1633, 7
  %v1635 = vsub.s32 %v1632, %v1634
  %v1636 = vrot.slane %v1628, %v1635
  %v1638 = vunpack.c.l.s4 1983009808
  %v1639 = vunpack.c.0.s8 %v1638
  %v1640 = vlaneseq
  %v1641 = vshrl.u32 %v1640, 7
  %v1642 = vsub.s32 %v1639, %v1641
  %v1643 = vrot.slane %v1629, %v1642
  %v1644 = vcombine.low %v1636, %v1643
  %v1646 = vunpack.c.l.s4 1983009808
  %v1647 = vunpack.c.0.s8 %v1646
  %v1648 = vlaneseq
  %v1649 = vshrl.u32 %v1648, 7
  %v1650 = vsub.s32 %v1647, %v1649
  %v1651 = vrot.slane %v1211, %v1650
  %v1652 = vcombine.low %v955, %v987
  %v1653 = vcombine.low %v1019, %v1051
  %v1655 = vunpack.c.l.s4 1983009808
  %v1656 = vunpack.c.0.s8 %v1655
  %v1657 = vlaneseq
  %v1658 = vshrl.u32 %v1657, 7
  %v1659 = vsub.s32 %v1656, %v1658
  %v1660 = vrot.slane %v1652, %v1659
  %v1662 = vunpack.c.l.s4 1983009808
  %v1663 = vunpack.c.0.s8 %v1662
  %v1664 = vlaneseq
  %v1665 = vshrl.u32 %v1664, 7
  %v1666 = vsub.s32 %v1663, %v1665
  %v1667 = vrot.slane %v1653, %v1666
  %v1668 = vcombine.low %v1660, %v1667
  %v1669 = vcombine.low %v1083, %v1115
  %v1670 = vcombine.low %v1148, %v1180
  %v1672 = vunpack.c.l.s4 1983009808
  %v1673 = vunpack.c.0.s8 %v1672
  %v1674 = vlaneseq
  %v1675 = vshrl.u32 %v1674, 7
  %v1676 = vsub.s32 %v1673, %v1675
  %v1677 = vrot.slane %v1669, %v1676
  %v1679 = vunpack.c.l.s4 1983009808
  %v1680 = vunpack.c.0.s8 %v1679
  %v1681 = vlaneseq
  %v1682 = vshrl.u32 %v1681, 7
  %v1683 = vsub.s32 %v1680, %v1682
  %v1684 = vrot.slane %v1670, %v1683
  %v1685 = vcombine.low %v1677, %v1684
  %v1687 = vunpack.c.l.s4 1983009808
  %v1688 = vunpack.c.0.s8 %v1687
  %v1689 = vlaneseq
  %v1690 = vshrl.u32 %v1689, 7
  %v1691 = vsub.s32 %v1688, %v1690
  %v1692 = vrot.slane %v1212, %v1691
  %v1693 = vcombine.low %v956, %v988
  %v1694 = vcombine.low %v1020, %v1052
  %v1696 = vunpack.c.l.s4 1983009808
  %v1697 = vunpack.c.0.s8 %v1696
  %v1698 = vlaneseq
  %v1699 = vshrl.u32 %v1698, 7
  %v1700 = vsub.s32 %v1697, %v1699
  %v1701 = vrot.slane %v1693, %v1700
  %v1703 = vunpack.c.l.s4 1983009808
  %v1704 = vunpack.c.0.s8 %v1703
  %v1705 = vlaneseq
  %v1706 = vshrl.u32 %v1705, 7
  %v1707 = vsub.s32 %v1704, %v1706
  %v1708 = vrot.slane %v1694, %v1707
  %v1709 = vcombine.low %v1701, %v1708
  %v1710 = vcombine.low %v1084, %v1116
  %v1711 = vcombine.low %v1149, %v1181
  %v1713 = vunpack.c.l.s4 1983009808
  %v1714 = vunpack.c.0.s8 %v1713
  %v1715 = vlaneseq
  %v1716 = vshrl.u32 %v1715, 7
  %v1717 = vsub.s32 %v1714, %v1716
  %v1718 = vrot.slane %v1710, %v1717
  %v1720 = vunpack.c.l.s4 1983009808
  %v1721 = vunpack.c.0.s8 %v1720
  %v1722 = vlaneseq
  %v1723 = vshrl.u32 %v1722, 7
  %v1724 = vsub.s32 %v1721, %v1723
  %v1725 = vrot.slane %v1711, %v1724
  %v1726 = vcombine.low %v1718, %v1725
  %v1728 = vunpack.c.l.s4 1983009808
  %v1729 = vunpack.c.0.s8 %v1728
  %v1730 = vlaneseq
  %v1731 = vshrl.u32 %v1730, 7
  %v1732 = vsub.s32 %v1729, %v1731
  %v1733 = vrot.slane %v1213, %v1732
  %v1734 = vcombine.low %v957, %v989
  %v1735 = vcombine.low %v1021, %v1053
  %v1737 = vunpack.c.l.s4 1983009808
  %v1738 = vunpack.c.0.s8 %v1737
  %v1739 = vlaneseq
  %v1740 = vshrl.u32 %v1739, 7
  %v1741 = vsub.s32 %v1738, %v1740
  %v1742 = vrot.slane %v1734, %v1741
  %v1744 = vunpack.c.l.s4 1983009808
  %v1745 = vunpack.c.0.s8 %v1744
  %v1746 = vlaneseq
  %v1747 = vshrl.u32 %v1746, 7
  %v1748 = vsub.s32 %v1745, %v1747
  %v1749 = vrot.slane %v1735, %v1748
  %v1750 = vcombine.low %v1742, %v1749
  %v1751 = vcombine.low %v1085, %v1117
  %v1752 = vcombine.low %v1150, %v1182
  %v1754 = vunpack.c.l.s4 1983009808
  %v1755 = vunpack.c.0.s8 %v1754
  %v1756 = vlaneseq
  %v1757 = vshrl.u32 %v1756, 7
  %v1758 = vsub.s32 %v1755, %v1757
  %v1759 = vrot.slane %v1751, %v1758
  %v1761 = vunpack.c.l.s4 1983009808
  %v1762 = vunpack.c.0.s8 %v1761
  %v1763 = vlaneseq
  %v1764 = vshrl.u32 %v1763, 7
  %v1765 = vsub.s32 %v1762, %v1764
  %v1766 = vrot.slane %v1752, %v1765
  %v1767 = vcombine.low %v1759, %v1766
  %v1769 = vunpack.c.l.s4 1983009808
  %v1770 = vunpack.c.0.s8 %v1769
  %v1771 = vlaneseq
  %v1772 = vshrl.u32 %v1771, 7
  %v1773 = vsub.s32 %v1770, %v1772
  %v1774 = vrot.slane %v1214, %v1773
  %v1775 = vcombine.low %v958, %v990
  %v1776 = vcombine.low %v1022, %v1054
  %v1778 = vunpack.c.l.s4 1983009808
  %v1779 = vunpack.c.0.s8 %v1778
  %v1780 = vlaneseq
  %v1781 = vshrl.u32 %v1780, 7
  %v1782 = vsub.s32 %v1779, %v1781
  %v1783 = vrot.slane %v1775, %v1782
  %v1785 = vunpack.c.l.s4 1983009808
  %v1786 = vunpack.c.0.s8 %v1785
  %v1787 = vlaneseq
  %v1788 = vshrl.u32 %v1787, 7
  %v1789 = vsub.s32 %v1786, %v1788
  %v1790 = vrot.slane %v1776, %v1789
  %v1791 = vcombine.low %v1783, %v1790
  %v1792 = vcombine.low %v1086, %v1118
  %v1793 = vcombine.low %v1151, %v1183
  %v1795 = vunpack.c.l.s4 1983009808
  %v1796 = vunpack.c.0.s8 %v1795
  %v1797 = vlaneseq
  %v1798 = vshrl.u32 %v1797, 7
  %v1799 = vsub.s32 %v1796, %v1798
  %v1800 = vrot.slane %v1792, %v1799
  %v1802 = vunpack.c.l.s4 1983009808
  %v1803 = vunpack.c.0.s8 %v1802
  %v1804 = vlaneseq
  %v1805 = vshrl.u32 %v1804, 7
  %v1806 = vsub.s32 %v1803, %v1805
  %v1807 = vrot.slane %v1793, %v1806
  %v1808 = vcombine.low %v1800, %v1807
  %v1810 = vunpack.c.l.s4 1983009808
  %v1811 = vunpack.c.0.s8 %v1810
  %v1812 = vlaneseq
  %v1813 = vshrl.u32 %v1812, 7
  %v1814 = vsub.s32 %v1811, %v1813
  %v1815 = vrot.slane %v1215, %v1814
  %v1816 = vcombine.low %v959, %v991
  %v1817 = vcombine.low %v1023, %v1055
  %v1819 = vunpack.c.l.s4 1983009808
  %v1820 = vunpack.c.0.s8 %v1819
  %v1821 = vlaneseq
  %v1822 = vshrl.u32 %v1821, 7
  %v1823 = vsub.s32 %v1820, %v1822
  %v1824 = vrot.slane %v1816, %v1823
  %v1826 = vunpack.c.l.s4 1983009808
  %v1827 = vunpack.c.0.s8 %v1826
  %v1828 = vlaneseq
  %v1829 = vshrl.u32 %v1828, 7
  %v1830 = vsub.s32 %v1827, %v1829
  %v1831 = vrot.slane %v1817, %v1830
  %v1832 = vcombine.low %v1824, %v1831
  %v1833 = vcombine.low %v1087, %v1119
  %v1834 = vcombine.low %v1152, %v1184
  %v1836 = vunpack.c.l.s4 1983009808
  %v1837 = vunpack.c.0.s8 %v1836
  %v1838 = vlaneseq
  %v1839 = vshrl.u32 %v1838, 7
  %v1840 = vsub.s32 %v1837, %v1839
  %v1841 = vrot.slane %v1833, %v1840
  %v1843 = vunpack.c.l.s4 1983009808
  %v1844 = vunpack.c.0.s8 %v1843
  %v1845 = vlaneseq
  %v1846 = vshrl.u32 %v1845, 7
  %v1847 = vsub.s32 %v1844, %v1846
  %v1848 = vrot.slane %v1834, %v1847
  %v1849 = vcombine.low %v1841, %v1848
  %v1851 = vunpack.c.l.s4 1983009808
  %v1852 = vunpack.c.0.s8 %v1851
  %v1853 = vlaneseq
  %v1854 = vshrl.u32 %v1853, 7
  %v1855 = vsub.s32 %v1852, %v1854
  %v1856 = vrot.slane %v1216, %v1855
  %v1857 = vcombine.low %v960, %v992
  %v1858 = vcombine.low %v1024, %v1056
  %v1860 = vunpack.c.l.s4 1983009808
  %v1861 = vunpack.c.0.s8 %v1860
  %v1862 = vlaneseq
  %v1863 = vshrl.u32 %v1862, 7
  %v1864 = vsub.s32 %v1861, %v1863
  %v1865 = vrot.slane %v1857, %v1864
  %v1867 = vunpack.c.l.s4 1983009808
  %v1868 = vunpack.c.0.s8 %v1867
  %v1869 = vlaneseq
  %v1870 = vshrl.u32 %v1869, 7
  %v1871 = vsub.s32 %v1868, %v1870
  %v1872 = vrot.slane %v1858, %v1871
  %v1873 = vcombine.low %v1865, %v1872
  %v1874 = vcombine.low %v1088, %v1120
  %v1875 = vcombine.low %v1153, %v1185
  %v1877 = vunpack.c.l.s4 1983009808
  %v1878 = vunpack.c.0.s8 %v1877
  %v1879 = vlaneseq
  %v1880 = vshrl.u32 %v1879, 7
  %v1881 = vsub.s32 %v1878, %v1880
  %v1882 = vrot.slane %v1874, %v1881
  %v1884 = vunpack.c.l.s4 1983009808
  %v1885 = vunpack.c.0.s8 %v1884
  %v1886 = vlaneseq
  %v1887 = vshrl.u32 %v1886, 7
  %v1888 = vsub.s32 %v1885, %v1887
  %v1889 = vrot.slane %v1875, %v1888
  %v1890 = vcombine.low %v1882, %v1889
  %v1892 = vunpack.c.l.s4 1983009808
  %v1893 = vunpack.c.0.s8 %v1892
  %v1894 = vlaneseq
  %v1895 = vshrl.u32 %v1894, 7
  %v1896 = vsub.s32 %v1893, %v1895
  %v1897 = vrot.slane %v1217, %v1896
  %v1898 = vcombine.low %v961, %v993
  %v1899 = vcombine.low %v1025, %v1057
  %v1901 = vunpack.c.l.s4 1983009808
  %v1902 = vunpack.c.0.s8 %v1901
  %v1903 = vlaneseq
  %v1904 = vshrl.u32 %v1903, 7
  %v1905 = vsub.s32 %v1902, %v1904
  %v1906 = vrot.slane %v1898, %v1905
  %v1908 = vunpack.c.l.s4 1983009808
  %v1909 = vunpack.c.0.s8 %v1908
  %v1910 = vlaneseq
  %v1911 = vshrl.u32 %v1910, 7
  %v1912 = vsub.s32 %v1909, %v1911
  %v1913 = vrot.slane %v1899, %v1912
  %v1914 = vcombine.low %v1906, %v1913
  %v1915 = vcombine.low %v1089, %v1121
  %v1916 = vcombine.low %v1154, %v1186
  %v1918 = vunpack.c.l.s4 1983009808
  %v1919 = vunpack.c.0.s8 %v1918
  %v1920 = vlaneseq
  %v1921 = vshrl.u32 %v1920, 7
  %v1922 = vsub.s32 %v1919, %v1921
  %v1923 = vrot.slane %v1915, %v1922
  %v1925 = vunpack.c.l.s4 1983009808
  %v1926 = vunpack.c.0.s8 %v1925
  %v1927 = vlaneseq
  %v1928 = vshrl.u32 %v1927, 7
  %v1929 = vsub.s32 %v1926, %v1928
  %v1930 = vrot.slane %v1916, %v1929
  %v1931 = vcombine.low %v1923, %v1930
  %v1933 = vunpack.c.l.s4 1983009808
  %v1934 = vunpack.c.0.s8 %v1933
  %v1935 = vlaneseq
  %v1936 = vshrl.u32 %v1935, 7
  %v1937 = vsub.s32 %v1934, %v1936
  %v1938 = vrot.slane %v1218, %v1937
  %v1939 = vcombine.low %v962, %v994
  %v1940 = vcombine.low %v1026, %v1058
  %v1942 = vunpack.c.l.s4 1983009808
  %v1943 = vunpack.c.0.s8 %v1942
  %v1944 = vlaneseq
  %v1945 = vshrl.u32 %v1944, 7
  %v1946 = vsub.s32 %v1943, %v1945
  %v1947 = vrot.slane %v1939, %v1946
  %v1949 = vunpack.c.l.s4 1983009808
  %v1950 = vunpack.c.0.s8 %v1949
  %v1951 = vlaneseq
  %v1952 = vshrl.u32 %v1951, 7
  %v1953 = vsub.s32 %v1950, %v1952
  %v1954 = vrot.slane %v1940, %v1953
  %v1955 = vcombine.low %v1947, %v1954
  %v1956 = vcombine.low %v1090, %v1122
  %v1957 = vcombine.low %v1155, %v1187
  %v1959 = vunpack.c.l.s4 1983009808
  %v1960 = vunpack.c.0.s8 %v1959
  %v1961 = vlaneseq
  %v1962 = vshrl.u32 %v1961, 7
  %v1963 = vsub.s32 %v1960, %v1962
  %v1964 = vrot.slane %v1956, %v1963
  %v1966 = vunpack.c.l.s4 1983009808
  %v1967 = vunpack.c.0.s8 %v1966
  %v1968 = vlaneseq
  %v1969 = vshrl.u32 %v1968, 7
  %v1970 = vsub.s32 %v1967, %v1969
  %v1971 = vrot.slane %v1957, %v1970
  %v1972 = vcombine.low %v1964, %v1971
  %v1974 = vunpack.c.l.s4 1983009808
  %v1975 = vunpack.c.0.s8 %v1974
  %v1976 = vlaneseq
  %v1977 = vshrl.u32 %v1976, 7
  %v1978 = vsub.s32 %v1975, %v1977
  %v1979 = vrot.slane %v1219, %v1978
  %v1980 = vcombine.low %v963, %v995
  %v1981 = vcombine.low %v1027, %v1059
  %v1983 = vunpack.c.l.s4 1983009808
  %v1984 = vunpack.c.0.s8 %v1983
  %v1985 = vlaneseq
  %v1986 = vshrl.u32 %v1985, 7
  %v1987 = vsub.s32 %v1984, %v1986
  %v1988 = vrot.slane %v1980, %v1987
  %v1990 = vunpack.c.l.s4 1983009808
  %v1991 = vunpack.c.0.s8 %v1990
  %v1992 = vlaneseq
  %v1993 = vshrl.u32 %v1992, 7
  %v1994 = vsub.s32 %v1991, %v1993
  %v1995 = vrot.slane %v1981, %v1994
  %v1996 = vcombine.low %v1988, %v1995
  %v1997 = vcombine.low %v1091, %v1123
  %v1998 = vcombine.low %v1156, %v1188
  %v2000 = vunpack.c.l.s4 1983009808
  %v2001 = vunpack.c.0.s8 %v2000
  %v2002 = vlaneseq
  %v2003 = vshrl.u32 %v2002, 7
  %v2004 = vsub.s32 %v2001, %v2003
  %v2005 = vrot.slane %v1997, %v2004
  %v2007 = vunpack.c.l.s4 1983009808
  %v2008 = vunpack.c.0.s8 %v2007
  %v2009 = vlaneseq
  %v2010 = vshrl.u32 %v2009, 7
  %v2011 = vsub.s32 %v2008, %v2010
  %v2012 = vrot.slane %v1998, %v2011
  %v2013 = vcombine.low %v2005, %v2012
  %v2015 = vunpack.c.l.s4 1983009808
  %v2016 = vunpack.c.0.s8 %v2015
  %v2017 = vlaneseq
  %v2018 = vshrl.u32 %v2017, 7
  %v2019 = vsub.s32 %v2016, %v2018
  %v2020 = vrot.slane %v1220, %v2019
  %v2021 = vcombine.low %v964, %v996
  %v2022 = vcombine.low %v1028, %v1060
  %v2024 = vunpack.c.l.s4 1983009808
  %v2025 = vunpack.c.0.s8 %v2024
  %v2026 = vlaneseq
  %v2027 = vshrl.u32 %v2026, 7
  %v2028 = vsub.s32 %v2025, %v2027
  %v2029 = vrot.slane %v2021, %v2028
  %v2031 = vunpack.c.l.s4 1983009808
  %v2032 = vunpack.c.0.s8 %v2031
  %v2033 = vlaneseq
  %v2034 = vshrl.u32 %v2033, 7
  %v2035 = vsub.s32 %v2032, %v2034
  %v2036 = vrot.slane %v2022, %v2035
  %v2037 = vcombine.low %v2029, %v2036
  %v2038 = vcombine.low %v1092, %v1124
  %v2039 = vcombine.low %v1157, %v1189
  %v2041 = vunpack.c.l.s4 1983009808
  %v2042 = vunpack.c.0.s8 %v2041
  %v2043 = vlaneseq
  %v2044 = vshrl.u32 %v2043, 7
  %v2045 = vsub.s32 %v2042, %v2044
  %v2046 = vrot.slane %v2038, %v2045
  %v2048 = vunpack.c.l.s4 1983009808
  %v2049 = vunpack.c.0.s8 %v2048
  %v2050 = vlaneseq
  %v2051 = vshrl.u32 %v2050, 7
  %v2052 = vsub.s32 %v2049, %v2051
  %v2053 = vrot.slane %v2039, %v2052
  %v2054 = vcombine.low %v2046, %v2053
  %v2056 = vunpack.c.l.s4 1983009808
  %v2057 = vunpack.c.0.s8 %v2056
  %v2058 = vlaneseq
  %v2059 = vshrl.u32 %v2058, 7
  %v2060 = vsub.s32 %v2057, %v2059
  %v2061 = vrot.slane %v1221, %v2060
  %v2062 = vcombine.low %v965, %v997
  %v2063 = vcombine.low %v1029, %v1061
  %v2065 = vunpack.c.l.s4 1983009808
  %v2066 = vunpack.c.0.s8 %v2065
  %v2067 = vlaneseq
  %v2068 = vshrl.u32 %v2067, 7
  %v2069 = vsub.s32 %v2066, %v2068
  %v2070 = vrot.slane %v2062, %v2069
  %v2072 = vunpack.c.l.s4 1983009808
  %v2073 = vunpack.c.0.s8 %v2072
  %v2074 = vlaneseq
  %v2075 = vshrl.u32 %v2074, 7
  %v2076 = vsub.s32 %v2073, %v2075
  %v2077 = vrot.slane %v2063, %v2076
  %v2078 = vcombine.low %v2070, %v2077
  %v2079 = vcombine.low %v1093, %v1125
  %v2080 = vcombine.low %v1158, %v1190
  %v2082 = vunpack.c.l.s4 1983009808
  %v2083 = vunpack.c.0.s8 %v2082
  %v2084 = vlaneseq
  %v2085 = vshrl.u32 %v2084, 7
  %v2086 = vsub.s32 %v2083, %v2085
  %v2087 = vrot.slane %v2079, %v2086
  %v2089 = vunpack.c.l.s4 1983009808
  %v2090 = vunpack.c.0.s8 %v2089
  %v2091 = vlaneseq
  %v2092 = vshrl.u32 %v2091, 7
  %v2093 = vsub.s32 %v2090, %v2092
  %v2094 = vrot.slane %v2080, %v2093
  %v2095 = vcombine.low %v2087, %v2094
  %v2097 = vunpack.c.l.s4 1983009808
  %v2098 = vunpack.c.0.s8 %v2097
  %v2099 = vlaneseq
  %v2100 = vshrl.u32 %v2099, 7
  %v2101 = vsub.s32 %v2098, %v2100
  %v2102 = vrot.slane %v1222, %v2101
  %v2103 = vcombine.low %v966, %v998
  %v2104 = vcombine.low %v1030, %v1062
  %v2106 = vunpack.c.l.s4 1983009808
  %v2107 = vunpack.c.0.s8 %v2106
  %v2108 = vlaneseq
  %v2109 = vshrl.u32 %v2108, 7
  %v2110 = vsub.s32 %v2107, %v2109
  %v2111 = vrot.slane %v2103, %v2110
  %v2113 = vunpack.c.l.s4 1983009808
  %v2114 = vunpack.c.0.s8 %v2113
  %v2115 = vlaneseq
  %v2116 = vshrl.u32 %v2115, 7
  %v2117 = vsub.s32 %v2114, %v2116
  %v2118 = vrot.slane %v2104, %v2117
  %v2119 = vcombine.low %v2111, %v2118
  %v2120 = vcombine.low %v1094, %v1126
  %v2121 = vcombine.low %v1159, %v1191
  %v2123 = vunpack.c.l.s4 1983009808
  %v2124 = vunpack.c.0.s8 %v2123
  %v2125 = vlaneseq
  %v2126 = vshrl.u32 %v2125, 7
  %v2127 = vsub.s32 %v2124, %v2126
  %v2128 = vrot.slane %v2120, %v2127
  %v2130 = vunpack.c.l.s4 1983009808
  %v2131 = vunpack.c.0.s8 %v2130
  %v2132 = vlaneseq
  %v2133 = vshrl.u32 %v2132, 7
  %v2134 = vsub.s32 %v2131, %v2133
  %v2135 = vrot.slane %v2121, %v2134
  %v2136 = vcombine.low %v2128, %v2135
  %v2138 = vunpack.c.l.s4 1983009808
  %v2139 = vunpack.c.0.s8 %v2138
  %v2140 = vlaneseq
  %v2141 = vshrl.u32 %v2140, 7
  %v2142 = vsub.s32 %v2139, %v2141
  %v2143 = vrot.slane %v1223, %v2142
  %v2144 = vcombine.low %v967, %v999
  %v2145 = vcombine.low %v1031, %v1063
  %v2147 = vunpack.c.l.s4 1983009808
  %v2148 = vunpack.c.0.s8 %v2147
  %v2149 = vlaneseq
  %v2150 = vshrl.u32 %v2149, 7
  %v2151 = vsub.s32 %v2148, %v2150
  %v2152 = vrot.slane %v2144, %v2151
  %v2154 = vunpack.c.l.s4 1983009808
  %v2155 = vunpack.c.0.s8 %v2154
  %v2156 = vlaneseq
  %v2157 = vshrl.u32 %v2156, 7
  %v2158 = vsub.s32 %v2155, %v2157
  %v2159 = vrot.slane %v2145, %v2158
  %v2160 = vcombine.low %v2152, %v2159
  %v2161 = vcombine.low %v1095, %v1127
  %v2162 = vcombine.low %v1160, %v1192
  %v2164 = vunpack.c.l.s4 1983009808
  %v2165 = vunpack.c.0.s8 %v2164
  %v2166 = vlaneseq
  %v2167 = vshrl.u32 %v2166, 7
  %v2168 = vsub.s32 %v2165, %v2167
  %v2169 = vrot.slane %v2161, %v2168
  %v2171 = vunpack.c.l.s4 1983009808
  %v2172 = vunpack.c.0.s8 %v2171
  %v2173 = vlaneseq
  %v2174 = vshrl.u32 %v2173, 7
  %v2175 = vsub.s32 %v2172, %v2174
  %v2176 = vrot.slane %v2162, %v2175
  %v2177 = vcombine.low %v2169, %v2176
  %v2179 = vunpack.c.l.s4 1983009808
  %v2180 = vunpack.c.0.s8 %v2179
  %v2181 = vlaneseq
  %v2182 = vshrl.u32 %v2181, 7
  %v2183 = vsub.s32 %v2180, %v2182
  %v2184 = vrot.slane %v1224, %v2183
  %v2185 = vcombine.low %v968, %v1000
  %v2186 = vcombine.low %v1032, %v1064
  %v2188 = vunpack.c.l.s4 1983009808
  %v2189 = vunpack.c.0.s8 %v2188
  %v2190 = vlaneseq
  %v2191 = vshrl.u32 %v2190, 7
  %v2192 = vsub.s32 %v2189, %v2191
  %v2193 = vrot.slane %v2185, %v2192
  %v2195 = vunpack.c.l.s4 1983009808
  %v2196 = vunpack.c.0.s8 %v2195
  %v2197 = vlaneseq
  %v2198 = vshrl.u32 %v2197, 7
  %v2199 = vsub.s32 %v2196, %v2198
  %v2200 = vrot.slane %v2186, %v2199
  %v2201 = vcombine.low %v2193, %v2200
  %v2202 = vcombine.low %v1096, %v1128
  %v2203 = vcombine.low %v1161, %v1193
  %v2205 = vunpack.c.l.s4 1983009808
  %v2206 = vunpack.c.0.s8 %v2205
  %v2207 = vlaneseq
  %v2208 = vshrl.u32 %v2207, 7
  %v2209 = vsub.s32 %v2206, %v2208
  %v2210 = vrot.slane %v2202, %v2209
  %v2212 = vunpack.c.l.s4 1983009808
  %v2213 = vunpack.c.0.s8 %v2212
  %v2214 = vlaneseq
  %v2215 = vshrl.u32 %v2214, 7
  %v2216 = vsub.s32 %v2213, %v2215
  %v2217 = vrot.slane %v2203, %v2216
  %v2218 = vcombine.low %v2210, %v2217
  %v2220 = vunpack.c.l.s4 1983009808
  %v2221 = vunpack.c.0.s8 %v2220
  %v2222 = vlaneseq
  %v2223 = vshrl.u32 %v2222, 7
  %v2224 = vsub.s32 %v2221, %v2223
  %v2225 = vrot.slane %v1225, %v2224
  %v2226 = vcombine.low %v969, %v1001
  %v2227 = vcombine.low %v1033, %v1065
  %v2229 = vunpack.c.l.s4 1983009808
  %v2230 = vunpack.c.0.s8 %v2229
  %v2231 = vlaneseq
  %v2232 = vshrl.u32 %v2231, 7
  %v2233 = vsub.s32 %v2230, %v2232
  %v2234 = vrot.slane %v2226, %v2233
  %v2236 = vunpack.c.l.s4 1983009808
  %v2237 = vunpack.c.0.s8 %v2236
  %v2238 = vlaneseq
  %v2239 = vshrl.u32 %v2238, 7
  %v2240 = vsub.s32 %v2237, %v2239
  %v2241 = vrot.slane %v2227, %v2240
  %v2242 = vcombine.low %v2234, %v2241
  %v2243 = vcombine.low %v1097, %v1129
  %v2244 = vcombine.low %v1162, %v1194
  %v2246 = vunpack.c.l.s4 1983009808
  %v2247 = vunpack.c.0.s8 %v2246
  %v2248 = vlaneseq
  %v2249 = vshrl.u32 %v2248, 7
  %v2250 = vsub.s32 %v2247, %v2249
  %v2251 = vrot.slane %v2243, %v2250
  %v2253 = vunpack.c.l.s4 1983009808
  %v2254 = vunpack.c.0.s8 %v2253
  %v2255 = vlaneseq
  %v2256 = vshrl.u32 %v2255, 7
  %v2257 = vsub.s32 %v2254, %v2256
  %v2258 = vrot.slane %v2244, %v2257
  %v2259 = vcombine.low %v2251, %v2258
  %v2261 = vunpack.c.l.s4 1983009808
  %v2262 = vunpack.c.0.s8 %v2261
  %v2263 = vlaneseq
  %v2264 = vshrl.u32 %v2263, 7
  %v2265 = vsub.s32 %v2262, %v2264
  %v2266 = vrot.slane %v1226, %v2265
  %v2267 = vcombine.low %v970, %v1002
  %v2268 = vcombine.low %v1034, %v1066
  %v2270 = vunpack.c.l.s4 1983009808
  %v2271 = vunpack.c.0.s8 %v2270
  %v2272 = vlaneseq
  %v2273 = vshrl.u32 %v2272, 7
  %v2274 = vsub.s32 %v2271, %v2273
  %v2275 = vrot.slane %v2267, %v2274
  %v2277 = vunpack.c.l.s4 1983009808
  %v2278 = vunpack.c.0.s8 %v2277
  %v2279 = vlaneseq
  %v2280 = vshrl.u32 %v2279, 7
  %v2281 = vsub.s32 %v2278, %v2280
  %v2282 = vrot.slane %v2268, %v2281
  %v2283 = vcombine.low %v2275, %v2282
  %v2284 = vcombine.low %v1098, %v1130
  %v2285 = vcombine.low %v1163, %v1195
  %v2287 = vunpack.c.l.s4 1983009808
  %v2288 = vunpack.c.0.s8 %v2287
  %v2289 = vlaneseq
  %v2290 = vshrl.u32 %v2289, 7
  %v2291 = vsub.s32 %v2288, %v2290
  %v2292 = vrot.slane %v2284, %v2291
  %v2294 = vunpack.c.l.s4 1983009808
  %v2295 = vunpack.c.0.s8 %v2294
  %v2296 = vlaneseq
  %v2297 = vshrl.u32 %v2296, 7
  %v2298 = vsub.s32 %v2295, %v2297
  %v2299 = vrot.slane %v2285, %v2298
  %v2300 = vcombine.low %v2292, %v2299
  %v2302 = vunpack.c.l.s4 1983009808
  %v2303 = vunpack.c.0.s8 %v2302
  %v2304 = vlaneseq
  %v2305 = vshrl.u32 %v2304, 7
  %v2306 = vsub.s32 %v2303, %v2305
  %v2307 = vrot.slane %v1227, %v2306
  %v2308 = vcombine.low %v971, %v1003
  %v2309 = vcombine.low %v1035, %v1067
  %v2311 = vunpack.c.l.s4 1983009808
  %v2312 = vunpack.c.0.s8 %v2311
  %v2313 = vlaneseq
  %v2314 = vshrl.u32 %v2313, 7
  %v2315 = vsub.s32 %v2312, %v2314
  %v2316 = vrot.slane %v2308, %v2315
  %v2318 = vunpack.c.l.s4 1983009808
  %v2319 = vunpack.c.0.s8 %v2318
  %v2320 = vlaneseq
  %v2321 = vshrl.u32 %v2320, 7
  %v2322 = vsub.s32 %v2319, %v2321
  %v2323 = vrot.slane %v2309, %v2322
  %v2324 = vcombine.low %v2316, %v2323
  %v2325 = vcombine.low %v1099, %v1131
  %v2326 = vcombine.low %v1164, %v1196
  %v2328 = vunpack.c.l.s4 1983009808
  %v2329 = vunpack.c.0.s8 %v2328
  %v2330 = vlaneseq
  %v2331 = vshrl.u32 %v2330, 7
  %v2332 = vsub.s32 %v2329, %v2331
  %v2333 = vrot.slane %v2325, %v2332
  %v2335 = vunpack.c.l.s4 1983009808
  %v2336 = vunpack.c.0.s8 %v2335
  %v2337 = vlaneseq
  %v2338 = vshrl.u32 %v2337, 7
  %v2339 = vsub.s32 %v2336, %v2338
  %v2340 = vrot.slane %v2326, %v2339
  %v2341 = vcombine.low %v2333, %v2340
  %v2343 = vunpack.c.l.s4 1983009808
  %v2344 = vunpack.c.0.s8 %v2343
  %v2345 = vlaneseq
  %v2346 = vshrl.u32 %v2345, 7
  %v2347 = vsub.s32 %v2344, %v2346
  %v2348 = vrot.slane %v1228, %v2347
  %v2349 = vcombine.low %v972, %v1004
  %v2350 = vcombine.low %v1036, %v1068
  %v2352 = vunpack.c.l.s4 1983009808
  %v2353 = vunpack.c.0.s8 %v2352
  %v2354 = vlaneseq
  %v2355 = vshrl.u32 %v2354, 7
  %v2356 = vsub.s32 %v2353, %v2355
  %v2357 = vrot.slane %v2349, %v2356
  %v2359 = vunpack.c.l.s4 1983009808
  %v2360 = vunpack.c.0.s8 %v2359
  %v2361 = vlaneseq
  %v2362 = vshrl.u32 %v2361, 7
  %v2363 = vsub.s32 %v2360, %v2362
  %v2364 = vrot.slane %v2350, %v2363
  %v2365 = vcombine.low %v2357, %v2364
  %v2366 = vcombine.low %v1100, %v1132
  %v2367 = vcombine.low %v1165, %v1197
  %v2369 = vunpack.c.l.s4 1983009808
  %v2370 = vunpack.c.0.s8 %v2369
  %v2371 = vlaneseq
  %v2372 = vshrl.u32 %v2371, 7
  %v2373 = vsub.s32 %v2370, %v2372
  %v2374 = vrot.slane %v2366, %v2373
  %v2376 = vunpack.c.l.s4 1983009808
  %v2377 = vunpack.c.0.s8 %v2376
  %v2378 = vlaneseq
  %v2379 = vshrl.u32 %v2378, 7
  %v2380 = vsub.s32 %v2377, %v2379
  %v2381 = vrot.slane %v2367, %v2380
  %v2382 = vcombine.low %v2374, %v2381
  %v2384 = vunpack.c.l.s4 1983009808
  %v2385 = vunpack.c.0.s8 %v2384
  %v2386 = vlaneseq
  %v2387 = vshrl.u32 %v2386, 7
  %v2388 = vsub.s32 %v2385, %v2387
  %v2389 = vrot.slane %v1229, %v2388
  %v2390 = vcombine.low %v973, %v1005
  %v2391 = vcombine.low %v1037, %v1069
  %v2393 = vunpack.c.l.s4 1983009808
  %v2394 = vunpack.c.0.s8 %v2393
  %v2395 = vlaneseq
  %v2396 = vshrl.u32 %v2395, 7
  %v2397 = vsub.s32 %v2394, %v2396
  %v2398 = vrot.slane %v2390, %v2397
  %v2400 = vunpack.c.l.s4 1983009808
  %v2401 = vunpack.c.0.s8 %v2400
  %v2402 = vlaneseq
  %v2403 = vshrl.u32 %v2402, 7
  %v2404 = vsub.s32 %v2401, %v2403
  %v2405 = vrot.slane %v2391, %v2404
  %v2406 = vcombine.low %v2398, %v2405
  %v2407 = vcombine.low %v1101, %v1133
  %v2408 = vcombine.low %v1166, %v1198
  %v2410 = vunpack.c.l.s4 1983009808
  %v2411 = vunpack.c.0.s8 %v2410
  %v2412 = vlaneseq
  %v2413 = vshrl.u32 %v2412, 7
  %v2414 = vsub.s32 %v2411, %v2413
  %v2415 = vrot.slane %v2407, %v2414
  %v2417 = vunpack.c.l.s4 1983009808
  %v2418 = vunpack.c.0.s8 %v2417
  %v2419 = vlaneseq
  %v2420 = vshrl.u32 %v2419, 7
  %v2421 = vsub.s32 %v2418, %v2420
  %v2422 = vrot.slane %v2408, %v2421
  %v2423 = vcombine.low %v2415, %v2422
  %v2425 = vunpack.c.l.s4 1983009808
  %v2426 = vunpack.c.0.s8 %v2425
  %v2427 = vlaneseq
  %v2428 = vshrl.u32 %v2427, 7
  %v2429 = vsub.s32 %v2426, %v2428
  %v2430 = vrot.slane %v1230, %v2429
  %v2431 = vcombine.low %v974, %v1006
  %v2432 = vcombine.low %v1038, %v1070
  %v2434 = vunpack.c.l.s4 1983009808
  %v2435 = vunpack.c.0.s8 %v2434
  %v2436 = vlaneseq
  %v2437 = vshrl.u32 %v2436, 7
  %v2438 = vsub.s32 %v2435, %v2437
  %v2439 = vrot.slane %v2431, %v2438
  %v2441 = vunpack.c.l.s4 1983009808
  %v2442 = vunpack.c.0.s8 %v2441
  %v2443 = vlaneseq
  %v2444 = vshrl.u32 %v2443, 7
  %v2445 = vsub.s32 %v2442, %v2444
  %v2446 = vrot.slane %v2432, %v2445
  %v2447 = vcombine.low %v2439, %v2446
  %v2448 = vcombine.low %v1102, %v1134
  %v2449 = vcombine.low %v1167, %v1199
  %v2451 = vunpack.c.l.s4 1983009808
  %v2452 = vunpack.c.0.s8 %v2451
  %v2453 = vlaneseq
  %v2454 = vshrl.u32 %v2453, 7
  %v2455 = vsub.s32 %v2452, %v2454
  %v2456 = vrot.slane %v2448, %v2455
  %v2458 = vunpack.c.l.s4 1983009808
  %v2459 = vunpack.c.0.s8 %v2458
  %v2460 = vlaneseq
  %v2461 = vshrl.u32 %v2460, 7
  %v2462 = vsub.s32 %v2459, %v2461
  %v2463 = vrot.slane %v2449, %v2462
  %v2464 = vcombine.low %v2456, %v2463
  %v2466 = vunpack.c.l.s4 1983009808
  %v2467 = vunpack.c.0.s8 %v2466
  %v2468 = vlaneseq
  %v2469 = vshrl.u32 %v2468, 7
  %v2470 = vsub.s32 %v2467, %v2469
  %v2471 = vrot.slane %v1231, %v2470
  %v2472 = vcombine.low %v975, %v1007
  %v2473 = vcombine.low %v1039, %v1071
  %v2475 = vunpack.c.l.s4 1983009808
  %v2476 = vunpack.c.0.s8 %v2475
  %v2477 = vlaneseq
  %v2478 = vshrl.u32 %v2477, 7
  %v2479 = vsub.s32 %v2476, %v2478
  %v2480 = vrot.slane %v2472, %v2479
  %v2482 = vunpack.c.l.s4 1983009808
  %v2483 = vunpack.c.0.s8 %v2482
  %v2484 = vlaneseq
  %v2485 = vshrl.u32 %v2484, 7
  %v2486 = vsub.s32 %v2483, %v2485
  %v2487 = vrot.slane %v2473, %v2486
  %v2488 = vcombine.low %v2480, %v2487
  %v2489 = vcombine.low %v1103, %v1135
  %v2490 = vcombine.low %v1168, %v1200
  %v2492 = vunpack.c.l.s4 1983009808
  %v2493 = vunpack.c.0.s8 %v2492
  %v2494 = vlaneseq
  %v2495 = vshrl.u32 %v2494, 7
  %v2496 = vsub.s32 %v2493, %v2495
  %v2497 = vrot.slane %v2489, %v2496
  %v2499 = vunpack.c.l.s4 1983009808
  %v2500 = vunpack.c.0.s8 %v2499
  %v2501 = vlaneseq
  %v2502 = vshrl.u32 %v2501, 7
  %v2503 = vsub.s32 %v2500, %v2502
  %v2504 = vrot.slane %v2490, %v2503
  %v2505 = vcombine.low %v2497, %v2504
  %v2507 = vunpack.c.l.s4 1983009808
  %v2508 = vunpack.c.0.s8 %v2507
  %v2509 = vlaneseq
  %v2510 = vshrl.u32 %v2509, 7
  %v2511 = vsub.s32 %v2508, %v2510
  %v2512 = vrot.slane %v1232, %v2511
  %v2513 = vcombine.low %v976, %v1008
  %v2514 = vcombine.low %v1040, %v1072
  %v2516 = vunpack.c.l.s4 1983009808
  %v2517 = vunpack.c.0.s8 %v2516
  %v2518 = vlaneseq
  %v2519 = vshrl.u32 %v2518, 7
  %v2520 = vsub.s32 %v2517, %v2519
  %v2521 = vrot.slane %v2513, %v2520
  %v2523 = vunpack.c.l.s4 1983009808
  %v2524 = vunpack.c.0.s8 %v2523
  %v2525 = vlaneseq
  %v2526 = vshrl.u32 %v2525, 7
  %v2527 = vsub.s32 %v2524, %v2526
  %v2528 = vrot.slane %v2514, %v2527
  %v2529 = vcombine.low %v2521, %v2528
  %v2530 = vcombine.low %v1104, %v1136
  %v2531 = vcombine.low %v1169, %v1201
  %v2533 = vunpack.c.l.s4 1983009808
  %v2534 = vunpack.c.0.s8 %v2533
  %v2535 = vlaneseq
  %v2536 = vshrl.u32 %v2535, 7
  %v2537 = vsub.s32 %v2534, %v2536
  %v2538 = vrot.slane %v2530, %v2537
  %v2540 = vunpack.c.l.s4 1983009808
  %v2541 = vunpack.c.0.s8 %v2540
  %v2542 = vlaneseq
  %v2543 = vshrl.u32 %v2542, 7
  %v2544 = vsub.s32 %v2541, %v2543
  %v2545 = vrot.slane %v2531, %v2544
  %v2546 = vcombine.low %v2538, %v2545
  %v2548 = vunpack.c.l.s4 1983009808
  %v2549 = vunpack.c.0.s8 %v2548
  %v2550 = vlaneseq
  %v2551 = vshrl.u32 %v2550, 7
  %v2552 = vsub.s32 %v2549, %v2551
  %v2553 = vrot.slane %v1233, %v2552
  %v2554 = vcombine.low %v977, %v1009
  %v2555 = vcombine.low %v1041, %v1073
  %v2557 = vunpack.c.l.s4 1983009808
  %v2558 = vunpack.c.0.s8 %v2557
  %v2559 = vlaneseq
  %v2560 = vshrl.u32 %v2559, 7
  %v2561 = vsub.s32 %v2558, %v2560
  %v2562 = vrot.slane %v2554, %v2561
  %v2564 = vunpack.c.l.s4 1983009808
  %v2565 = vunpack.c.0.s8 %v2564
  %v2566 = vlaneseq
  %v2567 = vshrl.u32 %v2566, 7
  %v2568 = vsub.s32 %v2565, %v2567
  %v2569 = vrot.slane %v2555, %v2568
  %v2570 = vcombine.low %v2562, %v2569
  %v2571 = vcombine.low %v1105, %v1137
  %v2572 = vcombine.low %v1170, %v1202
  %v2574 = vunpack.c.l.s4 1983009808
  %v2575 = vunpack.c.0.s8 %v2574
  %v2576 = vlaneseq
  %v2577 = vshrl.u32 %v2576, 7
  %v2578 = vsub.s32 %v2575, %v2577
  %v2579 = vrot.slane %v2571, %v2578
  %v2581 = vunpack.c.l.s4 1983009808
  %v2582 = vunpack.c.0.s8 %v2581
  %v2583 = vlaneseq
  %v2584 = vshrl.u32 %v2583, 7
  %v2585 = vsub.s32 %v2582, %v2584
  %v2586 = vrot.slane %v2572, %v2585
  %v2587 = vcombine.low %v2579, %v2586
  %v2589 = vunpack.c.l.s4 1983009808
  %v2590 = vunpack.c.0.s8 %v2589
  %v2591 = vlaneseq
  %v2592 = vshrl.u32 %v2591, 7
  %v2593 = vsub.s32 %v2590, %v2592
  %v2594 = vrot.slane %v1234, %v2593
  %v2595 = vcombine.low %v978, %v1010
  %v2596 = vcombine.low %v1042, %v1074
  %v2598 = vunpack.c.l.s4 1983009808
  %v2599 = vunpack.c.0.s8 %v2598
  %v2600 = vlaneseq
  %v2601 = vshrl.u32 %v2600, 7
  %v2602 = vsub.s32 %v2599, %v2601
  %v2603 = vrot.slane %v2595, %v2602
  %v2605 = vunpack.c.l.s4 1983009808
  %v2606 = vunpack.c.0.s8 %v2605
  %v2607 = vlaneseq
  %v2608 = vshrl.u32 %v2607, 7
  %v2609 = vsub.s32 %v2606, %v2608
  %v2610 = vrot.slane %v2596, %v2609
  %v2611 = vcombine.low %v2603, %v2610
  %v2612 = vcombine.low %v1106, %v1138
  %v2613 = vcombine.low %v1171, %v1203
  %v2615 = vunpack.c.l.s4 1983009808
  %v2616 = vunpack.c.0.s8 %v2615
  %v2617 = vlaneseq
  %v2618 = vshrl.u32 %v2617, 7
  %v2619 = vsub.s32 %v2616, %v2618
  %v2620 = vrot.slane %v2612, %v2619
  %v2622 = vunpack.c.l.s4 1983009808
  %v2623 = vunpack.c.0.s8 %v2622
  %v2624 = vlaneseq
  %v2625 = vshrl.u32 %v2624, 7
  %v2626 = vsub.s32 %v2623, %v2625
  %v2627 = vrot.slane %v2613, %v2626
  %v2628 = vcombine.low %v2620, %v2627
  %v2630 = vunpack.c.l.s4 1983009808
  %v2631 = vunpack.c.0.s8 %v2630
  %v2632 = vlaneseq
  %v2633 = vshrl.u32 %v2632, 7
  %v2634 = vsub.s32 %v2631, %v2633
  %v2635 = vrot.slane %v1235, %v2634
  %v2636 = vcombine.low %v979, %v1011
  %v2637 = vcombine.low %v1043, %v1075
  %v2639 = vunpack.c.l.s4 1983009808
  %v2640 = vunpack.c.0.s8 %v2639
  %v2641 = vlaneseq
  %v2642 = vshrl.u32 %v2641, 7
  %v2643 = vsub.s32 %v2640, %v2642
  %v2644 = vrot.slane %v2636, %v2643
  %v2646 = vunpack.c.l.s4 1983009808
  %v2647 = vunpack.c.0.s8 %v2646
  %v2648 = vlaneseq
  %v2649 = vshrl.u32 %v2648, 7
  %v2650 = vsub.s32 %v2647, %v2649
  %v2651 = vrot.slane %v2637, %v2650
  %v2652 = vcombine.low %v2644, %v2651
  %v2653 = vcombine.low %v1107, %v1139
  %v2654 = vcombine.low %v1172, %v1204
  %v2656 = vunpack.c.l.s4 1983009808
  %v2657 = vunpack.c.0.s8 %v2656
  %v2658 = vlaneseq
  %v2659 = vshrl.u32 %v2658, 7
  %v2660 = vsub.s32 %v2657, %v2659
  %v2661 = vrot.slane %v2653, %v2660
  %v2663 = vunpack.c.l.s4 1983009808
  %v2664 = vunpack.c.0.s8 %v2663
  %v2665 = vlaneseq
  %v2666 = vshrl.u32 %v2665, 7
  %v2667 = vsub.s32 %v2664, %v2666
  %v2668 = vrot.slane %v2654, %v2667
  %v2669 = vcombine.low %v2661, %v2668
  %v2671 = vunpack.c.l.s4 1983009808
  %v2672 = vunpack.c.0.s8 %v2671
  %v2673 = vlaneseq
  %v2674 = vshrl.u32 %v2673, 7
  %v2675 = vsub.s32 %v2672, %v2674
  %v2676 = vrot.slane %v1236, %v2675
  %v2677 = vcombine.low %v980, %v1012
  %v2678 = vcombine.low %v1044, %v1076
  %v2680 = vunpack.c.l.s4 1983009808
  %v2681 = vunpack.c.0.s8 %v2680
  %v2682 = vlaneseq
  %v2683 = vshrl.u32 %v2682, 7
  %v2684 = vsub.s32 %v2681, %v2683
  %v2685 = vrot.slane %v2677, %v2684
  %v2687 = vunpack.c.l.s4 1983009808
  %v2688 = vunpack.c.0.s8 %v2687
  %v2689 = vlaneseq
  %v2690 = vshrl.u32 %v2689, 7
  %v2691 = vsub.s32 %v2688, %v2690
  %v2692 = vrot.slane %v2678, %v2691
  %v2693 = vcombine.low %v2685, %v2692
  %v2694 = vcombine.low %v1108, %v1140
  %v2695 = vcombine.low %v1173, %v1205
  %v2697 = vunpack.c.l.s4 1983009808
  %v2698 = vunpack.c.0.s8 %v2697
  %v2699 = vlaneseq
  %v2700 = vshrl.u32 %v2699, 7
  %v2701 = vsub.s32 %v2698, %v2700
  %v2702 = vrot.slane %v2694, %v2701
  %v2704 = vunpack.c.l.s4 1983009808
  %v2705 = vunpack.c.0.s8 %v2704
  %v2706 = vlaneseq
  %v2707 = vshrl.u32 %v2706, 7
  %v2708 = vsub.s32 %v2705, %v2707
  %v2709 = vrot.slane %v2695, %v2708
  %v2710 = vcombine.low %v2702, %v2709
  %v2712 = vunpack.c.l.s4 1983009808
  %v2713 = vunpack.c.0.s8 %v2712
  %v2714 = vlaneseq
  %v2715 = vshrl.u32 %v2714, 7
  %v2716 = vsub.s32 %v2713, %v2715
  %v2717 = vrot.slane %v1237, %v2716
  %v2718 = vcombine.low %v981, %v1013
  %v2719 = vcombine.low %v1045, %v1077
  %v2721 = vunpack.c.l.s4 1983009808
  %v2722 = vunpack.c.0.s8 %v2721
  %v2723 = vlaneseq
  %v2724 = vshrl.u32 %v2723, 7
  %v2725 = vsub.s32 %v2722, %v2724
  %v2726 = vrot.slane %v2718, %v2725
  %v2728 = vunpack.c.l.s4 1983009808
  %v2729 = vunpack.c.0.s8 %v2728
  %v2730 = vlaneseq
  %v2731 = vshrl.u32 %v2730, 7
  %v2732 = vsub.s32 %v2729, %v2731
  %v2733 = vrot.slane %v2719, %v2732
  %v2734 = vcombine.low %v2726, %v2733
  %v2735 = vcombine.low %v1109, %v1141
  %v2736 = vcombine.low %v1174, %v1206
  %v2738 = vunpack.c.l.s4 1983009808
  %v2739 = vunpack.c.0.s8 %v2738
  %v2740 = vlaneseq
  %v2741 = vshrl.u32 %v2740, 7
  %v2742 = vsub.s32 %v2739, %v2741
  %v2743 = vrot.slane %v2735, %v2742
  %v2745 = vunpack.c.l.s4 1983009808
  %v2746 = vunpack.c.0.s8 %v2745
  %v2747 = vlaneseq
  %v2748 = vshrl.u32 %v2747, 7
  %v2749 = vsub.s32 %v2746, %v2748
  %v2750 = vrot.slane %v2736, %v2749
  %v2751 = vcombine.low %v2743, %v2750
  %v2753 = vunpack.c.l.s4 1983009808
  %v2754 = vunpack.c.0.s8 %v2753
  %v2755 = vlaneseq
  %v2756 = vshrl.u32 %v2755, 7
  %v2757 = vsub.s32 %v2754, %v2756
  %v2758 = vrot.slane %v1238, %v2757
  %v2759 = vcombine.low %v982, %v1014
  %v2760 = vcombine.low %v1046, %v1078
  %v2762 = vunpack.c.l.s4 1983009808
  %v2763 = vunpack.c.0.s8 %v2762
  %v2764 = vlaneseq
  %v2765 = vshrl.u32 %v2764, 7
  %v2766 = vsub.s32 %v2763, %v2765
  %v2767 = vrot.slane %v2759, %v2766
  %v2769 = vunpack.c.l.s4 1983009808
  %v2770 = vunpack.c.0.s8 %v2769
  %v2771 = vlaneseq
  %v2772 = vshrl.u32 %v2771, 7
  %v2773 = vsub.s32 %v2770, %v2772
  %v2774 = vrot.slane %v2760, %v2773
  %v2775 = vcombine.low %v2767, %v2774
  %v2776 = vcombine.low %v1110, %v1142
  %v2777 = vcombine.low %v1175, %v1207
  %v2779 = vunpack.c.l.s4 1983009808
  %v2780 = vunpack.c.0.s8 %v2779
  %v2781 = vlaneseq
  %v2782 = vshrl.u32 %v2781, 7
  %v2783 = vsub.s32 %v2780, %v2782
  %v2784 = vrot.slane %v2776, %v2783
  %v2786 = vunpack.c.l.s4 1983009808
  %v2787 = vunpack.c.0.s8 %v2786
  %v2788 = vlaneseq
  %v2789 = vshrl.u32 %v2788, 7
  %v2790 = vsub.s32 %v2787, %v2789
  %v2791 = vrot.slane %v2777, %v2790
  %v2792 = vcombine.low %v2784, %v2791
  %v2794 = vunpack.c.l.s4 1983009808
  %v2795 = vunpack.c.0.s8 %v2794
  %v2796 = vlaneseq
  %v2797 = vshrl.u32 %v2796, 7
  %v2798 = vsub.s32 %v2795, %v2797
  %v2799 = vrot.slane %v1239, %v2798
  %v2800 = vcombine.low %v983, %v1015
  %v2801 = vcombine.low %v1047, %v1079
  %v2803 = vunpack.c.l.s4 1983009808
  %v2804 = vunpack.c.0.s8 %v2803
  %v2805 = vlaneseq
  %v2806 = vshrl.u32 %v2805, 7
  %v2807 = vsub.s32 %v2804, %v2806
  %v2808 = vrot.slane %v2800, %v2807
  %v2810 = vunpack.c.l.s4 1983009808
  %v2811 = vunpack.c.0.s8 %v2810
  %v2812 = vlaneseq
  %v2813 = vshrl.u32 %v2812, 7
  %v2814 = vsub.s32 %v2811, %v2813
  %v2815 = vrot.slane %v2801, %v2814
  %v2816 = vcombine.low %v2808, %v2815
  %v2817 = vcombine.low %v1111, %v1143
  %v2818 = vcombine.low %v1176, %v1208
  %v2820 = vunpack.c.l.s4 1983009808
  %v2821 = vunpack.c.0.s8 %v2820
  %v2822 = vlaneseq
  %v2823 = vshrl.u32 %v2822, 7
  %v2824 = vsub.s32 %v2821, %v2823
  %v2825 = vrot.slane %v2817, %v2824
  %v2827 = vunpack.c.l.s4 1983009808
  %v2828 = vunpack.c.0.s8 %v2827
  %v2829 = vlaneseq
  %v2830 = vshrl.u32 %v2829, 7
  %v2831 = vsub.s32 %v2828, %v2830
  %v2832 = vrot.slane %v2818, %v2831
  %v2833 = vcombine.low %v2825, %v2832
  %v2835 = vunpack.c.l.s4 1983009808
  %v2836 = vunpack.c.0.s8 %v2835
  %v2837 = vlaneseq
  %v2838 = vshrl.u32 %v2837, 7
  %v2839 = vsub.s32 %v2836, %v2838
  %v2840 = vrot.slane %v1240, %v2839
  %v2841 = vcombine.low %v1545, %v1586
  %v2842 = vcombine.high %v1545, %v1586
  %v2843 = vcombine.low %v1627, %v1668
  %v2844 = vcombine.high %v1627, %v1668
  %v2846 = vunpack.c.l.s4 1983009808
  %v2847 = vunpack.c.0.s8 %v2846
  %v2848 = vlaneseq
  %v2849 = vshrl.u32 %v2848, 7
  %v2850 = vsub.s32 %v2847, %v2849
  %v2851 = vrot.slane %v2841, %v2850
  %v2853 = vunpack.c.l.s4 1983009808
  %v2854 = vunpack.c.0.s8 %v2853
  %v2855 = vlaneseq
  %v2856 = vshrl.u32 %v2855, 7
  %v2857 = vsub.s32 %v2854, %v2856
  %v2858 = vrot.slane %v2842, %v2857
  %v2860 = vunpack.c.l.s4 1983009808
  %v2861 = vunpack.c.0.s8 %v2860
  %v2862 = vlaneseq
  %v2863 = vshrl.u32 %v2862, 7
  %v2864 = vsub.s32 %v2861, %v2863
  %v2865 = vrot.slane %v2843, %v2864
  %v2867 = vunpack.c.l.s4 1983009808
  %v2868 = vunpack.c.0.s8 %v2867
  %v2869 = vlaneseq
  %v2870 = vshrl.u32 %v2869, 7
  %v2871 = vsub.s32 %v2868, %v2870
  %v2872 = vrot.slane %v2844, %v2871
  %v2873 = vcombine.low %v2851, %v2865
  %v2874 = vcombine.high %v2851, %v2865
  %v2875 = vcombine.low %v2858, %v2872
  %v2876 = vcombine.high %v2858, %v2872
  %v2877 = vcombine.low %v1562, %v1603
  %v2878 = vcombine.high %v1562, %v1603
  %v2879 = vcombine.low %v1644, %v1685
  %v2880 = vcombine.high %v1644, %v1685
  %v2882 = vunpack.c.l.s4 1983009808
  %v2883 = vunpack.c.0.s8 %v2882
  %v2884 = vlaneseq
  %v2885 = vshrl.u32 %v2884, 7
  %v2886 = vsub.s32 %v2883, %v2885
  %v2887 = vrot.slane %v2877, %v2886
  %v2889 = vunpack.c.l.s4 1983009808
  %v2890 = vunpack.c.0.s8 %v2889
  %v2891 = vlaneseq
  %v2892 = vshrl.u32 %v2891, 7
  %v2893 = vsub.s32 %v2890, %v2892
  %v2894 = vrot.slane %v2878, %v2893
  %v2896 = vunpack.c.l.s4 1983009808
  %v2897 = vunpack.c.0.s8 %v2896
  %v2898 = vlaneseq
  %v2899 = vshrl.u32 %v2898, 7
  %v2900 = vsub.s32 %v2897, %v2899
  %v2901 = vrot.slane %v2879, %v2900
  %v2903 = vunpack.c.l.s4 1983009808
  %v2904 = vunpack.c.0.s8 %v2903
  %v2905 = vlaneseq
  %v2906 = vshrl.u32 %v2905, 7
  %v2907 = vsub.s32 %v2904, %v2906
  %v2908 = vrot.slane %v2880, %v2907
  %v2909 = vcombine.low %v2887, %v2901
  %v2910 = vcombine.high %v2887, %v2901
  %v2911 = vcombine.low %v2894, %v2908
  %v2912 = vcombine.high %v2894, %v2908
  %v2913 = vcombine.low %v1569, %v1610
  %v2914 = vcombine.low %v1651, %v1692
  %v2916 = vunpack.c.l.s4 1983009808
  %v2917 = vunpack.c.0.s8 %v2916
  %v2918 = vlaneseq
  %v2919 = vshrl.u32 %v2918, 7
  %v2920 = vsub.s32 %v2917, %v2919
  %v2921 = vrot.slane %v2913, %v2920
  %v2923 = vunpack.c.l.s4 1983009808
  %v2924 = vunpack.c.0.s8 %v2923
  %v2925 = vlaneseq
  %v2926 = vshrl.u32 %v2925, 7
  %v2927 = vsub.s32 %v2924, %v2926
  %v2928 = vrot.slane %v2914, %v2927
  %v2929 = vcombine.low %v2921, %v2928
  %v2930 = vcombine.low %v1709, %v1750
  %v2931 = vcombine.high %v1709, %v1750
  %v2932 = vcombine.low %v1791, %v1832
  %v2933 = vcombine.high %v1791, %v1832
  %v2935 = vunpack.c.l.s4 1983009808
  %v2936 = vunpack.c.0.s8 %v2935
  %v2937 = vlaneseq
  %v2938 = vshrl.u32 %v2937, 7
  %v2939 = vsub.s32 %v2936, %v2938
  %v2940 = vrot.slane %v2930, %v2939
  %v2942 = vunpack.c.l.s4 1983009808
  %v2943 = vunpack.c.0.s8 %v2942
  %v2944 = vlaneseq
  %v2945 = vshrl.u32 %v2944, 7
  %v2946 = vsub.s32 %v2943, %v2945
  %v2947 = vrot.slane %v2931, %v2946
  %v2949 = vunpack.c.l.s4 1983009808
  %v2950 = vunpack.c.0.s8 %v2949
  %v2951 = vlaneseq
  %v2952 = vshrl.u32 %v2951, 7
  %v2953 = vsub.s32 %v2950, %v2952
  %v2954 = vrot.slane %v2932, %v2953
  %v2956 = vunpack.c.l.s4 1983009808
  %v2957 = vunpack.c.0.s8 %v2956
  %v2958 = vlaneseq
  %v2959 = vshrl.u32 %v2958, 7
  %v2960 = vsub.s32 %v2957, %v2959
  %v2961 = vrot.slane %v2933, %v2960
  %v2962 = vcombine.low %v2940, %v2954
  %v2963 = vcombine.high %v2940, %v2954
  %v2964 = vcombine.low %v2947, %v2961
  %v2965 = vcombine.high %v2947, %v2961
  %v2966 = vcombine.low %v1726, %v1767
  %v2967 = vcombine.high %v1726, %v1767
  %v2968 = vcombine.low %v1808, %v1849
  %v2969 = vcombine.high %v1808, %v1849
  %v2971 = vunpack.c.l.s4 1983009808
  %v2972 = vunpack.c.0.s8 %v2971
  %v2973 = vlaneseq
  %v2974 = vshrl.u32 %v2973, 7
  %v2975 = vsub.s32 %v2972, %v2974
  %v2976 = vrot.slane %v2966, %v2975
  %v2978 = vunpack.c.l.s4 1983009808
  %v2979 = vunpack.c.0.s8 %v2978
  %v2980 = vlaneseq
  %v2981 = vshrl.u32 %v2980, 7
  %v2982 = vsub.s32 %v2979, %v2981
  %v2983 = vrot.slane %v2967, %v2982
  %v2985 = vunpack.c.l.s4 1983009808
  %v2986 = vunpack.c.0.s8 %v2985
  %v2987 = vlaneseq
  %v2988 = vshrl.u32 %v2987, 7
  %v2989 = vsub.s32 %v2986, %v2988
  %v2990 = vrot.slane %v2968, %v2989
  %v2992 = vunpack.c.l.s4 1983009808
  %v2993 = vunpack.c.0.s8 %v2992
  %v2994 = vlaneseq
  %v2995 = vshrl.u32 %v2994, 7
  %v2996 = vsub.s32 %v2993, %v2995
  %v2997 = vrot.slane %v2969, %v2996
  %v2998 = vcombine.low %v2976, %v2990
  %v2999 = vcombine.high %v2976, %v2990
  %v3000 = vcombine.low %v2983, %v2997
  %v3001 = vcombine.high %v2983, %v2997
  %v3002 = vcombine.low %v1733, %v1774
  %v3003 = vcombine.low %v1815, %v1856
  %v3005 = vunpack.c.l.s4 1983009808
  %v3006 = vunpack.c.0.s8 %v3005
  %v3007 = vlaneseq
  %v3008 = vshrl.u32 %v3007, 7
  %v3009 = vsub.s32 %v3006, %v3008
  %v3010 = vrot.slane %v3002, %v3009
  %v3012 = vunpack.c.l.s4 1983009808
  %v3013 = vunpack.c.0.s8 %v3012
  %v3014 = vlaneseq
  %v3015 = vshrl.u32 %v3014, 7
  %v3016 = vsub.s32 %v3013, %v3015
  %v3017 = vrot.slane %v3003, %v3016
  %v3018 = vcombine.low %v3010, %v3017
  %v3019 = vcombine.low %v1873, %v1914
  %v3020 = vcombine.high %v1873, %v1914
  %v3021 = vcombine.low %v1955, %v1996
  %v3022 = vcombine.high %v1955, %v1996
  %v3024 = vunpack.c.l.s4 1983009808
  %v3025 = vunpack.c.0.s8 %v3024
  %v3026 = vlaneseq
  %v3027 = vshrl.u32 %v3026, 7
  %v3028 = vsub.s32 %v3025, %v3027
  %v3029 = vrot.slane %v3019, %v3028
  %v3031 = vunpack.c.l.s4 1983009808
  %v3032 = vunpack.c.0.s8 %v3031
  %v3033 = vlaneseq
  %v3034 = vshrl.u32 %v3033, 7
  %v3035 = vsub.s32 %v3032, %v3034
  %v3036 = vrot.slane %v3020, %v3035
  %v3038 = vunpack.c.l.s4 1983009808
  %v3039 = vunpack.c.0.s8 %v3038
  %v3040 = vlaneseq
  %v3041 = vshrl.u32 %v3040, 7
  %v3042 = vsub.s32 %v3039, %v3041
  %v3043 = vrot.slane %v3021, %v3042
  %v3045 = vunpack.c.l.s4 1983009808
  %v3046 = vunpack.c.0.s8 %v3045
  %v3047 = vlaneseq
  %v3048 = vshrl.u32 %v3047, 7
  %v3049 = vsub.s32 %v3046, %v3048
  %v3050 = vrot.slane %v3022, %v3049
  %v3051 = vcombine.low %v3029, %v3043
  %v3052 = vcombine.high %v3029, %v3043
  %v3053 = vcombine.low %v3036, %v3050
  %v3054 = vcombine.high %v3036, %v3050
  %v3055 = vcombine.low %v1890, %v1931
  %v3056 = vcombine.high %v1890, %v1931
  %v3057 = vcombine.low %v1972, %v2013
  %v3058 = vcombine.high %v1972, %v2013
  %v3060 = vunpack.c.l.s4 1983009808
  %v3061 = vunpack.c.0.s8 %v3060
  %v3062 = vlaneseq
  %v3063 = vshrl.u32 %v3062, 7
  %v3064 = vsub.s32 %v3061, %v3063
  %v3065 = vrot.slane %v3055, %v3064
  %v3067 = vunpack.c.l.s4 1983009808
  %v3068 = vunpack.c.0.s8 %v3067
  %v3069 = vlaneseq
  %v3070 = vshrl.u32 %v3069, 7
  %v3071 = vsub.s32 %v3068, %v3070
  %v3072 = vrot.slane %v3056, %v3071
  %v3074 = vunpack.c.l.s4 1983009808
  %v3075 = vunpack.c.0.s8 %v3074
  %v3076 = vlaneseq
  %v3077 = vshrl.u32 %v3076, 7
  %v3078 = vsub.s32 %v3075, %v3077
  %v3079 = vrot.slane %v3057, %v3078
  %v3081 = vunpack.c.l.s4 1983009808
  %v3082 = vunpack.c.0.s8 %v3081
  %v3083 = vlaneseq
  %v3084 = vshrl.u32 %v3083, 7
  %v3085 = vsub.s32 %v3082, %v3084
  %v3086 = vrot.slane %v3058, %v3085
  %v3087 = vcombine.low %v3065, %v3079
  %v3088 = vcombine.high %v3065, %v3079
  %v3089 = vcombine.low %v3072, %v3086
  %v3090 = vcombine.high %v3072, %v3086
  %v3091 = vcombine.low %v1897, %v1938
  %v3092 = vcombine.low %v1979, %v2020
  %v3094 = vunpack.c.l.s4 1983009808
  %v3095 = vunpack.c.0.s8 %v3094
  %v3096 = vlaneseq
  %v3097 = vshrl.u32 %v3096, 7
  %v3098 = vsub.s32 %v3095, %v3097
  %v3099 = vrot.slane %v3091, %v3098
  %v3101 = vunpack.c.l.s4 1983009808
  %v3102 = vunpack.c.0.s8 %v3101
  %v3103 = vlaneseq
  %v3104 = vshrl.u32 %v3103, 7
  %v3105 = vsub.s32 %v3102, %v3104
  %v3106 = vrot.slane %v3092, %v3105
  %v3107 = vcombine.low %v3099, %v3106
  %v3108 = vcombine.low %v2037, %v2078
  %v3109 = vcombine.high %v2037, %v2078
  %v3110 = vcombine.low %v2119, %v2160
  %v3111 = vcombine.high %v2119, %v2160
  %v3113 = vunpack.c.l.s4 1983009808
  %v3114 = vunpack.c.0.s8 %v3113
  %v3115 = vlaneseq
  %v3116 = vshrl.u32 %v3115, 7
  %v3117 = vsub.s32 %v3114, %v3116
  %v3118 = vrot.slane %v3108, %v3117
  %v3120 = vunpack.c.l.s4 1983009808
  %v3121 = vunpack.c.0.s8 %v3120
  %v3122 = vlaneseq
  %v3123 = vshrl.u32 %v3122, 7
  %v3124 = vsub.s32 %v3121, %v3123
  %v3125 = vrot.slane %v3109, %v3124
  %v3127 = vunpack.c.l.s4 1983009808
  %v3128 = vunpack.c.0.s8 %v3127
  %v3129 = vlaneseq
  %v3130 = vshrl.u32 %v3129, 7
  %v3131 = vsub.s32 %v3128, %v3130
  %v3132 = vrot.slane %v3110, %v3131
  %v3134 = vunpack.c.l.s4 1983009808
  %v3135 = vunpack.c.0.s8 %v3134
  %v3136 = vlaneseq
  %v3137 = vshrl.u32 %v3136, 7
  %v3138 = vsub.s32 %v3135, %v3137
  %v3139 = vrot.slane %v3111, %v3138
  %v3140 = vcombine.low %v3118, %v3132
  %v3141 = vcombine.high %v3118, %v3132
  %v3142 = vcombine.low %v3125, %v3139
  %v3143 = vcombine.high %v3125, %v3139
  %v3144 = vcombine.low %v2054, %v2095
  %v3145 = vcombine.high %v2054, %v2095
  %v3146 = vcombine.low %v2136, %v2177
  %v3147 = vcombine.high %v2136, %v2177
  %v3149 = vunpack.c.l.s4 1983009808
  %v3150 = vunpack.c.0.s8 %v3149
  %v3151 = vlaneseq
  %v3152 = vshrl.u32 %v3151, 7
  %v3153 = vsub.s32 %v3150, %v3152
  %v3154 = vrot.slane %v3144, %v3153
  %v3156 = vunpack.c.l.s4 1983009808
  %v3157 = vunpack.c.0.s8 %v3156
  %v3158 = vlaneseq
  %v3159 = vshrl.u32 %v3158, 7
  %v3160 = vsub.s32 %v3157, %v3159
  %v3161 = vrot.slane %v3145, %v3160
  %v3163 = vunpack.c.l.s4 1983009808
  %v3164 = vunpack.c.0.s8 %v3163
  %v3165 = vlaneseq
  %v3166 = vshrl.u32 %v3165, 7
  %v3167 = vsub.s32 %v3164, %v3166
  %v3168 = vrot.slane %v3146, %v3167
  %v3170 = vunpack.c.l.s4 1983009808
  %v3171 = vunpack.c.0.s8 %v3170
  %v3172 = vlaneseq
  %v3173 = vshrl.u32 %v3172, 7
  %v3174 = vsub.s32 %v3171, %v3173
  %v3175 = vrot.slane %v3147, %v3174
  %v3176 = vcombine.low %v3154, %v3168
  %v3177 = vcombine.high %v3154, %v3168
  %v3178 = vcombine.low %v3161, %v3175
  %v3179 = vcombine.high %v3161, %v3175
  %v3180 = vcombine.low %v2061, %v2102
  %v3181 = vcombine.low %v2143, %v2184
  %v3183 = vunpack.c.l.s4 1983009808
  %v3184 = vunpack.c.0.s8 %v3183
  %v3185 = vlaneseq
  %v3186 = vshrl.u32 %v3185, 7
  %v3187 = vsub.s32 %v3184, %v3186
  %v3188 = vrot.slane %v3180, %v3187
  %v3190 = vunpack.c.l.s4 1983009808
  %v3191 = vunpack.c.0.s8 %v3190
  %v3192 = vlaneseq
  %v3193 = vshrl.u32 %v3192, 7
  %v3194 = vsub.s32 %v3191, %v3193
  %v3195 = vrot.slane %v3181, %v3194
  %v3196 = vcombine.low %v3188, %v3195
  %v3197 = vcombine.low %v2201, %v2242
  %v3198 = vcombine.high %v2201, %v2242
  %v3199 = vcombine.low %v2283, %v2324
  %v3200 = vcombine.high %v2283, %v2324
  %v3202 = vunpack.c.l.s4 1983009808
  %v3203 = vunpack.c.0.s8 %v3202
  %v3204 = vlaneseq
  %v3205 = vshrl.u32 %v3204, 7
  %v3206 = vsub.s32 %v3203, %v3205
  %v3207 = vrot.slane %v3197, %v3206
  %v3209 = vunpack.c.l.s4 1983009808
  %v3210 = vunpack.c.0.s8 %v3209
  %v3211 = vlaneseq
  %v3212 = vshrl.u32 %v3211, 7
  %v3213 = vsub.s32 %v3210, %v3212
  %v3214 = vrot.slane %v3198, %v3213
  %v3216 = vunpack.c.l.s4 1983009808
  %v3217 = vunpack.c.0.s8 %v3216
  %v3218 = vlaneseq
  %v3219 = vshrl.u32 %v3218, 7
  %v3220 = vsub.s32 %v3217, %v3219
  %v3221 = vrot.slane %v3199, %v3220
  %v3223 = vunpack.c.l.s4 1983009808
  %v3224 = vunpack.c.0.s8 %v3223
  %v3225 = vlaneseq
  %v3226 = vshrl.u32 %v3225, 7
  %v3227 = vsub.s32 %v3224, %v3226
  %v3228 = vrot.slane %v3200, %v3227
  %v3229 = vcombine.low %v3207, %v3221
  %v3230 = vcombine.high %v3207, %v3221
  %v3231 = vcombine.low %v3214, %v3228
  %v3232 = vcombine.high %v3214, %v3228
  %v3233 = vcombine.low %v2218, %v2259
  %v3234 = vcombine.high %v2218, %v2259
  %v3235 = vcombine.low %v2300, %v2341
  %v3236 = vcombine.high %v2300, %v2341
  %v3238 = vunpack.c.l.s4 1983009808
  %v3239 = vunpack.c.0.s8 %v3238
  %v3240 = vlaneseq
  %v3241 = vshrl.u32 %v3240, 7
  %v3242 = vsub.s32 %v3239, %v3241
  %v3243 = vrot.slane %v3233, %v3242
  %v3245 = vunpack.c.l.s4 1983009808
  %v3246 = vunpack.c.0.s8 %v3245
  %v3247 = vlaneseq
  %v3248 = vshrl.u32 %v3247, 7
  %v3249 = vsub.s32 %v3246, %v3248
  %v3250 = vrot.slane %v3234, %v3249
  %v3252 = vunpack.c.l.s4 1983009808
  %v3253 = vunpack.c.0.s8 %v3252
  %v3254 = vlaneseq
  %v3255 = vshrl.u32 %v3254, 7
  %v3256 = vsub.s32 %v3253, %v3255
  %v3257 = vrot.slane %v3235, %v3256
  %v3259 = vunpack.c.l.s4 1983009808
  %v3260 = vunpack.c.0.s8 %v3259
  %v3261 = vlaneseq
  %v3262 = vshrl.u32 %v3261, 7
  %v3263 = vsub.s32 %v3260, %v3262
  %v3264 = vrot.slane %v3236, %v3263
  %v3265 = vcombine.low %v3243, %v3257
  %v3266 = vcombine.high %v3243, %v3257
  %v3267 = vcombine.low %v3250, %v3264
  %v3268 = vcombine.high %v3250, %v3264
  %v3269 = vcombine.low %v2225, %v2266
  %v3270 = vcombine.low %v2307, %v2348
  %v3272 = vunpack.c.l.s4 1983009808
  %v3273 = vunpack.c.0.s8 %v3272
  %v3274 = vlaneseq
  %v3275 = vshrl.u32 %v3274, 7
  %v3276 = vsub.s32 %v3273, %v3275
  %v3277 = vrot.slane %v3269, %v3276
  %v3279 = vunpack.c.l.s4 1983009808
  %v3280 = vunpack.c.0.s8 %v3279
  %v3281 = vlaneseq
  %v3282 = vshrl.u32 %v3281, 7
  %v3283 = vsub.s32 %v3280, %v3282
  %v3284 = vrot.slane %v3270, %v3283
  %v3285 = vcombine.low %v3277, %v3284
  %v3286 = vcombine.low %v2365, %v2406
  %v3287 = vcombine.high %v2365, %v2406
  %v3288 = vcombine.low %v2447, %v2488
  %v3289 = vcombine.high %v2447, %v2488
  %v3291 = vunpack.c.l.s4 1983009808
  %v3292 = vunpack.c.0.s8 %v3291
  %v3293 = vlaneseq
  %v3294 = vshrl.u32 %v3293, 7
  %v3295 = vsub.s32 %v3292, %v3294
  %v3296 = vrot.slane %v3286, %v3295
  %v3298 = vunpack.c.l.s4 1983009808
  %v3299 = vunpack.c.0.s8 %v3298
  %v3300 = vlaneseq
  %v3301 = vshrl.u32 %v3300, 7
  %v3302 = vsub.s32 %v3299, %v3301
  %v3303 = vrot.slane %v3287, %v3302
  %v3305 = vunpack.c.l.s4 1983009808
  %v3306 = vunpack.c.0.s8 %v3305
  %v3307 = vlaneseq
  %v3308 = vshrl.u32 %v3307, 7
  %v3309 = vsub.s32 %v3306, %v3308
  %v3310 = vrot.slane %v3288, %v3309
  %v3312 = vunpack.c.l.s4 1983009808
  %v3313 = vunpack.c.0.s8 %v3312
  %v3314 = vlaneseq
  %v3315 = vshrl.u32 %v3314, 7
  %v3316 = vsub.s32 %v3313, %v3315
  %v3317 = vrot.slane %v3289, %v3316
  %v3318 = vcombine.low %v3296, %v3310
  %v3319 = vcombine.high %v3296, %v3310
  %v3320 = vcombine.low %v3303, %v3317
  %v3321 = vcombine.high %v3303, %v3317
  %v3322 = vcombine.low %v2382, %v2423
  %v3323 = vcombine.high %v2382, %v2423
  %v3324 = vcombine.low %v2464, %v2505
  %v3325 = vcombine.high %v2464, %v2505
  %v3327 = vunpack.c.l.s4 1983009808
  %v3328 = vunpack.c.0.s8 %v3327
  %v3329 = vlaneseq
  %v3330 = vshrl.u32 %v3329, 7
  %v3331 = vsub.s32 %v3328, %v3330
  %v3332 = vrot.slane %v3322, %v3331
  %v3334 = vunpack.c.l.s4 1983009808
  %v3335 = vunpack.c.0.s8 %v3334
  %v3336 = vlaneseq
  %v3337 = vshrl.u32 %v3336, 7
  %v3338 = vsub.s32 %v3335, %v3337
  %v3339 = vrot.slane %v3323, %v3338
  %v3341 = vunpack.c.l.s4 1983009808
  %v3342 = vunpack.c.0.s8 %v3341
  %v3343 = vlaneseq
  %v3344 = vshrl.u32 %v3343, 7
  %v3345 = vsub.s32 %v3342, %v3344
  %v3346 = vrot.slane %v3324, %v3345
  %v3348 = vunpack.c.l.s4 1983009808
  %v3349 = vunpack.c.0.s8 %v3348
  %v3350 = vlaneseq
  %v3351 = vshrl.u32 %v3350, 7
  %v3352 = vsub.s32 %v3349, %v3351
  %v3353 = vrot.slane %v3325, %v3352
  %v3354 = vcombine.low %v3332, %v3346
  %v3355 = vcombine.high %v3332, %v3346
  %v3356 = vcombine.low %v3339, %v3353
  %v3357 = vcombine.high %v3339, %v3353
  %v3358 = vcombine.low %v2389, %v2430
  %v3359 = vcombine.low %v2471, %v2512
  %v3361 = vunpack.c.l.s4 1983009808
  %v3362 = vunpack.c.0.s8 %v3361
  %v3363 = vlaneseq
  %v3364 = vshrl.u32 %v3363, 7
  %v3365 = vsub.s32 %v3362, %v3364
  %v3366 = vrot.slane %v3358, %v3365
  %v3368 = vunpack.c.l.s4 1983009808
  %v3369 = vunpack.c.0.s8 %v3368
  %v3370 = vlaneseq
  %v3371 = vshrl.u32 %v3370, 7
  %v3372 = vsub.s32 %v3369, %v3371
  %v3373 = vrot.slane %v3359, %v3372
  %v3374 = vcombine.low %v3366, %v3373
  %v3375 = vcombine.low %v2529, %v2570
  %v3376 = vcombine.high %v2529, %v2570
  %v3377 = vcombine.low %v2611, %v2652
  %v3378 = vcombine.high %v2611, %v2652
  %v3380 = vunpack.c.l.s4 1983009808
  %v3381 = vunpack.c.0.s8 %v3380
  %v3382 = vlaneseq
  %v3383 = vshrl.u32 %v3382, 7
  %v3384 = vsub.s32 %v3381, %v3383
  %v3385 = vrot.slane %v3375, %v3384
  %v3387 = vunpack.c.l.s4 1983009808
  %v3388 = vunpack.c.0.s8 %v3387
  %v3389 = vlaneseq
  %v3390 = vshrl.u32 %v3389, 7
  %v3391 = vsub.s32 %v3388, %v3390
  %v3392 = vrot.slane %v3376, %v3391
  %v3394 = vunpack.c.l.s4 1983009808
  %v3395 = vunpack.c.0.s8 %v3394
  %v3396 = vlaneseq
  %v3397 = vshrl.u32 %v3396, 7
  %v3398 = vsub.s32 %v3395, %v3397
  %v3399 = vrot.slane %v3377, %v3398
  %v3401 = vunpack.c.l.s4 1983009808
  %v3402 = vunpack.c.0.s8 %v3401
  %v3403 = vlaneseq
  %v3404 = vshrl.u32 %v3403, 7
  %v3405 = vsub.s32 %v3402, %v3404
  %v3406 = vrot.slane %v3378, %v3405
  %v3407 = vcombine.low %v3385, %v3399
  %v3408 = vcombine.high %v3385, %v3399
  %v3409 = vcombine.low %v3392, %v3406
  %v3410 = vcombine.high %v3392, %v3406
  %v3411 = vcombine.low %v2546, %v2587
  %v3412 = vcombine.high %v2546, %v2587
  %v3413 = vcombine.low %v2628, %v2669
  %v3414 = vcombine.high %v2628, %v2669
  %v3416 = vunpack.c.l.s4 1983009808
  %v3417 = vunpack.c.0.s8 %v3416
  %v3418 = vlaneseq
  %v3419 = vshrl.u32 %v3418, 7
  %v3420 = vsub.s32 %v3417, %v3419
  %v3421 = vrot.slane %v3411, %v3420
  %v3423 = vunpack.c.l.s4 1983009808
  %v3424 = vunpack.c.0.s8 %v3423
  %v3425 = vlaneseq
  %v3426 = vshrl.u32 %v3425, 7
  %v3427 = vsub.s32 %v3424, %v3426
  %v3428 = vrot.slane %v3412, %v3427
  %v3430 = vunpack.c.l.s4 1983009808
  %v3431 = vunpack.c.0.s8 %v3430
  %v3432 = vlaneseq
  %v3433 = vshrl.u32 %v3432, 7
  %v3434 = vsub.s32 %v3431, %v3433
  %v3435 = vrot.slane %v3413, %v3434
  %v3437 = vunpack.c.l.s4 1983009808
  %v3438 = vunpack.c.0.s8 %v3437
  %v3439 = vlaneseq
  %v3440 = vshrl.u32 %v3439, 7
  %v3441 = vsub.s32 %v3438, %v3440
  %v3442 = vrot.slane %v3414, %v3441
  %v3443 = vcombine.low %v3421, %v3435
  %v3444 = vcombine.high %v3421, %v3435
  %v3445 = vcombine.low %v3428, %v3442
  %v3446 = vcombine.high %v3428, %v3442
  %v3447 = vcombine.low %v2553, %v2594
  %v3448 = vcombine.low %v2635, %v2676
  %v3450 = vunpack.c.l.s4 1983009808
  %v3451 = vunpack.c.0.s8 %v3450
  %v3452 = vlaneseq
  %v3453 = vshrl.u32 %v3452, 7
  %v3454 = vsub.s32 %v3451, %v3453
  %v3455 = vrot.slane %v3447, %v3454
  %v3457 = vunpack.c.l.s4 1983009808
  %v3458 = vunpack.c.0.s8 %v3457
  %v3459 = vlaneseq
  %v3460 = vshrl.u32 %v3459, 7
  %v3461 = vsub.s32 %v3458, %v3460
  %v3462 = vrot.slane %v3448, %v3461
  %v3463 = vcombine.low %v3455, %v3462
  %v3464 = vcombine.low %v2693, %v2734
  %v3465 = vcombine.high %v2693, %v2734
  %v3466 = vcombine.low %v2775, %v2816
  %v3467 = vcombine.high %v2775, %v2816
  %v3469 = vunpack.c.l.s4 1983009808
  %v3470 = vunpack.c.0.s8 %v3469
  %v3471 = vlaneseq
  %v3472 = vshrl.u32 %v3471, 7
  %v3473 = vsub.s32 %v3470, %v3472
  %v3474 = vrot.slane %v3464, %v3473
  %v3476 = vunpack.c.l.s4 1983009808
  %v3477 = vunpack.c.0.s8 %v3476
  %v3478 = vlaneseq
  %v3479 = vshrl.u32 %v3478, 7
  %v3480 = vsub.s32 %v3477, %v3479
  %v3481 = vrot.slane %v3465, %v3480
  %v3483 = vunpack.c.l.s4 1983009808
  %v3484 = vunpack.c.0.s8 %v3483
  %v3485 = vlaneseq
  %v3486 = vshrl.u32 %v3485, 7
  %v3487 = vsub.s32 %v3484, %v3486
  %v3488 = vrot.slane %v3466, %v3487
  %v3490 = vunpack.c.l.s4 1983009808
  %v3491 = vunpack.c.0.s8 %v3490
  %v3492 = vlaneseq
  %v3493 = vshrl.u32 %v3492, 7
  %v3494 = vsub.s32 %v3491, %v3493
  %v3495 = vrot.slane %v3467, %v3494
  %v3496 = vcombine.low %v3474, %v3488
  %v3497 = vcombine.high %v3474, %v3488
  %v3498 = vcombine.low %v3481, %v3495
  %v3499 = vcombine.high %v3481, %v3495
  %v3500 = vcombine.low %v2710, %v2751
  %v3501 = vcombine.high %v2710, %v2751
  %v3502 = vcombine.low %v2792, %v2833
  %v3503 = vcombine.high %v2792, %v2833
  %v3505 = vunpack.c.l.s4 1983009808
  %v3506 = vunpack.c.0.s8 %v3505
  %v3507 = vlaneseq
  %v3508 = vshrl.u32 %v3507, 7
  %v3509 = vsub.s32 %v3506, %v3508
  %v3510 = vrot.slane %v3500, %v3509
  %v3512 = vunpack.c.l.s4 1983009808
  %v3513 = vunpack.c.0.s8 %v3512
  %v3514 = vlaneseq
  %v3515 = vshrl.u32 %v3514, 7
  %v3516 = vsub.s32 %v3513, %v3515
  %v3517 = vrot.slane %v3501, %v3516
  %v3519 = vunpack.c.l.s4 1983009808
  %v3520 = vunpack.c.0.s8 %v3519
  %v3521 = vlaneseq
  %v3522 = vshrl.u32 %v3521, 7
  %v3523 = vsub.s32 %v3520, %v3522
  %v3524 = vrot.slane %v3502, %v3523
  %v3526 = vunpack.c.l.s4 1983009808
  %v3527 = vunpack.c.0.s8 %v3526
  %v3528 = vlaneseq
  %v3529 = vshrl.u32 %v3528, 7
  %v3530 = vsub.s32 %v3527, %v3529
  %v3531 = vrot.slane %v3503, %v3530
  %v3532 = vcombine.low %v3510, %v3524
  %v3533 = vcombine.high %v3510, %v3524
  %v3534 = vcombine.low %v3517, %v3531
  %v3535 = vcombine.high %v3517, %v3531
  %v3536 = vcombine.low %v2717, %v2758
  %v3537 = vcombine.low %v2799, %v2840
  %v3539 = vunpack.c.l.s4 1983009808
  %v3540 = vunpack.c.0.s8 %v3539
  %v3541 = vlaneseq
  %v3542 = vshrl.u32 %v3541, 7
  %v3543 = vsub.s32 %v3540, %v3542
  %v3544 = vrot.slane %v3536, %v3543
  %v3546 = vunpack.c.l.s4 1983009808
  %v3547 = vunpack.c.0.s8 %v3546
  %v3548 = vlaneseq
  %v3549 = vshrl.u32 %v3548, 7
  %v3550 = vsub.s32 %v3547, %v3549
  %v3551 = vrot.slane %v3537, %v3550
  %v3552 = vcombine.low %v3544, %v3551
  %v3625 = vpack.c.bf16 %v2962, %v2873
  %v3626 = vpack.c.bf16 %v2963, %v2874
  %v3627 = vpack.c.bf16 %v2964, %v2875
  %v3628 = vpack.c.bf16 %v2965, %v2876
  %v3629 = vpack.c.bf16 %v2998, %v2909
  %v3630 = vpack.c.bf16 %v2999, %v2910
  %v3631 = vpack.c.bf16 %v3000, %v2911
  %v3632 = vpack.c.bf16 %v3001, %v2912
  %v3633 = vpack.c.bf16 %v3018, %v2929
  %v3634 = vpack.c.bf16 %v3140, %v3051
  %v3635 = vpack.c.bf16 %v3141, %v3052
  %v3636 = vpack.c.bf16 %v3142, %v3053
  %v3637 = vpack.c.bf16 %v3143, %v3054
  %v3638 = vpack.c.bf16 %v3176, %v3087
  %v3639 = vpack.c.bf16 %v3177, %v3088
  %v3640 = vpack.c.bf16 %v3178, %v3089
  %v3641 = vpack.c.bf16 %v3179, %v3090
  %v3642 = vpack.c.bf16 %v3196, %v3107
  %v3643 = vpack.c.bf16 %v3318, %v3229
  %v3644 = vpack.c.bf16 %v3319, %v3230
  %v3645 = vpack.c.bf16 %v3320, %v3231
  %v3646 = vpack.c.bf16 %v3321, %v3232
  %v3647 = vpack.c.bf16 %v3354, %v3265
  %v3648 = vpack.c.bf16 %v3355, %v3266
  %v3649 = vpack.c.bf16 %v3356, %v3267
  %v3650 = vpack.c.bf16 %v3357, %v3268
  %v3651 = vpack.c.bf16 %v3374, %v3285
  %v3652 = vpack.c.bf16 %v3496, %v3407
  %v3653 = vpack.c.bf16 %v3497, %v3408
  %v3654 = vpack.c.bf16 %v3498, %v3409
  %v3655 = vpack.c.bf16 %v3499, %v3410
  %v3656 = vpack.c.bf16 %v3532, %v3443
  %v3657 = vpack.c.bf16 %v3533, %v3444
  %v3658 = vpack.c.bf16 %v3534, %v3445
  %v3659 = vpack.c.bf16 %v3535, %v3446
  %v3660 = vpack.c.bf16 %v3552, %v3463
  %v3662 = vlaneseq
  %v3663 = vshrl.u32 %v3662, 7
  %v3664 = vsub.s32 0, %v3663
  %v3665 = vrot.slane %v811, %v3664
  %v3811 = vunpack.c.l.b16 %v667
  %v3812 = vunpack.c.l.b16 %v668
  %v3813 = vunpack.c.l.b16 %v669
  %v3814 = vunpack.c.l.b16 %v670
  %v3815 = vunpack.c.l.b16 %v671
  %v3816 = vunpack.c.l.b16 %v672
  %v3817 = vunpack.c.l.b16 %v673
  %v3818 = vunpack.c.l.b16 %v674
  %v3819 = vunpack.c.l.b16 %v675
  %v3820 = vunpack.c.l.b16 %v676
  %v3821 = vunpack.c.l.b16 %v677
  %v3822 = vunpack.c.l.b16 %v678
  %v3823 = vunpack.c.l.b16 %v679
  %v3824 = vunpack.c.l.b16 %v680
  %v3825 = vunpack.c.l.b16 %v681
  %v3826 = vunpack.c.l.b16 %v682
  %v3827 = vunpack.c.l.b16 %v683
  %v3828 = vunpack.c.l.b16 %v684
  %v3829 = vunpack.c.l.b16 %v685
  %v3830 = vunpack.c.l.b16 %v686
  %v3831 = vunpack.c.l.b16 %v687
  %v3832 = vunpack.c.l.b16 %v688
  %v3833 = vunpack.c.l.b16 %v689
  %v3834 = vunpack.c.l.b16 %v690
  %v3835 = vunpack.c.l.b16 %v691
  %v3836 = vunpack.c.l.b16 %v692
  %v3837 = vunpack.c.l.b16 %v693
  %v3838 = vunpack.c.l.b16 %v694
  %v3839 = vunpack.c.l.b16 %v695
  %v3840 = vunpack.c.l.b16 %v696
  %v3841 = vunpack.c.l.b16 %v697
  %v3842 = vunpack.c.l.b16 %v698
  %v3843 = vunpack.c.l.b16 %v699
  %v3844 = vunpack.c.l.b16 %v700
  %v3845 = vunpack.c.l.b16 %v701
  %v3846 = vunpack.c.l.b16 %v702
  %v3847 = vunpack.c.l.b16 %v703
  %v3848 = vunpack.c.l.b16 %v704
  %v3849 = vunpack.c.l.b16 %v705
  %v3850 = vunpack.c.l.b16 %v706
  %v3851 = vunpack.c.l.b16 %v707
  %v3852 = vunpack.c.l.b16 %v708
  %v3853 = vunpack.c.l.b16 %v709
  %v3854 = vunpack.c.l.b16 %v710
  %v3855 = vunpack.c.l.b16 %v711
  %v3856 = vunpack.c.l.b16 %v712
  %v3857 = vunpack.c.l.b16 %v713
  %v3858 = vunpack.c.l.b16 %v714
  %v3859 = vunpack.c.l.b16 %v715
  %v3860 = vunpack.c.l.b16 %v716
  %v3861 = vunpack.c.l.b16 %v717
  %v3862 = vunpack.c.l.b16 %v718
  %v3863 = vunpack.c.l.b16 %v719
  %v3864 = vunpack.c.l.b16 %v720
  %v3865 = vunpack.c.l.b16 %v721
  %v3866 = vunpack.c.l.b16 %v722
  %v3867 = vunpack.c.l.b16 %v723
  %v3868 = vunpack.c.l.b16 %v724
  %v3869 = vunpack.c.l.b16 %v725
  %v3870 = vunpack.c.l.b16 %v726
  %v3871 = vunpack.c.l.b16 %v727
  %v3872 = vunpack.c.l.b16 %v728
  %v3873 = vunpack.c.l.b16 %v729
  %v3874 = vunpack.c.l.b16 %v730
  %v3875 = vunpack.c.l.b16 %v731
  %v3876 = vunpack.c.l.b16 %v732
  %v3877 = vunpack.c.l.b16 %v733
  %v3878 = vunpack.c.l.b16 %v734
  %v3879 = vunpack.c.l.b16 %v735
  %v3880 = vunpack.c.l.b16 %v736
  %v3881 = vunpack.c.l.b16 %v737
  %v3882 = vunpack.c.l.b16 %v738
  %v3883 = vunpack.c.l.b16 %v739
  %v3884 = vunpack.c.l.b16 %v740
  %v3885 = vunpack.c.l.b16 %v741
  %v3886 = vunpack.c.l.b16 %v742
  %v3887 = vunpack.c.l.b16 %v743
  %v3888 = vunpack.c.l.b16 %v744
  %v3889 = vunpack.c.l.b16 %v745
  %v3890 = vunpack.c.l.b16 %v746
  %v3891 = vunpack.c.l.b16 %v747
  %v3892 = vunpack.c.l.b16 %v748
  %v3893 = vunpack.c.l.b16 %v749
  %v3894 = vunpack.c.l.b16 %v750
  %v3895 = vunpack.c.l.b16 %v751
  %v3896 = vunpack.c.l.b16 %v752
  %v3897 = vunpack.c.l.b16 %v753
  %v3898 = vunpack.c.l.b16 %v754
  %v3899 = vunpack.c.l.b16 %v755
  %v3900 = vunpack.c.l.b16 %v756
  %v3901 = vunpack.c.l.b16 %v757
  %v3902 = vunpack.c.l.b16 %v758
  %v3903 = vunpack.c.l.b16 %v759
  %v3904 = vunpack.c.l.b16 %v760
  %v3905 = vunpack.c.l.b16 %v761
  %v3906 = vunpack.c.l.b16 %v762
  %v3907 = vunpack.c.l.b16 %v763
  %v3908 = vunpack.c.l.b16 %v764
  %v3909 = vunpack.c.l.b16 %v765
  %v3910 = vunpack.c.l.b16 %v766
  %v3911 = vunpack.c.l.b16 %v767
  %v3912 = vunpack.c.l.b16 %v768
  %v3913 = vunpack.c.l.b16 %v769
  %v3914 = vunpack.c.l.b16 %v770
  %v3915 = vunpack.c.l.b16 %v771
  %v3916 = vunpack.c.l.b16 %v772
  %v3917 = vunpack.c.l.b16 %v773
  %v3918 = vunpack.c.l.b16 %v774
  %v3919 = vunpack.c.l.b16 %v775
  %v3920 = vunpack.c.l.b16 %v776
  %v3921 = vunpack.c.l.b16 %v777
  %v3922 = vunpack.c.l.b16 %v778
  %v3923 = vunpack.c.l.b16 %v779
  %v3924 = vunpack.c.l.b16 %v780
  %v3925 = vunpack.c.l.b16 %v781
  %v3926 = vunpack.c.l.b16 %v782
  %v3927 = vunpack.c.l.b16 %v783
  %v3928 = vunpack.c.l.b16 %v784
  %v3929 = vunpack.c.l.b16 %v785
  %v3930 = vunpack.c.l.b16 %v786
  %v3931 = vunpack.c.l.b16 %v787
  %v3932 = vunpack.c.l.b16 %v788
  %v3933 = vunpack.c.l.b16 %v789
  %v3934 = vunpack.c.l.b16 %v790
  %v3935 = vunpack.c.l.b16 %v791
  %v3936 = vunpack.c.l.b16 %v792
  %v3937 = vunpack.c.l.b16 %v793
  %v3938 = vunpack.c.l.b16 %v794
  %v3939 = vunpack.c.l.b16 %v795
  %v3940 = vunpack.c.l.b16 %v796
  %v3941 = vunpack.c.l.b16 %v797
  %v3942 = vunpack.c.l.b16 %v798
  %v3943 = vunpack.c.l.b16 %v799
  %v3944 = vunpack.c.l.b16 %v800
  %v3945 = vunpack.c.l.b16 %v801
  %v3946 = vunpack.c.l.b16 %v802
  %v3947 = vunpack.c.l.b16 %v803
  %v3948 = vunpack.c.l.b16 %v804
  %v3949 = vunpack.c.l.b16 %v805
  %v3950 = vunpack.c.l.b16 %v806
  %v3951 = vunpack.c.l.b16 %v807
  %v3952 = vunpack.c.l.b16 %v808
  %v3953 = vunpack.c.l.b16 %v809
  %v3954 = vunpack.c.l.b16 %v810
  %v3955 = vpack.c.b16 %v3812, %v3811
  %v3956 = vpack.c.b16 %v3814, %v3813
  %v3957 = vpack.c.b16 %v3816, %v3815
  %v3958 = vpack.c.b16 %v3818, %v3817
  %v3959 = vpack.c.b16 %v3820, %v3819
  %v3960 = vpack.c.b16 %v3822, %v3821
  %v3961 = vpack.c.b16 %v3824, %v3823
  %v3962 = vpack.c.b16 %v3826, %v3825
  %v3963 = vpack.c.b16 %v3828, %v3827
  %v3964 = vpack.c.b16 %v3830, %v3829
  %v3965 = vpack.c.b16 %v3832, %v3831
  %v3966 = vpack.c.b16 %v3834, %v3833
  %v3967 = vpack.c.b16 %v3836, %v3835
  %v3968 = vpack.c.b16 %v3838, %v3837
  %v3969 = vpack.c.b16 %v3840, %v3839
  %v3970 = vpack.c.b16 %v3842, %v3841
  %v3971 = vpack.c.b16 %v3844, %v3843
  %v3972 = vpack.c.b16 %v3846, %v3845
  %v3973 = vpack.c.b16 %v3848, %v3847
  %v3974 = vpack.c.b16 %v3850, %v3849
  %v3975 = vpack.c.b16 %v3852, %v3851
  %v3976 = vpack.c.b16 %v3854, %v3853
  %v3977 = vpack.c.b16 %v3856, %v3855
  %v3978 = vpack.c.b16 %v3858, %v3857
  %v3979 = vpack.c.b16 %v3860, %v3859
  %v3980 = vpack.c.b16 %v3862, %v3861
  %v3981 = vpack.c.b16 %v3864, %v3863
  %v3982 = vpack.c.b16 %v3866, %v3865
  %v3983 = vpack.c.b16 %v3868, %v3867
  %v3984 = vpack.c.b16 %v3870, %v3869
  %v3985 = vpack.c.b16 %v3872, %v3871
  %v3986 = vpack.c.b16 %v3874, %v3873
  %v3987 = vpack.c.b16 %v3876, %v3875
  %v3988 = vpack.c.b16 %v3878, %v3877
  %v3989 = vpack.c.b16 %v3880, %v3879
  %v3990 = vpack.c.b16 %v3882, %v3881
  %v3991 = vpack.c.b16 %v3884, %v3883
  %v3992 = vpack.c.b16 %v3886, %v3885
  %v3993 = vpack.c.b16 %v3888, %v3887
  %v3994 = vpack.c.b16 %v3890, %v3889
  %v3995 = vpack.c.b16 %v3892, %v3891
  %v3996 = vpack.c.b16 %v3894, %v3893
  %v3997 = vpack.c.b16 %v3896, %v3895
  %v3998 = vpack.c.b16 %v3898, %v3897
  %v3999 = vpack.c.b16 %v3900, %v3899
  %v4000 = vpack.c.b16 %v3902, %v3901
  %v4001 = vpack.c.b16 %v3904, %v3903
  %v4002 = vpack.c.b16 %v3906, %v3905
  %v4003 = vpack.c.b16 %v3908, %v3907
  %v4004 = vpack.c.b16 %v3910, %v3909
  %v4005 = vpack.c.b16 %v3912, %v3911
  %v4006 = vpack.c.b16 %v3914, %v3913
  %v4007 = vpack.c.b16 %v3916, %v3915
  %v4008 = vpack.c.b16 %v3918, %v3917
  %v4009 = vpack.c.b16 %v3920, %v3919
  %v4010 = vpack.c.b16 %v3922, %v3921
  %v4011 = vpack.c.b16 %v3924, %v3923
  %v4012 = vpack.c.b16 %v3926, %v3925
  %v4013 = vpack.c.b16 %v3928, %v3927
  %v4014 = vpack.c.b16 %v3930, %v3929
  %v4015 = vpack.c.b16 %v3932, %v3931
  %v4016 = vpack.c.b16 %v3934, %v3933
  %v4017 = vpack.c.b16 %v3936, %v3935
  %v4018 = vpack.c.b16 %v3938, %v3937
  %v4019 = vpack.c.b16 %v3940, %v3939
  %v4020 = vpack.c.b16 %v3942, %v3941
  %v4021 = vpack.c.b16 %v3944, %v3943
  %v4022 = vpack.c.b16 %v3946, %v3945
  %v4023 = vpack.c.b16 %v3948, %v3947
  %v4024 = vpack.c.b16 %v3950, %v3949
  %v4025 = vpack.c.b16 %v3952, %v3951
  %v4026 = vpack.c.b16 %v3954, %v3953
  %4099 = vmatprep.subr.bf16.mxu0 0
  %4100 = vmatpush1.bf16.msra.mxu0 %v3955
  %4101 = vmatprep.subr.bf16.mxu0 0
  %4102 = vmatpush1.bf16.msra.mxu0 %v3956
  %4103 = vmatprep.subr.bf16.mxu0 0
  %4104 = vmatpush1.bf16.msra.mxu0 %v3957
  %4105 = vmatprep.subr.bf16.mxu0 0
  %4106 = vmatpush1.bf16.msra.mxu0 %v3958
  %4107 = vmatprep.subr.bf16.mxu0 0
  %4108 = vmatpush1.bf16.msra.mxu0 %v3959
  %4109 = vmatprep.subr.bf16.mxu0 0
  %4110 = vmatpush1.bf16.msra.mxu0 %v3960
  %4111 = vmatprep.subr.bf16.mxu0 0
  %4112 = vmatpush1.bf16.msra.mxu0 %v3961
  %4113 = vmatprep.subr.bf16.mxu0 0
  %4114 = vmatpush1.bf16.msra.mxu0 %v3962
  %4115 = vmatprep.subr.bf16.mxu0 0
  %4116 = vmatpush1.bf16.msra.mxu0 %v3963
  %4117 = vmatprep.subr.bf16.mxu0 0
  %4118 = vmatpush1.bf16.msra.mxu0 %v3964
  %4119 = vmatprep.subr.bf16.mxu0 0
  %4120 = vmatpush1.bf16.msra.mxu0 %v3965
  %4121 = vmatprep.subr.bf16.mxu0 0
  %4122 = vmatpush1.bf16.msra.mxu0 %v3966
  %4123 = vmatprep.subr.bf16.mxu0 0
  %4124 = vmatpush1.bf16.msra.mxu0 %v3967
  %4125 = vmatprep.subr.bf16.mxu0 0
  %4126 = vmatpush1.bf16.msra.mxu0 %v3968
  %4127 = vmatprep.subr.bf16.mxu0 0
  %4128 = vmatpush1.bf16.msra.mxu0 %v3969
  %4129 = vmatprep.subr.bf16.mxu0 0
  %4130 = vmatpush1.bf16.msra.mxu0 %v3970
  %4131 = vmatprep.mubr.bf16.mxu0 %v3626
  %4132 = vmatmul.mubr.bf16.gmra.mrb[0].mxu0 %v3625
  %v4133 = vpop.f32.mrb[0].mxu0
  %v4134 = vadd.f32 %v3665, %v4133
  %v4135 = vpop.f32.mrb[0].mxu0
  %v4136 = vpop.f32.mrb[0].mxu0
  %v4137 = vadd.f32 %v3665, %v4136
  %v4138 = vpop.f32.mrb[0].mxu0
  %4139 = vmatprep.mubr.bf16.mxu0 %v3635
  %4140 = vmatmul.mubr.bf16.gmra.mrb[0].mxu0 %v3634
  %v4141 = vpop.f32.mrb[0].mxu0
  %v4142 = vadd.f32 %v3665, %v4141
  %v4143 = vpop.f32.mrb[0].mxu0
  %v4144 = vpop.f32.mrb[0].mxu0
  %v4145 = vadd.f32 %v3665, %v4144
  %v4146 = vpop.f32.mrb[0].mxu0
  %4147 = vmatprep.mubr.bf16.mxu0 %v3644
  %4148 = vmatmul.mubr.bf16.gmra.mrb[0].mxu0 %v3643
  %v4149 = vpop.f32.mrb[0].mxu0
  %v4150 = vadd.f32 %v3665, %v4149
  %v4151 = vpop.f32.mrb[0].mxu0
  %v4152 = vpop.f32.mrb[0].mxu0
  %v4153 = vadd.f32 %v3665, %v4152
  %v4154 = vpop.f32.mrb[0].mxu0
  %4155 = vmatprep.mubr.bf16.mxu0 %v3653
  %4156 = vmatmul.mubr.bf16.gmra.mrb[0].mxu0 %v3652
  %v4157 = vpop.f32.mrb[0].mxu0
  %v4158 = vadd.f32 %v3665, %v4157
  %v4159 = vpop.f32.mrb[0].mxu0
  %v4160 = vpop.f32.mrb[0].mxu0
  %v4161 = vadd.f32 %v3665, %v4160
  %v4162 = vpop.f32.mrb[0].mxu0
  %4163 = vdwg.mxu0
  %4164 = vmatprep.subr.bf16.mxu0 0
  %4165 = vmatpush1.bf16.msra.mxu0 %v3971
  %4166 = vmatprep.subr.bf16.mxu0 0
  %4167 = vmatpush1.bf16.msra.mxu0 %v3972
  %4168 = vmatprep.subr.bf16.mxu0 0
  %4169 = vmatpush1.bf16.msra.mxu0 %v3973
  %4170 = vmatprep.subr.bf16.mxu0 0
  %4171 = vmatpush1.bf16.msra.mxu0 %v3974
  %4172 = vmatprep.subr.bf16.mxu0 0
  %4173 = vmatpush1.bf16.msra.mxu0 %v3975
  %4174 = vmatprep.subr.bf16.mxu0 0
  %4175 = vmatpush1.bf16.msra.mxu0 %v3976
  %4176 = vmatprep.subr.bf16.mxu0 0
  %4177 = vmatpush1.bf16.msra.mxu0 %v3977
  %4178 = vmatprep.subr.bf16.mxu0 0
  %4179 = vmatpush1.bf16.msra.mxu0 %v3978
  %4180 = vmatprep.subr.bf16.mxu0 0
  %4181 = vmatpush1.bf16.msra.mxu0 %v3979
  %4182 = vmatprep.subr.bf16.mxu0 0
  %4183 = vmatpush1.bf16.msra.mxu0 %v3980
  %4184 = vmatprep.subr.bf16.mxu0 0
  %4185 = vmatpush1.bf16.msra.mxu0 %v3981
  %4186 = vmatprep.subr.bf16.mxu0 0
  %4187 = vmatpush1.bf16.msra.mxu0 %v3982
  %4188 = vmatprep.subr.bf16.mxu0 0
  %4189 = vmatpush1.bf16.msra.mxu0 %v3983
  %4190 = vmatprep.subr.bf16.mxu0 0
  %4191 = vmatpush1.bf16.msra.mxu0 %v3984
  %4192 = vmatprep.subr.bf16.mxu0 0
  %4193 = vmatpush1.bf16.msra.mxu0 %v3985
  %4194 = vmatprep.subr.bf16.mxu0 0
  %4195 = vmatpush1.bf16.msra.mxu0 %v3986
  %4196 = vmatprep.mubr.bf16.mxu0 %v3628
  %4197 = vmatmul.mubr.bf16.gmra.mrb[0].mxu0 %v3627
  %v4198 = vpop.f32.mrb[0].mxu0
  %v4199 = vadd.f32 %v4134, %v4198
  %v4200 = vpop.f32.mrb[0].mxu0
  %v4201 = vpop.f32.mrb[0].mxu0
  %v4202 = vadd.f32 %v4137, %v4201
  %v4203 = vpop.f32.mrb[0].mxu0
  %4204 = vmatprep.mubr.bf16.mxu0 %v3637
  %4205 = vmatmul.mubr.bf16.gmra.mrb[0].mxu0 %v3636
  %v4206 = vpop.f32.mrb[0].mxu0
  %v4207 = vadd.f32 %v4142, %v4206
  %v4208 = vpop.f32.mrb[0].mxu0
  %v4209 = vpop.f32.mrb[0].mxu0
  %v4210 = vadd.f32 %v4145, %v4209
  %v4211 = vpop.f32.mrb[0].mxu0
  %4212 = vmatprep.mubr.bf16.mxu0 %v3646
  %4213 = vmatmul.mubr.bf16.gmra.mrb[0].mxu0 %v3645
  %v4214 = vpop.f32.mrb[0].mxu0
  %v4215 = vadd.f32 %v4150, %v4214
  %v4216 = vpop.f32.mrb[0].mxu0
  %v4217 = vpop.f32.mrb[0].mxu0
  %v4218 = vadd.f32 %v4153, %v4217
  %v4219 = vpop.f32.mrb[0].mxu0
  %4220 = vmatprep.mubr.bf16.mxu0 %v3655
  %4221 = vmatmul.mubr.bf16.gmra.mrb[0].mxu0 %v3654
  %v4222 = vpop.f32.mrb[0].mxu0
  %v4223 = vadd.f32 %v4158, %v4222
  %v4224 = vpop.f32.mrb[0].mxu0
  %v4225 = vpop.f32.mrb[0].mxu0
  %v4226 = vadd.f32 %v4161, %v4225
  %v4227 = vpop.f32.mrb[0].mxu0
  %4228 = vdwg.mxu0
  %4229 = vmatprep.subr.bf16.mxu0 0
  %4230 = vmatpush1.bf16.msra.mxu0 %v3987
  %4231 = vmatprep.subr.bf16.mxu0 0
  %4232 = vmatpush1.bf16.msra.mxu0 %v3988
  %4233 = vmatprep.subr.bf16.mxu0 0
  %4234 = vmatpush1.bf16.msra.mxu0 %v3989
  %4235 = vmatprep.subr.bf16.mxu0 0
  %4236 = vmatpush1.bf16.msra.mxu0 %v3990
  %4237 = vmatprep.subr.bf16.mxu0 0
  %4238 = vmatpush1.bf16.msra.mxu0 %v3991
  %4239 = vmatprep.subr.bf16.mxu0 0
  %4240 = vmatpush1.bf16.msra.mxu0 %v3992
  %4241 = vmatprep.subr.bf16.mxu0 0
  %4242 = vmatpush1.bf16.msra.mxu0 %v3993
  %4243 = vmatprep.subr.bf16.mxu0 0
  %4244 = vmatpush1.bf16.msra.mxu0 %v3994
  %4245 = vmatprep.subr.bf16.mxu0 0
  %4246 = vmatpush1.bf16.msra.mxu0 %v3995
  %4247 = vmatprep.subr.bf16.mxu0 0
  %4248 = vmatpush1.bf16.msra.mxu0 %v3996
  %4249 = vmatprep.subr.bf16.mxu0 0
  %4250 = vmatpush1.bf16.msra.mxu0 %v3997
  %4251 = vmatprep.subr.bf16.mxu0 0
  %4252 = vmatpush1.bf16.msra.mxu0 %v3998
  %4253 = vmatprep.subr.bf16.mxu0 0
  %4254 = vmatpush1.bf16.msra.mxu0 %v3999
  %4255 = vmatprep.subr.bf16.mxu0 0
  %4256 = vmatpush1.bf16.msra.mxu0 %v4000
  %4257 = vmatprep.subr.bf16.mxu0 0
  %4258 = vmatpush1.bf16.msra.mxu0 %v4001
  %4259 = vmatprep.subr.bf16.mxu0 0
  %4260 = vmatpush1.bf16.msra.mxu0 %v4002
  %4261 = vmatprep.mubr.bf16.mxu0 %v3630
  %4262 = vmatmul.mubr.bf16.gmra.mrb[0].mxu0 %v3629
  %v4263 = vpop.f32.mrb[0].mxu0
  %v4264 = vadd.f32 %v4199, %v4263
  %v4265 = vpop.f32.mrb[0].mxu0
  %v4266 = vpop.f32.mrb[0].mxu0
  %v4267 = vadd.f32 %v4202, %v4266
  %v4268 = vpop.f32.mrb[0].mxu0
  %4269 = vmatprep.mubr.bf16.mxu0 %v3639
  %4270 = vmatmul.mubr.bf16.gmra.mrb[0].mxu0 %v3638
  %v4271 = vpop.f32.mrb[0].mxu0
  %v4272 = vadd.f32 %v4207, %v4271
  %v4273 = vpop.f32.mrb[0].mxu0
  %v4274 = vpop.f32.mrb[0].mxu0
  %v4275 = vadd.f32 %v4210, %v4274
  %v4276 = vpop.f32.mrb[0].mxu0
  %4277 = vmatprep.mubr.bf16.mxu0 %v3648
  %4278 = vmatmul.mubr.bf16.gmra.mrb[0].mxu0 %v3647
  %v4279 = vpop.f32.mrb[0].mxu0
  %v4280 = vadd.f32 %v4215, %v4279
  %v4281 = vpop.f32.mrb[0].mxu0
  %v4282 = vpop.f32.mrb[0].mxu0
  %v4283 = vadd.f32 %v4218, %v4282
  %v4284 = vpop.f32.mrb[0].mxu0
  %4285 = vmatprep.mubr.bf16.mxu0 %v3657
  %4286 = vmatmul.mubr.bf16.gmra.mrb[0].mxu0 %v3656
  %v4287 = vpop.f32.mrb[0].mxu0
  %v4288 = vadd.f32 %v4223, %v4287
  %v4289 = vpop.f32.mrb[0].mxu0
  %v4290 = vpop.f32.mrb[0].mxu0
  %v4291 = vadd.f32 %v4226, %v4290
  %v4292 = vpop.f32.mrb[0].mxu0
  %4293 = vdwg.mxu0
  %4294 = vmatprep.subr.bf16.mxu0 0
  %4295 = vmatpush1.bf16.msra.mxu0 %v4003
  %4296 = vmatprep.subr.bf16.mxu0 0
  %4297 = vmatpush1.bf16.msra.mxu0 %v4004
  %4298 = vmatprep.subr.bf16.mxu0 0
  %4299 = vmatpush1.bf16.msra.mxu0 %v4005
  %4300 = vmatprep.subr.bf16.mxu0 0
  %4301 = vmatpush1.bf16.msra.mxu0 %v4006
  %4302 = vmatprep.subr.bf16.mxu0 0
  %4303 = vmatpush1.bf16.msra.mxu0 %v4007
  %4304 = vmatprep.subr.bf16.mxu0 0
  %4305 = vmatpush1.bf16.msra.mxu0 %v4008
  %4306 = vmatprep.subr.bf16.mxu0 0
  %4307 = vmatpush1.bf16.msra.mxu0 %v4009
  %4308 = vmatprep.subr.bf16.mxu0 0
  %4309 = vmatpush1.bf16.msra.mxu0 %v4010
  %4310 = vmatprep.subr.bf16.mxu0 0
  %4311 = vmatpush1.bf16.msra.mxu0 %v4011
  %4312 = vmatprep.subr.bf16.mxu0 0
  %4313 = vmatpush1.bf16.msra.mxu0 %v4012
  %4314 = vmatprep.subr.bf16.mxu0 0
  %4315 = vmatpush1.bf16.msra.mxu0 %v4013
  %4316 = vmatprep.subr.bf16.mxu0 0
  %4317 = vmatpush1.bf16.msra.mxu0 %v4014
  %4318 = vmatprep.subr.bf16.mxu0 0
  %4319 = vmatpush1.bf16.msra.mxu0 %v4015
  %4320 = vmatprep.subr.bf16.mxu0 0
  %4321 = vmatpush1.bf16.msra.mxu0 %v4016
  %4322 = vmatprep.subr.bf16.mxu0 0
  %4323 = vmatpush1.bf16.msra.mxu0 %v4017
  %4324 = vmatprep.subr.bf16.mxu0 0
  %4325 = vmatpush1.bf16.msra.mxu0 %v4018
  %4326 = vmatprep.mubr.bf16.mxu0 %v3632
  %4327 = vmatmul.mubr.bf16.gmra.mrb[0].mxu0 %v3631
  %v4328 = vpop.f32.mrb[0].mxu0
  %v4329 = vadd.f32 %v4264, %v4328
  %v4330 = vpop.f32.mrb[0].mxu0
  %v4331 = vpop.f32.mrb[0].mxu0
  %v4332 = vadd.f32 %v4267, %v4331
  %v4333 = vpop.f32.mrb[0].mxu0
  %4334 = vmatprep.mubr.bf16.mxu0 %v3641
  %4335 = vmatmul.mubr.bf16.gmra.mrb[0].mxu0 %v3640
  %v4336 = vpop.f32.mrb[0].mxu0
  %v4337 = vadd.f32 %v4272, %v4336
  %v4338 = vpop.f32.mrb[0].mxu0
  %v4339 = vpop.f32.mrb[0].mxu0
  %v4340 = vadd.f32 %v4275, %v4339
  %v4341 = vpop.f32.mrb[0].mxu0
  %4342 = vmatprep.mubr.bf16.mxu0 %v3650
  %4343 = vmatmul.mubr.bf16.gmra.mrb[0].mxu0 %v3649
  %v4344 = vpop.f32.mrb[0].mxu0
  %v4345 = vadd.f32 %v4280, %v4344
  %v4346 = vpop.f32.mrb[0].mxu0
  %v4347 = vpop.f32.mrb[0].mxu0
  %v4348 = vadd.f32 %v4283, %v4347
  %v4349 = vpop.f32.mrb[0].mxu0
  %4350 = vmatprep.mubr.bf16.mxu0 %v3659
  %4351 = vmatmul.mubr.bf16.gmra.mrb[0].mxu0 %v3658
  %v4352 = vpop.f32.mrb[0].mxu0
  %v4353 = vadd.f32 %v4288, %v4352
  %v4354 = vpop.f32.mrb[0].mxu0
  %v4355 = vpop.f32.mrb[0].mxu0
  %v4356 = vadd.f32 %v4291, %v4355
  %v4357 = vpop.f32.mrb[0].mxu0
  %4358 = vdwg.mxu0
  %4359 = vmatprep.subr.bf16.mxu0 0
  %4360 = vmatpush1.bf16.msra.mxu0 %v4019
  %4361 = vmatprep.subr.bf16.mxu0 0
  %4362 = vmatpush1.bf16.msra.mxu0 %v4020
  %4363 = vmatprep.subr.bf16.mxu0 0
  %4364 = vmatpush1.bf16.msra.mxu0 %v4021
  %4365 = vmatprep.subr.bf16.mxu0 0
  %4366 = vmatpush1.bf16.msra.mxu0 %v4022
  %4367 = vmatprep.subr.bf16.mxu0 0
  %4368 = vmatpush1.bf16.msra.mxu0 %v4023
  %4369 = vmatprep.subr.bf16.mxu0 0
  %4370 = vmatpush1.bf16.msra.mxu0 %v4024
  %4371 = vmatprep.subr.bf16.mxu0 0
  %4372 = vmatpush1.bf16.msra.mxu0 %v4025
  %4373 = vmatprep.subr.bf16.mxu0 0
  %4374 = vmatpush1.bf16.msra.mxu0 %v4026
  %4375 = vmatprep.subr.bf16.mxu0 0
  %4376 = vmatpush1.bf16.msra.mxu0 0
  %4377 = vmatprep.subr.bf16.mxu0 0
  %4378 = vmatpush1.bf16.msra.mxu0 0
  %4379 = vmatprep.subr.bf16.mxu0 0
  %4380 = vmatpush1.bf16.msra.mxu0 0
  %4381 = vmatprep.subr.bf16.mxu0 0
  %4382 = vmatpush1.bf16.msra.mxu0 0
  %4383 = vmatprep.subr.bf16.mxu0 0
  %4384 = vmatpush1.bf16.msra.mxu0 0
  %4385 = vmatprep.subr.bf16.mxu0 0
  %4386 = vmatpush1.bf16.msra.mxu0 0
  %4387 = vmatprep.subr.bf16.mxu0 0
  %4388 = vmatpush1.bf16.msra.mxu0 0
  %4389 = vmatprep.subr.bf16.mxu0 0
  %4390 = vmatpush1.bf16.msra.mxu0 0
  %4391 = vmatprep.mubr.bf16.mxu0 0
  %4392 = vmatmul.mubr.bf16.gmra.mrb[0].mxu0 %v3633
  %v4393 = vpop.f32.mrb[0].mxu0
  %v4394 = vadd.f32 %v4329, %v4393
  %v4395 = vpop.f32.mrb[0].mxu0
  %v4396 = vpop.f32.mrb[0].mxu0
  %v4397 = vadd.f32 %v4332, %v4396
  %v4398 = vpop.f32.mrb[0].mxu0
  %4399 = vmatprep.mubr.bf16.mxu0 0
  %4400 = vmatmul.mubr.bf16.gmra.mrb[0].mxu0 %v3642
  %v4401 = vpop.f32.mrb[0].mxu0
  %v4402 = vadd.f32 %v4337, %v4401
  %v4403 = vpop.f32.mrb[0].mxu0
  %v4404 = vpop.f32.mrb[0].mxu0
  %v4405 = vadd.f32 %v4340, %v4404
  %v4406 = vpop.f32.mrb[0].mxu0
  %4407 = vmatprep.mubr.bf16.mxu0 0
  %4408 = vmatmul.mubr.bf16.gmra.mrb[0].mxu0 %v3651
  %v4409 = vpop.f32.mrb[0].mxu0
  %v4410 = vadd.f32 %v4345, %v4409
  %v4411 = vpop.f32.mrb[0].mxu0
  %v4412 = vpop.f32.mrb[0].mxu0
  %v4413 = vadd.f32 %v4348, %v4412
  %v4414 = vpop.f32.mrb[0].mxu0
  %4415 = vmatprep.mubr.bf16.mxu0 0
  %4416 = vmatmul.mubr.bf16.gmra.mrb[0].mxu0 %v3660
  %v4417 = vpop.f32.mrb[0].mxu0
  %v4418 = vadd.f32 %v4353, %v4417
  %v4419 = vpop.f32.mrb[0].mxu0
  %v4420 = vpop.f32.mrb[0].mxu0
  %v4421 = vadd.f32 %v4356, %v4420
  %v4422 = vpop.f32.mrb[0].mxu0
  %4423 = vdwg.mxu0
  %v4424 = vadd.f32 %v4394, %v4397
  %v4425 = vadd.f32 %v4424, %v4402
  %v4426 = vadd.f32 %v4425, %v4405
  %v4427 = vadd.f32 %v4426, %v4410
  %v4428 = vadd.f32 %v4427, %v4413
  %v4429 = vadd.f32 %v4428, %v4418
  %v4430 = vadd.f32 %v4429, %v4421
  %v4431 = vrot.slane %v4430, 4
  %v4432 = vadd.f32 %v4430, %v4431
  %v4433 = vrot.slane %v4432, 2
  %v4434 = vadd.f32 %v4432, %v4433
  %v4435 = vrot.slane %v4434, 1
  %v4436 = vadd.f32 %v4434, %v4435
  %v4437 = vmul.f32 %v4394, %v4394
  %v4438 = vmul.f32 %v4397, %v4397
  %v4439 = vmul.f32 %v4402, %v4402
  %v4440 = vmul.f32 %v4405, %v4405
  %v4441 = vmul.f32 %v4410, %v4410
  %v4442 = vmul.f32 %v4413, %v4413
  %v4443 = vmul.f32 %v4418, %v4418
  %v4444 = vmul.f32 %v4421, %v4421
  %v4445 = vadd.f32 %v4437, %v4438
  %v4446 = vadd.f32 %v4445, %v4439
  %v4447 = vadd.f32 %v4446, %v4440
  %v4448 = vadd.f32 %v4447, %v4441
  %v4449 = vadd.f32 %v4448, %v4442
  %v4450 = vadd.f32 %v4449, %v4443
  %v4451 = vadd.f32 %v4450, %v4444
  %v4452 = vrot.slane %v4451, 4
  %v4453 = vadd.f32 %v4451, %v4452
  %v4454 = vrot.slane %v4453, 2
  %v4455 = vadd.f32 %v4453, %v4454
  %v4456 = vrot.slane %v4455, 1
  %v4457 = vadd.f32 %v4455, %v4456
  %v4458 = vsel %vm548, %v4436, %v4457
  %v4459 = vld [vmem:[%s1] sm:$0xff]
  %v4460 = vld [vmem:[%s1 + $0x8] sm:$0xff]
  %v4461 = vld [vmem:[%s1 + $0x10] sm:$0xff]
  %v4462 = vld [vmem:[%s1 + $0x18] sm:$0xff]
  %v4463 = vld [vmem:[%s1 + $0x20] sm:$0xff]
  %v4464 = vld [vmem:[%s1 + $0x28] sm:$0xff]
  %v4465 = vld [vmem:[%s1 + $0x30] sm:$0xff]
  %v4466 = vld [vmem:[%s1 + $0x38] sm:$0xff]
  %v4467 = vld [vmem:[%s1 + $0x40] sm:$0xff]
  %v4468 = vld [vmem:[%s1 + $0x48] sm:$0xff]
  %v4469 = vld [vmem:[%s1 + $0x50] sm:$0xff]
  %v4470 = vld [vmem:[%s1 + $0x58] sm:$0xff]
  %v4471 = vld [vmem:[%s1 + $0x60] sm:$0xff]
  %v4472 = vld [vmem:[%s1 + $0x68] sm:$0xff]
  %v4473 = vld [vmem:[%s1 + $0x70] sm:$0xff]
  %v4474 = vld [vmem:[%s1 + $0x78] sm:$0xff]
  %4475 = vmatprep.subr.mxu0 0.0
  %4476 = vmatpush1.msra.mxu0 %v4459
  %4477 = vmatprep.subr.mxu0 0.0
  %4478 = vmatpush1.msra.mxu0 %v4460
  %4479 = vmatprep.subr.mxu0 0.0
  %4480 = vmatpush1.msra.mxu0 %v4461
  %4481 = vmatprep.subr.mxu0 0.0
  %4482 = vmatpush1.msra.mxu0 %v4462
  %4483 = vmatprep.subr.mxu0 0.0
  %4484 = vmatpush1.msra.mxu0 %v4463
  %4485 = vmatprep.subr.mxu0 0.0
  %4486 = vmatpush1.msra.mxu0 %v4464
  %4487 = vmatprep.subr.mxu0 0.0
  %4488 = vmatpush1.msra.mxu0 %v4465
  %4489 = vmatprep.subr.mxu0 0.0
  %4490 = vmatpush1.msra.mxu0 %v4466
  %4491 = vmatprep.subr.mxu0 0.0
  %4492 = vmatpush1.msra.mxu0 %v4467
  %4493 = vmatprep.subr.mxu0 0.0
  %4494 = vmatpush1.msra.mxu0 %v4468
  %4495 = vmatprep.subr.mxu0 0.0
  %4496 = vmatpush1.msra.mxu0 %v4469
  %4497 = vmatprep.subr.mxu0 0.0
  %4498 = vmatpush1.msra.mxu0 %v4470
  %4499 = vmatprep.subr.mxu0 0.0
  %4500 = vmatpush1.msra.mxu0 %v4471
  %4501 = vmatprep.subr.mxu0 0.0
  %4502 = vmatpush1.msra.mxu0 %v4472
  %4503 = vmatprep.subr.mxu0 0.0
  %4504 = vmatpush1.msra.mxu0 %v4473
  %4505 = vmatprep.subr.mxu0 0.0
  %4506 = vmatpush1.msra.mxu0 %v4474
  %4507 = vmatprep.subr.mxu0 0.0
  %4508 = vmatpush1.msra.mxu0 0.0
  %4509 = vmatprep.subr.mxu0 0.0
  %4510 = vmatpush1.msra.mxu0 0.0
  %4511 = vmatprep.subr.mxu0 0.0
  %4512 = vmatpush1.msra.mxu0 0.0
  %4513 = vmatprep.subr.mxu0 0.0
  %4514 = vmatpush1.msra.mxu0 0.0
  %4515 = vmatprep.subr.mxu0 0.0
  %4516 = vmatpush1.msra.mxu0 0.0
  %4517 = vmatprep.subr.mxu0 0.0
  %4518 = vmatpush1.msra.mxu0 0.0
  %4519 = vmatprep.subr.mxu0 0.0
  %4520 = vmatpush1.msra.mxu0 0.0
  %4521 = vmatprep.subr.mxu0 0.0
  %4522 = vmatpush1.msra.mxu0 0.0
  %4523 = vmatprep.subr.mxu0 0.0
  %4524 = vmatpush1.msra.mxu0 0.0
  %4525 = vmatprep.subr.mxu0 0.0
  %4526 = vmatpush1.msra.mxu0 0.0
  %4527 = vmatprep.subr.mxu0 0.0
  %4528 = vmatpush1.msra.mxu0 0.0
  %4529 = vmatprep.subr.mxu0 0.0
  %4530 = vmatpush1.msra.mxu0 0.0
  %4531 = vmatprep.subr.mxu0 0.0
  %4532 = vmatpush1.msra.mxu0 0.0
  %4533 = vmatprep.subr.mxu0 0.0
  %4534 = vmatpush1.msra.mxu0 0.0
  %4535 = vmatprep.subr.mxu0 0.0
  %4536 = vmatpush1.msra.mxu0 0.0
  %4537 = vmatprep.subr.mxu0 0.0
  %4538 = vmatpush1.msra.mxu0 0.0
  %4539 = vmatprep.mubr.f32.mxu0 0.0
  %4540 = vmatmul.mubr.f32.gmra.mrb[0].mxu0 %v4458
  %v4541 = vpop.f32.mrb[0].mxu0
  %v4542 = vadd.f32 0.0, %v4541
  %v4543 = vpop.f32.mrb[0].mxu0
  %4544 = vdwg.mxu0
  %v4545 = vmul.f32 %v4542, 0.001953125
  %v4546 = vmul.f32 %v4545, %v4545
  %v4548 = vrot.slane %v4546, 7
  %v4550 = vsub.f32 %v4545, %v4548
  %v4551 = vmax.f32 %v4550, 0.0
  %v4552 = vld [vmem:[%s6] sm:$0x1]
  %v4553 = vld [vmem:[%s7] sm:$0x1]
  %v4554 = vadd.f32 %v4551, 1e-05
  %v4555 = vrsqrt.pop %v4554
  %v4558 = vunpack.c.l.s4 1966171168
  %v4559 = vunpack.c.0.s8 %v4558
  %v4560 = vlaneseq
  %v4561 = vshrl.u32 %v4560, 7
  %v4562 = vsub.s32 %v4559, %v4561
  %v4563 = vrot.slane %v4555, %v4562
  %v4564 = vcombine.high %v4563, %v4563
  %v4566 = vunpack.c.l.s4 1966171168
  %v4567 = vunpack.c.0.s8 %v4566
  %v4568 = vlaneseq
  %v4569 = vshrl.u32 %v4568, 7
  %v4570 = vsub.s32 %v4567, %v4569
  %v4571 = vrot.slane %v4564, %v4570
  %v4573 = vmul.f32 %v4552, %v4571
  %v4574 = vmul.f32 %v4545, %v4573
  %v4575 = vsub.f32 %v4553, %v4574
  %v4584 = vcombine.high %v4394, %v4394
  %v4586 = vunpack.c.l.s4 1983009808
  %v4587 = vunpack.c.0.s8 %v4586
  %v4588 = vlaneseq
  %v4589 = vshrl.u32 %v4588, 7
  %v4590 = vsub.s32 %v4587, %v4589
  %v4591 = vrot.slane %v4394, %v4590
  %v4593 = vunpack.c.l.s4 1983009808
  %v4594 = vunpack.c.0.s8 %v4593
  %v4595 = vlaneseq
  %v4596 = vshrl.u32 %v4595, 7
  %v4597 = vsub.s32 %v4594, %v4596
  %v4598 = vrot.slane %v4584, %v4597
  %v4599 = vcombine.high %v4591, %v4591
  %v4600 = vcombine.high %v4598, %v4598
  %v4601 = vcombine.high %v4397, %v4397
  %v4603 = vunpack.c.l.s4 1983009808
  %v4604 = vunpack.c.0.s8 %v4603
  %v4605 = vlaneseq
  %v4606 = vshrl.u32 %v4605, 7
  %v4607 = vsub.s32 %v4604, %v4606
  %v4608 = vrot.slane %v4397, %v4607
  %v4610 = vunpack.c.l.s4 1983009808
  %v4611 = vunpack.c.0.s8 %v4610
  %v4612 = vlaneseq
  %v4613 = vshrl.u32 %v4612, 7
  %v4614 = vsub.s32 %v4611, %v4613
  %v4615 = vrot.slane %v4601, %v4614
  %v4616 = vcombine.high %v4608, %v4608
  %v4617 = vcombine.high %v4615, %v4615
  %v4618 = vcombine.high %v4402, %v4402
  %v4620 = vunpack.c.l.s4 1983009808
  %v4621 = vunpack.c.0.s8 %v4620
  %v4622 = vlaneseq
  %v4623 = vshrl.u32 %v4622, 7
  %v4624 = vsub.s32 %v4621, %v4623
  %v4625 = vrot.slane %v4402, %v4624
  %v4627 = vunpack.c.l.s4 1983009808
  %v4628 = vunpack.c.0.s8 %v4627
  %v4629 = vlaneseq
  %v4630 = vshrl.u32 %v4629, 7
  %v4631 = vsub.s32 %v4628, %v4630
  %v4632 = vrot.slane %v4618, %v4631
  %v4633 = vcombine.high %v4625, %v4625
  %v4634 = vcombine.high %v4632, %v4632
  %v4635 = vcombine.high %v4405, %v4405
  %v4637 = vunpack.c.l.s4 1983009808
  %v4638 = vunpack.c.0.s8 %v4637
  %v4639 = vlaneseq
  %v4640 = vshrl.u32 %v4639, 7
  %v4641 = vsub.s32 %v4638, %v4640
  %v4642 = vrot.slane %v4405, %v4641
  %v4644 = vunpack.c.l.s4 1983009808
  %v4645 = vunpack.c.0.s8 %v4644
  %v4646 = vlaneseq
  %v4647 = vshrl.u32 %v4646, 7
  %v4648 = vsub.s32 %v4645, %v4647
  %v4649 = vrot.slane %v4635, %v4648
  %v4650 = vcombine.high %v4642, %v4642
  %v4651 = vcombine.high %v4649, %v4649
  %v4652 = vcombine.high %v4410, %v4410
  %v4654 = vunpack.c.l.s4 1983009808
  %v4655 = vunpack.c.0.s8 %v4654
  %v4656 = vlaneseq
  %v4657 = vshrl.u32 %v4656, 7
  %v4658 = vsub.s32 %v4655, %v4657
  %v4659 = vrot.slane %v4410, %v4658
  %v4661 = vunpack.c.l.s4 1983009808
  %v4662 = vunpack.c.0.s8 %v4661
  %v4663 = vlaneseq
  %v4664 = vshrl.u32 %v4663, 7
  %v4665 = vsub.s32 %v4662, %v4664
  %v4666 = vrot.slane %v4652, %v4665
  %v4667 = vcombine.high %v4659, %v4659
  %v4668 = vcombine.high %v4666, %v4666
  %v4669 = vcombine.high %v4413, %v4413
  %v4671 = vunpack.c.l.s4 1983009808
  %v4672 = vunpack.c.0.s8 %v4671
  %v4673 = vlaneseq
  %v4674 = vshrl.u32 %v4673, 7
  %v4675 = vsub.s32 %v4672, %v4674
  %v4676 = vrot.slane %v4413, %v4675
  %v4678 = vunpack.c.l.s4 1983009808
  %v4679 = vunpack.c.0.s8 %v4678
  %v4680 = vlaneseq
  %v4681 = vshrl.u32 %v4680, 7
  %v4682 = vsub.s32 %v4679, %v4681
  %v4683 = vrot.slane %v4669, %v4682
  %v4684 = vcombine.high %v4676, %v4676
  %v4685 = vcombine.high %v4683, %v4683
  %v4686 = vcombine.high %v4418, %v4418
  %v4688 = vunpack.c.l.s4 1983009808
  %v4689 = vunpack.c.0.s8 %v4688
  %v4690 = vlaneseq
  %v4691 = vshrl.u32 %v4690, 7
  %v4692 = vsub.s32 %v4689, %v4691
  %v4693 = vrot.slane %v4418, %v4692
  %v4695 = vunpack.c.l.s4 1983009808
  %v4696 = vunpack.c.0.s8 %v4695
  %v4697 = vlaneseq
  %v4698 = vshrl.u32 %v4697, 7
  %v4699 = vsub.s32 %v4696, %v4698
  %v4700 = vrot.slane %v4686, %v4699
  %v4701 = vcombine.high %v4693, %v4693
  %v4702 = vcombine.high %v4700, %v4700
  %v4703 = vcombine.high %v4421, %v4421
  %v4705 = vunpack.c.l.s4 1983009808
  %v4706 = vunpack.c.0.s8 %v4705
  %v4707 = vlaneseq
  %v4708 = vshrl.u32 %v4707, 7
  %v4709 = vsub.s32 %v4706, %v4708
  %v4710 = vrot.slane %v4421, %v4709
  %v4712 = vunpack.c.l.s4 1983009808
  %v4713 = vunpack.c.0.s8 %v4712
  %v4714 = vlaneseq
  %v4715 = vshrl.u32 %v4714, 7
  %v4716 = vsub.s32 %v4713, %v4715
  %v4717 = vrot.slane %v4703, %v4716
  %v4718 = vcombine.high %v4710, %v4710
  %v4719 = vcombine.high %v4717, %v4717
  %v4752 = vld [vmem:[%s8] sm:$0xf]
  %v4753 = vld [vmem:[%s8 + $0x4] sm:$0xf]
  %v4754 = vld [vmem:[%s8 + $0x8] sm:$0xf]
  %v4755 = vld [vmem:[%s8 + $0xc] sm:$0xf]
  %v4756 = vld [vmem:[%s8 + $0x10] sm:$0xf]
  %v4757 = vld [vmem:[%s8 + $0x14] sm:$0xf]
  %v4758 = vld [vmem:[%s8 + $0x18] sm:$0xf]
  %v4759 = vld [vmem:[%s8 + $0x1c] sm:$0xf]
  %v4760 = vld [vmem:[%s8 + $0x20] sm:$0xf]
  %v4761 = vld [vmem:[%s8 + $0x24] sm:$0xf]
  %v4762 = vld [vmem:[%s8 + $0x28] sm:$0xf]
  %v4763 = vld [vmem:[%s8 + $0x2c] sm:$0xf]
  %v4764 = vld [vmem:[%s8 + $0x30] sm:$0xf]
  %v4765 = vld [vmem:[%s8 + $0x34] sm:$0xf]
  %v4766 = vld [vmem:[%s8 + $0x38] sm:$0xf]
  %v4767 = vld [vmem:[%s8 + $0x3c] sm:$0xf]
  %v4768 = vld [vmem:[%s8 + $0x40] sm:$0xf]
  %v4769 = vld [vmem:[%s8 + $0x44] sm:$0xf]
  %v4770 = vld [vmem:[%s8 + $0x48] sm:$0xf]
  %v4771 = vld [vmem:[%s8 + $0x4c] sm:$0xf]
  %v4772 = vld [vmem:[%s8 + $0x50] sm:$0xf]
  %v4773 = vld [vmem:[%s8 + $0x54] sm:$0xf]
  %v4774 = vld [vmem:[%s8 + $0x58] sm:$0xf]
  %v4775 = vld [vmem:[%s8 + $0x5c] sm:$0xf]
  %v4776 = vld [vmem:[%s8 + $0x60] sm:$0xf]
  %v4777 = vld [vmem:[%s8 + $0x64] sm:$0xf]
  %v4778 = vld [vmem:[%s8 + $0x68] sm:$0xf]
  %v4779 = vld [vmem:[%s8 + $0x6c] sm:$0xf]
  %v4780 = vld [vmem:[%s8 + $0x70] sm:$0xf]
  %v4781 = vld [vmem:[%s8 + $0x74] sm:$0xf]
  %v4782 = vld [vmem:[%s8 + $0x78] sm:$0xf]
  %v4783 = vld [vmem:[%s8 + $0x7c] sm:$0xf]
  %v4784 = vld [vmem:[%s8 + $0x80] sm:$0xf]
  %v4785 = vld [vmem:[%s8 + $0x84] sm:$0xf]
  %v4786 = vld [vmem:[%s8 + $0x88] sm:$0xf]
  %v4787 = vld [vmem:[%s8 + $0x8c] sm:$0xf]
  %v4788 = vld [vmem:[%s8 + $0x90] sm:$0xf]
  %v4789 = vld [vmem:[%s8 + $0x94] sm:$0xf]
  %v4790 = vld [vmem:[%s8 + $0x98] sm:$0xf]
  %v4791 = vld [vmem:[%s8 + $0x9c] sm:$0xf]
  %v4792 = vld [vmem:[%s8 + $0xa0] sm:$0xf]
  %v4793 = vld [vmem:[%s8 + $0xa4] sm:$0xf]
  %v4794 = vld [vmem:[%s8 + $0xa8] sm:$0xf]
  %v4795 = vld [vmem:[%s8 + $0xac] sm:$0xf]
  %v4796 = vld [vmem:[%s8 + $0xb0] sm:$0xf]
  %v4797 = vld [vmem:[%s8 + $0xb4] sm:$0xf]
  %v4798 = vld [vmem:[%s8 + $0xb8] sm:$0xf]
  %v4799 = vld [vmem:[%s8 + $0xbc] sm:$0xf]
  %v4800 = vld [vmem:[%s8 + $0xc0] sm:$0xf]
  %v4801 = vld [vmem:[%s8 + $0xc4] sm:$0xf]
  %v4802 = vld [vmem:[%s8 + $0xc8] sm:$0xf]
  %v4803 = vld [vmem:[%s8 + $0xcc] sm:$0xf]
  %v4804 = vld [vmem:[%s8 + $0xd0] sm:$0xf]
  %v4805 = vld [vmem:[%s8 + $0xd4] sm:$0xf]
  %v4806 = vld [vmem:[%s8 + $0xd8] sm:$0xf]
  %v4807 = vld [vmem:[%s8 + $0xdc] sm:$0xf]
  %v4808 = vld [vmem:[%s8 + $0xe0] sm:$0xf]
  %v4809 = vld [vmem:[%s8 + $0xe4] sm:$0xf]
  %v4810 = vld [vmem:[%s8 + $0xe8] sm:$0xf]
  %v4811 = vld [vmem:[%s8 + $0xec] sm:$0xf]
  %v4812 = vld [vmem:[%s8 + $0xf0] sm:$0xf]
  %v4813 = vld [vmem:[%s8 + $0xf4] sm:$0xf]
  %v4814 = vld [vmem:[%s8 + $0xf8] sm:$0xf]
  %v4815 = vld [vmem:[%s8 + $0xfc] sm:$0xf]
  %v4816 = vld [vmem:[%s8 + $0x100] sm:$0xf]
  %v4817 = vld [vmem:[%s8 + $0x104] sm:$0xf]
  %v4818 = vld [vmem:[%s8 + $0x108] sm:$0xf]
  %v4819 = vld [vmem:[%s8 + $0x10c] sm:$0xf]
  %v4820 = vld [vmem:[%s8 + $0x110] sm:$0xf]
  %v4821 = vld [vmem:[%s8 + $0x114] sm:$0xf]
  %v4822 = vld [vmem:[%s8 + $0x118] sm:$0xf]
  %v4823 = vld [vmem:[%s8 + $0x11c] sm:$0xf]
  %v4824 = vld [vmem:[%s8 + $0x120] sm:$0xf]
  %v4825 = vld [vmem:[%s8 + $0x124] sm:$0xf]
  %v4826 = vld [vmem:[%s8 + $0x128] sm:$0xf]
  %v4827 = vld [vmem:[%s8 + $0x12c] sm:$0xf]
  %v4828 = vld [vmem:[%s8 + $0x130] sm:$0xf]
  %v4829 = vld [vmem:[%s8 + $0x134] sm:$0xf]
  %v4830 = vld [vmem:[%s8 + $0x138] sm:$0xf]
  %v4831 = vld [vmem:[%s8 + $0x13c] sm:$0xf]
  %v4832 = vld [vmem:[%s8 + $0x140] sm:$0xf]
  %v4833 = vld [vmem:[%s8 + $0x144] sm:$0xf]
  %v4834 = vld [vmem:[%s8 + $0x148] sm:$0xf]
  %v4835 = vld [vmem:[%s8 + $0x14c] sm:$0xf]
  %v4836 = vld [vmem:[%s8 + $0x150] sm:$0xf]
  %v4837 = vld [vmem:[%s8 + $0x154] sm:$0xf]
  %v4838 = vld [vmem:[%s8 + $0x158] sm:$0xf]
  %v4839 = vld [vmem:[%s8 + $0x15c] sm:$0xf]
  %v4840 = vld [vmem:[%s8 + $0x160] sm:$0xf]
  %v4841 = vld [vmem:[%s8 + $0x164] sm:$0xf]
  %v4842 = vld [vmem:[%s8 + $0x168] sm:$0xf]
  %v4843 = vld [vmem:[%s8 + $0x16c] sm:$0xf]
  %v4844 = vld [vmem:[%s8 + $0x170] sm:$0xf]
  %v4845 = vld [vmem:[%s8 + $0x174] sm:$0xf]
  %v4846 = vld [vmem:[%s8 + $0x178] sm:$0xf]
  %v4847 = vld [vmem:[%s8 + $0x17c] sm:$0xf]
  %v4848 = vld [vmem:[%s8 + $0x180] sm:$0xf]
  %v4849 = vld [vmem:[%s8 + $0x184] sm:$0xf]
  %v4850 = vld [vmem:[%s8 + $0x188] sm:$0xf]
  %v4851 = vld [vmem:[%s8 + $0x18c] sm:$0xf]
  %v4852 = vld [vmem:[%s8 + $0x190] sm:$0xf]
  %v4853 = vld [vmem:[%s8 + $0x194] sm:$0xf]
  %v4854 = vld [vmem:[%s8 + $0x198] sm:$0xf]
  %v4855 = vld [vmem:[%s8 + $0x19c] sm:$0xf]
  %v4856 = vld [vmem:[%s8 + $0x1a0] sm:$0xf]
  %v4857 = vld [vmem:[%s8 + $0x1a4] sm:$0xf]
  %v4858 = vld [vmem:[%s8 + $0x1a8] sm:$0xf]
  %v4859 = vld [vmem:[%s8 + $0x1ac] sm:$0xf]
  %v4860 = vld [vmem:[%s8 + $0x1b0] sm:$0xf]
  %v4861 = vld [vmem:[%s8 + $0x1b4] sm:$0xf]
  %v4862 = vld [vmem:[%s8 + $0x1b8] sm:$0xf]
  %v4863 = vld [vmem:[%s8 + $0x1bc] sm:$0xf]
  %v4864 = vld [vmem:[%s8 + $0x1c0] sm:$0xf]
  %v4865 = vld [vmem:[%s8 + $0x1c4] sm:$0xf]
  %v4866 = vld [vmem:[%s8 + $0x1c8] sm:$0xf]
  %v4867 = vld [vmem:[%s8 + $0x1cc] sm:$0xf]
  %v4868 = vld [vmem:[%s8 + $0x1d0] sm:$0xf]
  %v4869 = vld [vmem:[%s8 + $0x1d4] sm:$0xf]
  %v4870 = vld [vmem:[%s8 + $0x1d8] sm:$0xf]
  %v4871 = vld [vmem:[%s8 + $0x1dc] sm:$0xf]
  %v4872 = vld [vmem:[%s8 + $0x1e0] sm:$0xf]
  %v4873 = vld [vmem:[%s8 + $0x1e4] sm:$0xf]
  %v4874 = vld [vmem:[%s8 + $0x1e8] sm:$0xf]
  %v4875 = vld [vmem:[%s8 + $0x1ec] sm:$0xf]
  %v4876 = vld [vmem:[%s8 + $0x1f0] sm:$0xf]
  %v4877 = vld [vmem:[%s8 + $0x1f4] sm:$0xf]
  %v4878 = vld [vmem:[%s8 + $0x1f8] sm:$0xf]
  %v4879 = vld [vmem:[%s8 + $0x1fc] sm:$0xf]
  %v4880 = vld [vmem:[%s8 + $0x200] sm:$0xf]
  %v4881 = vld [vmem:[%s8 + $0x204] sm:$0xf]
  %v4882 = vld [vmem:[%s8 + $0x208] sm:$0xf]
  %v4883 = vld [vmem:[%s8 + $0x20c] sm:$0xf]
  %v4884 = vld [vmem:[%s8 + $0x210] sm:$0xf]
  %v4885 = vld [vmem:[%s8 + $0x214] sm:$0xf]
  %v4886 = vld [vmem:[%s8 + $0x218] sm:$0xf]
  %v4887 = vld [vmem:[%s8 + $0x21c] sm:$0xf]
  %v4888 = vld [vmem:[%s8 + $0x220] sm:$0xf]
  %v4889 = vld [vmem:[%s8 + $0x224] sm:$0xf]
  %v4890 = vld [vmem:[%s8 + $0x228] sm:$0xf]
  %v4891 = vld [vmem:[%s8 + $0x22c] sm:$0xf]
  %v4892 = vld [vmem:[%s8 + $0x230] sm:$0xf]
  %v4893 = vld [vmem:[%s8 + $0x234] sm:$0xf]
  %v4894 = vld [vmem:[%s8 + $0x238] sm:$0xf]
  %v4895 = vld [vmem:[%s8 + $0x23c] sm:$0xf]
  %v4896 = vld [vmem:[%s9] sm:$0x1]
  %v4898 = vlaneseq
  %v4899 = vshrl.u32 %v4898, 7
  %v4900 = vsub.s32 0, %v4899
  %v4901 = vrot.slane %v4573, %v4900
  %v4903 = vmul.f32 %v4591, %v4901
  %v4904 = vmul.f32 %v4599, %v4901
  %v4905 = vmul.f32 %v4598, %v4901
  %v4906 = vmul.f32 %v4600, %v4901
  %v4907 = vmul.f32 %v4608, %v4901
  %v4908 = vmul.f32 %v4616, %v4901
  %v4909 = vmul.f32 %v4615, %v4901
  %v4910 = vmul.f32 %v4617, %v4901
  %v4911 = vmul.f32 %v4625, %v4901
  %v4912 = vmul.f32 %v4633, %v4901
  %v4913 = vmul.f32 %v4632, %v4901
  %v4914 = vmul.f32 %v4634, %v4901
  %v4915 = vmul.f32 %v4642, %v4901
  %v4916 = vmul.f32 %v4650, %v4901
  %v4917 = vmul.f32 %v4649, %v4901
  %v4918 = vmul.f32 %v4651, %v4901
  %v4919 = vmul.f32 %v4659, %v4901
  %v4920 = vmul.f32 %v4667, %v4901
  %v4921 = vmul.f32 %v4666, %v4901
  %v4922 = vmul.f32 %v4668, %v4901
  %v4923 = vmul.f32 %v4676, %v4901
  %v4924 = vmul.f32 %v4684, %v4901
  %v4925 = vmul.f32 %v4683, %v4901
  %v4926 = vmul.f32 %v4685, %v4901
  %v4927 = vmul.f32 %v4693, %v4901
  %v4928 = vmul.f32 %v4701, %v4901
  %v4929 = vmul.f32 %v4700, %v4901
  %v4930 = vmul.f32 %v4702, %v4901
  %v4931 = vmul.f32 %v4710, %v4901
  %v4932 = vmul.f32 %v4718, %v4901
  %v4933 = vmul.f32 %v4717, %v4901
  %v4934 = vmul.f32 %v4719, %v4901
  %v4936 = vlaneseq
  %v4937 = vshrl.u32 %v4936, 7
  %v4938 = vsub.s32 0, %v4937
  %v4939 = vrot.slane %v4575, %v4938
  %v4941 = vadd.f32 %v4903, %v4939
  %v4942 = vadd.f32 %v4904, %v4939
  %v4943 = vadd.f32 %v4905, %v4939
  %v4944 = vadd.f32 %v4906, %v4939
  %v4945 = vadd.f32 %v4907, %v4939
  %v4946 = vadd.f32 %v4908, %v4939
  %v4947 = vadd.f32 %v4909, %v4939
  %v4948 = vadd.f32 %v4910, %v4939
  %v4949 = vadd.f32 %v4911, %v4939
  %v4950 = vadd.f32 %v4912, %v4939
  %v4951 = vadd.f32 %v4913, %v4939
  %v4952 = vadd.f32 %v4914, %v4939
  %v4953 = vadd.f32 %v4915, %v4939
  %v4954 = vadd.f32 %v4916, %v4939
  %v4955 = vadd.f32 %v4917, %v4939
  %v4956 = vadd.f32 %v4918, %v4939
  %v4957 = vadd.f32 %v4919, %v4939
  %v4958 = vadd.f32 %v4920, %v4939
  %v4959 = vadd.f32 %v4921, %v4939
  %v4960 = vadd.f32 %v4922, %v4939
  %v4961 = vadd.f32 %v4923, %v4939
  %v4962 = vadd.f32 %v4924, %v4939
  %v4963 = vadd.f32 %v4925, %v4939
  %v4964 = vadd.f32 %v4926, %v4939
  %v4965 = vadd.f32 %v4927, %v4939
  %v4966 = vadd.f32 %v4928, %v4939
  %v4967 = vadd.f32 %v4929, %v4939
  %v4968 = vadd.f32 %v4930, %v4939
  %v4969 = vadd.f32 %v4931, %v4939
  %v4970 = vadd.f32 %v4932, %v4939
  %v4971 = vadd.f32 %v4933, %v4939
  %v4972 = vadd.f32 %v4934, %v4939
  %v4973 = vmax.f32 %v4941, 0.0
  %v4974 = vmax.f32 %v4942, 0.0
  %v4975 = vmax.f32 %v4943, 0.0
  %v4976 = vmax.f32 %v4944, 0.0
  %v4977 = vmax.f32 %v4945, 0.0
  %v4978 = vmax.f32 %v4946, 0.0
  %v4979 = vmax.f32 %v4947, 0.0
  %v4980 = vmax.f32 %v4948, 0.0
  %v4981 = vmax.f32 %v4949, 0.0
  %v4982 = vmax.f32 %v4950, 0.0
  %v4983 = vmax.f32 %v4951, 0.0
  %v4984 = vmax.f32 %v4952, 0.0
  %v4985 = vmax.f32 %v4953, 0.0
  %v4986 = vmax.f32 %v4954, 0.0
  %v4987 = vmax.f32 %v4955, 0.0
  %v4988 = vmax.f32 %v4956, 0.0
  %v4989 = vmax.f32 %v4957, 0.0
  %v4990 = vmax.f32 %v4958, 0.0
  %v4991 = vmax.f32 %v4959, 0.0
  %v4992 = vmax.f32 %v4960, 0.0
  %v4993 = vmax.f32 %v4961, 0.0
  %v4994 = vmax.f32 %v4962, 0.0
  %v4995 = vmax.f32 %v4963, 0.0
  %v4996 = vmax.f32 %v4964, 0.0
  %v4997 = vmax.f32 %v4965, 0.0
  %v4998 = vmax.f32 %v4966, 0.0
  %v4999 = vmax.f32 %v4967, 0.0
  %v5000 = vmax.f32 %v4968, 0.0
  %v5001 = vmax.f32 %v4969, 0.0
  %v5002 = vmax.f32 %v4970, 0.0
  %v5003 = vmax.f32 %v4971, 0.0
  %v5004 = vmax.f32 %v4972, 0.0
  %5005 = vst [vmem:[%s41 + $0x1] sm:$0x3] %v4973
  %5006 = vst [vmem:[%s41 + $0x5] sm:$0x3] %v4974
  %5007 = vst [vmem:[%s41 + $0x9] sm:$0x3] %v4975
  %5008 = vst [vmem:[%s41 + $0xd] sm:$0x3] %v4976
  %5009 = vst [vmem:[%s41 + $0x11] sm:$0x3] %v4977
  %5010 = vst [vmem:[%s41 + $0x15] sm:$0x3] %v4978
  %5011 = vst [vmem:[%s41 + $0x19] sm:$0x3] %v4979
  %5012 = vst [vmem:[%s41 + $0x1d] sm:$0x3] %v4980
  %5013 = vst [vmem:[%s41 + $0x21] sm:$0x3] %v4981
  %5014 = vst [vmem:[%s41 + $0x25] sm:$0x3] %v4982
  %5015 = vst [vmem:[%s41 + $0x29] sm:$0x3] %v4983
  %5016 = vst [vmem:[%s41 + $0x2d] sm:$0x3] %v4984
  %5017 = vst [vmem:[%s41 + $0x31] sm:$0x3] %v4985
  %5018 = vst [vmem:[%s41 + $0x35] sm:$0x3] %v4986
  %5019 = vst [vmem:[%s41 + $0x39] sm:$0x3] %v4987
  %5020 = vst [vmem:[%s41 + $0x3d] sm:$0x3] %v4988
  %5021 = vst [vmem:[%s41 + $0x49] sm:$0x3] %v4989
  %5022 = vst [vmem:[%s41 + $0x4d] sm:$0x3] %v4990
  %5023 = vst [vmem:[%s41 + $0x51] sm:$0x3] %v4991
  %5024 = vst [vmem:[%s41 + $0x55] sm:$0x3] %v4992
  %5025 = vst [vmem:[%s41 + $0x59] sm:$0x3] %v4993
  %5026 = vst [vmem:[%s41 + $0x5d] sm:$0x3] %v4994
  %5027 = vst [vmem:[%s41 + $0x61] sm:$0x3] %v4995
  %5028 = vst [vmem:[%s41 + $0x65] sm:$0x3] %v4996
  %5029 = vst [vmem:[%s41 + $0x69] sm:$0x3] %v4997
  %5030 = vst [vmem:[%s41 + $0x6d] sm:$0x3] %v4998
  %5031 = vst [vmem:[%s41 + $0x71] sm:$0x3] %v4999
  %5032 = vst [vmem:[%s41 + $0x75] sm:$0x3] %v5000
  %5033 = vst [vmem:[%s41 + $0x79] sm:$0x3] %v5001
  %5034 = vst [vmem:[%s41 + $0x7d] sm:$0x3] %v5002
  %5035 = vst [vmem:[%s41 + $0x81] sm:$0x3] %v5003
  %5036 = vst [vmem:[%s41 + $0x85] sm:$0x3] %v5004
  %v5037 = vld [vmem:[#allocation2] sm:$0x3]
  %v5038 = vld [vmem:[#allocation2 + $0x4] sm:$0x3]
  %v5039 = vld [vmem:[#allocation2 + $0x8] sm:$0x3]
  %v5040 = vld [vmem:[#allocation2 + $0xc] sm:$0x3]
  %v5041 = vld [vmem:[#allocation2 + $0x10] sm:$0x3]
  %v5042 = vld [vmem:[#allocation2 + $0x14] sm:$0x3]
  %v5043 = vld [vmem:[#allocation2 + $0x18] sm:$0x3]
  %v5044 = vld [vmem:[#allocation2 + $0x1c] sm:$0x3]
  %v5045 = vld [vmem:[#allocation2 + $0x20] sm:$0x3]
  %v5046 = vld [vmem:[#allocation2 + $0x24] sm:$0x3]
  %v5047 = vld [vmem:[#allocation2 + $0x28] sm:$0x3]
  %v5048 = vld [vmem:[#allocation2 + $0x2c] sm:$0x3]
  %v5049 = vld [vmem:[#allocation2 + $0x30] sm:$0x3]
  %v5050 = vld [vmem:[#allocation2 + $0x34] sm:$0x3]
  %v5051 = vld [vmem:[#allocation2 + $0x38] sm:$0x3]
  %v5052 = vld [vmem:[#allocation2 + $0x3c] sm:$0x3]
  %v5053 = vld [vmem:[#allocation2 + $0x48] sm:$0x3]
  %v5054 = vld [vmem:[#allocation2 + $0x4c] sm:$0x3]
  %v5055 = vld [vmem:[#allocation2 + $0x50] sm:$0x3]
  %v5056 = vld [vmem:[#allocation2 + $0x54] sm:$0x3]
  %v5057 = vld [vmem:[#allocation2 + $0x58] sm:$0x3]
  %v5058 = vld [vmem:[#allocation2 + $0x5c] sm:$0x3]
  %v5059 = vld [vmem:[#allocation2 + $0x60] sm:$0x3]
  %v5060 = vld [vmem:[#allocation2 + $0x64] sm:$0x3]
  %v5061 = vld [vmem:[#allocation2 + $0x68] sm:$0x3]
  %v5062 = vld [vmem:[#allocation2 + $0x6c] sm:$0x3]
  %v5063 = vld [vmem:[#allocation2 + $0x70] sm:$0x3]
  %v5064 = vld [vmem:[#allocation2 + $0x74] sm:$0x3]
  %v5065 = vld [vmem:[#allocation2 + $0x78] sm:$0x3]
  %v5066 = vld [vmem:[#allocation2 + $0x7c] sm:$0x3]
  %v5067 = vld [vmem:[#allocation2 + $0x80] sm:$0x3]
  %v5068 = vld [vmem:[#allocation2 + $0x84] sm:$0x3]
  %v5069 = vld [vmem:[#allocation2 + $0x1] sm:$0x3]
  %v5070 = vld [vmem:[#allocation2 + $0x5] sm:$0x3]
  %v5071 = vld [vmem:[#allocation2 + $0x9] sm:$0x3]
  %v5072 = vld [vmem:[#allocation2 + $0xd] sm:$0x3]
  %v5073 = vld [vmem:[#allocation2 + $0x11] sm:$0x3]
  %v5074 = vld [vmem:[#allocation2 + $0x15] sm:$0x3]
  %v5075 = vld [vmem:[#allocation2 + $0x19] sm:$0x3]
  %v5076 = vld [vmem:[#allocation2 + $0x1d] sm:$0x3]
  %v5077 = vld [vmem:[#allocation2 + $0x21] sm:$0x3]
  %v5078 = vld [vmem:[#allocation2 + $0x25] sm:$0x3]
  %v5079 = vld [vmem:[#allocation2 + $0x29] sm:$0x3]
  %v5080 = vld [vmem:[#allocation2 + $0x2d] sm:$0x3]
  %v5081 = vld [vmem:[#allocation2 + $0x31] sm:$0x3]
  %v5082 = vld [vmem:[#allocation2 + $0x35] sm:$0x3]
  %v5083 = vld [vmem:[#allocation2 + $0x39] sm:$0x3]
  %v5084 = vld [vmem:[#allocation2 + $0x3d] sm:$0x3]
  %v5085 = vld [vmem:[#allocation2 + $0x49] sm:$0x3]
  %v5086 = vld [vmem:[#allocation2 + $0x4d] sm:$0x3]
  %v5087 = vld [vmem:[#allocation2 + $0x51] sm:$0x3]
  %v5088 = vld [vmem:[#allocation2 + $0x55] sm:$0x3]
  %v5089 = vld [vmem:[#allocation2 + $0x59] sm:$0x3]
  %v5090 = vld [vmem:[#allocation2 + $0x5d] sm:$0x3]
  %v5091 = vld [vmem:[#allocation2 + $0x61] sm:$0x3]
  %v5092 = vld [vmem:[#allocation2 + $0x65] sm:$0x3]
  %v5093 = vld [vmem:[#allocation2 + $0x69] sm:$0x3]
  %v5094 = vld [vmem:[#allocation2 + $0x6d] sm:$0x3]
  %v5095 = vld [vmem:[#allocation2 + $0x71] sm:$0x3]
  %v5096 = vld [vmem:[#allocation2 + $0x75] sm:$0x3]
  %v5097 = vld [vmem:[#allocation2 + $0x79] sm:$0x3]
  %v5098 = vld [vmem:[#allocation2 + $0x7d] sm:$0x3]
  %v5099 = vld [vmem:[#allocation2 + $0x81] sm:$0x3]
  %v5100 = vld [vmem:[#allocation2 + $0x85] sm:$0x3]
  %v5101 = vld [vmem:[#allocation2 + $0x2] sm:$0x3]
  %v5102 = vld [vmem:[#allocation2 + $0x6] sm:$0x3]
  %v5103 = vld [vmem:[#allocation2 + $0xa] sm:$0x3]
  %v5104 = vld [vmem:[#allocation2 + $0xe] sm:$0x3]
  %v5105 = vld [vmem:[#allocation2 + $0x12] sm:$0x3]
  %v5106 = vld [vmem:[#allocation2 + $0x16] sm:$0x3]
  %v5107 = vld [vmem:[#allocation2 + $0x1a] sm:$0x3]
  %v5108 = vld [vmem:[#allocation2 + $0x1e] sm:$0x3]
  %v5109 = vld [vmem:[#allocation2 + $0x22] sm:$0x3]
  %v5110 = vld [vmem:[#allocation2 + $0x26] sm:$0x3]
  %v5111 = vld [vmem:[#allocation2 + $0x2a] sm:$0x3]
  %v5112 = vld [vmem:[#allocation2 + $0x2e] sm:$0x3]
  %v5113 = vld [vmem:[#allocation2 + $0x32] sm:$0x3]
  %v5114 = vld [vmem:[#allocation2 + $0x36] sm:$0x3]
  %v5115 = vld [vmem:[#allocation2 + $0x3a] sm:$0x3]
  %v5116 = vld [vmem:[#allocation2 + $0x3e] sm:$0x3]
  %v5117 = vld [vmem:[#allocation2 + $0x4a] sm:$0x3]
  %v5118 = vld [vmem:[#allocation2 + $0x4e] sm:$0x3]
  %v5119 = vld [vmem:[#allocation2 + $0x52] sm:$0x3]
  %v5120 = vld [vmem:[#allocation2 + $0x56] sm:$0x3]
  %v5121 = vld [vmem:[#allocation2 + $0x5a] sm:$0x3]
  %v5122 = vld [vmem:[#allocation2 + $0x5e] sm:$0x3]
  %v5123 = vld [vmem:[#allocation2 + $0x62] sm:$0x3]
  %v5124 = vld [vmem:[#allocation2 + $0x66] sm:$0x3]
  %v5125 = vld [vmem:[#allocation2 + $0x6a] sm:$0x3]
  %v5126 = vld [vmem:[#allocation2 + $0x6e] sm:$0x3]
  %v5127 = vld [vmem:[#allocation2 + $0x72] sm:$0x3]
  %v5128 = vld [vmem:[#allocation2 + $0x76] sm:$0x3]
  %v5129 = vld [vmem:[#allocation2 + $0x7a] sm:$0x3]
  %v5130 = vld [vmem:[#allocation2 + $0x7e] sm:$0x3]
  %v5131 = vld [vmem:[#allocation2 + $0x82] sm:$0x3]
  %v5132 = vld [vmem:[#allocation2 + $0x86] sm:$0x3]
  %v5133 = vld [vmem:[%s41] sm:$0x3]
  %v5134 = vld [vmem:[%s41 + $0x4] sm:$0x3]
  %v5135 = vld [vmem:[%s41 + $0x8] sm:$0x3]
  %v5136 = vld [vmem:[%s41 + $0xc] sm:$0x3]
  %v5137 = vld [vmem:[%s41 + $0x10] sm:$0x3]
  %v5138 = vld [vmem:[%s41 + $0x14] sm:$0x3]
  %v5139 = vld [vmem:[%s41 + $0x18] sm:$0x3]
  %v5140 = vld [vmem:[%s41 + $0x1c] sm:$0x3]
  %v5141 = vld [vmem:[%s41 + $0x20] sm:$0x3]
  %v5142 = vld [vmem:[%s41 + $0x24] sm:$0x3]
  %v5143 = vld [vmem:[%s41 + $0x28] sm:$0x3]
  %v5144 = vld [vmem:[%s41 + $0x2c] sm:$0x3]
  %v5145 = vld [vmem:[%s41 + $0x30] sm:$0x3]
  %v5146 = vld [vmem:[%s41 + $0x34] sm:$0x3]
  %v5147 = vld [vmem:[%s41 + $0x38] sm:$0x3]
  %v5148 = vld [vmem:[%s41 + $0x3c] sm:$0x3]
  %v5149 = vld [vmem:[%s41 + $0x48] sm:$0x3]
  %v5150 = vld [vmem:[%s41 + $0x4c] sm:$0x3]
  %v5151 = vld [vmem:[%s41 + $0x50] sm:$0x3]
  %v5152 = vld [vmem:[%s41 + $0x54] sm:$0x3]
  %v5153 = vld [vmem:[%s41 + $0x58] sm:$0x3]
  %v5154 = vld [vmem:[%s41 + $0x5c] sm:$0x3]
  %v5155 = vld [vmem:[%s41 + $0x60] sm:$0x3]
  %v5156 = vld [vmem:[%s41 + $0x64] sm:$0x3]
  %v5157 = vld [vmem:[%s41 + $0x68] sm:$0x3]
  %v5158 = vld [vmem:[%s41 + $0x6c] sm:$0x3]
  %v5159 = vld [vmem:[%s41 + $0x70] sm:$0x3]
  %v5160 = vld [vmem:[%s41 + $0x74] sm:$0x3]
  %v5161 = vld [vmem:[%s41 + $0x78] sm:$0x3]
  %v5162 = vld [vmem:[%s41 + $0x7c] sm:$0x3]
  %v5163 = vld [vmem:[%s41 + $0x80] sm:$0x3]
  %v5164 = vld [vmem:[%s41 + $0x84] sm:$0x3]
  %v5165 = vld [vmem:[%s41 + $0x1] sm:$0x3]
  %v5166 = vld [vmem:[%s41 + $0x5] sm:$0x3]
  %v5167 = vld [vmem:[%s41 + $0x9] sm:$0x3]
  %v5168 = vld [vmem:[%s41 + $0xd] sm:$0x3]
  %v5169 = vld [vmem:[%s41 + $0x11] sm:$0x3]
  %v5170 = vld [vmem:[%s41 + $0x15] sm:$0x3]
  %v5171 = vld [vmem:[%s41 + $0x19] sm:$0x3]
  %v5172 = vld [vmem:[%s41 + $0x1d] sm:$0x3]
  %v5173 = vld [vmem:[%s41 + $0x21] sm:$0x3]
  %v5174 = vld [vmem:[%s41 + $0x25] sm:$0x3]
  %v5175 = vld [vmem:[%s41 + $0x29] sm:$0x3]
  %v5176 = vld [vmem:[%s41 + $0x2d] sm:$0x3]
  %v5177 = vld [vmem:[%s41 + $0x31] sm:$0x3]
  %v5178 = vld [vmem:[%s41 + $0x35] sm:$0x3]
  %v5179 = vld [vmem:[%s41 + $0x39] sm:$0x3]
  %v5180 = vld [vmem:[%s41 + $0x3d] sm:$0x3]
  %v5181 = vld [vmem:[%s41 + $0x49] sm:$0x3]
  %v5182 = vld [vmem:[%s41 + $0x4d] sm:$0x3]
  %v5183 = vld [vmem:[%s41 + $0x51] sm:$0x3]
  %v5184 = vld [vmem:[%s41 + $0x55] sm:$0x3]
  %v5185 = vld [vmem:[%s41 + $0x59] sm:$0x3]
  %v5186 = vld [vmem:[%s41 + $0x5d] sm:$0x3]
  %v5187 = vld [vmem:[%s41 + $0x61] sm:$0x3]
  %v5188 = vld [vmem:[%s41 + $0x65] sm:$0x3]
  %v5189 = vld [vmem:[%s41 + $0x69] sm:$0x3]
  %v5190 = vld [vmem:[%s41 + $0x6d] sm:$0x3]
  %v5191 = vld [vmem:[%s41 + $0x71] sm:$0x3]
  %v5192 = vld [vmem:[%s41 + $0x75] sm:$0x3]
  %v5193 = vld [vmem:[%s41 + $0x79] sm:$0x3]
  %v5194 = vld [vmem:[%s41 + $0x7d] sm:$0x3]
  %v5195 = vld [vmem:[%s41 + $0x81] sm:$0x3]
  %v5196 = vld [vmem:[%s41 + $0x85] sm:$0x3]
  %v5197 = vld [vmem:[%s41 + $0x2] sm:$0x3]
  %v5198 = vld [vmem:[%s41 + $0x6] sm:$0x3]
  %v5199 = vld [vmem:[%s41 + $0xa] sm:$0x3]
  %v5200 = vld [vmem:[%s41 + $0xe] sm:$0x3]
  %v5201 = vld [vmem:[%s41 + $0x12] sm:$0x3]
  %v5202 = vld [vmem:[%s41 + $0x16] sm:$0x3]
  %v5203 = vld [vmem:[%s41 + $0x1a] sm:$0x3]
  %v5204 = vld [vmem:[%s41 + $0x1e] sm:$0x3]
  %v5205 = vld [vmem:[%s41 + $0x22] sm:$0x3]
  %v5206 = vld [vmem:[%s41 + $0x26] sm:$0x3]
  %v5207 = vld [vmem:[%s41 + $0x2a] sm:$0x3]
  %v5208 = vld [vmem:[%s41 + $0x2e] sm:$0x3]
  %v5209 = vld [vmem:[%s41 + $0x32] sm:$0x3]
  %v5210 = vld [vmem:[%s41 + $0x36] sm:$0x3]
  %v5211 = vld [vmem:[%s41 + $0x3a] sm:$0x3]
  %v5212 = vld [vmem:[%s41 + $0x3e] sm:$0x3]
  %v5213 = vld [vmem:[%s41 + $0x4a] sm:$0x3]
  %v5214 = vld [vmem:[%s41 + $0x4e] sm:$0x3]
  %v5215 = vld [vmem:[%s41 + $0x52] sm:$0x3]
  %v5216 = vld [vmem:[%s41 + $0x56] sm:$0x3]
  %v5217 = vld [vmem:[%s41 + $0x5a] sm:$0x3]
  %v5218 = vld [vmem:[%s41 + $0x5e] sm:$0x3]
  %v5219 = vld [vmem:[%s41 + $0x62] sm:$0x3]
  %v5220 = vld [vmem:[%s41 + $0x66] sm:$0x3]
  %v5221 = vld [vmem:[%s41 + $0x6a] sm:$0x3]
  %v5222 = vld [vmem:[%s41 + $0x6e] sm:$0x3]
  %v5223 = vld [vmem:[%s41 + $0x72] sm:$0x3]
  %v5224 = vld [vmem:[%s41 + $0x76] sm:$0x3]
  %v5225 = vld [vmem:[%s41 + $0x7a] sm:$0x3]
  %v5226 = vld [vmem:[%s41 + $0x7e] sm:$0x3]
  %v5227 = vld [vmem:[%s41 + $0x82] sm:$0x3]
  %v5228 = vld [vmem:[%s41 + $0x86] sm:$0x3]
  %v5229 = vld [vmem:[%s1144] sm:$0x3]
  %v5230 = vld [vmem:[%s1144 + $0x4] sm:$0x3]
  %v5231 = vld [vmem:[%s1144 + $0x8] sm:$0x3]
  %v5232 = vld [vmem:[%s1144 + $0xc] sm:$0x3]
  %v5233 = vld [vmem:[%s1144 + $0x10] sm:$0x3]
  %v5234 = vld [vmem:[%s1144 + $0x14] sm:$0x3]
  %v5235 = vld [vmem:[%s1144 + $0x18] sm:$0x3]
  %v5236 = vld [vmem:[%s1144 + $0x1c] sm:$0x3]
  %v5237 = vld [vmem:[%s1144 + $0x20] sm:$0x3]
  %v5238 = vld [vmem:[%s1144 + $0x24] sm:$0x3]
  %v5239 = vld [vmem:[%s1144 + $0x28] sm:$0x3]
  %v5240 = vld [vmem:[%s1144 + $0x2c] sm:$0x3]
  %v5241 = vld [vmem:[%s1144 + $0x30] sm:$0x3]
  %v5242 = vld [vmem:[%s1144 + $0x34] sm:$0x3]
  %v5243 = vld [vmem:[%s1144 + $0x38] sm:$0x3]
  %v5244 = vld [vmem:[%s1144 + $0x3c] sm:$0x3]
  %v5245 = vld [vmem:[%s1144 + $0x48] sm:$0x3]
  %v5246 = vld [vmem:[%s1144 + $0x4c] sm:$0x3]
  %v5247 = vld [vmem:[%s1144 + $0x50] sm:$0x3]
  %v5248 = vld [vmem:[%s1144 + $0x54] sm:$0x3]
  %v5249 = vld [vmem:[%s1144 + $0x58] sm:$0x3]
  %v5250 = vld [vmem:[%s1144 + $0x5c] sm:$0x3]
  %v5251 = vld [vmem:[%s1144 + $0x60] sm:$0x3]
  %v5252 = vld [vmem:[%s1144 + $0x64] sm:$0x3]
  %v5253 = vld [vmem:[%s1144 + $0x68] sm:$0x3]
  %v5254 = vld [vmem:[%s1144 + $0x6c] sm:$0x3]
  %v5255 = vld [vmem:[%s1144 + $0x70] sm:$0x3]
  %v5256 = vld [vmem:[%s1144 + $0x74] sm:$0x3]
  %v5257 = vld [vmem:[%s1144 + $0x78] sm:$0x3]
  %v5258 = vld [vmem:[%s1144 + $0x7c] sm:$0x3]
  %v5259 = vld [vmem:[%s1144 + $0x80] sm:$0x3]
  %v5260 = vld [vmem:[%s1144 + $0x84] sm:$0x3]
  %v5261 = vld [vmem:[%s1144 + $0x1] sm:$0x3]
  %v5262 = vld [vmem:[%s1144 + $0x5] sm:$0x3]
  %v5263 = vld [vmem:[%s1144 + $0x9] sm:$0x3]
  %v5264 = vld [vmem:[%s1144 + $0xd] sm:$0x3]
  %v5265 = vld [vmem:[%s1144 + $0x11] sm:$0x3]
  %v5266 = vld [vmem:[%s1144 + $0x15] sm:$0x3]
  %v5267 = vld [vmem:[%s1144 + $0x19] sm:$0x3]
  %v5268 = vld [vmem:[%s1144 + $0x1d] sm:$0x3]
  %v5269 = vld [vmem:[%s1144 + $0x21] sm:$0x3]
  %v5270 = vld [vmem:[%s1144 + $0x25] sm:$0x3]
  %v5271 = vld [vmem:[%s1144 + $0x29] sm:$0x3]
  %v5272 = vld [vmem:[%s1144 + $0x2d] sm:$0x3]
  %v5273 = vld [vmem:[%s1144 + $0x31] sm:$0x3]
  %v5274 = vld [vmem:[%s1144 + $0x35] sm:$0x3]
  %v5275 = vld [vmem:[%s1144 + $0x39] sm:$0x3]
  %v5276 = vld [vmem:[%s1144 + $0x3d] sm:$0x3]
  %v5277 = vld [vmem:[%s1144 + $0x49] sm:$0x3]
  %v5278 = vld [vmem:[%s1144 + $0x4d] sm:$0x3]
  %v5279 = vld [vmem:[%s1144 + $0x51] sm:$0x3]
  %v5280 = vld [vmem:[%s1144 + $0x55] sm:$0x3]
  %v5281 = vld [vmem:[%s1144 + $0x59] sm:$0x3]
  %v5282 = vld [vmem:[%s1144 + $0x5d] sm:$0x3]
  %v5283 = vld [vmem:[%s1144 + $0x61] sm:$0x3]
  %v5284 = vld [vmem:[%s1144 + $0x65] sm:$0x3]
  %v5285 = vld [vmem:[%s1144 + $0x69] sm:$0x3]
  %v5286 = vld [vmem:[%s1144 + $0x6d] sm:$0x3]
  %v5287 = vld [vmem:[%s1144 + $0x71] sm:$0x3]
  %v5288 = vld [vmem:[%s1144 + $0x75] sm:$0x3]
  %v5289 = vld [vmem:[%s1144 + $0x79] sm:$0x3]
  %v5290 = vld [vmem:[%s1144 + $0x7d] sm:$0x3]
  %v5291 = vld [vmem:[%s1144 + $0x81] sm:$0x3]
  %v5292 = vld [vmem:[%s1144 + $0x85] sm:$0x3]
  %v5293 = vld [vmem:[%s1144 + $0x2] sm:$0x3]
  %v5294 = vld [vmem:[%s1144 + $0x6] sm:$0x3]
  %v5295 = vld [vmem:[%s1144 + $0xa] sm:$0x3]
  %v5296 = vld [vmem:[%s1144 + $0xe] sm:$0x3]
  %v5297 = vld [vmem:[%s1144 + $0x12] sm:$0x3]
  %v5298 = vld [vmem:[%s1144 + $0x16] sm:$0x3]
  %v5299 = vld [vmem:[%s1144 + $0x1a] sm:$0x3]
  %v5300 = vld [vmem:[%s1144 + $0x1e] sm:$0x3]
  %v5301 = vld [vmem:[%s1144 + $0x22] sm:$0x3]
  %v5302 = vld [vmem:[%s1144 + $0x26] sm:$0x3]
  %v5303 = vld [vmem:[%s1144 + $0x2a] sm:$0x3]
  %v5304 = vld [vmem:[%s1144 + $0x2e] sm:$0x3]
  %v5305 = vld [vmem:[%s1144 + $0x32] sm:$0x3]
  %v5306 = vld [vmem:[%s1144 + $0x36] sm:$0x3]
  %v5307 = vld [vmem:[%s1144 + $0x3a] sm:$0x3]
  %v5308 = vld [vmem:[%s1144 + $0x3e] sm:$0x3]
  %v5309 = vld [vmem:[%s1144 + $0x4a] sm:$0x3]
  %v5310 = vld [vmem:[%s1144 + $0x4e] sm:$0x3]
  %v5311 = vld [vmem:[%s1144 + $0x52] sm:$0x3]
  %v5312 = vld [vmem:[%s1144 + $0x56] sm:$0x3]
  %v5313 = vld [vmem:[%s1144 + $0x5a] sm:$0x3]
  %v5314 = vld [vmem:[%s1144 + $0x5e] sm:$0x3]
  %v5315 = vld [vmem:[%s1144 + $0x62] sm:$0x3]
  %v5316 = vld [vmem:[%s1144 + $0x66] sm:$0x3]
  %v5317 = vld [vmem:[%s1144 + $0x6a] sm:$0x3]
  %v5318 = vld [vmem:[%s1144 + $0x6e] sm:$0x3]
  %v5319 = vld [vmem:[%s1144 + $0x72] sm:$0x3]
  %v5320 = vld [vmem:[%s1144 + $0x76] sm:$0x3]
  %v5321 = vld [vmem:[%s1144 + $0x7a] sm:$0x3]
  %v5322 = vld [vmem:[%s1144 + $0x7e] sm:$0x3]
  %v5323 = vld [vmem:[%s1144 + $0x82] sm:$0x3]
  %v5324 = vld [vmem:[%s1144 + $0x86] sm:$0x3]
  %v5613 = vcombine.low %v5037, %v5069
  %v5614 = vcombine.low %v5101, %v5133
  %v5616 = vunpack.c.l.s4 1983009808
  %v5617 = vunpack.c.0.s8 %v5616
  %v5618 = vlaneseq
  %v5619 = vshrl.u32 %v5618, 7
  %v5620 = vsub.s32 %v5617, %v5619
  %v5621 = vrot.slane %v5613, %v5620
  %v5623 = vunpack.c.l.s4 1983009808
  %v5624 = vunpack.c.0.s8 %v5623
  %v5625 = vlaneseq
  %v5626 = vshrl.u32 %v5625, 7
  %v5627 = vsub.s32 %v5624, %v5626
  %v5628 = vrot.slane %v5614, %v5627
  %v5629 = vcombine.low %v5621, %v5628
  %v5630 = vcombine.low %v5165, %v5197
  %v5631 = vcombine.low %v5229, %v5261
  %v5633 = vunpack.c.l.s4 1983009808
  %v5634 = vunpack.c.0.s8 %v5633
  %v5635 = vlaneseq
  %v5636 = vshrl.u32 %v5635, 7
  %v5637 = vsub.s32 %v5634, %v5636
  %v5638 = vrot.slane %v5630, %v5637
  %v5640 = vunpack.c.l.s4 1983009808
  %v5641 = vunpack.c.0.s8 %v5640
  %v5642 = vlaneseq
  %v5643 = vshrl.u32 %v5642, 7
  %v5644 = vsub.s32 %v5641, %v5643
  %v5645 = vrot.slane %v5631, %v5644
  %v5646 = vcombine.low %v5638, %v5645
  %v5648 = vunpack.c.l.s4 1983009808
  %v5649 = vunpack.c.0.s8 %v5648
  %v5650 = vlaneseq
  %v5651 = vshrl.u32 %v5650, 7
  %v5652 = vsub.s32 %v5649, %v5651
  %v5653 = vrot.slane %v5293, %v5652
  %v5654 = vcombine.low %v5038, %v5070
  %v5655 = vcombine.low %v5102, %v5134
  %v5657 = vunpack.c.l.s4 1983009808
  %v5658 = vunpack.c.0.s8 %v5657
  %v5659 = vlaneseq
  %v5660 = vshrl.u32 %v5659, 7
  %v5661 = vsub.s32 %v5658, %v5660
  %v5662 = vrot.slane %v5654, %v5661
  %v5664 = vunpack.c.l.s4 1983009808
  %v5665 = vunpack.c.0.s8 %v5664
  %v5666 = vlaneseq
  %v5667 = vshrl.u32 %v5666, 7
  %v5668 = vsub.s32 %v5665, %v5667
  %v5669 = vrot.slane %v5655, %v5668
  %v5670 = vcombine.low %v5662, %v5669
  %v5671 = vcombine.low %v5166, %v5198
  %v5672 = vcombine.low %v5230, %v5262
  %v5674 = vunpack.c.l.s4 1983009808
  %v5675 = vunpack.c.0.s8 %v5674
  %v5676 = vlaneseq
  %v5677 = vshrl.u32 %v5676, 7
  %v5678 = vsub.s32 %v5675, %v5677
  %v5679 = vrot.slane %v5671, %v5678
  %v5681 = vunpack.c.l.s4 1983009808
  %v5682 = vunpack.c.0.s8 %v5681
  %v5683 = vlaneseq
  %v5684 = vshrl.u32 %v5683, 7
  %v5685 = vsub.s32 %v5682, %v5684
  %v5686 = vrot.slane %v5672, %v5685
  %v5687 = vcombine.low %v5679, %v5686
  %v5689 = vunpack.c.l.s4 1983009808
  %v5690 = vunpack.c.0.s8 %v5689
  %v5691 = vlaneseq
  %v5692 = vshrl.u32 %v5691, 7
  %v5693 = vsub.s32 %v5690, %v5692
  %v5694 = vrot.slane %v5294, %v5693
  %v5695 = vcombine.low %v5039, %v5071
  %v5696 = vcombine.low %v5103, %v5135
  %v5698 = vunpack.c.l.s4 1983009808
  %v5699 = vunpack.c.0.s8 %v5698
  %v5700 = vlaneseq
  %v5701 = vshrl.u32 %v5700, 7
  %v5702 = vsub.s32 %v5699, %v5701
  %v5703 = vrot.slane %v5695, %v5702
  %v5705 = vunpack.c.l.s4 1983009808
  %v5706 = vunpack.c.0.s8 %v5705
  %v5707 = vlaneseq
  %v5708 = vshrl.u32 %v5707, 7
  %v5709 = vsub.s32 %v5706, %v5708
  %v5710 = vrot.slane %v5696, %v5709
  %v5711 = vcombine.low %v5703, %v5710
  %v5712 = vcombine.low %v5167, %v5199
  %v5713 = vcombine.low %v5231, %v5263
  %v5715 = vunpack.c.l.s4 1983009808
  %v5716 = vunpack.c.0.s8 %v5715
  %v5717 = vlaneseq
  %v5718 = vshrl.u32 %v5717, 7
  %v5719 = vsub.s32 %v5716, %v5718
  %v5720 = vrot.slane %v5712, %v5719
  %v5722 = vunpack.c.l.s4 1983009808
  %v5723 = vunpack.c.0.s8 %v5722
  %v5724 = vlaneseq
  %v5725 = vshrl.u32 %v5724, 7
  %v5726 = vsub.s32 %v5723, %v5725
  %v5727 = vrot.slane %v5713, %v5726
  %v5728 = vcombine.low %v5720, %v5727
  %v5730 = vunpack.c.l.s4 1983009808
  %v5731 = vunpack.c.0.s8 %v5730
  %v5732 = vlaneseq
  %v5733 = vshrl.u32 %v5732, 7
  %v5734 = vsub.s32 %v5731, %v5733
  %v5735 = vrot.slane %v5295, %v5734
  %v5736 = vcombine.low %v5040, %v5072
  %v5737 = vcombine.low %v5104, %v5136
  %v5739 = vunpack.c.l.s4 1983009808
  %v5740 = vunpack.c.0.s8 %v5739
  %v5741 = vlaneseq
  %v5742 = vshrl.u32 %v5741, 7
  %v5743 = vsub.s32 %v5740, %v5742
  %v5744 = vrot.slane %v5736, %v5743
  %v5746 = vunpack.c.l.s4 1983009808
  %v5747 = vunpack.c.0.s8 %v5746
  %v5748 = vlaneseq
  %v5749 = vshrl.u32 %v5748, 7
  %v5750 = vsub.s32 %v5747, %v5749
  %v5751 = vrot.slane %v5737, %v5750
  %v5752 = vcombine.low %v5744, %v5751
  %v5753 = vcombine.low %v5168, %v5200
  %v5754 = vcombine.low %v5232, %v5264
  %v5756 = vunpack.c.l.s4 1983009808
  %v5757 = vunpack.c.0.s8 %v5756
  %v5758 = vlaneseq
  %v5759 = vshrl.u32 %v5758, 7
  %v5760 = vsub.s32 %v5757, %v5759
  %v5761 = vrot.slane %v5753, %v5760
  %v5763 = vunpack.c.l.s4 1983009808
  %v5764 = vunpack.c.0.s8 %v5763
  %v5765 = vlaneseq
  %v5766 = vshrl.u32 %v5765, 7
  %v5767 = vsub.s32 %v5764, %v5766
  %v5768 = vrot.slane %v5754, %v5767
  %v5769 = vcombine.low %v5761, %v5768
  %v5771 = vunpack.c.l.s4 1983009808
  %v5772 = vunpack.c.0.s8 %v5771
  %v5773 = vlaneseq
  %v5774 = vshrl.u32 %v5773, 7
  %v5775 = vsub.s32 %v5772, %v5774
  %v5776 = vrot.slane %v5296, %v5775
  %v5777 = vcombine.low %v5041, %v5073
  %v5778 = vcombine.low %v5105, %v5137
  %v5780 = vunpack.c.l.s4 1983009808
  %v5781 = vunpack.c.0.s8 %v5780
  %v5782 = vlaneseq
  %v5783 = vshrl.u32 %v5782, 7
  %v5784 = vsub.s32 %v5781, %v5783
  %v5785 = vrot.slane %v5777, %v5784
  %v5787 = vunpack.c.l.s4 1983009808
  %v5788 = vunpack.c.0.s8 %v5787
  %v5789 = vlaneseq
  %v5790 = vshrl.u32 %v5789, 7
  %v5791 = vsub.s32 %v5788, %v5790
  %v5792 = vrot.slane %v5778, %v5791
  %v5793 = vcombine.low %v5785, %v5792
  %v5794 = vcombine.low %v5169, %v5201
  %v5795 = vcombine.low %v5233, %v5265
  %v5797 = vunpack.c.l.s4 1983009808
  %v5798 = vunpack.c.0.s8 %v5797
  %v5799 = vlaneseq
  %v5800 = vshrl.u32 %v5799, 7
  %v5801 = vsub.s32 %v5798, %v5800
  %v5802 = vrot.slane %v5794, %v5801
  %v5804 = vunpack.c.l.s4 1983009808
  %v5805 = vunpack.c.0.s8 %v5804
  %v5806 = vlaneseq
  %v5807 = vshrl.u32 %v5806, 7
  %v5808 = vsub.s32 %v5805, %v5807
  %v5809 = vrot.slane %v5795, %v5808
  %v5810 = vcombine.low %v5802, %v5809
  %v5812 = vunpack.c.l.s4 1983009808
  %v5813 = vunpack.c.0.s8 %v5812
  %v5814 = vlaneseq
  %v5815 = vshrl.u32 %v5814, 7
  %v5816 = vsub.s32 %v5813, %v5815
  %v5817 = vrot.slane %v5297, %v5816
  %v5818 = vcombine.low %v5042, %v5074
  %v5819 = vcombine.low %v5106, %v5138
  %v5821 = vunpack.c.l.s4 1983009808
  %v5822 = vunpack.c.0.s8 %v5821
  %v5823 = vlaneseq
  %v5824 = vshrl.u32 %v5823, 7
  %v5825 = vsub.s32 %v5822, %v5824
  %v5826 = vrot.slane %v5818, %v5825
  %v5828 = vunpack.c.l.s4 1983009808
  %v5829 = vunpack.c.0.s8 %v5828
  %v5830 = vlaneseq
  %v5831 = vshrl.u32 %v5830, 7
  %v5832 = vsub.s32 %v5829, %v5831
  %v5833 = vrot.slane %v5819, %v5832
  %v5834 = vcombine.low %v5826, %v5833
  %v5835 = vcombine.low %v5170, %v5202
  %v5836 = vcombine.low %v5234, %v5266
  %v5838 = vunpack.c.l.s4 1983009808
  %v5839 = vunpack.c.0.s8 %v5838
  %v5840 = vlaneseq
  %v5841 = vshrl.u32 %v5840, 7
  %v5842 = vsub.s32 %v5839, %v5841
  %v5843 = vrot.slane %v5835, %v5842
  %v5845 = vunpack.c.l.s4 1983009808
  %v5846 = vunpack.c.0.s8 %v5845
  %v5847 = vlaneseq
  %v5848 = vshrl.u32 %v5847, 7
  %v5849 = vsub.s32 %v5846, %v5848
  %v5850 = vrot.slane %v5836, %v5849
  %v5851 = vcombine.low %v5843, %v5850
  %v5853 = vunpack.c.l.s4 1983009808
  %v5854 = vunpack.c.0.s8 %v5853
  %v5855 = vlaneseq
  %v5856 = vshrl.u32 %v5855, 7
  %v5857 = vsub.s32 %v5854, %v5856
  %v5858 = vrot.slane %v5298, %v5857
  %v5859 = vcombine.low %v5043, %v5075
  %v5860 = vcombine.low %v5107, %v5139
  %v5862 = vunpack.c.l.s4 1983009808
  %v5863 = vunpack.c.0.s8 %v5862
  %v5864 = vlaneseq
  %v5865 = vshrl.u32 %v5864, 7
  %v5866 = vsub.s32 %v5863, %v5865
  %v5867 = vrot.slane %v5859, %v5866
  %v5869 = vunpack.c.l.s4 1983009808
  %v5870 = vunpack.c.0.s8 %v5869
  %v5871 = vlaneseq
  %v5872 = vshrl.u32 %v5871, 7
  %v5873 = vsub.s32 %v5870, %v5872
  %v5874 = vrot.slane %v5860, %v5873
  %v5875 = vcombine.low %v5867, %v5874
  %v5876 = vcombine.low %v5171, %v5203
  %v5877 = vcombine.low %v5235, %v5267
  %v5879 = vunpack.c.l.s4 1983009808
  %v5880 = vunpack.c.0.s8 %v5879
  %v5881 = vlaneseq
  %v5882 = vshrl.u32 %v5881, 7
  %v5883 = vsub.s32 %v5880, %v5882
  %v5884 = vrot.slane %v5876, %v5883
  %v5886 = vunpack.c.l.s4 1983009808
  %v5887 = vunpack.c.0.s8 %v5886
  %v5888 = vlaneseq
  %v5889 = vshrl.u32 %v5888, 7
  %v5890 = vsub.s32 %v5887, %v5889
  %v5891 = vrot.slane %v5877, %v5890
  %v5892 = vcombine.low %v5884, %v5891
  %v5894 = vunpack.c.l.s4 1983009808
  %v5895 = vunpack.c.0.s8 %v5894
  %v5896 = vlaneseq
  %v5897 = vshrl.u32 %v5896, 7
  %v5898 = vsub.s32 %v5895, %v5897
  %v5899 = vrot.slane %v5299, %v5898
  %v5900 = vcombine.low %v5044, %v5076
  %v5901 = vcombine.low %v5108, %v5140
  %v5903 = vunpack.c.l.s4 1983009808
  %v5904 = vunpack.c.0.s8 %v5903
  %v5905 = vlaneseq
  %v5906 = vshrl.u32 %v5905, 7
  %v5907 = vsub.s32 %v5904, %v5906
  %v5908 = vrot.slane %v5900, %v5907
  %v5910 = vunpack.c.l.s4 1983009808
  %v5911 = vunpack.c.0.s8 %v5910
  %v5912 = vlaneseq
  %v5913 = vshrl.u32 %v5912, 7
  %v5914 = vsub.s32 %v5911, %v5913
  %v5915 = vrot.slane %v5901, %v5914
  %v5916 = vcombine.low %v5908, %v5915
  %v5917 = vcombine.low %v5172, %v5204
  %v5918 = vcombine.low %v5236, %v5268
  %v5920 = vunpack.c.l.s4 1983009808
  %v5921 = vunpack.c.0.s8 %v5920
  %v5922 = vlaneseq
  %v5923 = vshrl.u32 %v5922, 7
  %v5924 = vsub.s32 %v5921, %v5923
  %v5925 = vrot.slane %v5917, %v5924
  %v5927 = vunpack.c.l.s4 1983009808
  %v5928 = vunpack.c.0.s8 %v5927
  %v5929 = vlaneseq
  %v5930 = vshrl.u32 %v5929, 7
  %v5931 = vsub.s32 %v5928, %v5930
  %v5932 = vrot.slane %v5918, %v5931
  %v5933 = vcombine.low %v5925, %v5932
  %v5935 = vunpack.c.l.s4 1983009808
  %v5936 = vunpack.c.0.s8 %v5935
  %v5937 = vlaneseq
  %v5938 = vshrl.u32 %v5937, 7
  %v5939 = vsub.s32 %v5936, %v5938
  %v5940 = vrot.slane %v5300, %v5939
  %v5941 = vcombine.low %v5045, %v5077
  %v5942 = vcombine.low %v5109, %v5141
  %v5944 = vunpack.c.l.s4 1983009808
  %v5945 = vunpack.c.0.s8 %v5944
  %v5946 = vlaneseq
  %v5947 = vshrl.u32 %v5946, 7
  %v5948 = vsub.s32 %v5945, %v5947
  %v5949 = vrot.slane %v5941, %v5948
  %v5951 = vunpack.c.l.s4 1983009808
  %v5952 = vunpack.c.0.s8 %v5951
  %v5953 = vlaneseq
  %v5954 = vshrl.u32 %v5953, 7
  %v5955 = vsub.s32 %v5952, %v5954
  %v5956 = vrot.slane %v5942, %v5955
  %v5957 = vcombine.low %v5949, %v5956
  %v5958 = vcombine.low %v5173, %v5205
  %v5959 = vcombine.low %v5237, %v5269
  %v5961 = vunpack.c.l.s4 1983009808
  %v5962 = vunpack.c.0.s8 %v5961
  %v5963 = vlaneseq
  %v5964 = vshrl.u32 %v5963, 7
  %v5965 = vsub.s32 %v5962, %v5964
  %v5966 = vrot.slane %v5958, %v5965
  %v5968 = vunpack.c.l.s4 1983009808
  %v5969 = vunpack.c.0.s8 %v5968
  %v5970 = vlaneseq
  %v5971 = vshrl.u32 %v5970, 7
  %v5972 = vsub.s32 %v5969, %v5971
  %v5973 = vrot.slane %v5959, %v5972
  %v5974 = vcombine.low %v5966, %v5973
  %v5976 = vunpack.c.l.s4 1983009808
  %v5977 = vunpack.c.0.s8 %v5976
  %v5978 = vlaneseq
  %v5979 = vshrl.u32 %v5978, 7
  %v5980 = vsub.s32 %v5977, %v5979
  %v5981 = vrot.slane %v5301, %v5980
  %v5982 = vcombine.low %v5046, %v5078
  %v5983 = vcombine.low %v5110, %v5142
  %v5985 = vunpack.c.l.s4 1983009808
  %v5986 = vunpack.c.0.s8 %v5985
  %v5987 = vlaneseq
  %v5988 = vshrl.u32 %v5987, 7
  %v5989 = vsub.s32 %v5986, %v5988
  %v5990 = vrot.slane %v5982, %v5989
  %v5992 = vunpack.c.l.s4 1983009808
  %v5993 = vunpack.c.0.s8 %v5992
  %v5994 = vlaneseq
  %v5995 = vshrl.u32 %v5994, 7
  %v5996 = vsub.s32 %v5993, %v5995
  %v5997 = vrot.slane %v5983, %v5996
  %v5998 = vcombine.low %v5990, %v5997
  %v5999 = vcombine.low %v5174, %v5206
  %v6000 = vcombine.low %v5238, %v5270
  %v6002 = vunpack.c.l.s4 1983009808
  %v6003 = vunpack.c.0.s8 %v6002
  %v6004 = vlaneseq
  %v6005 = vshrl.u32 %v6004, 7
  %v6006 = vsub.s32 %v6003, %v6005
  %v6007 = vrot.slane %v5999, %v6006
  %v6009 = vunpack.c.l.s4 1983009808
  %v6010 = vunpack.c.0.s8 %v6009
  %v6011 = vlaneseq
  %v6012 = vshrl.u32 %v6011, 7
  %v6013 = vsub.s32 %v6010, %v6012
  %v6014 = vrot.slane %v6000, %v6013
  %v6015 = vcombine.low %v6007, %v6014
  %v6017 = vunpack.c.l.s4 1983009808
  %v6018 = vunpack.c.0.s8 %v6017
  %v6019 = vlaneseq
  %v6020 = vshrl.u32 %v6019, 7
  %v6021 = vsub.s32 %v6018, %v6020
  %v6022 = vrot.slane %v5302, %v6021
  %v6023 = vcombine.low %v5047, %v5079
  %v6024 = vcombine.low %v5111, %v5143
  %v6026 = vunpack.c.l.s4 1983009808
  %v6027 = vunpack.c.0.s8 %v6026
  %v6028 = vlaneseq
  %v6029 = vshrl.u32 %v6028, 7
  %v6030 = vsub.s32 %v6027, %v6029
  %v6031 = vrot.slane %v6023, %v6030
  %v6033 = vunpack.c.l.s4 1983009808
  %v6034 = vunpack.c.0.s8 %v6033
  %v6035 = vlaneseq
  %v6036 = vshrl.u32 %v6035, 7
  %v6037 = vsub.s32 %v6034, %v6036
  %v6038 = vrot.slane %v6024, %v6037
  %v6039 = vcombine.low %v6031, %v6038
  %v6040 = vcombine.low %v5175, %v5207
  %v6041 = vcombine.low %v5239, %v5271
  %v6043 = vunpack.c.l.s4 1983009808
  %v6044 = vunpack.c.0.s8 %v6043
  %v6045 = vlaneseq
  %v6046 = vshrl.u32 %v6045, 7
  %v6047 = vsub.s32 %v6044, %v6046
  %v6048 = vrot.slane %v6040, %v6047
  %v6050 = vunpack.c.l.s4 1983009808
  %v6051 = vunpack.c.0.s8 %v6050
  %v6052 = vlaneseq
  %v6053 = vshrl.u32 %v6052, 7
  %v6054 = vsub.s32 %v6051, %v6053
  %v6055 = vrot.slane %v6041, %v6054
  %v6056 = vcombine.low %v6048, %v6055
  %v6058 = vunpack.c.l.s4 1983009808
  %v6059 = vunpack.c.0.s8 %v6058
  %v6060 = vlaneseq
  %v6061 = vshrl.u32 %v6060, 7
  %v6062 = vsub.s32 %v6059, %v6061
  %v6063 = vrot.slane %v5303, %v6062
  %v6064 = vcombine.low %v5048, %v5080
  %v6065 = vcombine.low %v5112, %v5144
  %v6067 = vunpack.c.l.s4 1983009808
  %v6068 = vunpack.c.0.s8 %v6067
  %v6069 = vlaneseq
  %v6070 = vshrl.u32 %v6069, 7
  %v6071 = vsub.s32 %v6068, %v6070
  %v6072 = vrot.slane %v6064, %v6071
  %v6074 = vunpack.c.l.s4 1983009808
  %v6075 = vunpack.c.0.s8 %v6074
  %v6076 = vlaneseq
  %v6077 = vshrl.u32 %v6076, 7
  %v6078 = vsub.s32 %v6075, %v6077
  %v6079 = vrot.slane %v6065, %v6078
  %v6080 = vcombine.low %v6072, %v6079
  %v6081 = vcombine.low %v5176, %v5208
  %v6082 = vcombine.low %v5240, %v5272
  %v6084 = vunpack.c.l.s4 1983009808
  %v6085 = vunpack.c.0.s8 %v6084
  %v6086 = vlaneseq
  %v6087 = vshrl.u32 %v6086, 7
  %v6088 = vsub.s32 %v6085, %v6087
  %v6089 = vrot.slane %v6081, %v6088
  %v6091 = vunpack.c.l.s4 1983009808
  %v6092 = vunpack.c.0.s8 %v6091
  %v6093 = vlaneseq
  %v6094 = vshrl.u32 %v6093, 7
  %v6095 = vsub.s32 %v6092, %v6094
  %v6096 = vrot.slane %v6082, %v6095
  %v6097 = vcombine.low %v6089, %v6096
  %v6099 = vunpack.c.l.s4 1983009808
  %v6100 = vunpack.c.0.s8 %v6099
  %v6101 = vlaneseq
  %v6102 = vshrl.u32 %v6101, 7
  %v6103 = vsub.s32 %v6100, %v6102
  %v6104 = vrot.slane %v5304, %v6103
  %v6105 = vcombine.low %v5049, %v5081
  %v6106 = vcombine.low %v5113, %v5145
  %v6108 = vunpack.c.l.s4 1983009808
  %v6109 = vunpack.c.0.s8 %v6108
  %v6110 = vlaneseq
  %v6111 = vshrl.u32 %v6110, 7
  %v6112 = vsub.s32 %v6109, %v6111
  %v6113 = vrot.slane %v6105, %v6112
  %v6115 = vunpack.c.l.s4 1983009808
  %v6116 = vunpack.c.0.s8 %v6115
  %v6117 = vlaneseq
  %v6118 = vshrl.u32 %v6117, 7
  %v6119 = vsub.s32 %v6116, %v6118
  %v6120 = vrot.slane %v6106, %v6119
  %v6121 = vcombine.low %v6113, %v6120
  %v6122 = vcombine.low %v5177, %v5209
  %v6123 = vcombine.low %v5241, %v5273
  %v6125 = vunpack.c.l.s4 1983009808
  %v6126 = vunpack.c.0.s8 %v6125
  %v6127 = vlaneseq
  %v6128 = vshrl.u32 %v6127, 7
  %v6129 = vsub.s32 %v6126, %v6128
  %v6130 = vrot.slane %v6122, %v6129
  %v6132 = vunpack.c.l.s4 1983009808
  %v6133 = vunpack.c.0.s8 %v6132
  %v6134 = vlaneseq
  %v6135 = vshrl.u32 %v6134, 7
  %v6136 = vsub.s32 %v6133, %v6135
  %v6137 = vrot.slane %v6123, %v6136
  %v6138 = vcombine.low %v6130, %v6137
  %v6140 = vunpack.c.l.s4 1983009808
  %v6141 = vunpack.c.0.s8 %v6140
  %v6142 = vlaneseq
  %v6143 = vshrl.u32 %v6142, 7
  %v6144 = vsub.s32 %v6141, %v6143
  %v6145 = vrot.slane %v5305, %v6144
  %v6146 = vcombine.low %v5050, %v5082
  %v6147 = vcombine.low %v5114, %v5146
  %v6149 = vunpack.c.l.s4 1983009808
  %v6150 = vunpack.c.0.s8 %v6149
  %v6151 = vlaneseq
  %v6152 = vshrl.u32 %v6151, 7
  %v6153 = vsub.s32 %v6150, %v6152
  %v6154 = vrot.slane %v6146, %v6153
  %v6156 = vunpack.c.l.s4 1983009808
  %v6157 = vunpack.c.0.s8 %v6156
  %v6158 = vlaneseq
  %v6159 = vshrl.u32 %v6158, 7
  %v6160 = vsub.s32 %v6157, %v6159
  %v6161 = vrot.slane %v6147, %v6160
  %v6162 = vcombine.low %v6154, %v6161
  %v6163 = vcombine.low %v5178, %v5210
  %v6164 = vcombine.low %v5242, %v5274
  %v6166 = vunpack.c.l.s4 1983009808
  %v6167 = vunpack.c.0.s8 %v6166
  %v6168 = vlaneseq
  %v6169 = vshrl.u32 %v6168, 7
  %v6170 = vsub.s32 %v6167, %v6169
  %v6171 = vrot.slane %v6163, %v6170
  %v6173 = vunpack.c.l.s4 1983009808
  %v6174 = vunpack.c.0.s8 %v6173
  %v6175 = vlaneseq
  %v6176 = vshrl.u32 %v6175, 7
  %v6177 = vsub.s32 %v6174, %v6176
  %v6178 = vrot.slane %v6164, %v6177
  %v6179 = vcombine.low %v6171, %v6178
  %v6181 = vunpack.c.l.s4 1983009808
  %v6182 = vunpack.c.0.s8 %v6181
  %v6183 = vlaneseq
  %v6184 = vshrl.u32 %v6183, 7
  %v6185 = vsub.s32 %v6182, %v6184
  %v6186 = vrot.slane %v5306, %v6185
  %v6187 = vcombine.low %v5051, %v5083
  %v6188 = vcombine.low %v5115, %v5147
  %v6190 = vunpack.c.l.s4 1983009808
  %v6191 = vunpack.c.0.s8 %v6190
  %v6192 = vlaneseq
  %v6193 = vshrl.u32 %v6192, 7
  %v6194 = vsub.s32 %v6191, %v6193
  %v6195 = vrot.slane %v6187, %v6194
  %v6197 = vunpack.c.l.s4 1983009808
  %v6198 = vunpack.c.0.s8 %v6197
  %v6199 = vlaneseq
  %v6200 = vshrl.u32 %v6199, 7
  %v6201 = vsub.s32 %v6198, %v6200
  %v6202 = vrot.slane %v6188, %v6201
  %v6203 = vcombine.low %v6195, %v6202
  %v6204 = vcombine.low %v5179, %v5211
  %v6205 = vcombine.low %v5243, %v5275
  %v6207 = vunpack.c.l.s4 1983009808
  %v6208 = vunpack.c.0.s8 %v6207
  %v6209 = vlaneseq
  %v6210 = vshrl.u32 %v6209, 7
  %v6211 = vsub.s32 %v6208, %v6210
  %v6212 = vrot.slane %v6204, %v6211
  %v6214 = vunpack.c.l.s4 1983009808
  %v6215 = vunpack.c.0.s8 %v6214
  %v6216 = vlaneseq
  %v6217 = vshrl.u32 %v6216, 7
  %v6218 = vsub.s32 %v6215, %v6217
  %v6219 = vrot.slane %v6205, %v6218
  %v6220 = vcombine.low %v6212, %v6219
  %v6222 = vunpack.c.l.s4 1983009808
  %v6223 = vunpack.c.0.s8 %v6222
  %v6224 = vlaneseq
  %v6225 = vshrl.u32 %v6224, 7
  %v6226 = vsub.s32 %v6223, %v6225
  %v6227 = vrot.slane %v5307, %v6226
  %v6228 = vcombine.low %v5052, %v5084
  %v6229 = vcombine.low %v5116, %v5148
  %v6231 = vunpack.c.l.s4 1983009808
  %v6232 = vunpack.c.0.s8 %v6231
  %v6233 = vlaneseq
  %v6234 = vshrl.u32 %v6233, 7
  %v6235 = vsub.s32 %v6232, %v6234
  %v6236 = vrot.slane %v6228, %v6235
  %v6238 = vunpack.c.l.s4 1983009808
  %v6239 = vunpack.c.0.s8 %v6238
  %v6240 = vlaneseq
  %v6241 = vshrl.u32 %v6240, 7
  %v6242 = vsub.s32 %v6239, %v6241
  %v6243 = vrot.slane %v6229, %v6242
  %v6244 = vcombine.low %v6236, %v6243
  %v6245 = vcombine.low %v5180, %v5212
  %v6246 = vcombine.low %v5244, %v5276
  %v6248 = vunpack.c.l.s4 1983009808
  %v6249 = vunpack.c.0.s8 %v6248
  %v6250 = vlaneseq
  %v6251 = vshrl.u32 %v6250, 7
  %v6252 = vsub.s32 %v6249, %v6251
  %v6253 = vrot.slane %v6245, %v6252
  %v6255 = vunpack.c.l.s4 1983009808
  %v6256 = vunpack.c.0.s8 %v6255
  %v6257 = vlaneseq
  %v6258 = vshrl.u32 %v6257, 7
  %v6259 = vsub.s32 %v6256, %v6258
  %v6260 = vrot.slane %v6246, %v6259
  %v6261 = vcombine.low %v6253, %v6260
  %v6263 = vunpack.c.l.s4 1983009808
  %v6264 = vunpack.c.0.s8 %v6263
  %v6265 = vlaneseq
  %v6266 = vshrl.u32 %v6265, 7
  %v6267 = vsub.s32 %v6264, %v6266
  %v6268 = vrot.slane %v5308, %v6267
  %v6269 = vcombine.low %v5053, %v5085
  %v6270 = vcombine.low %v5117, %v5149
  %v6272 = vunpack.c.l.s4 1983009808
  %v6273 = vunpack.c.0.s8 %v6272
  %v6274 = vlaneseq
  %v6275 = vshrl.u32 %v6274, 7
  %v6276 = vsub.s32 %v6273, %v6275
  %v6277 = vrot.slane %v6269, %v6276
  %v6279 = vunpack.c.l.s4 1983009808
  %v6280 = vunpack.c.0.s8 %v6279
  %v6281 = vlaneseq
  %v6282 = vshrl.u32 %v6281, 7
  %v6283 = vsub.s32 %v6280, %v6282
  %v6284 = vrot.slane %v6270, %v6283
  %v6285 = vcombine.low %v6277, %v6284
  %v6286 = vcombine.low %v5181, %v5213
  %v6287 = vcombine.low %v5245, %v5277
  %v6289 = vunpack.c.l.s4 1983009808
  %v6290 = vunpack.c.0.s8 %v6289
  %v6291 = vlaneseq
  %v6292 = vshrl.u32 %v6291, 7
  %v6293 = vsub.s32 %v6290, %v6292
  %v6294 = vrot.slane %v6286, %v6293
  %v6296 = vunpack.c.l.s4 1983009808
  %v6297 = vunpack.c.0.s8 %v6296
  %v6298 = vlaneseq
  %v6299 = vshrl.u32 %v6298, 7
  %v6300 = vsub.s32 %v6297, %v6299
  %v6301 = vrot.slane %v6287, %v6300
  %v6302 = vcombine.low %v6294, %v6301
  %v6304 = vunpack.c.l.s4 1983009808
  %v6305 = vunpack.c.0.s8 %v6304
  %v6306 = vlaneseq
  %v6307 = vshrl.u32 %v6306, 7
  %v6308 = vsub.s32 %v6305, %v6307
  %v6309 = vrot.slane %v5309, %v6308
  %v6310 = vcombine.low %v5054, %v5086
  %v6311 = vcombine.low %v5118, %v5150
  %v6313 = vunpack.c.l.s4 1983009808
  %v6314 = vunpack.c.0.s8 %v6313
  %v6315 = vlaneseq
  %v6316 = vshrl.u32 %v6315, 7
  %v6317 = vsub.s32 %v6314, %v6316
  %v6318 = vrot.slane %v6310, %v6317
  %v6320 = vunpack.c.l.s4 1983009808
  %v6321 = vunpack.c.0.s8 %v6320
  %v6322 = vlaneseq
  %v6323 = vshrl.u32 %v6322, 7
  %v6324 = vsub.s32 %v6321, %v6323
  %v6325 = vrot.slane %v6311, %v6324
  %v6326 = vcombine.low %v6318, %v6325
  %v6327 = vcombine.low %v5182, %v5214
  %v6328 = vcombine.low %v5246, %v5278
  %v6330 = vunpack.c.l.s4 1983009808
  %v6331 = vunpack.c.0.s8 %v6330
  %v6332 = vlaneseq
  %v6333 = vshrl.u32 %v6332, 7
  %v6334 = vsub.s32 %v6331, %v6333
  %v6335 = vrot.slane %v6327, %v6334
  %v6337 = vunpack.c.l.s4 1983009808
  %v6338 = vunpack.c.0.s8 %v6337
  %v6339 = vlaneseq
  %v6340 = vshrl.u32 %v6339, 7
  %v6341 = vsub.s32 %v6338, %v6340
  %v6342 = vrot.slane %v6328, %v6341
  %v6343 = vcombine.low %v6335, %v6342
  %v6345 = vunpack.c.l.s4 1983009808
  %v6346 = vunpack.c.0.s8 %v6345
  %v6347 = vlaneseq
  %v6348 = vshrl.u32 %v6347, 7
  %v6349 = vsub.s32 %v6346, %v6348
  %v6350 = vrot.slane %v5310, %v6349
  %v6351 = vcombine.low %v5055, %v5087
  %v6352 = vcombine.low %v5119, %v5151
  %v6354 = vunpack.c.l.s4 1983009808
  %v6355 = vunpack.c.0.s8 %v6354
  %v6356 = vlaneseq
  %v6357 = vshrl.u32 %v6356, 7
  %v6358 = vsub.s32 %v6355, %v6357
  %v6359 = vrot.slane %v6351, %v6358
  %v6361 = vunpack.c.l.s4 1983009808
  %v6362 = vunpack.c.0.s8 %v6361
  %v6363 = vlaneseq
  %v6364 = vshrl.u32 %v6363, 7
  %v6365 = vsub.s32 %v6362, %v6364
  %v6366 = vrot.slane %v6352, %v6365
  %v6367 = vcombine.low %v6359, %v6366
  %v6368 = vcombine.low %v5183, %v5215
  %v6369 = vcombine.low %v5247, %v5279
  %v6371 = vunpack.c.l.s4 1983009808
  %v6372 = vunpack.c.0.s8 %v6371
  %v6373 = vlaneseq
  %v6374 = vshrl.u32 %v6373, 7
  %v6375 = vsub.s32 %v6372, %v6374
  %v6376 = vrot.slane %v6368, %v6375
  %v6378 = vunpack.c.l.s4 1983009808
  %v6379 = vunpack.c.0.s8 %v6378
  %v6380 = vlaneseq
  %v6381 = vshrl.u32 %v6380, 7
  %v6382 = vsub.s32 %v6379, %v6381
  %v6383 = vrot.slane %v6369, %v6382
  %v6384 = vcombine.low %v6376, %v6383
  %v6386 = vunpack.c.l.s4 1983009808
  %v6387 = vunpack.c.0.s8 %v6386
  %v6388 = vlaneseq
  %v6389 = vshrl.u32 %v6388, 7
  %v6390 = vsub.s32 %v6387, %v6389
  %v6391 = vrot.slane %v5311, %v6390
  %v6392 = vcombine.low %v5056, %v5088
  %v6393 = vcombine.low %v5120, %v5152
  %v6395 = vunpack.c.l.s4 1983009808
  %v6396 = vunpack.c.0.s8 %v6395
  %v6397 = vlaneseq
  %v6398 = vshrl.u32 %v6397, 7
  %v6399 = vsub.s32 %v6396, %v6398
  %v6400 = vrot.slane %v6392, %v6399
  %v6402 = vunpack.c.l.s4 1983009808
  %v6403 = vunpack.c.0.s8 %v6402
  %v6404 = vlaneseq
  %v6405 = vshrl.u32 %v6404, 7
  %v6406 = vsub.s32 %v6403, %v6405
  %v6407 = vrot.slane %v6393, %v6406
  %v6408 = vcombine.low %v6400, %v6407
  %v6409 = vcombine.low %v5184, %v5216
  %v6410 = vcombine.low %v5248, %v5280
  %v6412 = vunpack.c.l.s4 1983009808
  %v6413 = vunpack.c.0.s8 %v6412
  %v6414 = vlaneseq
  %v6415 = vshrl.u32 %v6414, 7
  %v6416 = vsub.s32 %v6413, %v6415
  %v6417 = vrot.slane %v6409, %v6416
  %v6419 = vunpack.c.l.s4 1983009808
  %v6420 = vunpack.c.0.s8 %v6419
  %v6421 = vlaneseq
  %v6422 = vshrl.u32 %v6421, 7
  %v6423 = vsub.s32 %v6420, %v6422
  %v6424 = vrot.slane %v6410, %v6423
  %v6425 = vcombine.low %v6417, %v6424
  %v6427 = vunpack.c.l.s4 1983009808
  %v6428 = vunpack.c.0.s8 %v6427
  %v6429 = vlaneseq
  %v6430 = vshrl.u32 %v6429, 7
  %v6431 = vsub.s32 %v6428, %v6430
  %v6432 = vrot.slane %v5312, %v6431
  %v6433 = vcombine.low %v5057, %v5089
  %v6434 = vcombine.low %v5121, %v5153
  %v6436 = vunpack.c.l.s4 1983009808
  %v6437 = vunpack.c.0.s8 %v6436
  %v6438 = vlaneseq
  %v6439 = vshrl.u32 %v6438, 7
  %v6440 = vsub.s32 %v6437, %v6439
  %v6441 = vrot.slane %v6433, %v6440
  %v6443 = vunpack.c.l.s4 1983009808
  %v6444 = vunpack.c.0.s8 %v6443
  %v6445 = vlaneseq
  %v6446 = vshrl.u32 %v6445, 7
  %v6447 = vsub.s32 %v6444, %v6446
  %v6448 = vrot.slane %v6434, %v6447
  %v6449 = vcombine.low %v6441, %v6448
  %v6450 = vcombine.low %v5185, %v5217
  %v6451 = vcombine.low %v5249, %v5281
  %v6453 = vunpack.c.l.s4 1983009808
  %v6454 = vunpack.c.0.s8 %v6453
  %v6455 = vlaneseq
  %v6456 = vshrl.u32 %v6455, 7
  %v6457 = vsub.s32 %v6454, %v6456
  %v6458 = vrot.slane %v6450, %v6457
  %v6460 = vunpack.c.l.s4 1983009808
  %v6461 = vunpack.c.0.s8 %v6460
  %v6462 = vlaneseq
  %v6463 = vshrl.u32 %v6462, 7
  %v6464 = vsub.s32 %v6461, %v6463
  %v6465 = vrot.slane %v6451, %v6464
  %v6466 = vcombine.low %v6458, %v6465
  %v6468 = vunpack.c.l.s4 1983009808
  %v6469 = vunpack.c.0.s8 %v6468
  %v6470 = vlaneseq
  %v6471 = vshrl.u32 %v6470, 7
  %v6472 = vsub.s32 %v6469, %v6471
  %v6473 = vrot.slane %v5313, %v6472
  %v6474 = vcombine.low %v5058, %v5090
  %v6475 = vcombine.low %v5122, %v5154
  %v6477 = vunpack.c.l.s4 1983009808
  %v6478 = vunpack.c.0.s8 %v6477
  %v6479 = vlaneseq
  %v6480 = vshrl.u32 %v6479, 7
  %v6481 = vsub.s32 %v6478, %v6480
  %v6482 = vrot.slane %v6474, %v6481
  %v6484 = vunpack.c.l.s4 1983009808
  %v6485 = vunpack.c.0.s8 %v6484
  %v6486 = vlaneseq
  %v6487 = vshrl.u32 %v6486, 7
  %v6488 = vsub.s32 %v6485, %v6487
  %v6489 = vrot.slane %v6475, %v6488
  %v6490 = vcombine.low %v6482, %v6489
  %v6491 = vcombine.low %v5186, %v5218
  %v6492 = vcombine.low %v5250, %v5282
  %v6494 = vunpack.c.l.s4 1983009808
  %v6495 = vunpack.c.0.s8 %v6494
  %v6496 = vlaneseq
  %v6497 = vshrl.u32 %v6496, 7
  %v6498 = vsub.s32 %v6495, %v6497
  %v6499 = vrot.slane %v6491, %v6498
  %v6501 = vunpack.c.l.s4 1983009808
  %v6502 = vunpack.c.0.s8 %v6501
  %v6503 = vlaneseq
  %v6504 = vshrl.u32 %v6503, 7
  %v6505 = vsub.s32 %v6502, %v6504
  %v6506 = vrot.slane %v6492, %v6505
  %v6507 = vcombine.low %v6499, %v6506
  %v6509 = vunpack.c.l.s4 1983009808
  %v6510 = vunpack.c.0.s8 %v6509
  %v6511 = vlaneseq
  %v6512 = vshrl.u32 %v6511, 7
  %v6513 = vsub.s32 %v6510, %v6512
  %v6514 = vrot.slane %v5314, %v6513
  %v6515 = vcombine.low %v5059, %v5091
  %v6516 = vcombine.low %v5123, %v5155
  %v6518 = vunpack.c.l.s4 1983009808
  %v6519 = vunpack.c.0.s8 %v6518
  %v6520 = vlaneseq
  %v6521 = vshrl.u32 %v6520, 7
  %v6522 = vsub.s32 %v6519, %v6521
  %v6523 = vrot.slane %v6515, %v6522
  %v6525 = vunpack.c.l.s4 1983009808
  %v6526 = vunpack.c.0.s8 %v6525
  %v6527 = vlaneseq
  %v6528 = vshrl.u32 %v6527, 7
  %v6529 = vsub.s32 %v6526, %v6528
  %v6530 = vrot.slane %v6516, %v6529
  %v6531 = vcombine.low %v6523, %v6530
  %v6532 = vcombine.low %v5187, %v5219
  %v6533 = vcombine.low %v5251, %v5283
  %v6535 = vunpack.c.l.s4 1983009808
  %v6536 = vunpack.c.0.s8 %v6535
  %v6537 = vlaneseq
  %v6538 = vshrl.u32 %v6537, 7
  %v6539 = vsub.s32 %v6536, %v6538
  %v6540 = vrot.slane %v6532, %v6539
  %v6542 = vunpack.c.l.s4 1983009808
  %v6543 = vunpack.c.0.s8 %v6542
  %v6544 = vlaneseq
  %v6545 = vshrl.u32 %v6544, 7
  %v6546 = vsub.s32 %v6543, %v6545
  %v6547 = vrot.slane %v6533, %v6546
  %v6548 = vcombine.low %v6540, %v6547
  %v6550 = vunpack.c.l.s4 1983009808
  %v6551 = vunpack.c.0.s8 %v6550
  %v6552 = vlaneseq
  %v6553 = vshrl.u32 %v6552, 7
  %v6554 = vsub.s32 %v6551, %v6553
  %v6555 = vrot.slane %v5315, %v6554
  %v6556 = vcombine.low %v5060, %v5092
  %v6557 = vcombine.low %v5124, %v5156
  %v6559 = vunpack.c.l.s4 1983009808
  %v6560 = vunpack.c.0.s8 %v6559
  %v6561 = vlaneseq
  %v6562 = vshrl.u32 %v6561, 7
  %v6563 = vsub.s32 %v6560, %v6562
  %v6564 = vrot.slane %v6556, %v6563
  %v6566 = vunpack.c.l.s4 1983009808
  %v6567 = vunpack.c.0.s8 %v6566
  %v6568 = vlaneseq
  %v6569 = vshrl.u32 %v6568, 7
  %v6570 = vsub.s32 %v6567, %v6569
  %v6571 = vrot.slane %v6557, %v6570
  %v6572 = vcombine.low %v6564, %v6571
  %v6573 = vcombine.low %v5188, %v5220
  %v6574 = vcombine.low %v5252, %v5284
  %v6576 = vunpack.c.l.s4 1983009808
  %v6577 = vunpack.c.0.s8 %v6576
  %v6578 = vlaneseq
  %v6579 = vshrl.u32 %v6578, 7
  %v6580 = vsub.s32 %v6577, %v6579
  %v6581 = vrot.slane %v6573, %v6580
  %v6583 = vunpack.c.l.s4 1983009808
  %v6584 = vunpack.c.0.s8 %v6583
  %v6585 = vlaneseq
  %v6586 = vshrl.u32 %v6585, 7
  %v6587 = vsub.s32 %v6584, %v6586
  %v6588 = vrot.slane %v6574, %v6587
  %v6589 = vcombine.low %v6581, %v6588
  %v6591 = vunpack.c.l.s4 1983009808
  %v6592 = vunpack.c.0.s8 %v6591
  %v6593 = vlaneseq
  %v6594 = vshrl.u32 %v6593, 7
  %v6595 = vsub.s32 %v6592, %v6594
  %v6596 = vrot.slane %v5316, %v6595
  %v6597 = vcombine.low %v5061, %v5093
  %v6598 = vcombine.low %v5125, %v5157
  %v6600 = vunpack.c.l.s4 1983009808
  %v6601 = vunpack.c.0.s8 %v6600
  %v6602 = vlaneseq
  %v6603 = vshrl.u32 %v6602, 7
  %v6604 = vsub.s32 %v6601, %v6603
  %v6605 = vrot.slane %v6597, %v6604
  %v6607 = vunpack.c.l.s4 1983009808
  %v6608 = vunpack.c.0.s8 %v6607
  %v6609 = vlaneseq
  %v6610 = vshrl.u32 %v6609, 7
  %v6611 = vsub.s32 %v6608, %v6610
  %v6612 = vrot.slane %v6598, %v6611
  %v6613 = vcombine.low %v6605, %v6612
  %v6614 = vcombine.low %v5189, %v5221
  %v6615 = vcombine.low %v5253, %v5285
  %v6617 = vunpack.c.l.s4 1983009808
  %v6618 = vunpack.c.0.s8 %v6617
  %v6619 = vlaneseq
  %v6620 = vshrl.u32 %v6619, 7
  %v6621 = vsub.s32 %v6618, %v6620
  %v6622 = vrot.slane %v6614, %v6621
  %v6624 = vunpack.c.l.s4 1983009808
  %v6625 = vunpack.c.0.s8 %v6624
  %v6626 = vlaneseq
  %v6627 = vshrl.u32 %v6626, 7
  %v6628 = vsub.s32 %v6625, %v6627
  %v6629 = vrot.slane %v6615, %v6628
  %v6630 = vcombine.low %v6622, %v6629
  %v6632 = vunpack.c.l.s4 1983009808
  %v6633 = vunpack.c.0.s8 %v6632
  %v6634 = vlaneseq
  %v6635 = vshrl.u32 %v6634, 7
  %v6636 = vsub.s32 %v6633, %v6635
  %v6637 = vrot.slane %v5317, %v6636
  %v6638 = vcombine.low %v5062, %v5094
  %v6639 = vcombine.low %v5126, %v5158
  %v6641 = vunpack.c.l.s4 1983009808
  %v6642 = vunpack.c.0.s8 %v6641
  %v6643 = vlaneseq
  %v6644 = vshrl.u32 %v6643, 7
  %v6645 = vsub.s32 %v6642, %v6644
  %v6646 = vrot.slane %v6638, %v6645
  %v6648 = vunpack.c.l.s4 1983009808
  %v6649 = vunpack.c.0.s8 %v6648
  %v6650 = vlaneseq
  %v6651 = vshrl.u32 %v6650, 7
  %v6652 = vsub.s32 %v6649, %v6651
  %v6653 = vrot.slane %v6639, %v6652
  %v6654 = vcombine.low %v6646, %v6653
  %v6655 = vcombine.low %v5190, %v5222
  %v6656 = vcombine.low %v5254, %v5286
  %v6658 = vunpack.c.l.s4 1983009808
  %v6659 = vunpack.c.0.s8 %v6658
  %v6660 = vlaneseq
  %v6661 = vshrl.u32 %v6660, 7
  %v6662 = vsub.s32 %v6659, %v6661
  %v6663 = vrot.slane %v6655, %v6662
  %v6665 = vunpack.c.l.s4 1983009808
  %v6666 = vunpack.c.0.s8 %v6665
  %v6667 = vlaneseq
  %v6668 = vshrl.u32 %v6667, 7
  %v6669 = vsub.s32 %v6666, %v6668
  %v6670 = vrot.slane %v6656, %v6669
  %v6671 = vcombine.low %v6663, %v6670
  %v6673 = vunpack.c.l.s4 1983009808
  %v6674 = vunpack.c.0.s8 %v6673
  %v6675 = vlaneseq
  %v6676 = vshrl.u32 %v6675, 7
  %v6677 = vsub.s32 %v6674, %v6676
  %v6678 = vrot.slane %v5318, %v6677
  %v6679 = vcombine.low %v5063, %v5095
  %v6680 = vcombine.low %v5127, %v5159
  %v6682 = vunpack.c.l.s4 1983009808
  %v6683 = vunpack.c.0.s8 %v6682
  %v6684 = vlaneseq
  %v6685 = vshrl.u32 %v6684, 7
  %v6686 = vsub.s32 %v6683, %v6685
  %v6687 = vrot.slane %v6679, %v6686
  %v6689 = vunpack.c.l.s4 1983009808
  %v6690 = vunpack.c.0.s8 %v6689
  %v6691 = vlaneseq
  %v6692 = vshrl.u32 %v6691, 7
  %v6693 = vsub.s32 %v6690, %v6692
  %v6694 = vrot.slane %v6680, %v6693
  %v6695 = vcombine.low %v6687, %v6694
  %v6696 = vcombine.low %v5191, %v5223
  %v6697 = vcombine.low %v5255, %v5287
  %v6699 = vunpack.c.l.s4 1983009808
  %v6700 = vunpack.c.0.s8 %v6699
  %v6701 = vlaneseq
  %v6702 = vshrl.u32 %v6701, 7
  %v6703 = vsub.s32 %v6700, %v6702
  %v6704 = vrot.slane %v6696, %v6703
  %v6706 = vunpack.c.l.s4 1983009808
  %v6707 = vunpack.c.0.s8 %v6706
  %v6708 = vlaneseq
  %v6709 = vshrl.u32 %v6708, 7
  %v6710 = vsub.s32 %v6707, %v6709
  %v6711 = vrot.slane %v6697, %v6710
  %v6712 = vcombine.low %v6704, %v6711
  %v6714 = vunpack.c.l.s4 1983009808
  %v6715 = vunpack.c.0.s8 %v6714
  %v6716 = vlaneseq
  %v6717 = vshrl.u32 %v6716, 7
  %v6718 = vsub.s32 %v6715, %v6717
  %v6719 = vrot.slane %v5319, %v6718
  %v6720 = vcombine.low %v5064, %v5096
  %v6721 = vcombine.low %v5128, %v5160
  %v6723 = vunpack.c.l.s4 1983009808
  %v6724 = vunpack.c.0.s8 %v6723
  %v6725 = vlaneseq
  %v6726 = vshrl.u32 %v6725, 7
  %v6727 = vsub.s32 %v6724, %v6726
  %v6728 = vrot.slane %v6720, %v6727
  %v6730 = vunpack.c.l.s4 1983009808
  %v6731 = vunpack.c.0.s8 %v6730
  %v6732 = vlaneseq
  %v6733 = vshrl.u32 %v6732, 7
  %v6734 = vsub.s32 %v6731, %v6733
  %v6735 = vrot.slane %v6721, %v6734
  %v6736 = vcombine.low %v6728, %v6735
  %v6737 = vcombine.low %v5192, %v5224
  %v6738 = vcombine.low %v5256, %v5288
  %v6740 = vunpack.c.l.s4 1983009808
  %v6741 = vunpack.c.0.s8 %v6740
  %v6742 = vlaneseq
  %v6743 = vshrl.u32 %v6742, 7
  %v6744 = vsub.s32 %v6741, %v6743
  %v6745 = vrot.slane %v6737, %v6744
  %v6747 = vunpack.c.l.s4 1983009808
  %v6748 = vunpack.c.0.s8 %v6747
  %v6749 = vlaneseq
  %v6750 = vshrl.u32 %v6749, 7
  %v6751 = vsub.s32 %v6748, %v6750
  %v6752 = vrot.slane %v6738, %v6751
  %v6753 = vcombine.low %v6745, %v6752
  %v6755 = vunpack.c.l.s4 1983009808
  %v6756 = vunpack.c.0.s8 %v6755
  %v6757 = vlaneseq
  %v6758 = vshrl.u32 %v6757, 7
  %v6759 = vsub.s32 %v6756, %v6758
  %v6760 = vrot.slane %v5320, %v6759
  %v6761 = vcombine.low %v5065, %v5097
  %v6762 = vcombine.low %v5129, %v5161
  %v6764 = vunpack.c.l.s4 1983009808
  %v6765 = vunpack.c.0.s8 %v6764
  %v6766 = vlaneseq
  %v6767 = vshrl.u32 %v6766, 7
  %v6768 = vsub.s32 %v6765, %v6767
  %v6769 = vrot.slane %v6761, %v6768
  %v6771 = vunpack.c.l.s4 1983009808
  %v6772 = vunpack.c.0.s8 %v6771
  %v6773 = vlaneseq
  %v6774 = vshrl.u32 %v6773, 7
  %v6775 = vsub.s32 %v6772, %v6774
  %v6776 = vrot.slane %v6762, %v6775
  %v6777 = vcombine.low %v6769, %v6776
  %v6778 = vcombine.low %v5193, %v5225
  %v6779 = vcombine.low %v5257, %v5289
  %v6781 = vunpack.c.l.s4 1983009808
  %v6782 = vunpack.c.0.s8 %v6781
  %v6783 = vlaneseq
  %v6784 = vshrl.u32 %v6783, 7
  %v6785 = vsub.s32 %v6782, %v6784
  %v6786 = vrot.slane %v6778, %v6785
  %v6788 = vunpack.c.l.s4 1983009808
  %v6789 = vunpack.c.0.s8 %v6788
  %v6790 = vlaneseq
  %v6791 = vshrl.u32 %v6790, 7
  %v6792 = vsub.s32 %v6789, %v6791
  %v6793 = vrot.slane %v6779, %v6792
  %v6794 = vcombine.low %v6786, %v6793
  %v6796 = vunpack.c.l.s4 1983009808
  %v6797 = vunpack.c.0.s8 %v6796
  %v6798 = vlaneseq
  %v6799 = vshrl.u32 %v6798, 7
  %v6800 = vsub.s32 %v6797, %v6799
  %v6801 = vrot.slane %v5321, %v6800
  %v6802 = vcombine.low %v5066, %v5098
  %v6803 = vcombine.low %v5130, %v5162
  %v6805 = vunpack.c.l.s4 1983009808
  %v6806 = vunpack.c.0.s8 %v6805
  %v6807 = vlaneseq
  %v6808 = vshrl.u32 %v6807, 7
  %v6809 = vsub.s32 %v6806, %v6808
  %v6810 = vrot.slane %v6802, %v6809
  %v6812 = vunpack.c.l.s4 1983009808
  %v6813 = vunpack.c.0.s8 %v6812
  %v6814 = vlaneseq
  %v6815 = vshrl.u32 %v6814, 7
  %v6816 = vsub.s32 %v6813, %v6815
  %v6817 = vrot.slane %v6803, %v6816
  %v6818 = vcombine.low %v6810, %v6817
  %v6819 = vcombine.low %v5194, %v5226
  %v6820 = vcombine.low %v5258, %v5290
  %v6822 = vunpack.c.l.s4 1983009808
  %v6823 = vunpack.c.0.s8 %v6822
  %v6824 = vlaneseq
  %v6825 = vshrl.u32 %v6824, 7
  %v6826 = vsub.s32 %v6823, %v6825
  %v6827 = vrot.slane %v6819, %v6826
  %v6829 = vunpack.c.l.s4 1983009808
  %v6830 = vunpack.c.0.s8 %v6829
  %v6831 = vlaneseq
  %v6832 = vshrl.u32 %v6831, 7
  %v6833 = vsub.s32 %v6830, %v6832
  %v6834 = vrot.slane %v6820, %v6833
  %v6835 = vcombine.low %v6827, %v6834
  %v6837 = vunpack.c.l.s4 1983009808
  %v6838 = vunpack.c.0.s8 %v6837
  %v6839 = vlaneseq
  %v6840 = vshrl.u32 %v6839, 7
  %v6841 = vsub.s32 %v6838, %v6840
  %v6842 = vrot.slane %v5322, %v6841
  %v6843 = vcombine.low %v5067, %v5099
  %v6844 = vcombine.low %v5131, %v5163
  %v6846 = vunpack.c.l.s4 1983009808
  %v6847 = vunpack.c.0.s8 %v6846
  %v6848 = vlaneseq
  %v6849 = vshrl.u32 %v6848, 7
  %v6850 = vsub.s32 %v6847, %v6849
  %v6851 = vrot.slane %v6843, %v6850
  %v6853 = vunpack.c.l.s4 1983009808
  %v6854 = vunpack.c.0.s8 %v6853
  %v6855 = vlaneseq
  %v6856 = vshrl.u32 %v6855, 7
  %v6857 = vsub.s32 %v6854, %v6856
  %v6858 = vrot.slane %v6844, %v6857
  %v6859 = vcombine.low %v6851, %v6858
  %v6860 = vcombine.low %v5195, %v5227
  %v6861 = vcombine.low %v5259, %v5291
  %v6863 = vunpack.c.l.s4 1983009808
  %v6864 = vunpack.c.0.s8 %v6863
  %v6865 = vlaneseq
  %v6866 = vshrl.u32 %v6865, 7
  %v6867 = vsub.s32 %v6864, %v6866
  %v6868 = vrot.slane %v6860, %v6867
  %v6870 = vunpack.c.l.s4 1983009808
  %v6871 = vunpack.c.0.s8 %v6870
  %v6872 = vlaneseq
  %v6873 = vshrl.u32 %v6872, 7
  %v6874 = vsub.s32 %v6871, %v6873
  %v6875 = vrot.slane %v6861, %v6874
  %v6876 = vcombine.low %v6868, %v6875
  %v6878 = vunpack.c.l.s4 1983009808
  %v6879 = vunpack.c.0.s8 %v6878
  %v6880 = vlaneseq
  %v6881 = vshrl.u32 %v6880, 7
  %v6882 = vsub.s32 %v6879, %v6881
  %v6883 = vrot.slane %v5323, %v6882
  %v6884 = vcombine.low %v5068, %v5100
  %v6885 = vcombine.low %v5132, %v5164
  %v6887 = vunpack.c.l.s4 1983009808
  %v6888 = vunpack.c.0.s8 %v6887
  %v6889 = vlaneseq
  %v6890 = vshrl.u32 %v6889, 7
  %v6891 = vsub.s32 %v6888, %v6890
  %v6892 = vrot.slane %v6884, %v6891
  %v6894 = vunpack.c.l.s4 1983009808
  %v6895 = vunpack.c.0.s8 %v6894
  %v6896 = vlaneseq
  %v6897 = vshrl.u32 %v6896, 7
  %v6898 = vsub.s32 %v6895, %v6897
  %v6899 = vrot.slane %v6885, %v6898
  %v6900 = vcombine.low %v6892, %v6899
  %v6901 = vcombine.low %v5196, %v5228
  %v6902 = vcombine.low %v5260, %v5292
  %v6904 = vunpack.c.l.s4 1983009808
  %v6905 = vunpack.c.0.s8 %v6904
  %v6906 = vlaneseq
  %v6907 = vshrl.u32 %v6906, 7
  %v6908 = vsub.s32 %v6905, %v6907
  %v6909 = vrot.slane %v6901, %v6908
  %v6911 = vunpack.c.l.s4 1983009808
  %v6912 = vunpack.c.0.s8 %v6911
  %v6913 = vlaneseq
  %v6914 = vshrl.u32 %v6913, 7
  %v6915 = vsub.s32 %v6912, %v6914
  %v6916 = vrot.slane %v6902, %v6915
  %v6917 = vcombine.low %v6909, %v6916
  %v6919 = vunpack.c.l.s4 1983009808
  %v6920 = vunpack.c.0.s8 %v6919
  %v6921 = vlaneseq
  %v6922 = vshrl.u32 %v6921, 7
  %v6923 = vsub.s32 %v6920, %v6922
  %v6924 = vrot.slane %v5324, %v6923
  %v6925 = vcombine.low %v5629, %v5670
  %v6926 = vcombine.high %v5629, %v5670
  %v6927 = vcombine.low %v5711, %v5752
  %v6928 = vcombine.high %v5711, %v5752
  %v6930 = vunpack.c.l.s4 1983009808
  %v6931 = vunpack.c.0.s8 %v6930
  %v6932 = vlaneseq
  %v6933 = vshrl.u32 %v6932, 7
  %v6934 = vsub.s32 %v6931, %v6933
  %v6935 = vrot.slane %v6925, %v6934
  %v6937 = vunpack.c.l.s4 1983009808
  %v6938 = vunpack.c.0.s8 %v6937
  %v6939 = vlaneseq
  %v6940 = vshrl.u32 %v6939, 7
  %v6941 = vsub.s32 %v6938, %v6940
  %v6942 = vrot.slane %v6926, %v6941
  %v6944 = vunpack.c.l.s4 1983009808
  %v6945 = vunpack.c.0.s8 %v6944
  %v6946 = vlaneseq
  %v6947 = vshrl.u32 %v6946, 7
  %v6948 = vsub.s32 %v6945, %v6947
  %v6949 = vrot.slane %v6927, %v6948
  %v6951 = vunpack.c.l.s4 1983009808
  %v6952 = vunpack.c.0.s8 %v6951
  %v6953 = vlaneseq
  %v6954 = vshrl.u32 %v6953, 7
  %v6955 = vsub.s32 %v6952, %v6954
  %v6956 = vrot.slane %v6928, %v6955
  %v6957 = vcombine.low %v6935, %v6949
  %v6958 = vcombine.high %v6935, %v6949
  %v6959 = vcombine.low %v6942, %v6956
  %v6960 = vcombine.high %v6942, %v6956
  %v6961 = vcombine.low %v5646, %v5687
  %v6962 = vcombine.high %v5646, %v5687
  %v6963 = vcombine.low %v5728, %v5769
  %v6964 = vcombine.high %v5728, %v5769
  %v6966 = vunpack.c.l.s4 1983009808
  %v6967 = vunpack.c.0.s8 %v6966
  %v6968 = vlaneseq
  %v6969 = vshrl.u32 %v6968, 7
  %v6970 = vsub.s32 %v6967, %v6969
  %v6971 = vrot.slane %v6961, %v6970
  %v6973 = vunpack.c.l.s4 1983009808
  %v6974 = vunpack.c.0.s8 %v6973
  %v6975 = vlaneseq
  %v6976 = vshrl.u32 %v6975, 7
  %v6977 = vsub.s32 %v6974, %v6976
  %v6978 = vrot.slane %v6962, %v6977
  %v6980 = vunpack.c.l.s4 1983009808
  %v6981 = vunpack.c.0.s8 %v6980
  %v6982 = vlaneseq
  %v6983 = vshrl.u32 %v6982, 7
  %v6984 = vsub.s32 %v6981, %v6983
  %v6985 = vrot.slane %v6963, %v6984
  %v6987 = vunpack.c.l.s4 1983009808
  %v6988 = vunpack.c.0.s8 %v6987
  %v6989 = vlaneseq
  %v6990 = vshrl.u32 %v6989, 7
  %v6991 = vsub.s32 %v6988, %v6990
  %v6992 = vrot.slane %v6964, %v6991
  %v6993 = vcombine.low %v6971, %v6985
  %v6994 = vcombine.high %v6971, %v6985
  %v6995 = vcombine.low %v6978, %v6992
  %v6996 = vcombine.high %v6978, %v6992
  %v6997 = vcombine.low %v5653, %v5694
  %v6998 = vcombine.low %v5735, %v5776
  %v7000 = vunpack.c.l.s4 1983009808
  %v7001 = vunpack.c.0.s8 %v7000
  %v7002 = vlaneseq
  %v7003 = vshrl.u32 %v7002, 7
  %v7004 = vsub.s32 %v7001, %v7003
  %v7005 = vrot.slane %v6997, %v7004
  %v7007 = vunpack.c.l.s4 1983009808
  %v7008 = vunpack.c.0.s8 %v7007
  %v7009 = vlaneseq
  %v7010 = vshrl.u32 %v7009, 7
  %v7011 = vsub.s32 %v7008, %v7010
  %v7012 = vrot.slane %v6998, %v7011
  %v7013 = vcombine.low %v7005, %v7012
  %v7014 = vcombine.low %v5793, %v5834
  %v7015 = vcombine.high %v5793, %v5834
  %v7016 = vcombine.low %v5875, %v5916
  %v7017 = vcombine.high %v5875, %v5916
  %v7019 = vunpack.c.l.s4 1983009808
  %v7020 = vunpack.c.0.s8 %v7019
  %v7021 = vlaneseq
  %v7022 = vshrl.u32 %v7021, 7
  %v7023 = vsub.s32 %v7020, %v7022
  %v7024 = vrot.slane %v7014, %v7023
  %v7026 = vunpack.c.l.s4 1983009808
  %v7027 = vunpack.c.0.s8 %v7026
  %v7028 = vlaneseq
  %v7029 = vshrl.u32 %v7028, 7
  %v7030 = vsub.s32 %v7027, %v7029
  %v7031 = vrot.slane %v7015, %v7030
  %v7033 = vunpack.c.l.s4 1983009808
  %v7034 = vunpack.c.0.s8 %v7033
  %v7035 = vlaneseq
  %v7036 = vshrl.u32 %v7035, 7
  %v7037 = vsub.s32 %v7034, %v7036
  %v7038 = vrot.slane %v7016, %v7037
  %v7040 = vunpack.c.l.s4 1983009808
  %v7041 = vunpack.c.0.s8 %v7040
  %v7042 = vlaneseq
  %v7043 = vshrl.u32 %v7042, 7
  %v7044 = vsub.s32 %v7041, %v7043
  %v7045 = vrot.slane %v7017, %v7044
  %v7046 = vcombine.low %v7024, %v7038
  %v7047 = vcombine.high %v7024, %v7038
  %v7048 = vcombine.low %v7031, %v7045
  %v7049 = vcombine.high %v7031, %v7045
  %v7050 = vcombine.low %v5810, %v5851
  %v7051 = vcombine.high %v5810, %v5851
  %v7052 = vcombine.low %v5892, %v5933
  %v7053 = vcombine.high %v5892, %v5933
  %v7055 = vunpack.c.l.s4 1983009808
  %v7056 = vunpack.c.0.s8 %v7055
  %v7057 = vlaneseq
  %v7058 = vshrl.u32 %v7057, 7
  %v7059 = vsub.s32 %v7056, %v7058
  %v7060 = vrot.slane %v7050, %v7059
  %v7062 = vunpack.c.l.s4 1983009808
  %v7063 = vunpack.c.0.s8 %v7062
  %v7064 = vlaneseq
  %v7065 = vshrl.u32 %v7064, 7
  %v7066 = vsub.s32 %v7063, %v7065
  %v7067 = vrot.slane %v7051, %v7066
  %v7069 = vunpack.c.l.s4 1983009808
  %v7070 = vunpack.c.0.s8 %v7069
  %v7071 = vlaneseq
  %v7072 = vshrl.u32 %v7071, 7
  %v7073 = vsub.s32 %v7070, %v7072
  %v7074 = vrot.slane %v7052, %v7073
  %v7076 = vunpack.c.l.s4 1983009808
  %v7077 = vunpack.c.0.s8 %v7076
  %v7078 = vlaneseq
  %v7079 = vshrl.u32 %v7078, 7
  %v7080 = vsub.s32 %v7077, %v7079
  %v7081 = vrot.slane %v7053, %v7080
  %v7082 = vcombine.low %v7060, %v7074
  %v7083 = vcombine.high %v7060, %v7074
  %v7084 = vcombine.low %v7067, %v7081
  %v7085 = vcombine.high %v7067, %v7081
  %v7086 = vcombine.low %v5817, %v5858
  %v7087 = vcombine.low %v5899, %v5940
  %v7089 = vunpack.c.l.s4 1983009808
  %v7090 = vunpack.c.0.s8 %v7089
  %v7091 = vlaneseq
  %v7092 = vshrl.u32 %v7091, 7
  %v7093 = vsub.s32 %v7090, %v7092
  %v7094 = vrot.slane %v7086, %v7093
  %v7096 = vunpack.c.l.s4 1983009808
  %v7097 = vunpack.c.0.s8 %v7096
  %v7098 = vlaneseq
  %v7099 = vshrl.u32 %v7098, 7
  %v7100 = vsub.s32 %v7097, %v7099
  %v7101 = vrot.slane %v7087, %v7100
  %v7102 = vcombine.low %v7094, %v7101
  %v7103 = vcombine.low %v5957, %v5998
  %v7104 = vcombine.high %v5957, %v5998
  %v7105 = vcombine.low %v6039, %v6080
  %v7106 = vcombine.high %v6039, %v6080
  %v7108 = vunpack.c.l.s4 1983009808
  %v7109 = vunpack.c.0.s8 %v7108
  %v7110 = vlaneseq
  %v7111 = vshrl.u32 %v7110, 7
  %v7112 = vsub.s32 %v7109, %v7111
  %v7113 = vrot.slane %v7103, %v7112
  %v7115 = vunpack.c.l.s4 1983009808
  %v7116 = vunpack.c.0.s8 %v7115
  %v7117 = vlaneseq
  %v7118 = vshrl.u32 %v7117, 7
  %v7119 = vsub.s32 %v7116, %v7118
  %v7120 = vrot.slane %v7104, %v7119
  %v7122 = vunpack.c.l.s4 1983009808
  %v7123 = vunpack.c.0.s8 %v7122
  %v7124 = vlaneseq
  %v7125 = vshrl.u32 %v7124, 7
  %v7126 = vsub.s32 %v7123, %v7125
  %v7127 = vrot.slane %v7105, %v7126
  %v7129 = vunpack.c.l.s4 1983009808
  %v7130 = vunpack.c.0.s8 %v7129
  %v7131 = vlaneseq
  %v7132 = vshrl.u32 %v7131, 7
  %v7133 = vsub.s32 %v7130, %v7132
  %v7134 = vrot.slane %v7106, %v7133
  %v7135 = vcombine.low %v7113, %v7127
  %v7136 = vcombine.high %v7113, %v7127
  %v7137 = vcombine.low %v7120, %v7134
  %v7138 = vcombine.high %v7120, %v7134
  %v7139 = vcombine.low %v5974, %v6015
  %v7140 = vcombine.high %v5974, %v6015
  %v7141 = vcombine.low %v6056, %v6097
  %v7142 = vcombine.high %v6056, %v6097
  %v7144 = vunpack.c.l.s4 1983009808
  %v7145 = vunpack.c.0.s8 %v7144
  %v7146 = vlaneseq
  %v7147 = vshrl.u32 %v7146, 7
  %v7148 = vsub.s32 %v7145, %v7147
  %v7149 = vrot.slane %v7139, %v7148
  %v7151 = vunpack.c.l.s4 1983009808
  %v7152 = vunpack.c.0.s8 %v7151
  %v7153 = vlaneseq
  %v7154 = vshrl.u32 %v7153, 7
  %v7155 = vsub.s32 %v7152, %v7154
  %v7156 = vrot.slane %v7140, %v7155
  %v7158 = vunpack.c.l.s4 1983009808
  %v7159 = vunpack.c.0.s8 %v7158
  %v7160 = vlaneseq
  %v7161 = vshrl.u32 %v7160, 7
  %v7162 = vsub.s32 %v7159, %v7161
  %v7163 = vrot.slane %v7141, %v7162
  %v7165 = vunpack.c.l.s4 1983009808
  %v7166 = vunpack.c.0.s8 %v7165
  %v7167 = vlaneseq
  %v7168 = vshrl.u32 %v7167, 7
  %v7169 = vsub.s32 %v7166, %v7168
  %v7170 = vrot.slane %v7142, %v7169
  %v7171 = vcombine.low %v7149, %v7163
  %v7172 = vcombine.high %v7149, %v7163
  %v7173 = vcombine.low %v7156, %v7170
  %v7174 = vcombine.high %v7156, %v7170
  %v7175 = vcombine.low %v5981, %v6022
  %v7176 = vcombine.low %v6063, %v6104
  %v7178 = vunpack.c.l.s4 1983009808
  %v7179 = vunpack.c.0.s8 %v7178
  %v7180 = vlaneseq
  %v7181 = vshrl.u32 %v7180, 7
  %v7182 = vsub.s32 %v7179, %v7181
  %v7183 = vrot.slane %v7175, %v7182
  %v7185 = vunpack.c.l.s4 1983009808
  %v7186 = vunpack.c.0.s8 %v7185
  %v7187 = vlaneseq
  %v7188 = vshrl.u32 %v7187, 7
  %v7189 = vsub.s32 %v7186, %v7188
  %v7190 = vrot.slane %v7176, %v7189
  %v7191 = vcombine.low %v7183, %v7190
  %v7192 = vcombine.low %v6121, %v6162
  %v7193 = vcombine.high %v6121, %v6162
  %v7194 = vcombine.low %v6203, %v6244
  %v7195 = vcombine.high %v6203, %v6244
  %v7197 = vunpack.c.l.s4 1983009808
  %v7198 = vunpack.c.0.s8 %v7197
  %v7199 = vlaneseq
  %v7200 = vshrl.u32 %v7199, 7
  %v7201 = vsub.s32 %v7198, %v7200
  %v7202 = vrot.slane %v7192, %v7201
  %v7204 = vunpack.c.l.s4 1983009808
  %v7205 = vunpack.c.0.s8 %v7204
  %v7206 = vlaneseq
  %v7207 = vshrl.u32 %v7206, 7
  %v7208 = vsub.s32 %v7205, %v7207
  %v7209 = vrot.slane %v7193, %v7208
  %v7211 = vunpack.c.l.s4 1983009808
  %v7212 = vunpack.c.0.s8 %v7211
  %v7213 = vlaneseq
  %v7214 = vshrl.u32 %v7213, 7
  %v7215 = vsub.s32 %v7212, %v7214
  %v7216 = vrot.slane %v7194, %v7215
  %v7218 = vunpack.c.l.s4 1983009808
  %v7219 = vunpack.c.0.s8 %v7218
  %v7220 = vlaneseq
  %v7221 = vshrl.u32 %v7220, 7
  %v7222 = vsub.s32 %v7219, %v7221
  %v7223 = vrot.slane %v7195, %v7222
  %v7224 = vcombine.low %v7202, %v7216
  %v7225 = vcombine.high %v7202, %v7216
  %v7226 = vcombine.low %v7209, %v7223
  %v7227 = vcombine.high %v7209, %v7223
  %v7228 = vcombine.low %v6138, %v6179
  %v7229 = vcombine.high %v6138, %v6179
  %v7230 = vcombine.low %v6220, %v6261
  %v7231 = vcombine.high %v6220, %v6261
  %v7233 = vunpack.c.l.s4 1983009808
  %v7234 = vunpack.c.0.s8 %v7233
  %v7235 = vlaneseq
  %v7236 = vshrl.u32 %v7235, 7
  %v7237 = vsub.s32 %v7234, %v7236
  %v7238 = vrot.slane %v7228, %v7237
  %v7240 = vunpack.c.l.s4 1983009808
  %v7241 = vunpack.c.0.s8 %v7240
  %v7242 = vlaneseq
  %v7243 = vshrl.u32 %v7242, 7
  %v7244 = vsub.s32 %v7241, %v7243
  %v7245 = vrot.slane %v7229, %v7244
  %v7247 = vunpack.c.l.s4 1983009808
  %v7248 = vunpack.c.0.s8 %v7247
  %v7249 = vlaneseq
  %v7250 = vshrl.u32 %v7249, 7
  %v7251 = vsub.s32 %v7248, %v7250
  %v7252 = vrot.slane %v7230, %v7251
  %v7254 = vunpack.c.l.s4 1983009808
  %v7255 = vunpack.c.0.s8 %v7254
  %v7256 = vlaneseq
  %v7257 = vshrl.u32 %v7256, 7
  %v7258 = vsub.s32 %v7255, %v7257
  %v7259 = vrot.slane %v7231, %v7258
  %v7260 = vcombine.low %v7238, %v7252
  %v7261 = vcombine.high %v7238, %v7252
  %v7262 = vcombine.low %v7245, %v7259
  %v7263 = vcombine.high %v7245, %v7259
  %v7264 = vcombine.low %v6145, %v6186
  %v7265 = vcombine.low %v6227, %v6268
  %v7267 = vunpack.c.l.s4 1983009808
  %v7268 = vunpack.c.0.s8 %v7267
  %v7269 = vlaneseq
  %v7270 = vshrl.u32 %v7269, 7
  %v7271 = vsub.s32 %v7268, %v7270
  %v7272 = vrot.slane %v7264, %v7271
  %v7274 = vunpack.c.l.s4 1983009808
  %v7275 = vunpack.c.0.s8 %v7274
  %v7276 = vlaneseq
  %v7277 = vshrl.u32 %v7276, 7
  %v7278 = vsub.s32 %v7275, %v7277
  %v7279 = vrot.slane %v7265, %v7278
  %v7280 = vcombine.low %v7272, %v7279
  %v7281 = vcombine.low %v6285, %v6326
  %v7282 = vcombine.high %v6285, %v6326
  %v7283 = vcombine.low %v6367, %v6408
  %v7284 = vcombine.high %v6367, %v6408
  %v7286 = vunpack.c.l.s4 1983009808
  %v7287 = vunpack.c.0.s8 %v7286
  %v7288 = vlaneseq
  %v7289 = vshrl.u32 %v7288, 7
  %v7290 = vsub.s32 %v7287, %v7289
  %v7291 = vrot.slane %v7281, %v7290
  %v7293 = vunpack.c.l.s4 1983009808
  %v7294 = vunpack.c.0.s8 %v7293
  %v7295 = vlaneseq
  %v7296 = vshrl.u32 %v7295, 7
  %v7297 = vsub.s32 %v7294, %v7296
  %v7298 = vrot.slane %v7282, %v7297
  %v7300 = vunpack.c.l.s4 1983009808
  %v7301 = vunpack.c.0.s8 %v7300
  %v7302 = vlaneseq
  %v7303 = vshrl.u32 %v7302, 7
  %v7304 = vsub.s32 %v7301, %v7303
  %v7305 = vrot.slane %v7283, %v7304
  %v7307 = vunpack.c.l.s4 1983009808
  %v7308 = vunpack.c.0.s8 %v7307
  %v7309 = vlaneseq
  %v7310 = vshrl.u32 %v7309, 7
  %v7311 = vsub.s32 %v7308, %v7310
  %v7312 = vrot.slane %v7284, %v7311
  %v7313 = vcombine.low %v7291, %v7305
  %v7314 = vcombine.high %v7291, %v7305
  %v7315 = vcombine.low %v7298, %v7312
  %v7316 = vcombine.high %v7298, %v7312
  %v7317 = vcombine.low %v6302, %v6343
  %v7318 = vcombine.high %v6302, %v6343
  %v7319 = vcombine.low %v6384, %v6425
  %v7320 = vcombine.high %v6384, %v6425
  %v7322 = vunpack.c.l.s4 1983009808
  %v7323 = vunpack.c.0.s8 %v7322
  %v7324 = vlaneseq
  %v7325 = vshrl.u32 %v7324, 7
  %v7326 = vsub.s32 %v7323, %v7325
  %v7327 = vrot.slane %v7317, %v7326
  %v7329 = vunpack.c.l.s4 1983009808
  %v7330 = vunpack.c.0.s8 %v7329
  %v7331 = vlaneseq
  %v7332 = vshrl.u32 %v7331, 7
  %v7333 = vsub.s32 %v7330, %v7332
  %v7334 = vrot.slane %v7318, %v7333
  %v7336 = vunpack.c.l.s4 1983009808
  %v7337 = vunpack.c.0.s8 %v7336
  %v7338 = vlaneseq
  %v7339 = vshrl.u32 %v7338, 7
  %v7340 = vsub.s32 %v7337, %v7339
  %v7341 = vrot.slane %v7319, %v7340
  %v7343 = vunpack.c.l.s4 1983009808
  %v7344 = vunpack.c.0.s8 %v7343
  %v7345 = vlaneseq
  %v7346 = vshrl.u32 %v7345, 7
  %v7347 = vsub.s32 %v7344, %v7346
  %v7348 = vrot.slane %v7320, %v7347
  %v7349 = vcombine.low %v7327, %v7341
  %v7350 = vcombine.high %v7327, %v7341
  %v7351 = vcombine.low %v7334, %v7348
  %v7352 = vcombine.high %v7334, %v7348
  %v7353 = vcombine.low %v6309, %v6350
  %v7354 = vcombine.low %v6391, %v6432
  %v7356 = vunpack.c.l.s4 1983009808
  %v7357 = vunpack.c.0.s8 %v7356
  %v7358 = vlaneseq
  %v7359 = vshrl.u32 %v7358, 7
  %v7360 = vsub.s32 %v7357, %v7359
  %v7361 = vrot.slane %v7353, %v7360
  %v7363 = vunpack.c.l.s4 1983009808
  %v7364 = vunpack.c.0.s8 %v7363
  %v7365 = vlaneseq
  %v7366 = vshrl.u32 %v7365, 7
  %v7367 = vsub.s32 %v7364, %v7366
  %v7368 = vrot.slane %v7354, %v7367
  %v7369 = vcombine.low %v7361, %v7368
  %v7370 = vcombine.low %v6449, %v6490
  %v7371 = vcombine.high %v6449, %v6490
  %v7372 = vcombine.low %v6531, %v6572
  %v7373 = vcombine.high %v6531, %v6572
  %v7375 = vunpack.c.l.s4 1983009808
  %v7376 = vunpack.c.0.s8 %v7375
  %v7377 = vlaneseq
  %v7378 = vshrl.u32 %v7377, 7
  %v7379 = vsub.s32 %v7376, %v7378
  %v7380 = vrot.slane %v7370, %v7379
  %v7382 = vunpack.c.l.s4 1983009808
  %v7383 = vunpack.c.0.s8 %v7382
  %v7384 = vlaneseq
  %v7385 = vshrl.u32 %v7384, 7
  %v7386 = vsub.s32 %v7383, %v7385
  %v7387 = vrot.slane %v7371, %v7386
  %v7389 = vunpack.c.l.s4 1983009808
  %v7390 = vunpack.c.0.s8 %v7389
  %v7391 = vlaneseq
  %v7392 = vshrl.u32 %v7391, 7
  %v7393 = vsub.s32 %v7390, %v7392
  %v7394 = vrot.slane %v7372, %v7393
  %v7396 = vunpack.c.l.s4 1983009808
  %v7397 = vunpack.c.0.s8 %v7396
  %v7398 = vlaneseq
  %v7399 = vshrl.u32 %v7398, 7
  %v7400 = vsub.s32 %v7397, %v7399
  %v7401 = vrot.slane %v7373, %v7400
  %v7402 = vcombine.low %v7380, %v7394
  %v7403 = vcombine.high %v7380, %v7394
  %v7404 = vcombine.low %v7387, %v7401
  %v7405 = vcombine.high %v7387, %v7401
  %v7406 = vcombine.low %v6466, %v6507
  %v7407 = vcombine.high %v6466, %v6507
  %v7408 = vcombine.low %v6548, %v6589
  %v7409 = vcombine.high %v6548, %v6589
  %v7411 = vunpack.c.l.s4 1983009808
  %v7412 = vunpack.c.0.s8 %v7411
  %v7413 = vlaneseq
  %v7414 = vshrl.u32 %v7413, 7
  %v7415 = vsub.s32 %v7412, %v7414
  %v7416 = vrot.slane %v7406, %v7415
  %v7418 = vunpack.c.l.s4 1983009808
  %v7419 = vunpack.c.0.s8 %v7418
  %v7420 = vlaneseq
  %v7421 = vshrl.u32 %v7420, 7
  %v7422 = vsub.s32 %v7419, %v7421
  %v7423 = vrot.slane %v7407, %v7422
  %v7425 = vunpack.c.l.s4 1983009808
  %v7426 = vunpack.c.0.s8 %v7425
  %v7427 = vlaneseq
  %v7428 = vshrl.u32 %v7427, 7
  %v7429 = vsub.s32 %v7426, %v7428
  %v7430 = vrot.slane %v7408, %v7429
  %v7432 = vunpack.c.l.s4 1983009808
  %v7433 = vunpack.c.0.s8 %v7432
  %v7434 = vlaneseq
  %v7435 = vshrl.u32 %v7434, 7
  %v7436 = vsub.s32 %v7433, %v7435
  %v7437 = vrot.slane %v7409, %v7436
  %v7438 = vcombine.low %v7416, %v7430
  %v7439 = vcombine.high %v7416, %v7430
  %v7440 = vcombine.low %v7423, %v7437
  %v7441 = vcombine.high %v7423, %v7437
  %v7442 = vcombine.low %v6473, %v6514
  %v7443 = vcombine.low %v6555, %v6596
  %v7445 = vunpack.c.l.s4 1983009808
  %v7446 = vunpack.c.0.s8 %v7445
  %v7447 = vlaneseq
  %v7448 = vshrl.u32 %v7447, 7
  %v7449 = vsub.s32 %v7446, %v7448
  %v7450 = vrot.slane %v7442, %v7449
  %v7452 = vunpack.c.l.s4 1983009808
  %v7453 = vunpack.c.0.s8 %v7452
  %v7454 = vlaneseq
  %v7455 = vshrl.u32 %v7454, 7
  %v7456 = vsub.s32 %v7453, %v7455
  %v7457 = vrot.slane %v7443, %v7456
  %v7458 = vcombine.low %v7450, %v7457
  %v7459 = vcombine.low %v6613, %v6654
  %v7460 = vcombine.high %v6613, %v6654
  %v7461 = vcombine.low %v6695, %v6736
  %v7462 = vcombine.high %v6695, %v6736
  %v7464 = vunpack.c.l.s4 1983009808
  %v7465 = vunpack.c.0.s8 %v7464
  %v7466 = vlaneseq
  %v7467 = vshrl.u32 %v7466, 7
  %v7468 = vsub.s32 %v7465, %v7467
  %v7469 = vrot.slane %v7459, %v7468
  %v7471 = vunpack.c.l.s4 1983009808
  %v7472 = vunpack.c.0.s8 %v7471
  %v7473 = vlaneseq
  %v7474 = vshrl.u32 %v7473, 7
  %v7475 = vsub.s32 %v7472, %v7474
  %v7476 = vrot.slane %v7460, %v7475
  %v7478 = vunpack.c.l.s4 1983009808
  %v7479 = vunpack.c.0.s8 %v7478
  %v7480 = vlaneseq
  %v7481 = vshrl.u32 %v7480, 7
  %v7482 = vsub.s32 %v7479, %v7481
  %v7483 = vrot.slane %v7461, %v7482
  %v7485 = vunpack.c.l.s4 1983009808
  %v7486 = vunpack.c.0.s8 %v7485
  %v7487 = vlaneseq
  %v7488 = vshrl.u32 %v7487, 7
  %v7489 = vsub.s32 %v7486, %v7488
  %v7490 = vrot.slane %v7462, %v7489
  %v7491 = vcombine.low %v7469, %v7483
  %v7492 = vcombine.high %v7469, %v7483
  %v7493 = vcombine.low %v7476, %v7490
  %v7494 = vcombine.high %v7476, %v7490
  %v7495 = vcombine.low %v6630, %v6671
  %v7496 = vcombine.high %v6630, %v6671
  %v7497 = vcombine.low %v6712, %v6753
  %v7498 = vcombine.high %v6712, %v6753
  %v7500 = vunpack.c.l.s4 1983009808
  %v7501 = vunpack.c.0.s8 %v7500
  %v7502 = vlaneseq
  %v7503 = vshrl.u32 %v7502, 7
  %v7504 = vsub.s32 %v7501, %v7503
  %v7505 = vrot.slane %v7495, %v7504
  %v7507 = vunpack.c.l.s4 1983009808
  %v7508 = vunpack.c.0.s8 %v7507
  %v7509 = vlaneseq
  %v7510 = vshrl.u32 %v7509, 7
  %v7511 = vsub.s32 %v7508, %v7510
  %v7512 = vrot.slane %v7496, %v7511
  %v7514 = vunpack.c.l.s4 1983009808
  %v7515 = vunpack.c.0.s8 %v7514
  %v7516 = vlaneseq
  %v7517 = vshrl.u32 %v7516, 7
  %v7518 = vsub.s32 %v7515, %v7517
  %v7519 = vrot.slane %v7497, %v7518
  %v7521 = vunpack.c.l.s4 1983009808
  %v7522 = vunpack.c.0.s8 %v7521
  %v7523 = vlaneseq
  %v7524 = vshrl.u32 %v7523, 7
  %v7525 = vsub.s32 %v7522, %v7524
  %v7526 = vrot.slane %v7498, %v7525
  %v7527 = vcombine.low %v7505, %v7519
  %v7528 = vcombine.high %v7505, %v7519
  %v7529 = vcombine.low %v7512, %v7526
  %v7530 = vcombine.high %v7512, %v7526
  %v7531 = vcombine.low %v6637, %v6678
  %v7532 = vcombine.low %v6719, %v6760
  %v7534 = vunpack.c.l.s4 1983009808
  %v7535 = vunpack.c.0.s8 %v7534
  %v7536 = vlaneseq
  %v7537 = vshrl.u32 %v7536, 7
  %v7538 = vsub.s32 %v7535, %v7537
  %v7539 = vrot.slane %v7531, %v7538
  %v7541 = vunpack.c.l.s4 1983009808
  %v7542 = vunpack.c.0.s8 %v7541
  %v7543 = vlaneseq
  %v7544 = vshrl.u32 %v7543, 7
  %v7545 = vsub.s32 %v7542, %v7544
  %v7546 = vrot.slane %v7532, %v7545
  %v7547 = vcombine.low %v7539, %v7546
  %v7548 = vcombine.low %v6777, %v6818
  %v7549 = vcombine.high %v6777, %v6818
  %v7550 = vcombine.low %v6859, %v6900
  %v7551 = vcombine.high %v6859, %v6900
  %v7553 = vunpack.c.l.s4 1983009808
  %v7554 = vunpack.c.0.s8 %v7553
  %v7555 = vlaneseq
  %v7556 = vshrl.u32 %v7555, 7
  %v7557 = vsub.s32 %v7554, %v7556
  %v7558 = vrot.slane %v7548, %v7557
  %v7560 = vunpack.c.l.s4 1983009808
  %v7561 = vunpack.c.0.s8 %v7560
  %v7562 = vlaneseq
  %v7563 = vshrl.u32 %v7562, 7
  %v7564 = vsub.s32 %v7561, %v7563
  %v7565 = vrot.slane %v7549, %v7564
  %v7567 = vunpack.c.l.s4 1983009808
  %v7568 = vunpack.c.0.s8 %v7567
  %v7569 = vlaneseq
  %v7570 = vshrl.u32 %v7569, 7
  %v7571 = vsub.s32 %v7568, %v7570
  %v7572 = vrot.slane %v7550, %v7571
  %v7574 = vunpack.c.l.s4 1983009808
  %v7575 = vunpack.c.0.s8 %v7574
  %v7576 = vlaneseq
  %v7577 = vshrl.u32 %v7576, 7
  %v7578 = vsub.s32 %v7575, %v7577
  %v7579 = vrot.slane %v7551, %v7578
  %v7580 = vcombine.low %v7558, %v7572
  %v7581 = vcombine.high %v7558, %v7572
  %v7582 = vcombine.low %v7565, %v7579
  %v7583 = vcombine.high %v7565, %v7579
  %v7584 = vcombine.low %v6794, %v6835
  %v7585 = vcombine.high %v6794, %v6835
  %v7586 = vcombine.low %v6876, %v6917
  %v7587 = vcombine.high %v6876, %v6917
  %v7589 = vunpack.c.l.s4 1983009808
  %v7590 = vunpack.c.0.s8 %v7589
  %v7591 = vlaneseq
  %v7592 = vshrl.u32 %v7591, 7
  %v7593 = vsub.s32 %v7590, %v7592
  %v7594 = vrot.slane %v7584, %v7593
  %v7596 = vunpack.c.l.s4 1983009808
  %v7597 = vunpack.c.0.s8 %v7596
  %v7598 = vlaneseq
  %v7599 = vshrl.u32 %v7598, 7
  %v7600 = vsub.s32 %v7597, %v7599
  %v7601 = vrot.slane %v7585, %v7600
  %v7603 = vunpack.c.l.s4 1983009808
  %v7604 = vunpack.c.0.s8 %v7603
  %v7605 = vlaneseq
  %v7606 = vshrl.u32 %v7605, 7
  %v7607 = vsub.s32 %v7604, %v7606
  %v7608 = vrot.slane %v7586, %v7607
  %v7610 = vunpack.c.l.s4 1983009808
  %v7611 = vunpack.c.0.s8 %v7610
  %v7612 = vlaneseq
  %v7613 = vshrl.u32 %v7612, 7
  %v7614 = vsub.s32 %v7611, %v7613
  %v7615 = vrot.slane %v7587, %v7614
  %v7616 = vcombine.low %v7594, %v7608
  %v7617 = vcombine.high %v7594, %v7608
  %v7618 = vcombine.low %v7601, %v7615
  %v7619 = vcombine.high %v7601, %v7615
  %v7620 = vcombine.low %v6801, %v6842
  %v7621 = vcombine.low %v6883, %v6924
  %v7623 = vunpack.c.l.s4 1983009808
  %v7624 = vunpack.c.0.s8 %v7623
  %v7625 = vlaneseq
  %v7626 = vshrl.u32 %v7625, 7
  %v7627 = vsub.s32 %v7624, %v7626
  %v7628 = vrot.slane %v7620, %v7627
  %v7630 = vunpack.c.l.s4 1983009808
  %v7631 = vunpack.c.0.s8 %v7630
  %v7632 = vlaneseq
  %v7633 = vshrl.u32 %v7632, 7
  %v7634 = vsub.s32 %v7631, %v7633
  %v7635 = vrot.slane %v7621, %v7634
  %v7636 = vcombine.low %v7628, %v7635
  %v7709 = vpack.c.bf16 %v7046, %v6957
  %v7710 = vpack.c.bf16 %v7047, %v6958
  %v7711 = vpack.c.bf16 %v7048, %v6959
  %v7712 = vpack.c.bf16 %v7049, %v6960
  %v7713 = vpack.c.bf16 %v7082, %v6993
  %v7714 = vpack.c.bf16 %v7083, %v6994
  %v7715 = vpack.c.bf16 %v7084, %v6995
  %v7716 = vpack.c.bf16 %v7085, %v6996
  %v7717 = vpack.c.bf16 %v7102, %v7013
  %v7718 = vpack.c.bf16 %v7224, %v7135
  %v7719 = vpack.c.bf16 %v7225, %v7136
  %v7720 = vpack.c.bf16 %v7226, %v7137
  %v7721 = vpack.c.bf16 %v7227, %v7138
  %v7722 = vpack.c.bf16 %v7260, %v7171
  %v7723 = vpack.c.bf16 %v7261, %v7172
  %v7724 = vpack.c.bf16 %v7262, %v7173
  %v7725 = vpack.c.bf16 %v7263, %v7174
  %v7726 = vpack.c.bf16 %v7280, %v7191
  %v7727 = vpack.c.bf16 %v7402, %v7313
  %v7728 = vpack.c.bf16 %v7403, %v7314
  %v7729 = vpack.c.bf16 %v7404, %v7315
  %v7730 = vpack.c.bf16 %v7405, %v7316
  %v7731 = vpack.c.bf16 %v7438, %v7349
  %v7732 = vpack.c.bf16 %v7439, %v7350
  %v7733 = vpack.c.bf16 %v7440, %v7351
  %v7734 = vpack.c.bf16 %v7441, %v7352
  %v7735 = vpack.c.bf16 %v7458, %v7369
  %v7736 = vpack.c.bf16 %v7580, %v7491
  %v7737 = vpack.c.bf16 %v7581, %v7492
  %v7738 = vpack.c.bf16 %v7582, %v7493
  %v7739 = vpack.c.bf16 %v7583, %v7494
  %v7740 = vpack.c.bf16 %v7616, %v7527
  %v7741 = vpack.c.bf16 %v7617, %v7528
  %v7742 = vpack.c.bf16 %v7618, %v7529
  %v7743 = vpack.c.bf16 %v7619, %v7530
  %v7744 = vpack.c.bf16 %v7636, %v7547
  %v7746 = vlaneseq
  %v7747 = vshrl.u32 %v7746, 7
  %v7748 = vsub.s32 0, %v7747
  %v7749 = vrot.slane %v4896, %v7748
  %v7895 = vunpack.c.l.b16 %v4752
  %v7896 = vunpack.c.l.b16 %v4753
  %v7897 = vunpack.c.l.b16 %v4754
  %v7898 = vunpack.c.l.b16 %v4755
  %v7899 = vunpack.c.l.b16 %v4756
  %v7900 = vunpack.c.l.b16 %v4757
  %v7901 = vunpack.c.l.b16 %v4758
  %v7902 = vunpack.c.l.b16 %v4759
  %v7903 = vunpack.c.l.b16 %v4760
  %v7904 = vunpack.c.l.b16 %v4761
  %v7905 = vunpack.c.l.b16 %v4762
  %v7906 = vunpack.c.l.b16 %v4763
  %v7907 = vunpack.c.l.b16 %v4764
  %v7908 = vunpack.c.l.b16 %v4765
  %v7909 = vunpack.c.l.b16 %v4766
  %v7910 = vunpack.c.l.b16 %v4767
  %v7911 = vunpack.c.l.b16 %v4768
  %v7912 = vunpack.c.l.b16 %v4769
  %v7913 = vunpack.c.l.b16 %v4770
  %v7914 = vunpack.c.l.b16 %v4771
  %v7915 = vunpack.c.l.b16 %v4772
  %v7916 = vunpack.c.l.b16 %v4773
  %v7917 = vunpack.c.l.b16 %v4774
  %v7918 = vunpack.c.l.b16 %v4775
  %v7919 = vunpack.c.l.b16 %v4776
  %v7920 = vunpack.c.l.b16 %v4777
  %v7921 = vunpack.c.l.b16 %v4778
  %v7922 = vunpack.c.l.b16 %v4779
  %v7923 = vunpack.c.l.b16 %v4780
  %v7924 = vunpack.c.l.b16 %v4781
  %v7925 = vunpack.c.l.b16 %v4782
  %v7926 = vunpack.c.l.b16 %v4783
  %v7927 = vunpack.c.l.b16 %v4784
  %v7928 = vunpack.c.l.b16 %v4785
  %v7929 = vunpack.c.l.b16 %v4786
  %v7930 = vunpack.c.l.b16 %v4787
  %v7931 = vunpack.c.l.b16 %v4788
  %v7932 = vunpack.c.l.b16 %v4789
  %v7933 = vunpack.c.l.b16 %v4790
  %v7934 = vunpack.c.l.b16 %v4791
  %v7935 = vunpack.c.l.b16 %v4792
  %v7936 = vunpack.c.l.b16 %v4793
  %v7937 = vunpack.c.l.b16 %v4794
  %v7938 = vunpack.c.l.b16 %v4795
  %v7939 = vunpack.c.l.b16 %v4796
  %v7940 = vunpack.c.l.b16 %v4797
  %v7941 = vunpack.c.l.b16 %v4798
  %v7942 = vunpack.c.l.b16 %v4799
  %v7943 = vunpack.c.l.b16 %v4800
  %v7944 = vunpack.c.l.b16 %v4801
  %v7945 = vunpack.c.l.b16 %v4802
  %v7946 = vunpack.c.l.b16 %v4803
  %v7947 = vunpack.c.l.b16 %v4804
  %v7948 = vunpack.c.l.b16 %v4805
  %v7949 = vunpack.c.l.b16 %v4806
  %v7950 = vunpack.c.l.b16 %v4807
  %v7951 = vunpack.c.l.b16 %v4808
  %v7952 = vunpack.c.l.b16 %v4809
  %v7953 = vunpack.c.l.b16 %v4810
  %v7954 = vunpack.c.l.b16 %v4811
  %v7955 = vunpack.c.l.b16 %v4812
  %v7956 = vunpack.c.l.b16 %v4813
  %v7957 = vunpack.c.l.b16 %v4814
  %v7958 = vunpack.c.l.b16 %v4815
  %v7959 = vunpack.c.l.b16 %v4816
  %v7960 = vunpack.c.l.b16 %v4817
  %v7961 = vunpack.c.l.b16 %v4818
  %v7962 = vunpack.c.l.b16 %v4819
  %v7963 = vunpack.c.l.b16 %v4820
  %v7964 = vunpack.c.l.b16 %v4821
  %v7965 = vunpack.c.l.b16 %v4822
  %v7966 = vunpack.c.l.b16 %v4823
  %v7967 = vunpack.c.l.b16 %v4824
  %v7968 = vunpack.c.l.b16 %v4825
  %v7969 = vunpack.c.l.b16 %v4826
  %v7970 = vunpack.c.l.b16 %v4827
  %v7971 = vunpack.c.l.b16 %v4828
  %v7972 = vunpack.c.l.b16 %v4829
  %v7973 = vunpack.c.l.b16 %v4830
  %v7974 = vunpack.c.l.b16 %v4831
  %v7975 = vunpack.c.l.b16 %v4832
  %v7976 = vunpack.c.l.b16 %v4833
  %v7977 = vunpack.c.l.b16 %v4834
  %v7978 = vunpack.c.l.b16 %v4835
  %v7979 = vunpack.c.l.b16 %v4836
  %v7980 = vunpack.c.l.b16 %v4837
  %v7981 = vunpack.c.l.b16 %v4838
  %v7982 = vunpack.c.l.b16 %v4839
  %v7983 = vunpack.c.l.b16 %v4840
  %v7984 = vunpack.c.l.b16 %v4841
  %v7985 = vunpack.c.l.b16 %v4842
  %v7986 = vunpack.c.l.b16 %v4843
  %v7987 = vunpack.c.l.b16 %v4844
  %v7988 = vunpack.c.l.b16 %v4845
  %v7989 = vunpack.c.l.b16 %v4846
  %v7990 = vunpack.c.l.b16 %v4847
  %v7991 = vunpack.c.l.b16 %v4848
  %v7992 = vunpack.c.l.b16 %v4849
  %v7993 = vunpack.c.l.b16 %v4850
  %v7994 = vunpack.c.l.b16 %v4851
  %v7995 = vunpack.c.l.b16 %v4852
  %v7996 = vunpack.c.l.b16 %v4853
  %v7997 = vunpack.c.l.b16 %v4854
  %v7998 = vunpack.c.l.b16 %v4855
  %v7999 = vunpack.c.l.b16 %v4856
  %v8000 = vunpack.c.l.b16 %v4857
  %v8001 = vunpack.c.l.b16 %v4858
  %v8002 = vunpack.c.l.b16 %v4859
  %v8003 = vunpack.c.l.b16 %v4860
  %v8004 = vunpack.c.l.b16 %v4861
  %v8005 = vunpack.c.l.b16 %v4862
  %v8006 = vunpack.c.l.b16 %v4863
  %v8007 = vunpack.c.l.b16 %v4864
  %v8008 = vunpack.c.l.b16 %v4865
  %v8009 = vunpack.c.l.b16 %v4866
  %v8010 = vunpack.c.l.b16 %v4867
  %v8011 = vunpack.c.l.b16 %v4868
  %v8012 = vunpack.c.l.b16 %v4869
  %v8013 = vunpack.c.l.b16 %v4870
  %v8014 = vunpack.c.l.b16 %v4871
  %v8015 = vunpack.c.l.b16 %v4872
  %v8016 = vunpack.c.l.b16 %v4873
  %v8017 = vunpack.c.l.b16 %v4874
  %v8018 = vunpack.c.l.b16 %v4875
  %v8019 = vunpack.c.l.b16 %v4876
  %v8020 = vunpack.c.l.b16 %v4877
  %v8021 = vunpack.c.l.b16 %v4878
  %v8022 = vunpack.c.l.b16 %v4879
  %v8023 = vunpack.c.l.b16 %v4880
  %v8024 = vunpack.c.l.b16 %v4881
  %v8025 = vunpack.c.l.b16 %v4882
  %v8026 = vunpack.c.l.b16 %v4883
  %v8027 = vunpack.c.l.b16 %v4884
  %v8028 = vunpack.c.l.b16 %v4885
  %v8029 = vunpack.c.l.b16 %v4886
  %v8030 = vunpack.c.l.b16 %v4887
  %v8031 = vunpack.c.l.b16 %v4888
  %v8032 = vunpack.c.l.b16 %v4889
  %v8033 = vunpack.c.l.b16 %v4890
  %v8034 = vunpack.c.l.b16 %v4891
  %v8035 = vunpack.c.l.b16 %v4892
  %v8036 = vunpack.c.l.b16 %v4893
  %v8037 = vunpack.c.l.b16 %v4894
  %v8038 = vunpack.c.l.b16 %v4895
  %v8039 = vpack.c.b16 %v7896, %v7895
  %v8040 = vpack.c.b16 %v7898, %v7897
  %v8041 = vpack.c.b16 %v7900, %v7899
  %v8042 = vpack.c.b16 %v7902, %v7901
  %v8043 = vpack.c.b16 %v7904, %v7903
  %v8044 = vpack.c.b16 %v7906, %v7905
  %v8045 = vpack.c.b16 %v7908, %v7907
  %v8046 = vpack.c.b16 %v7910, %v7909
  %v8047 = vpack.c.b16 %v7912, %v7911
  %v8048 = vpack.c.b16 %v7914, %v7913
  %v8049 = vpack.c.b16 %v7916, %v7915
  %v8050 = vpack.c.b16 %v7918, %v7917
  %v8051 = vpack.c.b16 %v7920, %v7919
  %v8052 = vpack.c.b16 %v7922, %v7921
  %v8053 = vpack.c.b16 %v7924, %v7923
  %v8054 = vpack.c.b16 %v7926, %v7925
  %v8055 = vpack.c.b16 %v7928, %v7927
  %v8056 = vpack.c.b16 %v7930, %v7929
  %v8057 = vpack.c.b16 %v7932, %v7931
  %v8058 = vpack.c.b16 %v7934, %v7933
  %v8059 = vpack.c.b16 %v7936, %v7935
  %v8060 = vpack.c.b16 %v7938, %v7937
  %v8061 = vpack.c.b16 %v7940, %v7939
  %v8062 = vpack.c.b16 %v7942, %v7941
  %v8063 = vpack.c.b16 %v7944, %v7943
  %v8064 = vpack.c.b16 %v7946, %v7945
  %v8065 = vpack.c.b16 %v7948, %v7947
  %v8066 = vpack.c.b16 %v7950, %v7949
  %v8067 = vpack.c.b16 %v7952, %v7951
  %v8068 = vpack.c.b16 %v7954, %v7953
  %v8069 = vpack.c.b16 %v7956, %v7955
  %v8070 = vpack.c.b16 %v7958, %v7957
  %v8071 = vpack.c.b16 %v7960, %v7959
  %v8072 = vpack.c.b16 %v7962, %v7961
  %v8073 = vpack.c.b16 %v7964, %v7963
  %v8074 = vpack.c.b16 %v7966, %v7965
  %v8075 = vpack.c.b16 %v7968, %v7967
  %v8076 = vpack.c.b16 %v7970, %v7969
  %v8077 = vpack.c.b16 %v7972, %v7971
  %v8078 = vpack.c.b16 %v7974, %v7973
  %v8079 = vpack.c.b16 %v7976, %v7975
  %v8080 = vpack.c.b16 %v7978, %v7977
  %v8081 = vpack.c.b16 %v7980, %v7979
  %v8082 = vpack.c.b16 %v7982, %v7981
  %v8083 = vpack.c.b16 %v7984, %v7983
  %v8084 = vpack.c.b16 %v7986, %v7985
  %v8085 = vpack.c.b16 %v7988, %v7987
  %v8086 = vpack.c.b16 %v7990, %v7989
  %v8087 = vpack.c.b16 %v7992, %v7991
  %v8088 = vpack.c.b16 %v7994, %v7993
  %v8089 = vpack.c.b16 %v7996, %v7995
  %v8090 = vpack.c.b16 %v7998, %v7997
  %v8091 = vpack.c.b16 %v8000, %v7999
  %v8092 = vpack.c.b16 %v8002, %v8001
  %v8093 = vpack.c.b16 %v8004, %v8003
  %v8094 = vpack.c.b16 %v8006, %v8005
  %v8095 = vpack.c.b16 %v8008, %v8007
  %v8096 = vpack.c.b16 %v8010, %v8009
  %v8097 = vpack.c.b16 %v8012, %v8011
  %v8098 = vpack.c.b16 %v8014, %v8013
  %v8099 = vpack.c.b16 %v8016, %v8015
  %v8100 = vpack.c.b16 %v8018, %v8017
  %v8101 = vpack.c.b16 %v8020, %v8019
  %v8102 = vpack.c.b16 %v8022, %v8021
  %v8103 = vpack.c.b16 %v8024, %v8023
  %v8104 = vpack.c.b16 %v8026, %v8025
  %v8105 = vpack.c.b16 %v8028, %v8027
  %v8106 = vpack.c.b16 %v8030, %v8029
  %v8107 = vpack.c.b16 %v8032, %v8031
  %v8108 = vpack.c.b16 %v8034, %v8033
  %v8109 = vpack.c.b16 %v8036, %v8035
  %v8110 = vpack.c.b16 %v8038, %v8037
  %8183 = vmatprep.subr.bf16.mxu0 0
  %8184 = vmatpush1.bf16.msra.mxu0 %v8039
  %8185 = vmatprep.subr.bf16.mxu0 0
  %8186 = vmatpush1.bf16.msra.mxu0 %v8040
  %8187 = vmatprep.subr.bf16.mxu0 0
  %8188 = vmatpush1.bf16.msra.mxu0 %v8041
  %8189 = vmatprep.subr.bf16.mxu0 0
  %8190 = vmatpush1.bf16.msra.mxu0 %v8042
  %8191 = vmatprep.subr.bf16.mxu0 0
  %8192 = vmatpush1.bf16.msra.mxu0 %v8043
  %8193 = vmatprep.subr.bf16.mxu0 0
  %8194 = vmatpush1.bf16.msra.mxu0 %v8044
  %8195 = vmatprep.subr.bf16.mxu0 0
  %8196 = vmatpush1.bf16.msra.mxu0 %v8045
  %8197 = vmatprep.subr.bf16.mxu0 0
  %8198 = vmatpush1.bf16.msra.mxu0 %v8046
  %8199 = vmatprep.subr.bf16.mxu0 0
  %8200 = vmatpush1.bf16.msra.mxu0 %v8047
  %8201 = vmatprep.subr.bf16.mxu0 0
  %8202 = vmatpush1.bf16.msra.mxu0 %v8048
  %8203 = vmatprep.subr.bf16.mxu0 0
  %8204 = vmatpush1.bf16.msra.mxu0 %v8049
  %8205 = vmatprep.subr.bf16.mxu0 0
  %8206 = vmatpush1.bf16.msra.mxu0 %v8050
  %8207 = vmatprep.subr.bf16.mxu0 0
  %8208 = vmatpush1.bf16.msra.mxu0 %v8051
  %8209 = vmatprep.subr.bf16.mxu0 0
  %8210 = vmatpush1.bf16.msra.mxu0 %v8052
  %8211 = vmatprep.subr.bf16.mxu0 0
  %8212 = vmatpush1.bf16.msra.mxu0 %v8053
  %8213 = vmatprep.subr.bf16.mxu0 0
  %8214 = vmatpush1.bf16.msra.mxu0 %v8054
  %8215 = vmatprep.mubr.bf16.mxu0 %v7710
  %8216 = vmatmul.mubr.bf16.gmra.mrb[0].mxu0 %v7709
  %v8217 = vpop.f32.mrb[0].mxu0
  %v8218 = vadd.f32 %v7749, %v8217
  %v8219 = vpop.f32.mrb[0].mxu0
  %v8220 = vpop.f32.mrb[0].mxu0
  %v8221 = vadd.f32 %v7749, %v8220
  %v8222 = vpop.f32.mrb[0].mxu0
  %8223 = vmatprep.mubr.bf16.mxu0 %v7719
  %8224 = vmatmul.mubr.bf16.gmra.mrb[0].mxu0 %v7718
  %v8225 = vpop.f32.mrb[0].mxu0
  %v8226 = vadd.f32 %v7749, %v8225
  %v8227 = vpop.f32.mrb[0].mxu0
  %v8228 = vpop.f32.mrb[0].mxu0
  %v8229 = vadd.f32 %v7749, %v8228
  %v8230 = vpop.f32.mrb[0].mxu0
  %8231 = vmatprep.mubr.bf16.mxu0 %v7728
  %8232 = vmatmul.mubr.bf16.gmra.mrb[0].mxu0 %v7727
  %v8233 = vpop.f32.mrb[0].mxu0
  %v8234 = vadd.f32 %v7749, %v8233
  %v8235 = vpop.f32.mrb[0].mxu0
  %v8236 = vpop.f32.mrb[0].mxu0
  %v8237 = vadd.f32 %v7749, %v8236
  %v8238 = vpop.f32.mrb[0].mxu0
  %8239 = vmatprep.mubr.bf16.mxu0 %v7737
  %8240 = vmatmul.mubr.bf16.gmra.mrb[0].mxu0 %v7736
  %v8241 = vpop.f32.mrb[0].mxu0
  %v8242 = vadd.f32 %v7749, %v8241
  %v8243 = vpop.f32.mrb[0].mxu0
  %v8244 = vpop.f32.mrb[0].mxu0
  %v8245 = vadd.f32 %v7749, %v8244
  %v8246 = vpop.f32.mrb[0].mxu0
  %8247 = vdwg.mxu0
  %8248 = vmatprep.subr.bf16.mxu0 0
  %8249 = vmatpush1.bf16.msra.mxu0 %v8055
  %8250 = vmatprep.subr.bf16.mxu0 0
  %8251 = vmatpush1.bf16.msra.mxu0 %v8056
  %8252 = vmatprep.subr.bf16.mxu0 0
  %8253 = vmatpush1.bf16.msra.mxu0 %v8057
  %8254 = vmatprep.subr.bf16.mxu0 0
  %8255 = vmatpush1.bf16.msra.mxu0 %v8058
  %8256 = vmatprep.subr.bf16.mxu0 0
  %8257 = vmatpush1.bf16.msra.mxu0 %v8059
  %8258 = vmatprep.subr.bf16.mxu0 0
  %8259 = vmatpush1.bf16.msra.mxu0 %v8060
  %8260 = vmatprep.subr.bf16.mxu0 0
  %8261 = vmatpush1.bf16.msra.mxu0 %v8061
  %8262 = vmatprep.subr.bf16.mxu0 0
  %8263 = vmatpush1.bf16.msra.mxu0 %v8062
  %8264 = vmatprep.subr.bf16.mxu0 0
  %8265 = vmatpush1.bf16.msra.mxu0 %v8063
  %8266 = vmatprep.subr.bf16.mxu0 0
  %8267 = vmatpush1.bf16.msra.mxu0 %v8064
  %8268 = vmatprep.subr.bf16.mxu0 0
  %8269 = vmatpush1.bf16.msra.mxu0 %v8065
  %8270 = vmatprep.subr.bf16.mxu0 0
  %8271 = vmatpush1.bf16.msra.mxu0 %v8066
  %8272 = vmatprep.subr.bf16.mxu0 0
  %8273 = vmatpush1.bf16.msra.mxu0 %v8067
  %8274 = vmatprep.subr.bf16.mxu0 0
  %8275 = vmatpush1.bf16.msra.mxu0 %v8068
  %8276 = vmatprep.subr.bf16.mxu0 0
  %8277 = vmatpush1.bf16.msra.mxu0 %v8069
  %8278 = vmatprep.subr.bf16.mxu0 0
  %8279 = vmatpush1.bf16.msra.mxu0 %v8070
  %8280 = vmatprep.mubr.bf16.mxu0 %v7712
  %8281 = vmatmul.mubr.bf16.gmra.mrb[0].mxu0 %v7711
  %v8282 = vpop.f32.mrb[0].mxu0
  %v8283 = vadd.f32 %v8218, %v8282
  %v8284 = vpop.f32.mrb[0].mxu0
  %v8285 = vpop.f32.mrb[0].mxu0
  %v8286 = vadd.f32 %v8221, %v8285
  %v8287 = vpop.f32.mrb[0].mxu0
  %8288 = vmatprep.mubr.bf16.mxu0 %v7721
  %8289 = vmatmul.mubr.bf16.gmra.mrb[0].mxu0 %v7720
  %v8290 = vpop.f32.mrb[0].mxu0
  %v8291 = vadd.f32 %v8226, %v8290
  %v8292 = vpop.f32.mrb[0].mxu0
  %v8293 = vpop.f32.mrb[0].mxu0
  %v8294 = vadd.f32 %v8229, %v8293
  %v8295 = vpop.f32.mrb[0].mxu0
  %8296 = vmatprep.mubr.bf16.mxu0 %v7730
  %8297 = vmatmul.mubr.bf16.gmra.mrb[0].mxu0 %v7729
  %v8298 = vpop.f32.mrb[0].mxu0
  %v8299 = vadd.f32 %v8234, %v8298
  %v8300 = vpop.f32.mrb[0].mxu0
  %v8301 = vpop.f32.mrb[0].mxu0
  %v8302 = vadd.f32 %v8237, %v8301
  %v8303 = vpop.f32.mrb[0].mxu0
  %8304 = vmatprep.mubr.bf16.mxu0 %v7739
  %8305 = vmatmul.mubr.bf16.gmra.mrb[0].mxu0 %v7738
  %v8306 = vpop.f32.mrb[0].mxu0
  %v8307 = vadd.f32 %v8242, %v8306
  %v8308 = vpop.f32.mrb[0].mxu0
  %v8309 = vpop.f32.mrb[0].mxu0
  %v8310 = vadd.f32 %v8245, %v8309
  %v8311 = vpop.f32.mrb[0].mxu0
  %8312 = vdwg.mxu0
  %8313 = vmatprep.subr.bf16.mxu0 0
  %8314 = vmatpush1.bf16.msra.mxu0 %v8071
  %8315 = vmatprep.subr.bf16.mxu0 0
  %8316 = vmatpush1.bf16.msra.mxu0 %v8072
  %8317 = vmatprep.subr.bf16.mxu0 0
  %8318 = vmatpush1.bf16.msra.mxu0 %v8073
  %8319 = vmatprep.subr.bf16.mxu0 0
  %8320 = vmatpush1.bf16.msra.mxu0 %v8074
  %8321 = vmatprep.subr.bf16.mxu0 0
  %8322 = vmatpush1.bf16.msra.mxu0 %v8075
  %8323 = vmatprep.subr.bf16.mxu0 0
  %8324 = vmatpush1.bf16.msra.mxu0 %v8076
  %8325 = vmatprep.subr.bf16.mxu0 0
  %8326 = vmatpush1.bf16.msra.mxu0 %v8077
  %8327 = vmatprep.subr.bf16.mxu0 0
  %8328 = vmatpush1.bf16.msra.mxu0 %v8078
  %8329 = vmatprep.subr.bf16.mxu0 0
  %8330 = vmatpush1.bf16.msra.mxu0 %v8079
  %8331 = vmatprep.subr.bf16.mxu0 0
  %8332 = vmatpush1.bf16.msra.mxu0 %v8080
  %8333 = vmatprep.subr.bf16.mxu0 0
  %8334 = vmatpush1.bf16.msra.mxu0 %v8081
  %8335 = vmatprep.subr.bf16.mxu0 0
  %8336 = vmatpush1.bf16.msra.mxu0 %v8082
  %8337 = vmatprep.subr.bf16.mxu0 0
  %8338 = vmatpush1.bf16.msra.mxu0 %v8083
  %8339 = vmatprep.subr.bf16.mxu0 0
  %8340 = vmatpush1.bf16.msra.mxu0 %v8084
  %8341 = vmatprep.subr.bf16.mxu0 0
  %8342 = vmatpush1.bf16.msra.mxu0 %v8085
  %8343 = vmatprep.subr.bf16.mxu0 0
  %8344 = vmatpush1.bf16.msra.mxu0 %v8086
  %8345 = vmatprep.mubr.bf16.mxu0 %v7714
  %8346 = vmatmul.mubr.bf16.gmra.mrb[0].mxu0 %v7713
  %v8347 = vpop.f32.mrb[0].mxu0
  %v8348 = vadd.f32 %v8283, %v8347
  %v8349 = vpop.f32.mrb[0].mxu0
  %v8350 = vpop.f32.mrb[0].mxu0
  %v8351 = vadd.f32 %v8286, %v8350
  %v8352 = vpop.f32.mrb[0].mxu0
  %8353 = vmatprep.mubr.bf16.mxu0 %v7723
  %8354 = vmatmul.mubr.bf16.gmra.mrb[0].mxu0 %v7722
  %v8355 = vpop.f32.mrb[0].mxu0
  %v8356 = vadd.f32 %v8291, %v8355
  %v8357 = vpop.f32.mrb[0].mxu0
  %v8358 = vpop.f32.mrb[0].mxu0
  %v8359 = vadd.f32 %v8294, %v8358
  %v8360 = vpop.f32.mrb[0].mxu0
  %8361 = vmatprep.mubr.bf16.mxu0 %v7732
  %8362 = vmatmul.mubr.bf16.gmra.mrb[0].mxu0 %v7731
  %v8363 = vpop.f32.mrb[0].mxu0
  %v8364 = vadd.f32 %v8299, %v8363
  %v8365 = vpop.f32.mrb[0].mxu0
  %v8366 = vpop.f32.mrb[0].mxu0
  %v8367 = vadd.f32 %v8302, %v8366
  %v8368 = vpop.f32.mrb[0].mxu0
  %8369 = vmatprep.mubr.bf16.mxu0 %v7741
  %8370 = vmatmul.mubr.bf16.gmra.mrb[0].mxu0 %v7740
  %v8371 = vpop.f32.mrb[0].mxu0
  %v8372 = vadd.f32 %v8307, %v8371
  %v8373 = vpop.f32.mrb[0].mxu0
  %v8374 = vpop.f32.mrb[0].mxu0
  %v8375 = vadd.f32 %v8310, %v8374
  %v8376 = vpop.f32.mrb[0].mxu0
  %8377 = vdwg.mxu0
  %8378 = vmatprep.subr.bf16.mxu0 0
  %8379 = vmatpush1.bf16.msra.mxu0 %v8087
  %8380 = vmatprep.subr.bf16.mxu0 0
  %8381 = vmatpush1.bf16.msra.mxu0 %v8088
  %8382 = vmatprep.subr.bf16.mxu0 0
  %8383 = vmatpush1.bf16.msra.mxu0 %v8089
  %8384 = vmatprep.subr.bf16.mxu0 0
  %8385 = vmatpush1.bf16.msra.mxu0 %v8090
  %8386 = vmatprep.subr.bf16.mxu0 0
  %8387 = vmatpush1.bf16.msra.mxu0 %v8091
  %8388 = vmatprep.subr.bf16.mxu0 0
  %8389 = vmatpush1.bf16.msra.mxu0 %v8092
  %8390 = vmatprep.subr.bf16.mxu0 0
  %8391 = vmatpush1.bf16.msra.mxu0 %v8093
  %8392 = vmatprep.subr.bf16.mxu0 0
  %8393 = vmatpush1.bf16.msra.mxu0 %v8094
  %8394 = vmatprep.subr.bf16.mxu0 0
  %8395 = vmatpush1.bf16.msra.mxu0 %v8095
  %8396 = vmatprep.subr.bf16.mxu0 0
  %8397 = vmatpush1.bf16.msra.mxu0 %v8096
  %8398 = vmatprep.subr.bf16.mxu0 0
  %8399 = vmatpush1.bf16.msra.mxu0 %v8097
  %8400 = vmatprep.subr.bf16.mxu0 0
  %8401 = vmatpush1.bf16.msra.mxu0 %v8098
  %8402 = vmatprep.subr.bf16.mxu0 0
  %8403 = vmatpush1.bf16.msra.mxu0 %v8099
  %8404 = vmatprep.subr.bf16.mxu0 0
  %8405 = vmatpush1.bf16.msra.mxu0 %v8100
  %8406 = vmatprep.subr.bf16.mxu0 0
  %8407 = vmatpush1.bf16.msra.mxu0 %v8101
  %8408 = vmatprep.subr.bf16.mxu0 0
  %8409 = vmatpush1.bf16.msra.mxu0 %v8102
  %8410 = vmatprep.mubr.bf16.mxu0 %v7716
  %8411 = vmatmul.mubr.bf16.gmra.mrb[0].mxu0 %v7715
  %v8412 = vpop.f32.mrb[0].mxu0
  %v8413 = vadd.f32 %v8348, %v8412
  %v8414 = vpop.f32.mrb[0].mxu0
  %v8415 = vpop.f32.mrb[0].mxu0
  %v8416 = vadd.f32 %v8351, %v8415
  %v8417 = vpop.f32.mrb[0].mxu0
  %8418 = vmatprep.mubr.bf16.mxu0 %v7725
  %8419 = vmatmul.mubr.bf16.gmra.mrb[0].mxu0 %v7724
  %v8420 = vpop.f32.mrb[0].mxu0
  %v8421 = vadd.f32 %v8356, %v8420
  %v8422 = vpop.f32.mrb[0].mxu0
  %v8423 = vpop.f32.mrb[0].mxu0
  %v8424 = vadd.f32 %v8359, %v8423
  %v8425 = vpop.f32.mrb[0].mxu0
  %8426 = vmatprep.mubr.bf16.mxu0 %v7734
  %8427 = vmatmul.mubr.bf16.gmra.mrb[0].mxu0 %v7733
  %v8428 = vpop.f32.mrb[0].mxu0
  %v8429 = vadd.f32 %v8364, %v8428
  %v8430 = vpop.f32.mrb[0].mxu0
  %v8431 = vpop.f32.mrb[0].mxu0
  %v8432 = vadd.f32 %v8367, %v8431
  %v8433 = vpop.f32.mrb[0].mxu0
  %8434 = vmatprep.mubr.bf16.mxu0 %v7743
  %8435 = vmatmul.mubr.bf16.gmra.mrb[0].mxu0 %v7742
  %v8436 = vpop.f32.mrb[0].mxu0
  %v8437 = vadd.f32 %v8372, %v8436
  %v8438 = vpop.f32.mrb[0].mxu0
  %v8439 = vpop.f32.mrb[0].mxu0
  %v8440 = vadd.f32 %v8375, %v8439
  %v8441 = vpop.f32.mrb[0].mxu0
  %8442 = vdwg.mxu0
  %8443 = vmatprep.subr.bf16.mxu0 0
  %8444 = vmatpush1.bf16.msra.mxu0 %v8103
  %8445 = vmatprep.subr.bf16.mxu0 0
  %8446 = vmatpush1.bf16.msra.mxu0 %v8104
  %8447 = vmatprep.subr.bf16.mxu0 0
  %8448 = vmatpush1.bf16.msra.mxu0 %v8105
  %8449 = vmatprep.subr.bf16.mxu0 0
  %8450 = vmatpush1.bf16.msra.mxu0 %v8106
  %8451 = vmatprep.subr.bf16.mxu0 0
  %8452 = vmatpush1.bf16.msra.mxu0 %v8107
  %8453 = vmatprep.subr.bf16.mxu0 0
  %8454 = vmatpush1.bf16.msra.mxu0 %v8108
  %8455 = vmatprep.subr.bf16.mxu0 0
  %8456 = vmatpush1.bf16.msra.mxu0 %v8109
  %8457 = vmatprep.subr.bf16.mxu0 0
  %8458 = vmatpush1.bf16.msra.mxu0 %v8110
  %8459 = vmatprep.subr.bf16.mxu0 0
  %8460 = vmatpush1.bf16.msra.mxu0 0
  %8461 = vmatprep.subr.bf16.mxu0 0
  %8462 = vmatpush1.bf16.msra.mxu0 0
  %8463 = vmatprep.subr.bf16.mxu0 0
  %8464 = vmatpush1.bf16.msra.mxu0 0
  %8465 = vmatprep.subr.bf16.mxu0 0
  %8466 = vmatpush1.bf16.msra.mxu0 0
  %8467 = vmatprep.subr.bf16.mxu0 0
  %8468 = vmatpush1.bf16.msra.mxu0 0
  %8469 = vmatprep.subr.bf16.mxu0 0
  %8470 = vmatpush1.bf16.msra.mxu0 0
  %8471 = vmatprep.subr.bf16.mxu0 0
  %8472 = vmatpush1.bf16.msra.mxu0 0
  %8473 = vmatprep.subr.bf16.mxu0 0
  %8474 = vmatpush1.bf16.msra.mxu0 0
  %8475 = vmatprep.mubr.bf16.mxu0 0
  %8476 = vmatmul.mubr.bf16.gmra.mrb[0].mxu0 %v7717
  %v8477 = vpop.f32.mrb[0].mxu0
  %v8478 = vadd.f32 %v8413, %v8477
  %v8479 = vpop.f32.mrb[0].mxu0
  %v8480 = vpop.f32.mrb[0].mxu0
  %v8481 = vadd.f32 %v8416, %v8480
  %v8482 = vpop.f32.mrb[0].mxu0
  %8483 = vmatprep.mubr.bf16.mxu0 0
  %8484 = vmatmul.mubr.bf16.gmra.mrb[0].mxu0 %v7726
  %v8485 = vpop.f32.mrb[0].mxu0
  %v8486 = vadd.f32 %v8421, %v8485
  %v8487 = vpop.f32.mrb[0].mxu0
  %v8488 = vpop.f32.mrb[0].mxu0
  %v8489 = vadd.f32 %v8424, %v8488
  %v8490 = vpop.f32.mrb[0].mxu0
  %8491 = vmatprep.mubr.bf16.mxu0 0
  %8492 = vmatmul.mubr.bf16.gmra.mrb[0].mxu0 %v7735
  %v8493 = vpop.f32.mrb[0].mxu0
  %v8494 = vadd.f32 %v8429, %v8493
  %v8495 = vpop.f32.mrb[0].mxu0
  %v8496 = vpop.f32.mrb[0].mxu0
  %v8497 = vadd.f32 %v8432, %v8496
  %v8498 = vpop.f32.mrb[0].mxu0
  %8499 = vmatprep.mubr.bf16.mxu0 0
  %8500 = vmatmul.mubr.bf16.gmra.mrb[0].mxu0 %v7744
  %v8501 = vpop.f32.mrb[0].mxu0
  %v8502 = vadd.f32 %v8437, %v8501
  %v8503 = vpop.f32.mrb[0].mxu0
  %v8504 = vpop.f32.mrb[0].mxu0
  %v8505 = vadd.f32 %v8440, %v8504
  %v8506 = vpop.f32.mrb[0].mxu0
  %8507 = vdwg.mxu0
  %v8516 = vcombine.high %v8478, %v8478
  %v8518 = vunpack.c.l.s4 1983009808
  %v8519 = vunpack.c.0.s8 %v8518
  %v8520 = vlaneseq
  %v8521 = vshrl.u32 %v8520, 7
  %v8522 = vsub.s32 %v8519, %v8521
  %v8523 = vrot.slane %v8478, %v8522
  %v8525 = vunpack.c.l.s4 1983009808
  %v8526 = vunpack.c.0.s8 %v8525
  %v8527 = vlaneseq
  %v8528 = vshrl.u32 %v8527, 7
  %v8529 = vsub.s32 %v8526, %v8528
  %v8530 = vrot.slane %v8516, %v8529
  %v8531 = vcombine.high %v8523, %v8523
  %v8532 = vcombine.high %v8530, %v8530
  %v8533 = vcombine.high %v8481, %v8481
  %v8535 = vunpack.c.l.s4 1983009808
  %v8536 = vunpack.c.0.s8 %v8535
  %v8537 = vlaneseq
  %v8538 = vshrl.u32 %v8537, 7
  %v8539 = vsub.s32 %v8536, %v8538
  %v8540 = vrot.slane %v8481, %v8539
  %v8542 = vunpack.c.l.s4 1983009808
  %v8543 = vunpack.c.0.s8 %v8542
  %v8544 = vlaneseq
  %v8545 = vshrl.u32 %v8544, 7
  %v8546 = vsub.s32 %v8543, %v8545
  %v8547 = vrot.slane %v8533, %v8546
  %v8548 = vcombine.high %v8540, %v8540
  %v8549 = vcombine.high %v8547, %v8547
  %v8550 = vcombine.high %v8486, %v8486
  %v8552 = vunpack.c.l.s4 1983009808
  %v8553 = vunpack.c.0.s8 %v8552
  %v8554 = vlaneseq
  %v8555 = vshrl.u32 %v8554, 7
  %v8556 = vsub.s32 %v8553, %v8555
  %v8557 = vrot.slane %v8486, %v8556
  %v8559 = vunpack.c.l.s4 1983009808
  %v8560 = vunpack.c.0.s8 %v8559
  %v8561 = vlaneseq
  %v8562 = vshrl.u32 %v8561, 7
  %v8563 = vsub.s32 %v8560, %v8562
  %v8564 = vrot.slane %v8550, %v8563
  %v8565 = vcombine.high %v8557, %v8557
  %v8566 = vcombine.high %v8564, %v8564
  %v8567 = vcombine.high %v8489, %v8489
  %v8569 = vunpack.c.l.s4 1983009808
  %v8570 = vunpack.c.0.s8 %v8569
  %v8571 = vlaneseq
  %v8572 = vshrl.u32 %v8571, 7
  %v8573 = vsub.s32 %v8570, %v8572
  %v8574 = vrot.slane %v8489, %v8573
  %v8576 = vunpack.c.l.s4 1983009808
  %v8577 = vunpack.c.0.s8 %v8576
  %v8578 = vlaneseq
  %v8579 = vshrl.u32 %v8578, 7
  %v8580 = vsub.s32 %v8577, %v8579
  %v8581 = vrot.slane %v8567, %v8580
  %v8582 = vcombine.high %v8574, %v8574
  %v8583 = vcombine.high %v8581, %v8581
  %v8584 = vcombine.high %v8494, %v8494
  %v8586 = vunpack.c.l.s4 1983009808
  %v8587 = vunpack.c.0.s8 %v8586
  %v8588 = vlaneseq
  %v8589 = vshrl.u32 %v8588, 7
  %v8590 = vsub.s32 %v8587, %v8589
  %v8591 = vrot.slane %v8494, %v8590
  %v8593 = vunpack.c.l.s4 1983009808
  %v8594 = vunpack.c.0.s8 %v8593
  %v8595 = vlaneseq
  %v8596 = vshrl.u32 %v8595, 7
  %v8597 = vsub.s32 %v8594, %v8596
  %v8598 = vrot.slane %v8584, %v8597
  %v8599 = vcombine.high %v8591, %v8591
  %v8600 = vcombine.high %v8598, %v8598
  %v8601 = vcombine.high %v8497, %v8497
  %v8603 = vunpack.c.l.s4 1983009808
  %v8604 = vunpack.c.0.s8 %v8603
  %v8605 = vlaneseq
  %v8606 = vshrl.u32 %v8605, 7
  %v8607 = vsub.s32 %v8604, %v8606
  %v8608 = vrot.slane %v8497, %v8607
  %v8610 = vunpack.c.l.s4 1983009808
  %v8611 = vunpack.c.0.s8 %v8610
  %v8612 = vlaneseq
  %v8613 = vshrl.u32 %v8612, 7
  %v8614 = vsub.s32 %v8611, %v8613
  %v8615 = vrot.slane %v8601, %v8614
  %v8616 = vcombine.high %v8608, %v8608
  %v8617 = vcombine.high %v8615, %v8615
  %v8618 = vcombine.high %v8502, %v8502
  %v8620 = vunpack.c.l.s4 1983009808
  %v8621 = vunpack.c.0.s8 %v8620
  %v8622 = vlaneseq
  %v8623 = vshrl.u32 %v8622, 7
  %v8624 = vsub.s32 %v8621, %v8623
  %v8625 = vrot.slane %v8502, %v8624
  %v8627 = vunpack.c.l.s4 1983009808
  %v8628 = vunpack.c.0.s8 %v8627
  %v8629 = vlaneseq
  %v8630 = vshrl.u32 %v8629, 7
  %v8631 = vsub.s32 %v8628, %v8630
  %v8632 = vrot.slane %v8618, %v8631
  %v8633 = vcombine.high %v8625, %v8625
  %v8634 = vcombine.high %v8632, %v8632
  %v8635 = vcombine.high %v8505, %v8505
  %v8637 = vunpack.c.l.s4 1983009808
  %v8638 = vunpack.c.0.s8 %v8637
  %v8639 = vlaneseq
  %v8640 = vshrl.u32 %v8639, 7
  %v8641 = vsub.s32 %v8638, %v8640
  %v8642 = vrot.slane %v8505, %v8641
  %v8644 = vunpack.c.l.s4 1983009808
  %v8645 = vunpack.c.0.s8 %v8644
  %v8646 = vlaneseq
  %v8647 = vshrl.u32 %v8646, 7
  %v8648 = vsub.s32 %v8645, %v8647
  %v8649 = vrot.slane %v8635, %v8648
  %v8650 = vcombine.high %v8642, %v8642
  %v8651 = vcombine.high %v8649, %v8649
  %v8684 = vadd.f32 %v8523, %v106
  %v8685 = vadd.f32 %v8531, %v107
  %v8686 = vadd.f32 %v8530, %v108
  %v8687 = vadd.f32 %v8532, %v109
  %v8688 = vadd.f32 %v8540, %v110
  %v8689 = vadd.f32 %v8548, %v111
  %v8690 = vadd.f32 %v8547, %v112
  %v8691 = vadd.f32 %v8549, %v113
  %v8692 = vadd.f32 %v8557, %v114
  %v8693 = vadd.f32 %v8565, %v115
  %v8694 = vadd.f32 %v8564, %v116
  %v8695 = vadd.f32 %v8566, %v117
  %v8696 = vadd.f32 %v8574, %v118
  %v8697 = vadd.f32 %v8582, %v119
  %v8698 = vadd.f32 %v8581, %v120
  %v8699 = vadd.f32 %v8583, %v121
  %v8700 = vadd.f32 %v8591, %v122
  %v8701 = vadd.f32 %v8599, %v123
  %v8702 = vadd.f32 %v8598, %v124
  %v8703 = vadd.f32 %v8600, %v125
  %v8704 = vadd.f32 %v8608, %v126
  %v8705 = vadd.f32 %v8616, %v127
  %v8706 = vadd.f32 %v8615, %v128
  %v8707 = vadd.f32 %v8617, %v129
  %v8708 = vadd.f32 %v8625, %v130
  %v8709 = vadd.f32 %v8633, %v131
  %v8710 = vadd.f32 %v8632, %v132
  %v8711 = vadd.f32 %v8634, %v133
  %v8712 = vadd.f32 %v8642, %v134
  %v8713 = vadd.f32 %v8650, %v135
  %v8714 = vadd.f32 %v8649, %v136
  %v8715 = vadd.f32 %v8651, %v137
  %8716 = vst [vmem:[%s10] sm:$0x3] %v8684
  %8717 = vst [vmem:[%s10 + $0x2] sm:$0x3] %v8685
  %8718 = vst [vmem:[%s10 + $0x4] sm:$0x3] %v8686
  %8719 = vst [vmem:[%s10 + $0x6] sm:$0x3] %v8687
  %8720 = vst [vmem:[%s10 + $0x8] sm:$0x3] %v8688
  %8721 = vst [vmem:[%s10 + $0xa] sm:$0x3] %v8689
  %8722 = vst [vmem:[%s10 + $0xc] sm:$0x3] %v8690
  %8723 = vst [vmem:[%s10 + $0xe] sm:$0x3] %v8691
  %8724 = vst [vmem:[%s10 + $0x10] sm:$0x3] %v8692
  %8725 = vst [vmem:[%s10 + $0x12] sm:$0x3] %v8693
  %8726 = vst [vmem:[%s10 + $0x14] sm:$0x3] %v8694
  %8727 = vst [vmem:[%s10 + $0x16] sm:$0x3] %v8695
  %8728 = vst [vmem:[%s10 + $0x18] sm:$0x3] %v8696
  %8729 = vst [vmem:[%s10 + $0x1a] sm:$0x3] %v8697
  %8730 = vst [vmem:[%s10 + $0x1c] sm:$0x3] %v8698
  %8731 = vst [vmem:[%s10 + $0x1e] sm:$0x3] %v8699
  %8732 = vst [vmem:[%s10 + $0x20] sm:$0x3] %v8700
  %8733 = vst [vmem:[%s10 + $0x22] sm:$0x3] %v8701
  %8734 = vst [vmem:[%s10 + $0x24] sm:$0x3] %v8702
  %8735 = vst [vmem:[%s10 + $0x26] sm:$0x3] %v8703
  %8736 = vst [vmem:[%s10 + $0x28] sm:$0x3] %v8704
  %8737 = vst [vmem:[%s10 + $0x2a] sm:$0x3] %v8705
  %8738 = vst [vmem:[%s10 + $0x2c] sm:$0x3] %v8706
  %8739 = vst [vmem:[%s10 + $0x2e] sm:$0x3] %v8707
  %8740 = vst [vmem:[%s10 + $0x30] sm:$0x3] %v8708
  %8741 = vst [vmem:[%s10 + $0x32] sm:$0x3] %v8709
  %8742 = vst [vmem:[%s10 + $0x34] sm:$0x3] %v8710
  %8743 = vst [vmem:[%s10 + $0x36] sm:$0x3] %v8711
  %8744 = vst [vmem:[%s10 + $0x38] sm:$0x3] %v8712
  %8745 = vst [vmem:[%s10 + $0x3a] sm:$0x3] %v8713
  %8746 = vst [vmem:[%s10 + $0x3c] sm:$0x3] %v8714
  %8747 = vst [vmem:[%s10 + $0x3e] sm:$0x3] %v8715
  // Predicated region
  $region42: #{pre_activation_residual_block.1} parent=0 // pred_check
    _
  $region43: #{pre_activation_residual_block.1} parent=0 // pred_check_branch
    %8749 = sbr.rel (0) target = $region45
  $region44: #{pre_activation_residual_block.1} parent=0 // pred_region
    _
  $region45: #{pre_activation_residual_block.1} parent=0 // pred_fallthru
    _
  // Predicated region
  $region46: #{pre_activation_residual_block.1} parent=0 // pred_check
    _
  $region47: #{pre_activation_residual_block.1} parent=0 // pred_check_branch
    %8751 = sbr.rel (0) target = $region49
  $region48: #{pre_activation_residual_block.1} parent=0 // pred_region
    _
  $region49: #{pre_activation_residual_block.1} parent=0 // pred_fallthru
    _

</llo_original>
